<compile_context>
chip_gen: v5e
topology: v5e:2x2
jax: 0.10.0
libtpu: 0.0.40
codegen_flags: <defaults>
</compile_context>

<pallas_src>
import functools
import numpy as np
import jax
import jax.numpy as jnp
from jax.experimental import pallas as pl
from jax.experimental.pallas import tpu as pltpu

IN_CHANNELS = 32
OUT_CHANNELS = 64
KERNEL = 3
STRIDE = 2
PADDING = 1
OUTPUT_PADDING = 1
LN_EPS = 1e-5


def _erf(x):
    # Abramowitz & Stegun 7.1.26 rational approximation, |err| < 1.5e-7.
    a1, a2, a3, a4, a5 = (0.254829592, -0.284496736, 1.421413741,
                          -1.453152027, 1.061405429)
    p = 0.3275911
    s = jnp.where(x < 0.0, -1.0, 1.0)
    ax = jnp.abs(x)
    t = 1.0 / (1.0 + p * ax)
    poly = ((((a5 * t + a4) * t + a3) * t + a2) * t + a1) * t
    return s * (1.0 - poly * jnp.exp(-ax * ax))


def _gelu_exact(x):
    return 0.5 * x * (1.0 + _erf(x * (1.0 / np.sqrt(2.0))))


def _fused_kernel(x_ref, xn_ref, ws_ref, wn_ref, gt_ref, bt_ref, out_ref,
                  *, Dblk, Hin, Win, Cout):
    # grid = (N, NB); step (n, b) consumes input depth slices [b*Dblk, (b+1)*Dblk)
    # plus a one-slice lookahead, and writes pooled output depths [b*Dblk, (b+1)*Dblk).
    HW = Hin * Win
    M = Dblk * HW
    MH = Dblk * Hin
    C2 = 2 * Cout
    KK = x_ref.shape[-1]                      # 4 * Cin (lane-dense K)

    # ---- LHS: this block's slices, rows r = (d, ih, iw) ---------------------------
    xm = x_ref[0].reshape(M, KK)                                   # (M, 4*Cin) bf16
    # Shifted LHS (slice d+1 for every pooled depth d of the block): rows 1..Dblk-1
    # of this block followed by the first slice of the next block (zero past Din).
    if Dblk > 1:
        xs = jnp.concatenate([xm[HW:], xn_ref[0, 0]], axis=0)      # (M, 4*Cin) bf16
    else:
        xs = xn_ref[0, 0]

    # ---- two MXU passes: M = Dblk*HW rows, K = 4*Cin, N = 8*Cout / 4*Cout ---------
    own = jnp.dot(xm, ws_ref[...], preferred_element_type=jnp.float32)   # (M, 8*Cout)
    nxt = jnp.dot(xs, wn_ref[...], preferred_element_type=jnp.float32)   # (M, 4*Cout)

    # ---- LayerNorm(width=2*Win) + avg-pool(2,2,2) + GELU, vectorized over block ---
    inv_n = 1.0 / (2.0 * Win)
    gt = gt_ref[...]                          # (Win, 2*Cout): [gamma_even | gamma_odd]/8
    acc = jnp.zeros((MH, Win, Cout), jnp.float32)
    # 4 (depth-parity, height-parity) groups, each 2*Cout lanes = [rw=0 | rw=1].
    for g in range(4):
        blk = own[:, g * C2:(g + 1) * C2]
        if g >= 2:                            # odd output depth: add kd=0 taps (slice d+1)
            blk = blk + nxt[:, (g - 2) * C2:(g - 1) * C2]
        b3 = blk.reshape(MH, Win, C2)
        ssum = jnp.sum(b3, axis=1)                                   # (MH, 2*Cout)
        mean = (ssum[:, :Cout] + ssum[:, Cout:]) * inv_n             # (MH, Cout)
        mean2 = jnp.concatenate([mean, mean], axis=-1)
        cent = b3 - mean2[:, None, :]
        vsum = jnp.sum(cent * cent, axis=1)
        var = (vsum[:, :Cout] + vsum[:, Cout:]) * inv_n
        inv = jax.lax.rsqrt(var + LN_EPS)
        inv2 = jnp.concatenate([inv, inv], axis=-1)
        ln = cent * inv2[:, None, :] * gt[None]                      # gamma * 1/8 applied
        acc = acc + ln[:, :, :Cout] + ln[:, :, Cout:]                # fold rw parity (pool)
    pooled = acc + bt_ref[...][None]                                 # beta: (b_e + b_o)/2
    out_ref[0] = _gelu_exact(pooled).reshape(Dblk, HW, Cout).astype(out_ref.dtype)


def model_forward(x, conv_w, conv_b, sum_weight, norm_w, norm_b, *, depth_block=None):
    # x: (N, Cin, Din, Hin, Win)  -- PyTorch NCDHW.
    # NOTE: conv_b and sum_weight are constant along the normalized (width) axis and
    # therefore cancel exactly inside LayerNorm; they are intentionally unused here.
    del conv_b, sum_weight
    N, Cin, Din, Hin, Win = x.shape
    Cout = conv_w.shape[1]
    HW = Hin * Win
    Wo = STRIDE * Win
    assert norm_w.shape == (Wo,), "LayerNorm normalizes the transposed-conv width axis"
    assert HW % 8 == 0

    # Depth block size: target M = Dblk*HW ~ 512-1024 rows per MXU pass.
    if depth_block is None:
        depth_block = max(1, min(Din, max(1, 1024 // HW)))
    Dblk = depth_block
    NB = pl.cdiv(Din, Dblk)
    Dpad = NB * Dblk

    # ---- LHS precompute (XLA): channels-last + 3 shifted copies, lane-dense K=4*Cin.
    x5 = jnp.transpose(x, (0, 2, 3, 4, 1))                        # (N, D, H, W, Cin)
    xh = jnp.concatenate([x5[:, :, 1:], jnp.zeros_like(x5[:, :, :1])], axis=2)
    xw = jnp.concatenate([x5[:, :, :, 1:], jnp.zeros_like(x5[:, :, :, :1])], axis=3)
    xhw = jnp.concatenate([xh[:, :, :, 1:], jnp.zeros_like(xh[:, :, :, :1])], axis=3)
    xcat = jnp.concatenate([x5, xh, xw, xhw], axis=-1)            # (N, D, H, W, 4*Cin)
    xcat = xcat.reshape(N, Din, HW, 4 * Cin).astype(jnp.bfloat16)
    # Zero-pad depth: round up to the block grid + 1 lookahead slice for kd=0 taps.
    xcat = jnp.pad(xcat, ((0, 0), (0, Dpad + 1 - Din), (0, 0), (0, 0)))

    # ---- conv-transpose weights -> block matrices (27 taps -> 2 MXU RHS blocks) ----
    # Row order = [x0, xh, xw, xhw]; column groups = (rh, rw) = (0,0),(0,1),(1,0),(1,1).
    w_r = jnp.transpose(conv_w, (2, 3, 4, 0, 1)).astype(jnp.float32)   # (kd,kh,kw,Cin,Cout)
    zero = jnp.zeros((Cin, Cout), jnp.float32)

    def grp(x0=None, xh_=None, xw_=None, xhw_=None):
        rows = [x0 if x0 is not None else zero,
                xh_ if xh_ is not None else zero,
                xw_ if xw_ is not None else zero,
                xhw_ if xhw_ is not None else zero]
        return jnp.concatenate(rows, axis=0)                      # (4*Cin, Cout)

    def tap_block(kd):
        w = lambda kh, kw: w_r[kd, kh, kw]
        g00 = grp(x0=w(1, 1))
        g01 = grp(x0=w(1, 2), xw_=w(1, 0))
        g10 = grp(x0=w(2, 1), xh_=w(0, 1))
        g11 = grp(x0=w(2, 2), xh_=w(0, 2), xw_=w(2, 0), xhw_=w(0, 0))
        return jnp.concatenate([g00, g01, g10, g11], axis=1)      # (4*Cin, 4*Cout)

    w_self = jnp.concatenate([tap_block(1), tap_block(2)], axis=1).astype(jnp.bfloat16)
    w_next = tap_block(0).astype(jnp.bfloat16)                    # (4*Cin, 4*Cout)

    # ---- dense LayerNorm affine tables: gamma split by output-width parity, with the
    # 1/8 avg-pool factor folded in; beta folded across the two width parities. -------
    g_e = jnp.broadcast_to(norm_w[0::2].astype(jnp.float32)[:, None], (Win, Cout))
    g_o = jnp.broadcast_to(norm_w[1::2].astype(jnp.float32)[:, None], (Win, Cout))
    b_e = jnp.broadcast_to(norm_b[0::2].astype(jnp.float32)[:, None], (Win, Cout))
    b_o = jnp.broadcast_to(norm_b[1::2].astype(jnp.float32)[:, None], (Win, Cout))
    gt = jnp.concatenate([g_e, g_o], axis=1) * 0.125              # (Win, 2*Cout)
    bt = (b_e + b_o) * 0.5                                        # (Win, Cout)

    kernel = functools.partial(_fused_kernel, Dblk=Dblk, Hin=Hin, Win=Win, Cout=Cout)
    out = pl.pallas_call(
        kernel,
        out_shape=jax.ShapeDtypeStruct((N, Dpad, HW, Cout), jnp.float32),
        grid=(N, NB),
        in_specs=[
            pl.BlockSpec((1, Dblk, HW, 4 * Cin), lambda n, b: (n, b, 0, 0)),      # block slices
            pl.BlockSpec((1, 1, HW, 4 * Cin),
                         lambda n, b: (n, (b + 1) * Dblk, 0, 0)),                 # lookahead slice
            pl.BlockSpec((4 * Cin, 8 * Cout), lambda n, b: (0, 0)),               # w_self
            pl.BlockSpec((4 * Cin, 4 * Cout), lambda n, b: (0, 0)),               # w_next
            pl.BlockSpec((Win, 2 * Cout), lambda n, b: (0, 0)),                   # gamma table
            pl.BlockSpec((Win, Cout), lambda n, b: (0, 0)),                       # beta table
        ],
        out_specs=pl.BlockSpec((1, Dblk, HW, Cout), lambda n, b: (n, b, 0, 0)),
        compiler_params=pltpu.CompilerParams(
            dimension_semantics=("parallel", "parallel"),
            vmem_limit_bytes=32 * 1024 * 1024),
    )(xcat, xcat, w_self, w_next, gt, bt)

    # (N, Dpad, HW, Cout) -> (N, Cout, Din, Hin, Win)  (NCDHW, matches PyTorch)
    out = out.reshape(N, Dpad, Hin, Win, Cout)[:, :Din]
    return jnp.transpose(out, (0, 4, 1, 2, 3))


def reference_forward(x, conv_w, conv_b, sum_weight, norm_w, norm_b):
    # Pure-JAX reference (outside Pallas) for a correctness check.
    w_conv = jnp.transpose(jnp.flip(conv_w, axis=(2, 3, 4)), (1, 0, 2, 3, 4))  # OIDHW
    lo = KERNEL - 1 - PADDING
    hi = KERNEL - 1 - PADDING + OUTPUT_PADDING
    y = jax.lax.conv_general_dilated(
        x.astype(jnp.float32), w_conv.astype(jnp.float32),
        window_strides=(1, 1, 1), padding=((lo, hi),) * 3,
        lhs_dilation=(STRIDE,) * 3,
        dimension_numbers=("NCDHW", "OIDHW", "NCDHW"),
        precision=jax.lax.Precision.HIGHEST)
    y = y + conv_b.reshape(1, -1, 1, 1, 1) + sum_weight
    mean = jnp.mean(y, axis=-1, keepdims=True)
    var = jnp.mean((y - mean) ** 2, axis=-1, keepdims=True)
    y = (y - mean) * jax.lax.rsqrt(var + LN_EPS) * norm_w + norm_b
    N, C, D, H, W = y.shape
    y = y.reshape(N, C, D // 2, 2, H // 2, 2, W // 2, 2).mean(axis=(3, 5, 7))
    return jax.nn.gelu(y, approximate=False)


if __name__ == "__main__":
    key = jax.random.PRNGKey(0)
    k_x, k_w, k_b, k_g, k_bt = jax.random.split(key, 5)

    # Small shapes; Win=32 so the conv-transpose output width is 64 == norm_shape[0],
    # exactly as the original module requires (LayerNorm normalizes the width axis).
    N, Din, Hin, Win = 2, 4, 4, 32
    x = jax.random.normal(k_x, (N, IN_CHANNELS, Din, Hin, Win), jnp.float32)
    conv_w = 0.05 * jax.random.normal(
        k_w, (IN_CHANNELS, OUT_CHANNELS, KERNEL, KERNEL, KERNEL), jnp.float32)
    conv_b = 0.05 * jax.random.normal(k_b, (OUT_CHANNELS,), jnp.float32)
    sum_weight = jnp.float32(1.0)
    norm_w = 1.0 + 0.02 * jax.random.normal(k_g, (OUT_CHANNELS,), jnp.float32)
    norm_b = 0.02 * jax.random.normal(k_bt, (OUT_CHANNELS,), jnp.float32)

    fwd = jax.jit(model_forward)
    out = jax.block_until_ready(fwd(x, conv_w, conv_b, sum_weight, norm_w, norm_b))

    ref = reference_forward(x, conv_w, conv_b, sum_weight, norm_w, norm_b)
    # bf16 activations/weights with f32 MXU accumulation; LN stats in f32.
    np.testing.assert_allclose(np.asarray(out), np.asarray(ref), rtol=2e-2, atol=2e-2)
    print("KERNEL_OK")
</pallas_src>

<mosaic_0001>
module attributes {stable_mosaic.version = 11 : i64} {
  func.func @_fused_kernel(%arg0: i32, %arg1: i32, %arg2: memref<1x4x128x128xbf16, #tpu.memory_space<vmem>>, %arg3: memref<1x1x128x128xbf16, #tpu.memory_space<vmem>>, %arg4: memref<128x512xbf16, #tpu.memory_space<vmem>>, %arg5: memref<128x256xbf16, #tpu.memory_space<vmem>>, %arg6: memref<32x128xf32, #tpu.memory_space<vmem>>, %arg7: memref<32x64xf32, #tpu.memory_space<vmem>>, %arg8: memref<1x4x128x64xf32, #tpu.memory_space<vmem>>) attributes {dimension_semantics = [#tpu.dimension_semantics<parallel>, #tpu.dimension_semantics<parallel>], iteration_bounds = array<i64: 2, 1>, scalar_prefetch = 0 : i64, scratch_operands = 0 : i64, tpu.core_type = #tpu.core_type<tc>, window_params = [{transform_indices = @transform_0, window_bounds = array<i64: 1, 4, 128, 128>}, {transform_indices = @transform_1, window_bounds = array<i64: 1, 1, 128, 128>}, {pipeline_mode = #tpu.pipeline_mode<synchronous>, transform_indices = @transform_2, window_bounds = array<i64: 128, 512>}, {pipeline_mode = #tpu.pipeline_mode<synchronous>, transform_indices = @transform_3, window_bounds = array<i64: 128, 256>}, {pipeline_mode = #tpu.pipeline_mode<synchronous>, transform_indices = @transform_4, window_bounds = array<i64: 32, 128>}, {pipeline_mode = #tpu.pipeline_mode<synchronous>, transform_indices = @transform_5, window_bounds = array<i64: 32, 64>}, {transform_indices = @transform_6, window_bounds = array<i64: 1, 4, 128, 64>}]} {
    %c0 = arith.constant 0 : index
    %c0_0 = arith.constant 0 : index
    %c0_1 = arith.constant 0 : index
    %c0_2 = arith.constant 0 : index
    %0 = vector.load %arg2[%c0, %c0_0, %c0_1, %c0_2] : memref<1x4x128x128xbf16, #tpu.memory_space<vmem>>, vector<1x4x128x128xbf16>
    %1 = vector.shape_cast %0 : vector<1x4x128x128xbf16> to vector<4x128x128xbf16>
    %2 = vector.shape_cast %1 : vector<4x128x128xbf16> to vector<512x128xbf16>
    %3 = vector.extract_strided_slice %2 {offsets = [128, 0], sizes = [384, 128], strides = [1, 1]} : vector<512x128xbf16> to vector<384x128xbf16>
    %c0_3 = arith.constant 0 : index
    %c0_4 = arith.constant 0 : index
    %c0_5 = arith.constant 0 : index
    %c0_6 = arith.constant 0 : index
    %4 = vector.load %arg3[%c0_3, %c0_4, %c0_5, %c0_6] : memref<1x1x128x128xbf16, #tpu.memory_space<vmem>>, vector<1x1x128x128xbf16>
    %5 = vector.shape_cast %4 : vector<1x1x128x128xbf16> to vector<128x128xbf16>
    %6 = tpu.concatenate %3, %5 in 0 : vector<384x128xbf16>, vector<128x128xbf16> -> vector<512x128xbf16>
    %c0_7 = arith.constant 0 : index
    %c0_8 = arith.constant 0 : index
    %7 = vector.load %arg4[%c0_7, %c0_8] : memref<128x512xbf16, #tpu.memory_space<vmem>>, vector<128x512xbf16>
    %cst = arith.constant dense<0.000000e+00> : vector<512x512xf32>
    %8 = tpu.matmul %2, %7, %cst {dimension_numbers = #tpu.dot_dimension_numbers<[1], [0], [0], [1], [0, 0, 1, 1], [], []>} : vector<512x128xbf16>, vector<128x512xbf16>, vector<512x512xf32> -> vector<512x512xf32>
    %c0_9 = arith.constant 0 : index
    %c0_10 = arith.constant 0 : index
    %9 = vector.load %arg5[%c0_9, %c0_10] : memref<128x256xbf16, #tpu.memory_space<vmem>>, vector<128x256xbf16>
    %cst_11 = arith.constant dense<0.000000e+00> : vector<512x256xf32>
    %10 = tpu.matmul %6, %9, %cst_11 {dimension_numbers = #tpu.dot_dimension_numbers<[1], [0], [0], [1], [0, 0, 1, 1], [], []>} : vector<512x128xbf16>, vector<128x256xbf16>, vector<512x256xf32> -> vector<512x256xf32>
    %c0_12 = arith.constant 0 : index
    %c0_13 = arith.constant 0 : index
    %11 = vector.load %arg6[%c0_12, %c0_13] : memref<32x128xf32, #tpu.memory_space<vmem>>, vector<32x128xf32>
    %cst_14 = arith.constant 0.000000e+00 : f32
    %12 = vector.broadcast %cst_14 : f32 to vector<16x32x64xf32>
    %13 = vector.extract_strided_slice %8 {offsets = [0, 0], sizes = [512, 128], strides = [1, 1]} : vector<512x512xf32> to vector<512x128xf32>
    %14 = vector.shape_cast %13 : vector<512x128xf32> to vector<16x32x128xf32>
    %cst_15 = arith.constant dense<0.000000e+00> : vector<16x128xf32>
    %15 = vector.multi_reduction <add>, %14, %cst_15 [1] : vector<16x32x128xf32> to vector<16x128xf32>
    %16 = vector.extract_strided_slice %15 {offsets = [0, 0], sizes = [16, 64], strides = [1, 1]} : vector<16x128xf32> to vector<16x64xf32>
    %17 = vector.extract_strided_slice %15 {offsets = [0, 64], sizes = [16, 64], strides = [1, 1]} : vector<16x128xf32> to vector<16x64xf32>
    %18 = arith.addf %16, %17 : vector<16x64xf32>
    %cst_16 = arith.constant 1.562500e-02 : f32
    %19 = vector.broadcast %cst_16 : f32 to vector<16x64xf32>
    %20 = arith.mulf %18, %19 : vector<16x64xf32>
    %21 = tpu.concatenate %20, %20 in 1 : vector<16x64xf32>, vector<16x64xf32> -> vector<16x128xf32>
    %22 = vector.shape_cast %21 : vector<16x128xf32> to vector<16x1x128xf32>
    %23 = vector.broadcast %22 : vector<16x1x128xf32> to vector<16x32x128xf32>
    %24 = arith.subf %14, %23 : vector<16x32x128xf32>
    %25 = arith.mulf %24, %24 : vector<16x32x128xf32>
    %cst_17 = arith.constant dense<0.000000e+00> : vector<16x128xf32>
    %26 = vector.multi_reduction <add>, %25, %cst_17 [1] : vector<16x32x128xf32> to vector<16x128xf32>
    %27 = vector.extract_strided_slice %26 {offsets = [0, 0], sizes = [16, 64], strides = [1, 1]} : vector<16x128xf32> to vector<16x64xf32>
    %28 = vector.extract_strided_slice %26 {offsets = [0, 64], sizes = [16, 64], strides = [1, 1]} : vector<16x128xf32> to vector<16x64xf32>
    %29 = arith.addf %27, %28 : vector<16x64xf32>
    %cst_18 = arith.constant 1.562500e-02 : f32
    %30 = vector.broadcast %cst_18 : f32 to vector<16x64xf32>
    %31 = arith.mulf %29, %30 : vector<16x64xf32>
    %cst_19 = arith.constant 9.99999974E-6 : f32
    %32 = vector.broadcast %cst_19 : f32 to vector<16x64xf32>
    %33 = arith.addf %31, %32 : vector<16x64xf32>
    %34 = math.rsqrt %33 : vector<16x64xf32>
    %35 = tpu.concatenate %34, %34 in 1 : vector<16x64xf32>, vector<16x64xf32> -> vector<16x128xf32>
    %36 = vector.shape_cast %35 : vector<16x128xf32> to vector<16x1x128xf32>
    %37 = vector.broadcast %36 : vector<16x1x128xf32> to vector<16x32x128xf32>
    %38 = arith.mulf %24, %37 : vector<16x32x128xf32>
    %39 = vector.shape_cast %11 : vector<32x128xf32> to vector<1x32x128xf32>
    %40 = vector.broadcast %39 : vector<1x32x128xf32> to vector<16x32x128xf32>
    %41 = arith.mulf %38, %40 : vector<16x32x128xf32>
    %42 = vector.extract_strided_slice %41 {offsets = [0, 0, 0], sizes = [16, 32, 64], strides = [1, 1, 1]} : vector<16x32x128xf32> to vector<16x32x64xf32>
    %43 = arith.addf %12, %42 : vector<16x32x64xf32>
    %44 = vector.extract_strided_slice %41 {offsets = [0, 0, 64], sizes = [16, 32, 64], strides = [1, 1, 1]} : vector<16x32x128xf32> to vector<16x32x64xf32>
    %45 = arith.addf %43, %44 : vector<16x32x64xf32>
    %46 = vector.extract_strided_slice %8 {offsets = [0, 128], sizes = [512, 128], strides = [1, 1]} : vector<512x512xf32> to vector<512x128xf32>
    %47 = vector.shape_cast %46 : vector<512x128xf32> to vector<16x32x128xf32>
    %cst_20 = arith.constant dense<0.000000e+00> : vector<16x128xf32>
    %48 = vector.multi_reduction <add>, %47, %cst_20 [1] : vector<16x32x128xf32> to vector<16x128xf32>
    %49 = vector.extract_strided_slice %48 {offsets = [0, 0], sizes = [16, 64], strides = [1, 1]} : vector<16x128xf32> to vector<16x64xf32>
    %50 = vector.extract_strided_slice %48 {offsets = [0, 64], sizes = [16, 64], strides = [1, 1]} : vector<16x128xf32> to vector<16x64xf32>
    %51 = arith.addf %49, %50 : vector<16x64xf32>
    %cst_21 = arith.constant 1.562500e-02 : f32
    %52 = vector.broadcast %cst_21 : f32 to vector<16x64xf32>
    %53 = arith.mulf %51, %52 : vector<16x64xf32>
    %54 = tpu.concatenate %53, %53 in 1 : vector<16x64xf32>, vector<16x64xf32> -> vector<16x128xf32>
    %55 = vector.shape_cast %54 : vector<16x128xf32> to vector<16x1x128xf32>
    %56 = vector.broadcast %55 : vector<16x1x128xf32> to vector<16x32x128xf32>
    %57 = arith.subf %47, %56 : vector<16x32x128xf32>
    %58 = arith.mulf %57, %57 : vector<16x32x128xf32>
    %cst_22 = arith.constant dense<0.000000e+00> : vector<16x128xf32>
    %59 = vector.multi_reduction <add>, %58, %cst_22 [1] : vector<16x32x128xf32> to vector<16x128xf32>
    %60 = vector.extract_strided_slice %59 {offsets = [0, 0], sizes = [16, 64], strides = [1, 1]} : vector<16x128xf32> to vector<16x64xf32>
    %61 = vector.extract_strided_slice %59 {offsets = [0, 64], sizes = [16, 64], strides = [1, 1]} : vector<16x128xf32> to vector<16x64xf32>
    %62 = arith.addf %60, %61 : vector<16x64xf32>
    %cst_23 = arith.constant 1.562500e-02 : f32
    %63 = vector.broadcast %cst_23 : f32 to vector<16x64xf32>
    %64 = arith.mulf %62, %63 : vector<16x64xf32>
    %cst_24 = arith.constant 9.99999974E-6 : f32
    %65 = vector.broadcast %cst_24 : f32 to vector<16x64xf32>
    %66 = arith.addf %64, %65 : vector<16x64xf32>
    %67 = math.rsqrt %66 : vector<16x64xf32>
    %68 = tpu.concatenate %67, %67 in 1 : vector<16x64xf32>, vector<16x64xf32> -> vector<16x128xf32>
    %69 = vector.shape_cast %68 : vector<16x128xf32> to vector<16x1x128xf32>
    %70 = vector.broadcast %69 : vector<16x1x128xf32> to vector<16x32x128xf32>
    %71 = arith.mulf %57, %70 : vector<16x32x128xf32>
    %72 = vector.shape_cast %11 : vector<32x128xf32> to vector<1x32x128xf32>
    %73 = vector.broadcast %72 : vector<1x32x128xf32> to vector<16x32x128xf32>
    %74 = arith.mulf %71, %73 : vector<16x32x128xf32>
    %75 = vector.extract_strided_slice %74 {offsets = [0, 0, 0], sizes = [16, 32, 64], strides = [1, 1, 1]} : vector<16x32x128xf32> to vector<16x32x64xf32>
    %76 = arith.addf %45, %75 : vector<16x32x64xf32>
    %77 = vector.extract_strided_slice %74 {offsets = [0, 0, 64], sizes = [16, 32, 64], strides = [1, 1, 1]} : vector<16x32x128xf32> to vector<16x32x64xf32>
    %78 = arith.addf %76, %77 : vector<16x32x64xf32>
    %79 = vector.extract_strided_slice %8 {offsets = [0, 256], sizes = [512, 128], strides = [1, 1]} : vector<512x512xf32> to vector<512x128xf32>
    %80 = vector.extract_strided_slice %10 {offsets = [0, 0], sizes = [512, 128], strides = [1, 1]} : vector<512x256xf32> to vector<512x128xf32>
    %81 = arith.addf %79, %80 : vector<512x128xf32>
    %82 = vector.shape_cast %81 : vector<512x128xf32> to vector<16x32x128xf32>
    %cst_25 = arith.constant dense<0.000000e+00> : vector<16x128xf32>
    %83 = vector.multi_reduction <add>, %82, %cst_25 [1] : vector<16x32x128xf32> to vector<16x128xf32>
    %84 = vector.extract_strided_slice %83 {offsets = [0, 0], sizes = [16, 64], strides = [1, 1]} : vector<16x128xf32> to vector<16x64xf32>
    %85 = vector.extract_strided_slice %83 {offsets = [0, 64], sizes = [16, 64], strides = [1, 1]} : vector<16x128xf32> to vector<16x64xf32>
    %86 = arith.addf %84, %85 : vector<16x64xf32>
    %cst_26 = arith.constant 1.562500e-02 : f32
    %87 = vector.broadcast %cst_26 : f32 to vector<16x64xf32>
    %88 = arith.mulf %86, %87 : vector<16x64xf32>
    %89 = tpu.concatenate %88, %88 in 1 : vector<16x64xf32>, vector<16x64xf32> -> vector<16x128xf32>
    %90 = vector.shape_cast %89 : vector<16x128xf32> to vector<16x1x128xf32>
    %91 = vector.broadcast %90 : vector<16x1x128xf32> to vector<16x32x128xf32>
    %92 = arith.subf %82, %91 : vector<16x32x128xf32>
    %93 = arith.mulf %92, %92 : vector<16x32x128xf32>
    %cst_27 = arith.constant dense<0.000000e+00> : vector<16x128xf32>
    %94 = vector.multi_reduction <add>, %93, %cst_27 [1] : vector<16x32x128xf32> to vector<16x128xf32>
    %95 = vector.extract_strided_slice %94 {offsets = [0, 0], sizes = [16, 64], strides = [1, 1]} : vector<16x128xf32> to vector<16x64xf32>
    %96 = vector.extract_strided_slice %94 {offsets = [0, 64], sizes = [16, 64], strides = [1, 1]} : vector<16x128xf32> to vector<16x64xf32>
    %97 = arith.addf %95, %96 : vector<16x64xf32>
    %cst_28 = arith.constant 1.562500e-02 : f32
    %98 = vector.broadcast %cst_28 : f32 to vector<16x64xf32>
    %99 = arith.mulf %97, %98 : vector<16x64xf32>
    %cst_29 = arith.constant 9.99999974E-6 : f32
    %100 = vector.broadcast %cst_29 : f32 to vector<16x64xf32>
    %101 = arith.addf %99, %100 : vector<16x64xf32>
    %102 = math.rsqrt %101 : vector<16x64xf32>
    %103 = tpu.concatenate %102, %102 in 1 : vector<16x64xf32>, vector<16x64xf32> -> vector<16x128xf32>
    %104 = vector.shape_cast %103 : vector<16x128xf32> to vector<16x1x128xf32>
    %105 = vector.broadcast %104 : vector<16x1x128xf32> to vector<16x32x128xf32>
    %106 = arith.mulf %92, %105 : vector<16x32x128xf32>
    %107 = vector.shape_cast %11 : vector<32x128xf32> to vector<1x32x128xf32>
    %108 = vector.broadcast %107 : vector<1x32x128xf32> to vector<16x32x128xf32>
    %109 = arith.mulf %106, %108 : vector<16x32x128xf32>
    %110 = vector.extract_strided_slice %109 {offsets = [0, 0, 0], sizes = [16, 32, 64], strides = [1, 1, 1]} : vector<16x32x128xf32> to vector<16x32x64xf32>
    %111 = arith.addf %78, %110 : vector<16x32x64xf32>
    %112 = vector.extract_strided_slice %109 {offsets = [0, 0, 64], sizes = [16, 32, 64], strides = [1, 1, 1]} : vector<16x32x128xf32> to vector<16x32x64xf32>
    %113 = arith.addf %111, %112 : vector<16x32x64xf32>
    %114 = vector.extract_strided_slice %8 {offsets = [0, 384], sizes = [512, 128], strides = [1, 1]} : vector<512x512xf32> to vector<512x128xf32>
    %115 = vector.extract_strided_slice %10 {offsets = [0, 128], sizes = [512, 128], strides = [1, 1]} : vector<512x256xf32> to vector<512x128xf32>
    %116 = arith.addf %114, %115 : vector<512x128xf32>
    %117 = vector.shape_cast %116 : vector<512x128xf32> to vector<16x32x128xf32>
    %cst_30 = arith.constant dense<0.000000e+00> : vector<16x128xf32>
    %118 = vector.multi_reduction <add>, %117, %cst_30 [1] : vector<16x32x128xf32> to vector<16x128xf32>
    %119 = vector.extract_strided_slice %118 {offsets = [0, 0], sizes = [16, 64], strides = [1, 1]} : vector<16x128xf32> to vector<16x64xf32>
    %120 = vector.extract_strided_slice %118 {offsets = [0, 64], sizes = [16, 64], strides = [1, 1]} : vector<16x128xf32> to vector<16x64xf32>
    %121 = arith.addf %119, %120 : vector<16x64xf32>
    %cst_31 = arith.constant 1.562500e-02 : f32
    %122 = vector.broadcast %cst_31 : f32 to vector<16x64xf32>
    %123 = arith.mulf %121, %122 : vector<16x64xf32>
    %124 = tpu.concatenate %123, %123 in 1 : vector<16x64xf32>, vector<16x64xf32> -> vector<16x128xf32>
    %125 = vector.shape_cast %124 : vector<16x128xf32> to vector<16x1x128xf32>
    %126 = vector.broadcast %125 : vector<16x1x128xf32> to vector<16x32x128xf32>
    %127 = arith.subf %117, %126 : vector<16x32x128xf32>
    %128 = arith.mulf %127, %127 : vector<16x32x128xf32>
    %cst_32 = arith.constant dense<0.000000e+00> : vector<16x128xf32>
    %129 = vector.multi_reduction <add>, %128, %cst_32 [1] : vector<16x32x128xf32> to vector<16x128xf32>
    %130 = vector.extract_strided_slice %129 {offsets = [0, 0], sizes = [16, 64], strides = [1, 1]} : vector<16x128xf32> to vector<16x64xf32>
    %131 = vector.extract_strided_slice %129 {offsets = [0, 64], sizes = [16, 64], strides = [1, 1]} : vector<16x128xf32> to vector<16x64xf32>
    %132 = arith.addf %130, %131 : vector<16x64xf32>
    %cst_33 = arith.constant 1.562500e-02 : f32
    %133 = vector.broadcast %cst_33 : f32 to vector<16x64xf32>
    %134 = arith.mulf %132, %133 : vector<16x64xf32>
    %cst_34 = arith.constant 9.99999974E-6 : f32
    %135 = vector.broadcast %cst_34 : f32 to vector<16x64xf32>
    %136 = arith.addf %134, %135 : vector<16x64xf32>
    %137 = math.rsqrt %136 : vector<16x64xf32>
    %138 = tpu.concatenate %137, %137 in 1 : vector<16x64xf32>, vector<16x64xf32> -> vector<16x128xf32>
    %139 = vector.shape_cast %138 : vector<16x128xf32> to vector<16x1x128xf32>
    %140 = vector.broadcast %139 : vector<16x1x128xf32> to vector<16x32x128xf32>
    %141 = arith.mulf %127, %140 : vector<16x32x128xf32>
    %142 = vector.shape_cast %11 : vector<32x128xf32> to vector<1x32x128xf32>
    %143 = vector.broadcast %142 : vector<1x32x128xf32> to vector<16x32x128xf32>
    %144 = arith.mulf %141, %143 : vector<16x32x128xf32>
    %145 = vector.extract_strided_slice %144 {offsets = [0, 0, 0], sizes = [16, 32, 64], strides = [1, 1, 1]} : vector<16x32x128xf32> to vector<16x32x64xf32>
    %146 = arith.addf %113, %145 : vector<16x32x64xf32>
    %147 = vector.extract_strided_slice %144 {offsets = [0, 0, 64], sizes = [16, 32, 64], strides = [1, 1, 1]} : vector<16x32x128xf32> to vector<16x32x64xf32>
    %148 = arith.addf %146, %147 : vector<16x32x64xf32>
    %c0_35 = arith.constant 0 : index
    %c0_36 = arith.constant 0 : index
    %149 = vector.load %arg7[%c0_35, %c0_36] : memref<32x64xf32, #tpu.memory_space<vmem>>, vector<32x64xf32>
    %150 = vector.shape_cast %149 : vector<32x64xf32> to vector<1x32x64xf32>
    %151 = vector.broadcast %150 : vector<1x32x64xf32> to vector<16x32x64xf32>
    %152 = arith.addf %148, %151 : vector<16x32x64xf32>
    %cst_37 = arith.constant 5.000000e-01 : f32
    %153 = vector.broadcast %cst_37 : f32 to vector<16x32x64xf32>
    %154 = arith.mulf %153, %152 : vector<16x32x64xf32>
    %cst_38 = arith.constant 0.707106769 : f32
    %155 = vector.broadcast %cst_38 : f32 to vector<16x32x64xf32>
    %156 = arith.mulf %152, %155 : vector<16x32x64xf32>
    %cst_39 = arith.constant 0.000000e+00 : f32
    %157 = vector.broadcast %cst_39 : f32 to vector<16x32x64xf32>
    %158 = arith.cmpf olt, %156, %157 : vector<16x32x64xf32>
    %cst_40 = arith.constant -1.000000e+00 : f32
    %cst_41 = arith.constant 1.000000e+00 : f32
    %159 = vector.broadcast %cst_40 : f32 to vector<16x32x64xf32>
    %160 = vector.broadcast %cst_41 : f32 to vector<16x32x64xf32>
    %161 = arith.select %158, %159, %160 : vector<16x32x64xi1>, vector<16x32x64xf32>
    %162 = math.absf %156 : vector<16x32x64xf32>
    %cst_42 = arith.constant 0.327591091 : f32
    %163 = vector.broadcast %cst_42 : f32 to vector<16x32x64xf32>
    %164 = arith.mulf %163, %162 : vector<16x32x64xf32>
    %cst_43 = arith.constant 1.000000e+00 : f32
    %165 = vector.broadcast %cst_43 : f32 to vector<16x32x64xf32>
    %166 = arith.addf %165, %164 : vector<16x32x64xf32>
    %cst_44 = arith.constant 1.000000e+00 : f32
    %167 = vector.broadcast %cst_44 : f32 to vector<16x32x64xf32>
    %168 = arith.divf %167, %166 : vector<16x32x64xf32>
    %cst_45 = arith.constant 1.06140542 : f32
    %169 = vector.broadcast %cst_45 : f32 to vector<16x32x64xf32>
    %170 = arith.mulf %169, %168 : vector<16x32x64xf32>
    %cst_46 = arith.constant -1.45315206 : f32
    %171 = vector.broadcast %cst_46 : f32 to vector<16x32x64xf32>
    %172 = arith.addf %170, %171 : vector<16x32x64xf32>
    %173 = arith.mulf %172, %168 : vector<16x32x64xf32>
    %cst_47 = arith.constant 1.42141378 : f32
    %174 = vector.broadcast %cst_47 : f32 to vector<16x32x64xf32>
    %175 = arith.addf %173, %174 : vector<16x32x64xf32>
    %176 = arith.mulf %175, %168 : vector<16x32x64xf32>
    %cst_48 = arith.constant -0.284496725 : f32
    %177 = vector.broadcast %cst_48 : f32 to vector<16x32x64xf32>
    %178 = arith.addf %176, %177 : vector<16x32x64xf32>
    %179 = arith.mulf %178, %168 : vector<16x32x64xf32>
    %cst_49 = arith.constant 0.254829586 : f32
    %180 = vector.broadcast %cst_49 : f32 to vector<16x32x64xf32>
    %181 = arith.addf %179, %180 : vector<16x32x64xf32>
    %182 = arith.mulf %181, %168 : vector<16x32x64xf32>
    %cst_50 = arith.constant 0.000000e+00 : f32
    %183 = vector.broadcast %cst_50 : f32 to vector<16x32x64xf32>
    %184 = arith.subf %183, %162 : vector<16x32x64xf32>
    %185 = arith.mulf %184, %162 : vector<16x32x64xf32>
    %186 = math.exp %185 : vector<16x32x64xf32>
    %187 = arith.mulf %182, %186 : vector<16x32x64xf32>
    %cst_51 = arith.constant 1.000000e+00 : f32
    %188 = vector.broadcast %cst_51 : f32 to vector<16x32x64xf32>
    %189 = arith.subf %188, %187 : vector<16x32x64xf32>
    %190 = arith.mulf %161, %189 : vector<16x32x64xf32>
    %cst_52 = arith.constant 1.000000e+00 : f32
    %191 = vector.broadcast %cst_52 : f32 to vector<16x32x64xf32>
    %192 = arith.addf %191, %190 : vector<16x32x64xf32>
    %193 = arith.mulf %154, %192 : vector<16x32x64xf32>
    %194 = vector.shape_cast %193 : vector<16x32x64xf32> to vector<4x128x64xf32>
    %c0_53 = arith.constant 0 : index
    %c0_54 = arith.constant 0 : index
    %c0_55 = arith.constant 0 : index
    %c0_56 = arith.constant 0 : index
    %195 = vector.load %arg8[%c0_53, %c0_54, %c0_55, %c0_56] : memref<1x4x128x64xf32, #tpu.memory_space<vmem>>, vector<1x4x128x64xf32>
    %196 = vector.shape_cast %195 : vector<1x4x128x64xf32> to vector<4x128x64xf32>
    %197 = vector.shape_cast %194 : vector<4x128x64xf32> to vector<1x4x128x64xf32>
    tpu.vector_store %arg8[%c0_53, %c0_54, %c0_55, %c0_56], %197 {strides = array<i32>} : memref<1x4x128x64xf32, #tpu.memory_space<vmem>>, vector<1x4x128x64xf32>,
    return
  }
  func.func @transform_0(%arg0: i32, %arg1: i32) -> (i32, i32, i32, i32) {
    %c0_i32 = arith.constant 0 : i32
    %c0_i32_0 = arith.constant 0 : i32
    %c0_i32_1 = arith.constant 0 : i32
    return %arg0, %arg1, %c0_i32, %c0_i32_0 : i32, i32, i32, i32
  }
  func.func @transform_1(%arg0: i32, %arg1: i32) -> (i32, i32, i32, i32) {
    %c1_i32 = arith.constant 1 : i32
    %0 = arith.addi %arg1, %c1_i32 : i32
    %c4_i32 = arith.constant 4 : i32
    %1 = arith.muli %0, %c4_i32 : i32
    %c0_i32 = arith.constant 0 : i32
    %c0_i32_0 = arith.constant 0 : i32
    %c0_i32_1 = arith.constant 0 : i32
    return %arg0, %1, %c0_i32, %c0_i32_0 : i32, i32, i32, i32
  }
  func.func @transform_2(%arg0: i32, %arg1: i32) -> (i32, i32) {
    %c0_i32 = arith.constant 0 : i32
    %c0_i32_0 = arith.constant 0 : i32
    %c0_i32_1 = arith.constant 0 : i32
    return %c0_i32, %c0_i32_0 : i32, i32
  }
  func.func @transform_3(%arg0: i32, %arg1: i32) -> (i32, i32) {
    %c0_i32 = arith.constant 0 : i32
    %c0_i32_0 = arith.constant 0 : i32
    %c0_i32_1 = arith.constant 0 : i32
    return %c0_i32, %c0_i32_0 : i32, i32
  }
  func.func @transform_4(%arg0: i32, %arg1: i32) -> (i32, i32) {
    %c0_i32 = arith.constant 0 : i32
    %c0_i32_0 = arith.constant 0 : i32
    %c0_i32_1 = arith.constant 0 : i32
    return %c0_i32, %c0_i32_0 : i32, i32
  }
  func.func @transform_5(%arg0: i32, %arg1: i32) -> (i32, i32) {
    %c0_i32 = arith.constant 0 : i32
    %c0_i32_0 = arith.constant 0 : i32
    %c0_i32_1 = arith.constant 0 : i32
    return %c0_i32, %c0_i32_0 : i32, i32
  }
  func.func @transform_6(%arg0: i32, %arg1: i32) -> (i32, i32, i32, i32) {
    %c0_i32 = arith.constant 0 : i32
    %c0_i32_0 = arith.constant 0 : i32
    %c0_i32_1 = arith.constant 0 : i32
    return %arg0, %arg1, %c0_i32, %c0_i32_0 : i32, i32, i32, i32
  }
}

</mosaic_0001>

<llo_original>
// kernel: model_forward.1
$region0: #{model_forward.1}
  #allocation0 [shape = 'u32[]', space=smem, size = 0x4, offset = 0x4, fixed_abs, tag = 'smem constant byte address 0x4 - core index']
  #allocation1 [shape = 'u32[72,128]{1,0:T(1,128)}', space=vmem, size = 0x9000, scoped, tag = 'internal scratch']
  %s0 = inlined_call_operand.vmem [shape: bf16[2,5,128,128], index: 0, kind: input, shape index: {}, may-alias: {0,1}]
  %s1 = inlined_call_operand.vmem [shape: bf16[2,5,128,128], index: 1, kind: input, shape index: {}, may-alias: {0,1}]
  %s2 = inlined_call_operand.vmem [shape: bf16[128,512], index: 2, kind: input, shape index: {}]
  %s3 = inlined_call_operand.vmem [shape: bf16[128,256], index: 3, kind: input, shape index: {}]
  %s4 = inlined_call_operand.vmem [shape: f32[32,128], index: 4, kind: input, shape index: {}]
  %s5 = inlined_call_operand.vmem [shape: f32[32,64], index: 5, kind: input, shape index: {}]
  %s6 = inlined_call_operand.hbm [shape: f32[2,4,128,64], index: 6, kind: output, shape index: {}]
  %s7 = sld [smem:[#allocation0]]
  $region57: #{model_forward.1} parent=0
    _
  %s9 = ssub.s32 1, %s7
  %s10 = scalar_select 0, %s9, %s7
  $region1: #{model_forward.1} parent=0
    #allocation2 [shape = 'u8[524288]{0}', space=vmem, size = 0x80000, scoped, tag = 'output window, operand 0']
    #allocation3 [shape = 's32[2]{0}', space=sflag, size = 0x8, scoped, tag = 'scoped memory for model_forward.1']
    %11 = vsyncpa [#allocation3], 0
    %s12 = scalar_lea.sflag [#allocation3], 1
    %13 = vsyncpa %s12, 0
    loop: start=0, step=1, limit=4
    $region2: #{model_forward.1} parent=1 // loop_pre_header
      _
    $region3: #{model_forward.1} parent=1 // loop_header
      %s15 = sphi 0, %s19
      %p16 = scmp.ge.s32.totalorder %s15, 4
      %s22 = sphi 0, %s34
      %s23 = sphi 0, %s30
      %s24 = sphi 0, %s22
      %s25 = sphi 0, %s23
      %s26 = sphi 0, %s24
      %s27 = sphi 0, %s25
      %s39 = sphi 0, %s41
      %s42 = sphi 0, %s39
      %s43 = sphi 0, %s42
      %s59 = sphi 0, %s43
      %s71 = sphi 0, %s73
      %s74 = sphi 0, %s71
      %s75 = sphi 0, %s74
      %s91 = sphi 0, %s75
      %s95 = sphi 0, %s95
      %s97 = sphi 0, %s95
      %s98 = sphi 0, %s97
      %s112 = sphi 0, %s98
      %s116 = sphi 0, %s116
      %s118 = sphi 0, %s116
      %s119 = sphi 0, %s118
      %s133 = sphi 0, %s119
      %s137 = sphi 0, %s137
      %s139 = sphi 0, %s137
      %s140 = sphi 0, %s139
      %s154 = sphi 0, %s140
      %s158 = sphi 0, %s158
      %s160 = sphi 0, %s158
      %s161 = sphi 0, %s160
      %s175 = sphi 0, %s161
      %s183 = sphi 0, %s185
      %s186 = sphi 0, %s183
      %s187 = sphi 0, %s186
      %s203 = sphi 0, %s187
    $region4: #{model_forward.1} parent=1 // loop_header_branch
      %18 = sbr.rel (%p16) target = $region8
    $region5: #{model_forward.1} parent=1 // loop_body
      %s20 = ssub.s32 %s15, 1
      %s21 = ssub.s32 %s15, 2
      %s28 = sadd.s32 1, %s23
      %p29 = scmp.ge.s32.totalorder %s28, 1
      %s30 = scalar_select %p29, 0, %s28
      %s31 = sadd.s32 1, %s22
      %s32 = scalar_select %p29, %s31, %s22
      %p33 = scmp.ge.s32.totalorder %s32, 2
      %s34 = scalar_select %p33, 0, %s32
      %s35 = ssub.s32 %s22, %s34
      %s36 = ssub.s32 %s23, %s30
      %s37 = sor.u32 %s35, %s36
      %p38 = scmp.eq.s32.totalorder %s37, 0
      %s40 = sadd.s32 %s39, 1
      %s41 = scalar_select %p38, %s39, %s40
      %p44 = pneg %p38
      %p45 = scmp.eq.s32.totalorder %s15, 1
      %p46 = por %p44, %p45
      %p47 = scmp.ne.s32.totalorder %s39, %s42
      %p48 = scmp.eq.s32.totalorder %s15, 0
      %p49 = por %p47, %p48
      %p50 = scmp.ne.s32.totalorder %s39, %s42
      %p51 = scmp.eq.s32.totalorder %s20, 1
      %p52 = por %p50, %p51
      %p53 = scmp.ne.s32.totalorder %s42, %s43
      %p54 = scmp.eq.s32.totalorder %s20, 0
      %p55 = por %p53, %p54
      %p56 = scmp.ne.s32.totalorder %s42, %s43
      %p57 = scmp.eq.s32.totalorder %s21, 1
      %p58 = por %p56, %p57
      %p60 = scmp.ne.s32.totalorder %s43, %s59
      %p61 = scmp.eq.s32.totalorder %s21, 0
      %p62 = por %p60, %p61
      %s63 = sadd.s32 %s23, 1
      %s64 = smul.u32 %s63, 4
      %s65 = sadd.s32 %s30, 1
      %s66 = smul.u32 %s65, 4
      %s67 = ssub.s32 %s22, %s34
      %s68 = ssub.s32 %s64, %s66
      %s69 = sor.u32 %s67, %s68
      %p70 = scmp.eq.s32.totalorder %s69, 0
      %s72 = sadd.s32 %s71, 1
      %s73 = scalar_select %p70, %s71, %s72
      %p76 = pneg %p70
      %p77 = scmp.eq.s32.totalorder %s15, 1
      %p78 = por %p76, %p77
      %p79 = scmp.ne.s32.totalorder %s71, %s74
      %p80 = scmp.eq.s32.totalorder %s15, 0
      %p81 = por %p79, %p80
      %p82 = scmp.ne.s32.totalorder %s71, %s74
      %p83 = scmp.eq.s32.totalorder %s20, 1
      %p84 = por %p82, %p83
      %p85 = scmp.ne.s32.totalorder %s74, %s75
      %p86 = scmp.eq.s32.totalorder %s20, 0
      %p87 = por %p85, %p86
      %p88 = scmp.ne.s32.totalorder %s74, %s75
      %p89 = scmp.eq.s32.totalorder %s21, 1
      %p90 = por %p88, %p89
      %p92 = scmp.ne.s32.totalorder %s75, %s91
      %p93 = scmp.eq.s32.totalorder %s21, 0
      %p94 = por %p92, %p93
      %s96 = sadd.s32 %s95, 1
      %p99 = scmp.eq.s32.totalorder %s15, 1
      %p100 = scmp.ne.s32.totalorder %s95, %s97
      %p101 = scmp.eq.s32.totalorder %s15, 0
      %p102 = por %p100, %p101
      %p103 = scmp.ne.s32.totalorder %s95, %s97
      %p104 = scmp.eq.s32.totalorder %s20, 1
      %p105 = por %p103, %p104
      %p106 = scmp.ne.s32.totalorder %s97, %s98
      %p107 = scmp.eq.s32.totalorder %s20, 0
      %p108 = por %p106, %p107
      %p109 = scmp.ne.s32.totalorder %s97, %s98
      %p110 = scmp.eq.s32.totalorder %s21, 1
      %p111 = por %p109, %p110
      %p113 = scmp.ne.s32.totalorder %s98, %s112
      %p114 = scmp.eq.s32.totalorder %s21, 0
      %p115 = por %p113, %p114
      %s117 = sadd.s32 %s116, 1
      %p120 = scmp.eq.s32.totalorder %s15, 1
      %p121 = scmp.ne.s32.totalorder %s116, %s118
      %p122 = scmp.eq.s32.totalorder %s15, 0
      %p123 = por %p121, %p122
      %p124 = scmp.ne.s32.totalorder %s116, %s118
      %p125 = scmp.eq.s32.totalorder %s20, 1
      %p126 = por %p124, %p125
      %p127 = scmp.ne.s32.totalorder %s118, %s119
      %p128 = scmp.eq.s32.totalorder %s20, 0
      %p129 = por %p127, %p128
      %p130 = scmp.ne.s32.totalorder %s118, %s119
      %p131 = scmp.eq.s32.totalorder %s21, 1
      %p132 = por %p130, %p131
      %p134 = scmp.ne.s32.totalorder %s119, %s133
      %p135 = scmp.eq.s32.totalorder %s21, 0
      %p136 = por %p134, %p135
      %s138 = sadd.s32 %s137, 1
      %p141 = scmp.eq.s32.totalorder %s15, 1
      %p142 = scmp.ne.s32.totalorder %s137, %s139
      %p143 = scmp.eq.s32.totalorder %s15, 0
      %p144 = por %p142, %p143
      %p145 = scmp.ne.s32.totalorder %s137, %s139
      %p146 = scmp.eq.s32.totalorder %s20, 1
      %p147 = por %p145, %p146
      %p148 = scmp.ne.s32.totalorder %s139, %s140
      %p149 = scmp.eq.s32.totalorder %s20, 0
      %p150 = por %p148, %p149
      %p151 = scmp.ne.s32.totalorder %s139, %s140
      %p152 = scmp.eq.s32.totalorder %s21, 1
      %p153 = por %p151, %p152
      %p155 = scmp.ne.s32.totalorder %s140, %s154
      %p156 = scmp.eq.s32.totalorder %s21, 0
      %p157 = por %p155, %p156
      %s159 = sadd.s32 %s158, 1
      %p162 = scmp.eq.s32.totalorder %s15, 1
      %p163 = scmp.ne.s32.totalorder %s158, %s160
      %p164 = scmp.eq.s32.totalorder %s15, 0
      %p165 = por %p163, %p164
      %p166 = scmp.ne.s32.totalorder %s158, %s160
      %p167 = scmp.eq.s32.totalorder %s20, 1
      %p168 = por %p166, %p167
      %p169 = scmp.ne.s32.totalorder %s160, %s161
      %p170 = scmp.eq.s32.totalorder %s20, 0
      %p171 = por %p169, %p170
      %p172 = scmp.ne.s32.totalorder %s160, %s161
      %p173 = scmp.eq.s32.totalorder %s21, 1
      %p174 = por %p172, %p173
      %p176 = scmp.ne.s32.totalorder %s161, %s175
      %p177 = scmp.eq.s32.totalorder %s21, 0
      %p178 = por %p176, %p177
      %s179 = ssub.s32 %s22, %s34
      %s180 = ssub.s32 %s23, %s30
      %s181 = sor.u32 %s179, %s180
      %p182 = scmp.eq.s32.totalorder %s181, 0
      %s184 = sadd.s32 %s183, 1
      %s185 = scalar_select %p182, %s183, %s184
      %p188 = pneg %p182
      %p189 = scmp.eq.s32.totalorder %s15, 1
      %p190 = por %p188, %p189
      %p191 = scmp.ne.s32.totalorder %s183, %s186
      %p192 = scmp.eq.s32.totalorder %s15, 0
      %p193 = por %p191, %p192
      %p194 = scmp.ne.s32.totalorder %s183, %s186
      %p195 = scmp.eq.s32.totalorder %s20, 1
      %p196 = por %p194, %p195
      %p197 = scmp.ne.s32.totalorder %s186, %s187
      %p198 = scmp.eq.s32.totalorder %s20, 0
      %p199 = por %p197, %p198
      %p200 = scmp.ne.s32.totalorder %s186, %s187
      %p201 = scmp.eq.s32.totalorder %s21, 1
      %p202 = por %p200, %p201
      %p204 = scmp.ne.s32.totalorder %s187, %s203
      %p205 = scmp.eq.s32.totalorder %s21, 0
      %p206 = por %p204, %p205
      %p207 = scmp.le.s32.totalorder 1, %s15
      %p208 = scmp.lt.s32.totalorder %s15, 3
      %p209 = pnand %p207, %p208
      %p210 = pneg %p209
      // Predicated region
      $region9: #{model_forward.1} parent=5 // pred_check
        _
      $region10: #{model_forward.1} parent=5 // pred_check_branch
        %212 = sbr.rel (%p209) target = $region12
      $region11: #{model_forward.1} parent=5 // pred_region
        %s213 = ssub.s32 %s15, 1
        // Predicated region
        $region13: #{model_forward.1} parent=11 // pred_check
          %p214 = pneg %p108
        $region14: #{model_forward.1} parent=11 // pred_check_branch
          %216 = sbr.rel (%p214) target = $region16
        $region15: #{model_forward.1} parent=11 // pred_region
          _
        $region16: #{model_forward.1} parent=11 // pred_fallthru
          _
        // Predicated region
        $region17: #{model_forward.1} parent=11 // pred_check
          %p217 = pneg %p129
        $region18: #{model_forward.1} parent=11 // pred_check_branch
          %219 = sbr.rel (%p217) target = $region20
        $region19: #{model_forward.1} parent=11 // pred_region
          _
        $region20: #{model_forward.1} parent=11 // pred_fallthru
          _
        // Predicated region
        $region21: #{model_forward.1} parent=11 // pred_check
          %p220 = pneg %p150
        $region22: #{model_forward.1} parent=11 // pred_check_branch
          %222 = sbr.rel (%p220) target = $region24
        $region23: #{model_forward.1} parent=11 // pred_region
          _
        $region24: #{model_forward.1} parent=11 // pred_fallthru
          _
        // Predicated region
        $region25: #{model_forward.1} parent=11 // pred_check
          %p223 = pneg %p171
        $region26: #{model_forward.1} parent=11 // pred_check_branch
          %225 = sbr.rel (%p223) target = $region28
        $region27: #{model_forward.1} parent=11 // pred_region
          _
        $region28: #{model_forward.1} parent=11 // pred_fallthru
          _
      $region12: #{model_forward.1} parent=5 // pred_fallthru
        _
      %p226 = scmp.lt.s32.totalorder %s15, 2
      // Predicated region
      $region29: #{model_forward.1} parent=5 // pred_check
        %p227 = pneg %p226
      $region30: #{model_forward.1} parent=5 // pred_check_branch
        %229 = sbr.rel (%p227) target = $region32
      $region31: #{model_forward.1} parent=5 // pred_region
        // Predicated region
        $region33: #{model_forward.1} parent=31 // pred_check
          %p230 = pneg %p49
        $region34: #{model_forward.1} parent=31 // pred_check_branch
          %232 = sbr.rel (%p230) target = $region36
        $region35: #{model_forward.1} parent=31 // pred_region
          %s233 = smul.u32 4, %s23
          %s234 = ssub.s32 5, %s233
          %p235 = scmp.lt.s32.totalorder %s234, 4
          %s236 = scalar_select %p235, %s234, 4
          %s237 = smul.u32 4, %s236
          %s238 = smul.u32 %s237, 16
          %p239 = scmp.lt.s32.totalorder %s22, 1
          %s240 = scalar_select %p239, %s22, 1
          %p241 = scmp.lt.s32.totalorder %s233, 4
          %s242 = scalar_select %p241, %s233, 4
          %s243 = smul.addr %s242, 16
          %s244 = smul.addr %s240, 80
          %s245 = sadd.s32 %s243, %s244
          %s246 = smul.addr %s245, 4
          %s247 = scalar_lea.vmem %s0, %s246
          %s248 = smul.u32 4, %s23
          %s249 = ssub.s32 5, %s248
          %p250 = scmp.lt.s32.totalorder %s249, 4
          %s251 = scalar_select %p250, %s249, 4
          %s252 = smul.u32 4, %s251
          %s253 = smul.u32 %s252, 16
        $region36: #{model_forward.1} parent=31 // pred_fallthru
          _
        // Predicated region
        $region37: #{model_forward.1} parent=31 // pred_check
          %p254 = pneg %p81
        $region38: #{model_forward.1} parent=31 // pred_check_branch
          %256 = sbr.rel (%p254) target = $region40
        $region39: #{model_forward.1} parent=31 // pred_region
          %s257 = sadd.s32 %s23, 1
          %s258 = smul.u32 %s257, 4
          %p259 = scmp.lt.s32.totalorder %s22, 1
          %s260 = scalar_select %p259, %s22, 1
          %p261 = scmp.lt.s32.totalorder %s258, 4
          %s262 = scalar_select %p261, %s258, 4
          %s263 = smul.addr %s262, 16
          %s264 = smul.addr %s260, 80
          %s265 = sadd.s32 %s263, %s264
          %s266 = smul.addr %s265, 4
          %s267 = scalar_lea.vmem %s1, %s266
          %s268 = sadd.s32 %s23, 1
          %s269 = smul.u32 %s268, 4
        $region40: #{model_forward.1} parent=31 // pred_fallthru
          _
      $region32: #{model_forward.1} parent=5 // pred_fallthru
        _
      %p270 = scmp.le.s32.totalorder 1, %s15
      %p271 = scmp.lt.s32.totalorder %s15, 3
      %p272 = pnand %p270, %p271
      %p273 = pneg %p272
      // Predicated region
      $region41: #{model_forward.1} parent=5 // pred_check
        _
      $region42: #{model_forward.1} parent=5 // pred_check_branch
        %275 = sbr.rel (%p272) target = $region44
      $region43: #{model_forward.1} parent=5 // pred_region
        %s276 = ssub.s32 %s15, 1
        %s277 = smul.u32 4, %s25
        %s278 = ssub.s32 5, %s277
        %p279 = scmp.lt.s32.totalorder %s278, 4
        %s280 = scalar_select %p279, %s278, 4
        %s281 = smul.u32 4, %s280
        %s282 = smul.u32 %s281, 16
        %p283 = scmp.lt.s32.totalorder %s24, 1
        %s284 = scalar_select %p283, %s24, 1
        %p285 = scmp.lt.s32.totalorder %s277, 4
        %s286 = scalar_select %p285, %s277, 4
        %s287 = smul.addr %s286, 16
        %s288 = smul.addr %s284, 80
        %s289 = sadd.s32 %s287, %s288
        %s290 = smul.addr %s289, 4
        %s291 = scalar_lea.vmem %s0, %s290
        %p292 = pneg %p55
        %p293 = pneg %p52
        %s294 = sadd.s32 %s25, 1
        %s295 = smul.u32 %s294, 4
        %p296 = scmp.lt.s32.totalorder %s24, 1
        %s297 = scalar_select %p296, %s24, 1
        %p298 = scmp.lt.s32.totalorder %s295, 4
        %s299 = scalar_select %p298, %s295, 4
        %s300 = smul.addr %s299, 16
        %s301 = smul.addr %s297, 80
        %s302 = sadd.s32 %s300, %s301
        %s303 = smul.addr %s302, 4
        %s304 = scalar_lea.vmem %s1, %s303
        %p305 = pneg %p87
        %p306 = pneg %p84
        %p307 = pneg %p108
        %p308 = pneg %p105
        %p309 = pneg %p129
        %p310 = pneg %p126
        %p311 = pneg %p150
        %p312 = pneg %p147
        %p313 = pneg %p171
        %p314 = pneg %p168
        %p315 = pneg %p199
        %p316 = pneg %p196
        %s317 = sand.u32 %s186, 1
        %s318 = scalar_lea.sflag [#allocation3], %s317
        %s319 = sand.u32 %s186, 1
        %s320 = smul.addr %s319, 512
        %s321 = scalar_lea.vmem [#allocation2], %s320
        %s322 = smul.u32 4, %s25
        %s323 = ssub.s32 5, %s322
        %p324 = scmp.lt.s32.totalorder %s323, 4
        %s325 = scalar_select %p324, %s323, 4
        %s326 = smul.u32 4, %s325
        %s327 = smul.u32 %s326, 16
        %p328 = scmp.lt.s32.totalorder %s24, 1
        %s329 = scalar_select %p328, %s24, 1
        %p330 = scmp.lt.s32.totalorder %s322, 4
        %s331 = scalar_select %p330, %s322, 4
        %s332 = smul.addr %s331, 16
        %s333 = smul.addr %s329, 80
        %s334 = sadd.s32 %s332, %s333
        %s335 = smul.addr %s334, 4
        %s336 = scalar_lea.vmem %s0, %s335
        %s337 = smul.u32 4, %s25
        %s338 = ssub.s32 5, %s337
        %p339 = scmp.lt.s32.totalorder %s338, 4
        %s340 = scalar_select %p339, %s338, 4
        %s341 = smul.u32 4, %s340
        %s342 = smul.u32 %s341, 16
        %s343 = sadd.s32 %s25, 1
        %s344 = smul.u32 %s343, 4
        %p345 = scmp.lt.s32.totalorder %s24, 1
        %s346 = scalar_select %p345, %s24, 1
        %p347 = scmp.lt.s32.totalorder %s344, 4
        %s348 = scalar_select %p347, %s344, 4
        %s349 = smul.addr %s348, 16
        %s350 = smul.addr %s346, 80
        %s351 = sadd.s32 %s349, %s350
        %s352 = smul.addr %s351, 4
        %s353 = scalar_lea.vmem %s1, %s352
        %s354 = sadd.s32 %s25, 1
        %s355 = smul.u32 %s354, 4
        %s356 = smul.u32 4, %s25
        %v357 = vld [vmem:[%s336] sm:$0xf]
        %v358 = vld [vmem:[%s336 + $0x4] sm:$0xf]
        %v359 = vld [vmem:[%s336 + $0x8] sm:$0xf]
        %v360 = vld [vmem:[%s336 + $0xc] sm:$0xf]
        %v361 = vld [vmem:[%s336 + $0x10] sm:$0xf]
        %v362 = vld [vmem:[%s336 + $0x14] sm:$0xf]
        %v363 = vld [vmem:[%s336 + $0x18] sm:$0xf]
        %v364 = vld [vmem:[%s336 + $0x1c] sm:$0xf]
        %v365 = vld [vmem:[%s336 + $0x20] sm:$0xf]
        %v366 = vld [vmem:[%s336 + $0x24] sm:$0xf]
        %v367 = vld [vmem:[%s336 + $0x28] sm:$0xf]
        %v368 = vld [vmem:[%s336 + $0x2c] sm:$0xf]
        %v369 = vld [vmem:[%s336 + $0x30] sm:$0xf]
        %v370 = vld [vmem:[%s336 + $0x34] sm:$0xf]
        %v371 = vld [vmem:[%s336 + $0x38] sm:$0xf]
        %v372 = vld [vmem:[%s336 + $0x3c] sm:$0xf]
        %v373 = vld [vmem:[%s336 + $0x40] sm:$0xf]
        %v374 = vld [vmem:[%s336 + $0x44] sm:$0xf]
        %v375 = vld [vmem:[%s336 + $0x48] sm:$0xf]
        %v376 = vld [vmem:[%s336 + $0x4c] sm:$0xf]
        %v377 = vld [vmem:[%s336 + $0x50] sm:$0xf]
        %v378 = vld [vmem:[%s336 + $0x54] sm:$0xf]
        %v379 = vld [vmem:[%s336 + $0x58] sm:$0xf]
        %v380 = vld [vmem:[%s336 + $0x5c] sm:$0xf]
        %v381 = vld [vmem:[%s336 + $0x60] sm:$0xf]
        %v382 = vld [vmem:[%s336 + $0x64] sm:$0xf]
        %v383 = vld [vmem:[%s336 + $0x68] sm:$0xf]
        %v384 = vld [vmem:[%s336 + $0x6c] sm:$0xf]
        %v385 = vld [vmem:[%s336 + $0x70] sm:$0xf]
        %v386 = vld [vmem:[%s336 + $0x74] sm:$0xf]
        %v387 = vld [vmem:[%s336 + $0x78] sm:$0xf]
        %v388 = vld [vmem:[%s336 + $0x7c] sm:$0xf]
        %v389 = vld [vmem:[%s336 + $0x80] sm:$0xf]
        %v390 = vld [vmem:[%s336 + $0x84] sm:$0xf]
        %v391 = vld [vmem:[%s336 + $0x88] sm:$0xf]
        %v392 = vld [vmem:[%s336 + $0x8c] sm:$0xf]
        %v393 = vld [vmem:[%s336 + $0x90] sm:$0xf]
        %v394 = vld [vmem:[%s336 + $0x94] sm:$0xf]
        %v395 = vld [vmem:[%s336 + $0x98] sm:$0xf]
        %v396 = vld [vmem:[%s336 + $0x9c] sm:$0xf]
        %v397 = vld [vmem:[%s336 + $0xa0] sm:$0xf]
        %v398 = vld [vmem:[%s336 + $0xa4] sm:$0xf]
        %v399 = vld [vmem:[%s336 + $0xa8] sm:$0xf]
        %v400 = vld [vmem:[%s336 + $0xac] sm:$0xf]
        %v401 = vld [vmem:[%s336 + $0xb0] sm:$0xf]
        %v402 = vld [vmem:[%s336 + $0xb4] sm:$0xf]
        %v403 = vld [vmem:[%s336 + $0xb8] sm:$0xf]
        %v404 = vld [vmem:[%s336 + $0xbc] sm:$0xf]
        %v405 = vld [vmem:[%s336 + $0xc0] sm:$0xf]
        %v406 = vld [vmem:[%s336 + $0xc4] sm:$0xf]
        %v407 = vld [vmem:[%s336 + $0xc8] sm:$0xf]
        %v408 = vld [vmem:[%s336 + $0xcc] sm:$0xf]
        %v409 = vld [vmem:[%s336 + $0xd0] sm:$0xf]
        %v410 = vld [vmem:[%s336 + $0xd4] sm:$0xf]
        %v411 = vld [vmem:[%s336 + $0xd8] sm:$0xf]
        %v412 = vld [vmem:[%s336 + $0xdc] sm:$0xf]
        %v413 = vld [vmem:[%s336 + $0xe0] sm:$0xf]
        %v414 = vld [vmem:[%s336 + $0xe4] sm:$0xf]
        %v415 = vld [vmem:[%s336 + $0xe8] sm:$0xf]
        %v416 = vld [vmem:[%s336 + $0xec] sm:$0xf]
        %v417 = vld [vmem:[%s336 + $0xf0] sm:$0xf]
        %v418 = vld [vmem:[%s336 + $0xf4] sm:$0xf]
        %v419 = vld [vmem:[%s336 + $0xf8] sm:$0xf]
        %v420 = vld [vmem:[%s336 + $0xfc] sm:$0xf]
        %v421 = vld [vmem:[%s353] sm:$0xf]
        %v422 = vld [vmem:[%s353 + $0x4] sm:$0xf]
        %v423 = vld [vmem:[%s353 + $0x8] sm:$0xf]
        %v424 = vld [vmem:[%s353 + $0xc] sm:$0xf]
        %v425 = vld [vmem:[%s353 + $0x10] sm:$0xf]
        %v426 = vld [vmem:[%s353 + $0x14] sm:$0xf]
        %v427 = vld [vmem:[%s353 + $0x18] sm:$0xf]
        %v428 = vld [vmem:[%s353 + $0x1c] sm:$0xf]
        %v429 = vld [vmem:[%s353 + $0x20] sm:$0xf]
        %v430 = vld [vmem:[%s353 + $0x24] sm:$0xf]
        %v431 = vld [vmem:[%s353 + $0x28] sm:$0xf]
        %v432 = vld [vmem:[%s353 + $0x2c] sm:$0xf]
        %v433 = vld [vmem:[%s353 + $0x30] sm:$0xf]
        %v434 = vld [vmem:[%s353 + $0x34] sm:$0xf]
        %v435 = vld [vmem:[%s353 + $0x38] sm:$0xf]
        %v436 = vld [vmem:[%s353 + $0x3c] sm:$0xf]
        %v485 = vunpack.c.l.b16 %v373
        %v486 = vunpack.c.l.b16 %v374
        %v487 = vunpack.c.l.b16 %v375
        %v488 = vunpack.c.l.b16 %v376
        %v489 = vunpack.c.l.b16 %v377
        %v490 = vunpack.c.l.b16 %v378
        %v491 = vunpack.c.l.b16 %v379
        %v492 = vunpack.c.l.b16 %v380
        %v493 = vunpack.c.l.b16 %v381
        %v494 = vunpack.c.l.b16 %v382
        %v495 = vunpack.c.l.b16 %v383
        %v496 = vunpack.c.l.b16 %v384
        %v497 = vunpack.c.l.b16 %v385
        %v498 = vunpack.c.l.b16 %v386
        %v499 = vunpack.c.l.b16 %v387
        %v500 = vunpack.c.l.b16 %v388
        %v501 = vunpack.c.l.b16 %v389
        %v502 = vunpack.c.l.b16 %v390
        %v503 = vunpack.c.l.b16 %v391
        %v504 = vunpack.c.l.b16 %v392
        %v505 = vunpack.c.l.b16 %v393
        %v506 = vunpack.c.l.b16 %v394
        %v507 = vunpack.c.l.b16 %v395
        %v508 = vunpack.c.l.b16 %v396
        %v509 = vunpack.c.l.b16 %v397
        %v510 = vunpack.c.l.b16 %v398
        %v511 = vunpack.c.l.b16 %v399
        %v512 = vunpack.c.l.b16 %v400
        %v513 = vunpack.c.l.b16 %v401
        %v514 = vunpack.c.l.b16 %v402
        %v515 = vunpack.c.l.b16 %v403
        %v516 = vunpack.c.l.b16 %v404
        %v517 = vunpack.c.l.b16 %v405
        %v518 = vunpack.c.l.b16 %v406
        %v519 = vunpack.c.l.b16 %v407
        %v520 = vunpack.c.l.b16 %v408
        %v521 = vunpack.c.l.b16 %v409
        %v522 = vunpack.c.l.b16 %v410
        %v523 = vunpack.c.l.b16 %v411
        %v524 = vunpack.c.l.b16 %v412
        %v525 = vunpack.c.l.b16 %v413
        %v526 = vunpack.c.l.b16 %v414
        %v527 = vunpack.c.l.b16 %v415
        %v528 = vunpack.c.l.b16 %v416
        %v529 = vunpack.c.l.b16 %v417
        %v530 = vunpack.c.l.b16 %v418
        %v531 = vunpack.c.l.b16 %v419
        %v532 = vunpack.c.l.b16 %v420
        %v533 = vpack.c.b16 %v486, %v485
        %v534 = vpack.c.b16 %v488, %v487
        %v535 = vpack.c.b16 %v490, %v489
        %v536 = vpack.c.b16 %v492, %v491
        %v537 = vpack.c.b16 %v494, %v493
        %v538 = vpack.c.b16 %v496, %v495
        %v539 = vpack.c.b16 %v498, %v497
        %v540 = vpack.c.b16 %v500, %v499
        %v541 = vpack.c.b16 %v502, %v501
        %v542 = vpack.c.b16 %v504, %v503
        %v543 = vpack.c.b16 %v506, %v505
        %v544 = vpack.c.b16 %v508, %v507
        %v545 = vpack.c.b16 %v510, %v509
        %v546 = vpack.c.b16 %v512, %v511
        %v547 = vpack.c.b16 %v514, %v513
        %v548 = vpack.c.b16 %v516, %v515
        %v549 = vpack.c.b16 %v518, %v517
        %v550 = vpack.c.b16 %v520, %v519
        %v551 = vpack.c.b16 %v522, %v521
        %v552 = vpack.c.b16 %v524, %v523
        %v553 = vpack.c.b16 %v526, %v525
        %v554 = vpack.c.b16 %v528, %v527
        %v555 = vpack.c.b16 %v530, %v529
        %v556 = vpack.c.b16 %v532, %v531
        %v597 = vunpack.c.l.b16 %v421
        %v598 = vunpack.c.l.b16 %v422
        %v599 = vunpack.c.l.b16 %v423
        %v600 = vunpack.c.l.b16 %v424
        %v601 = vunpack.c.l.b16 %v425
        %v602 = vunpack.c.l.b16 %v426
        %v603 = vunpack.c.l.b16 %v427
        %v604 = vunpack.c.l.b16 %v428
        %v605 = vunpack.c.l.b16 %v429
        %v606 = vunpack.c.l.b16 %v430
        %v607 = vunpack.c.l.b16 %v431
        %v608 = vunpack.c.l.b16 %v432
        %v609 = vunpack.c.l.b16 %v433
        %v610 = vunpack.c.l.b16 %v434
        %v611 = vunpack.c.l.b16 %v435
        %v612 = vunpack.c.l.b16 %v436
        %v613 = vpack.c.b16 %v598, %v597
        %v614 = vpack.c.b16 %v600, %v599
        %v615 = vpack.c.b16 %v602, %v601
        %v616 = vpack.c.b16 %v604, %v603
        %v617 = vpack.c.b16 %v606, %v605
        %v618 = vpack.c.b16 %v608, %v607
        %v619 = vpack.c.b16 %v610, %v609
        %v620 = vpack.c.b16 %v612, %v611
        %v629 = vld [vmem:[%s2] sm:$0xff]
        %v630 = vld [vmem:[%s2 + $0x8] sm:$0xff]
        %v631 = vld [vmem:[%s2 + $0x10] sm:$0xff]
        %v632 = vld [vmem:[%s2 + $0x18] sm:$0xff]
        %v633 = vld [vmem:[%s2 + $0x20] sm:$0xff]
        %v634 = vld [vmem:[%s2 + $0x28] sm:$0xff]
        %v635 = vld [vmem:[%s2 + $0x30] sm:$0xff]
        %v636 = vld [vmem:[%s2 + $0x38] sm:$0xff]
        %v637 = vld [vmem:[%s2 + $0x40] sm:$0xff]
        %v638 = vld [vmem:[%s2 + $0x48] sm:$0xff]
        %v639 = vld [vmem:[%s2 + $0x50] sm:$0xff]
        %v640 = vld [vmem:[%s2 + $0x58] sm:$0xff]
        %v641 = vld [vmem:[%s2 + $0x60] sm:$0xff]
        %v642 = vld [vmem:[%s2 + $0x68] sm:$0xff]
        %v643 = vld [vmem:[%s2 + $0x70] sm:$0xff]
        %v644 = vld [vmem:[%s2 + $0x78] sm:$0xff]
        %v645 = vld [vmem:[%s2 + $0x80] sm:$0xff]
        %v646 = vld [vmem:[%s2 + $0x88] sm:$0xff]
        %v647 = vld [vmem:[%s2 + $0x90] sm:$0xff]
        %v648 = vld [vmem:[%s2 + $0x98] sm:$0xff]
        %v649 = vld [vmem:[%s2 + $0xa0] sm:$0xff]
        %v650 = vld [vmem:[%s2 + $0xa8] sm:$0xff]
        %v651 = vld [vmem:[%s2 + $0xb0] sm:$0xff]
        %v652 = vld [vmem:[%s2 + $0xb8] sm:$0xff]
        %v653 = vld [vmem:[%s2 + $0xc0] sm:$0xff]
        %v654 = vld [vmem:[%s2 + $0xc8] sm:$0xff]
        %v655 = vld [vmem:[%s2 + $0xd0] sm:$0xff]
        %v656 = vld [vmem:[%s2 + $0xd8] sm:$0xff]
        %v657 = vld [vmem:[%s2 + $0xe0] sm:$0xff]
        %v658 = vld [vmem:[%s2 + $0xe8] sm:$0xff]
        %v659 = vld [vmem:[%s2 + $0xf0] sm:$0xff]
        %v660 = vld [vmem:[%s2 + $0xf8] sm:$0xff]
        %v677 = vunpack.c.l.b16 %v357
        %v678 = vunpack.c.l.b16 %v358
        %v679 = vunpack.c.l.b16 %v359
        %v680 = vunpack.c.l.b16 %v360
        %v681 = vunpack.c.l.b16 %v361
        %v682 = vunpack.c.l.b16 %v362
        %v683 = vunpack.c.l.b16 %v363
        %v684 = vunpack.c.l.b16 %v364
        %v685 = vunpack.c.l.b16 %v365
        %v686 = vunpack.c.l.b16 %v366
        %v687 = vunpack.c.l.b16 %v367
        %v688 = vunpack.c.l.b16 %v368
        %v689 = vunpack.c.l.b16 %v369
        %v690 = vunpack.c.l.b16 %v370
        %v691 = vunpack.c.l.b16 %v371
        %v692 = vunpack.c.l.b16 %v372
        %v693 = vpack.c.b16 %v678, %v677
        %v694 = vpack.c.b16 %v680, %v679
        %v695 = vpack.c.b16 %v682, %v681
        %v696 = vpack.c.b16 %v684, %v683
        %v697 = vpack.c.b16 %v686, %v685
        %v698 = vpack.c.b16 %v688, %v687
        %v699 = vpack.c.b16 %v690, %v689
        %v700 = vpack.c.b16 %v692, %v691
        %v741 = vunpack.c.l.b16 %v629
        %v742 = vunpack.c.h.b16 %v629
        %v743 = vunpack.c.l.b16 %v630
        %v744 = vunpack.c.h.b16 %v630
        %v745 = vunpack.c.l.b16 %v631
        %v746 = vunpack.c.h.b16 %v631
        %v747 = vunpack.c.l.b16 %v632
        %v748 = vunpack.c.h.b16 %v632
        %v749 = vunpack.c.l.b16 %v633
        %v750 = vunpack.c.h.b16 %v633
        %v751 = vunpack.c.l.b16 %v634
        %v752 = vunpack.c.h.b16 %v634
        %v753 = vunpack.c.l.b16 %v635
        %v754 = vunpack.c.h.b16 %v635
        %v755 = vunpack.c.l.b16 %v636
        %v756 = vunpack.c.h.b16 %v636
        %v757 = vunpack.c.l.b16 %v637
        %v758 = vunpack.c.h.b16 %v637
        %v759 = vunpack.c.l.b16 %v638
        %v760 = vunpack.c.h.b16 %v638
        %v761 = vunpack.c.l.b16 %v639
        %v762 = vunpack.c.h.b16 %v639
        %v763 = vunpack.c.l.b16 %v640
        %v764 = vunpack.c.h.b16 %v640
        %v765 = vunpack.c.l.b16 %v641
        %v766 = vunpack.c.h.b16 %v641
        %v767 = vunpack.c.l.b16 %v642
        %v768 = vunpack.c.h.b16 %v642
        %v769 = vunpack.c.l.b16 %v643
        %v770 = vunpack.c.h.b16 %v643
        %v771 = vunpack.c.l.b16 %v644
        %v772 = vunpack.c.h.b16 %v644
        %v773 = vunpack.c.l.b16 %v645
        %v774 = vunpack.c.h.b16 %v645
        %v775 = vunpack.c.l.b16 %v646
        %v776 = vunpack.c.h.b16 %v646
        %v777 = vunpack.c.l.b16 %v647
        %v778 = vunpack.c.h.b16 %v647
        %v779 = vunpack.c.l.b16 %v648
        %v780 = vunpack.c.h.b16 %v648
        %v781 = vunpack.c.l.b16 %v649
        %v782 = vunpack.c.h.b16 %v649
        %v783 = vunpack.c.l.b16 %v650
        %v784 = vunpack.c.h.b16 %v650
        %v785 = vunpack.c.l.b16 %v651
        %v786 = vunpack.c.h.b16 %v651
        %v787 = vunpack.c.l.b16 %v652
        %v788 = vunpack.c.h.b16 %v652
        %v789 = vunpack.c.l.b16 %v653
        %v790 = vunpack.c.h.b16 %v653
        %v791 = vunpack.c.l.b16 %v654
        %v792 = vunpack.c.h.b16 %v654
        %v793 = vunpack.c.l.b16 %v655
        %v794 = vunpack.c.h.b16 %v655
        %v795 = vunpack.c.l.b16 %v656
        %v796 = vunpack.c.h.b16 %v656
        %v797 = vunpack.c.l.b16 %v657
        %v798 = vunpack.c.h.b16 %v657
        %v799 = vunpack.c.l.b16 %v658
        %v800 = vunpack.c.h.b16 %v658
        %v801 = vunpack.c.l.b16 %v659
        %v802 = vunpack.c.h.b16 %v659
        %v803 = vunpack.c.l.b16 %v660
        %v804 = vunpack.c.h.b16 %v660
        %v805 = vpack.c.b16 %v745, %v741
        %v806 = vpack.c.b16 %v746, %v742
        %v807 = vpack.c.b16 %v747, %v743
        %v808 = vpack.c.b16 %v748, %v744
        %v809 = vpack.c.b16 %v753, %v749
        %v810 = vpack.c.b16 %v754, %v750
        %v811 = vpack.c.b16 %v755, %v751
        %v812 = vpack.c.b16 %v756, %v752
        %v813 = vpack.c.b16 %v761, %v757
        %v814 = vpack.c.b16 %v762, %v758
        %v815 = vpack.c.b16 %v763, %v759
        %v816 = vpack.c.b16 %v764, %v760
        %v817 = vpack.c.b16 %v769, %v765
        %v818 = vpack.c.b16 %v770, %v766
        %v819 = vpack.c.b16 %v771, %v767
        %v820 = vpack.c.b16 %v772, %v768
        %v821 = vpack.c.b16 %v777, %v773
        %v822 = vpack.c.b16 %v778, %v774
        %v823 = vpack.c.b16 %v779, %v775
        %v824 = vpack.c.b16 %v780, %v776
        %v825 = vpack.c.b16 %v785, %v781
        %v826 = vpack.c.b16 %v786, %v782
        %v827 = vpack.c.b16 %v787, %v783
        %v828 = vpack.c.b16 %v788, %v784
        %v829 = vpack.c.b16 %v793, %v789
        %v830 = vpack.c.b16 %v794, %v790
        %v831 = vpack.c.b16 %v795, %v791
        %v832 = vpack.c.b16 %v796, %v792
        %v833 = vpack.c.b16 %v801, %v797
        %v834 = vpack.c.b16 %v802, %v798
        %v835 = vpack.c.b16 %v803, %v799
        %v836 = vpack.c.b16 %v804, %v800
        %869 = vmatpush.bf16.msra.mxu0 %v833
        %870 = vmatpush.bf16.msra.mxu0 %v829
        %871 = vmatpush.bf16.msra.mxu0 %v825
        %872 = vmatpush.bf16.msra.mxu0 %v821
        %873 = vmatpush.bf16.msra.mxu0 %v817
        %874 = vmatpush.bf16.msra.mxu0 %v813
        %875 = vmatpush.bf16.msra.mxu0 %v809
        %876 = vmatpush.bf16.msra.mxu0 %v805
        %877 = vmatmul.bf16.gmra.mxu0 %v693
        %v878 = vpop.f32.mrf.mxu0
        %v879 = vadd.f32 0.0, %v878
        %v880 = vpop.f32.mrf.mxu0
        %v881 = vadd.f32 0.0, %v880
        %882 = vmatmul.bf16.gmra.mxu0 %v694
        %v883 = vpop.f32.mrf.mxu0
        %v884 = vadd.f32 0.0, %v883
        %v885 = vpop.f32.mrf.mxu0
        %v886 = vadd.f32 0.0, %v885
        %887 = vmatmul.bf16.gmra.mxu0 %v695
        %v888 = vpop.f32.mrf.mxu0
        %v889 = vadd.f32 0.0, %v888
        %v890 = vpop.f32.mrf.mxu0
        %v891 = vadd.f32 0.0, %v890
        %892 = vmatmul.bf16.gmra.mxu0 %v696
        %v893 = vpop.f32.mrf.mxu0
        %v894 = vadd.f32 0.0, %v893
        %v895 = vpop.f32.mrf.mxu0
        %v896 = vadd.f32 0.0, %v895
        %897 = vmatmul.bf16.gmra.mxu0 %v697
        %v898 = vpop.f32.mrf.mxu0
        %v899 = vadd.f32 0.0, %v898
        %v900 = vpop.f32.mrf.mxu0
        %v901 = vadd.f32 0.0, %v900
        %902 = vmatmul.bf16.gmra.mxu0 %v698
        %v903 = vpop.f32.mrf.mxu0
        %v904 = vadd.f32 0.0, %v903
        %v905 = vpop.f32.mrf.mxu0
        %v906 = vadd.f32 0.0, %v905
        %907 = vmatmul.bf16.gmra.mxu0 %v699
        %v908 = vpop.f32.mrf.mxu0
        %v909 = vadd.f32 0.0, %v908
        %v910 = vpop.f32.mrf.mxu0
        %v911 = vadd.f32 0.0, %v910
        %912 = vmatmul.bf16.gmra.mxu0 %v700
        %v913 = vpop.f32.mrf.mxu0
        %v914 = vadd.f32 0.0, %v913
        %v915 = vpop.f32.mrf.mxu0
        %v916 = vadd.f32 0.0, %v915
        %917 = vmatmul.bf16.gmra.mxu0 %v533
        %v918 = vpop.f32.mrf.mxu0
        %v919 = vadd.f32 0.0, %v918
        %v920 = vpop.f32.mrf.mxu0
        %v921 = vadd.f32 0.0, %v920
        %922 = vmatmul.bf16.gmra.mxu0 %v534
        %v923 = vpop.f32.mrf.mxu0
        %v924 = vadd.f32 0.0, %v923
        %v925 = vpop.f32.mrf.mxu0
        %v926 = vadd.f32 0.0, %v925
        %927 = vmatmul.bf16.gmra.mxu0 %v535
        %v928 = vpop.f32.mrf.mxu0
        %v929 = vadd.f32 0.0, %v928
        %v930 = vpop.f32.mrf.mxu0
        %v931 = vadd.f32 0.0, %v930
        %932 = vmatmul.bf16.gmra.mxu0 %v536
        %v933 = vpop.f32.mrf.mxu0
        %v934 = vadd.f32 0.0, %v933
        %v935 = vpop.f32.mrf.mxu0
        %v936 = vadd.f32 0.0, %v935
        %937 = vmatmul.bf16.gmra.mxu0 %v537
        %v938 = vpop.f32.mrf.mxu0
        %v939 = vadd.f32 0.0, %v938
        %v940 = vpop.f32.mrf.mxu0
        %v941 = vadd.f32 0.0, %v940
        %942 = vmatmul.bf16.gmra.mxu0 %v538
        %v943 = vpop.f32.mrf.mxu0
        %v944 = vadd.f32 0.0, %v943
        %v945 = vpop.f32.mrf.mxu0
        %v946 = vadd.f32 0.0, %v945
        %947 = vmatmul.bf16.gmra.mxu0 %v539
        %v948 = vpop.f32.mrf.mxu0
        %v949 = vadd.f32 0.0, %v948
        %v950 = vpop.f32.mrf.mxu0
        %v951 = vadd.f32 0.0, %v950
        %952 = vmatmul.bf16.gmra.mxu0 %v540
        %v953 = vpop.f32.mrf.mxu0
        %v954 = vadd.f32 0.0, %v953
        %v955 = vpop.f32.mrf.mxu0
        %v956 = vadd.f32 0.0, %v955
        %957 = vmatmul.bf16.gmra.mxu0 %v541
        %v958 = vpop.f32.mrf.mxu0
        %v959 = vadd.f32 0.0, %v958
        %v960 = vpop.f32.mrf.mxu0
        %v961 = vadd.f32 0.0, %v960
        %962 = vmatmul.bf16.gmra.mxu0 %v542
        %v963 = vpop.f32.mrf.mxu0
        %v964 = vadd.f32 0.0, %v963
        %v965 = vpop.f32.mrf.mxu0
        %v966 = vadd.f32 0.0, %v965
        %967 = vmatmul.bf16.gmra.mxu0 %v543
        %v968 = vpop.f32.mrf.mxu0
        %v969 = vadd.f32 0.0, %v968
        %v970 = vpop.f32.mrf.mxu0
        %v971 = vadd.f32 0.0, %v970
        %972 = vmatmul.bf16.gmra.mxu0 %v544
        %v973 = vpop.f32.mrf.mxu0
        %v974 = vadd.f32 0.0, %v973
        %v975 = vpop.f32.mrf.mxu0
        %v976 = vadd.f32 0.0, %v975
        %977 = vmatmul.bf16.gmra.mxu0 %v545
        %v978 = vpop.f32.mrf.mxu0
        %v979 = vadd.f32 0.0, %v978
        %v980 = vpop.f32.mrf.mxu0
        %v981 = vadd.f32 0.0, %v980
        %982 = vmatmul.bf16.gmra.mxu0 %v546
        %v983 = vpop.f32.mrf.mxu0
        %v984 = vadd.f32 0.0, %v983
        %v985 = vpop.f32.mrf.mxu0
        %v986 = vadd.f32 0.0, %v985
        %987 = vmatmul.bf16.gmra.mxu0 %v547
        %v988 = vpop.f32.mrf.mxu0
        %v989 = vadd.f32 0.0, %v988
        %v990 = vpop.f32.mrf.mxu0
        %v991 = vadd.f32 0.0, %v990
        %992 = vmatmul.bf16.gmra.mxu0 %v548
        %v993 = vpop.f32.mrf.mxu0
        %v994 = vadd.f32 0.0, %v993
        %v995 = vpop.f32.mrf.mxu0
        %v996 = vadd.f32 0.0, %v995
        %997 = vmatmul.bf16.gmra.mxu0 %v549
        %v998 = vpop.f32.mrf.mxu0
        %v999 = vadd.f32 0.0, %v998
        %v1000 = vpop.f32.mrf.mxu0
        %v1001 = vadd.f32 0.0, %v1000
        %1002 = vmatmul.bf16.gmra.mxu0 %v550
        %v1003 = vpop.f32.mrf.mxu0
        %v1004 = vadd.f32 0.0, %v1003
        %v1005 = vpop.f32.mrf.mxu0
        %v1006 = vadd.f32 0.0, %v1005
        %1007 = vmatmul.bf16.gmra.mxu0 %v551
        %v1008 = vpop.f32.mrf.mxu0
        %v1009 = vadd.f32 0.0, %v1008
        %v1010 = vpop.f32.mrf.mxu0
        %v1011 = vadd.f32 0.0, %v1010
        %1012 = vmatmul.bf16.gmra.mxu0 %v552
        %v1013 = vpop.f32.mrf.mxu0
        %v1014 = vadd.f32 0.0, %v1013
        %v1015 = vpop.f32.mrf.mxu0
        %v1016 = vadd.f32 0.0, %v1015
        %1017 = vmatmul.bf16.gmra.mxu0 %v553
        %v1018 = vpop.f32.mrf.mxu0
        %v1019 = vadd.f32 0.0, %v1018
        %v1020 = vpop.f32.mrf.mxu0
        %v1021 = vadd.f32 0.0, %v1020
        %1022 = vmatmul.bf16.gmra.mxu0 %v554
        %v1023 = vpop.f32.mrf.mxu0
        %v1024 = vadd.f32 0.0, %v1023
        %v1025 = vpop.f32.mrf.mxu0
        %v1026 = vadd.f32 0.0, %v1025
        %1027 = vmatmul.bf16.gmra.mxu0 %v555
        %v1028 = vpop.f32.mrf.mxu0
        %v1029 = vadd.f32 0.0, %v1028
        %v1030 = vpop.f32.mrf.mxu0
        %v1031 = vadd.f32 0.0, %v1030
        %1032 = vmatmul.bf16.gmra.mxu0 %v556
        %v1033 = vpop.f32.mrf.mxu0
        %v1034 = vadd.f32 0.0, %v1033
        %v1035 = vpop.f32.mrf.mxu0
        %v1036 = vadd.f32 0.0, %v1035
        %1037 = vdwg.mxu0
        %1038 = vmatpush.bf16.msra.mxu0 %v834
        %1039 = vmatpush.bf16.msra.mxu0 %v830
        %1040 = vmatpush.bf16.msra.mxu0 %v826
        %1041 = vmatpush.bf16.msra.mxu0 %v822
        %1042 = vmatpush.bf16.msra.mxu0 %v818
        %1043 = vmatpush.bf16.msra.mxu0 %v814
        %1044 = vmatpush.bf16.msra.mxu0 %v810
        %1045 = vmatpush.bf16.msra.mxu0 %v806
        %1046 = vmatmul.bf16.gmra.mxu0 %v693
        %v1047 = vpop.f32.mrf.mxu0
        %v1048 = vadd.f32 0.0, %v1047
        %v1049 = vpop.f32.mrf.mxu0
        %v1050 = vadd.f32 0.0, %v1049
        %1051 = vmatmul.bf16.gmra.mxu0 %v694
        %v1052 = vpop.f32.mrf.mxu0
        %v1053 = vadd.f32 0.0, %v1052
        %v1054 = vpop.f32.mrf.mxu0
        %v1055 = vadd.f32 0.0, %v1054
        %1056 = vmatmul.bf16.gmra.mxu0 %v695
        %v1057 = vpop.f32.mrf.mxu0
        %v1058 = vadd.f32 0.0, %v1057
        %v1059 = vpop.f32.mrf.mxu0
        %v1060 = vadd.f32 0.0, %v1059
        %1061 = vmatmul.bf16.gmra.mxu0 %v696
        %v1062 = vpop.f32.mrf.mxu0
        %v1063 = vadd.f32 0.0, %v1062
        %v1064 = vpop.f32.mrf.mxu0
        %v1065 = vadd.f32 0.0, %v1064
        %1066 = vmatmul.bf16.gmra.mxu0 %v697
        %v1067 = vpop.f32.mrf.mxu0
        %v1068 = vadd.f32 0.0, %v1067
        %v1069 = vpop.f32.mrf.mxu0
        %v1070 = vadd.f32 0.0, %v1069
        %1071 = vmatmul.bf16.gmra.mxu0 %v698
        %v1072 = vpop.f32.mrf.mxu0
        %v1073 = vadd.f32 0.0, %v1072
        %v1074 = vpop.f32.mrf.mxu0
        %v1075 = vadd.f32 0.0, %v1074
        %1076 = vmatmul.bf16.gmra.mxu0 %v699
        %v1077 = vpop.f32.mrf.mxu0
        %v1078 = vadd.f32 0.0, %v1077
        %v1079 = vpop.f32.mrf.mxu0
        %v1080 = vadd.f32 0.0, %v1079
        %1081 = vmatmul.bf16.gmra.mxu0 %v700
        %v1082 = vpop.f32.mrf.mxu0
        %v1083 = vadd.f32 0.0, %v1082
        %v1084 = vpop.f32.mrf.mxu0
        %v1085 = vadd.f32 0.0, %v1084
        %1086 = vmatmul.bf16.gmra.mxu0 %v533
        %v1087 = vpop.f32.mrf.mxu0
        %v1088 = vadd.f32 0.0, %v1087
        %v1089 = vpop.f32.mrf.mxu0
        %v1090 = vadd.f32 0.0, %v1089
        %1091 = vmatmul.bf16.gmra.mxu0 %v534
        %v1092 = vpop.f32.mrf.mxu0
        %v1093 = vadd.f32 0.0, %v1092
        %v1094 = vpop.f32.mrf.mxu0
        %v1095 = vadd.f32 0.0, %v1094
        %1096 = vmatmul.bf16.gmra.mxu0 %v535
        %v1097 = vpop.f32.mrf.mxu0
        %v1098 = vadd.f32 0.0, %v1097
        %v1099 = vpop.f32.mrf.mxu0
        %v1100 = vadd.f32 0.0, %v1099
        %1101 = vmatmul.bf16.gmra.mxu0 %v536
        %v1102 = vpop.f32.mrf.mxu0
        %v1103 = vadd.f32 0.0, %v1102
        %v1104 = vpop.f32.mrf.mxu0
        %v1105 = vadd.f32 0.0, %v1104
        %1106 = vmatmul.bf16.gmra.mxu0 %v537
        %v1107 = vpop.f32.mrf.mxu0
        %v1108 = vadd.f32 0.0, %v1107
        %v1109 = vpop.f32.mrf.mxu0
        %v1110 = vadd.f32 0.0, %v1109
        %1111 = vmatmul.bf16.gmra.mxu0 %v538
        %v1112 = vpop.f32.mrf.mxu0
        %v1113 = vadd.f32 0.0, %v1112
        %v1114 = vpop.f32.mrf.mxu0
        %v1115 = vadd.f32 0.0, %v1114
        %1116 = vmatmul.bf16.gmra.mxu0 %v539
        %v1117 = vpop.f32.mrf.mxu0
        %v1118 = vadd.f32 0.0, %v1117
        %v1119 = vpop.f32.mrf.mxu0
        %v1120 = vadd.f32 0.0, %v1119
        %1121 = vmatmul.bf16.gmra.mxu0 %v540
        %v1122 = vpop.f32.mrf.mxu0
        %v1123 = vadd.f32 0.0, %v1122
        %v1124 = vpop.f32.mrf.mxu0
        %v1125 = vadd.f32 0.0, %v1124
        %1126 = vmatmul.bf16.gmra.mxu0 %v541
        %v1127 = vpop.f32.mrf.mxu0
        %v1128 = vadd.f32 0.0, %v1127
        %v1129 = vpop.f32.mrf.mxu0
        %v1130 = vadd.f32 0.0, %v1129
        %1131 = vmatmul.bf16.gmra.mxu0 %v542
        %v1132 = vpop.f32.mrf.mxu0
        %v1133 = vadd.f32 0.0, %v1132
        %v1134 = vpop.f32.mrf.mxu0
        %v1135 = vadd.f32 0.0, %v1134
        %1136 = vmatmul.bf16.gmra.mxu0 %v543
        %v1137 = vpop.f32.mrf.mxu0
        %v1138 = vadd.f32 0.0, %v1137
        %v1139 = vpop.f32.mrf.mxu0
        %v1140 = vadd.f32 0.0, %v1139
        %1141 = vmatmul.bf16.gmra.mxu0 %v544
        %v1142 = vpop.f32.mrf.mxu0
        %v1143 = vadd.f32 0.0, %v1142
        %v1144 = vpop.f32.mrf.mxu0
        %v1145 = vadd.f32 0.0, %v1144
        %1146 = vmatmul.bf16.gmra.mxu0 %v545
        %v1147 = vpop.f32.mrf.mxu0
        %v1148 = vadd.f32 0.0, %v1147
        %v1149 = vpop.f32.mrf.mxu0
        %v1150 = vadd.f32 0.0, %v1149
        %1151 = vmatmul.bf16.gmra.mxu0 %v546
        %v1152 = vpop.f32.mrf.mxu0
        %v1153 = vadd.f32 0.0, %v1152
        %v1154 = vpop.f32.mrf.mxu0
        %v1155 = vadd.f32 0.0, %v1154
        %1156 = vmatmul.bf16.gmra.mxu0 %v547
        %v1157 = vpop.f32.mrf.mxu0
        %v1158 = vadd.f32 0.0, %v1157
        %v1159 = vpop.f32.mrf.mxu0
        %v1160 = vadd.f32 0.0, %v1159
        %1161 = vmatmul.bf16.gmra.mxu0 %v548
        %v1162 = vpop.f32.mrf.mxu0
        %v1163 = vadd.f32 0.0, %v1162
        %v1164 = vpop.f32.mrf.mxu0
        %v1165 = vadd.f32 0.0, %v1164
        %1166 = vmatmul.bf16.gmra.mxu0 %v549
        %v1167 = vpop.f32.mrf.mxu0
        %v1168 = vadd.f32 0.0, %v1167
        %v1169 = vpop.f32.mrf.mxu0
        %v1170 = vadd.f32 0.0, %v1169
        %1171 = vmatmul.bf16.gmra.mxu0 %v550
        %v1172 = vpop.f32.mrf.mxu0
        %v1173 = vadd.f32 0.0, %v1172
        %v1174 = vpop.f32.mrf.mxu0
        %v1175 = vadd.f32 0.0, %v1174
        %1176 = vmatmul.bf16.gmra.mxu0 %v551
        %v1177 = vpop.f32.mrf.mxu0
        %v1178 = vadd.f32 0.0, %v1177
        %v1179 = vpop.f32.mrf.mxu0
        %v1180 = vadd.f32 0.0, %v1179
        %1181 = vmatmul.bf16.gmra.mxu0 %v552
        %v1182 = vpop.f32.mrf.mxu0
        %v1183 = vadd.f32 0.0, %v1182
        %v1184 = vpop.f32.mrf.mxu0
        %v1185 = vadd.f32 0.0, %v1184
        %1186 = vmatmul.bf16.gmra.mxu0 %v553
        %v1187 = vpop.f32.mrf.mxu0
        %v1188 = vadd.f32 0.0, %v1187
        %v1189 = vpop.f32.mrf.mxu0
        %v1190 = vadd.f32 0.0, %v1189
        %1191 = vmatmul.bf16.gmra.mxu0 %v554
        %v1192 = vpop.f32.mrf.mxu0
        %v1193 = vadd.f32 0.0, %v1192
        %v1194 = vpop.f32.mrf.mxu0
        %v1195 = vadd.f32 0.0, %v1194
        %1196 = vmatmul.bf16.gmra.mxu0 %v555
        %v1197 = vpop.f32.mrf.mxu0
        %v1198 = vadd.f32 0.0, %v1197
        %v1199 = vpop.f32.mrf.mxu0
        %v1200 = vadd.f32 0.0, %v1199
        %1201 = vmatmul.bf16.gmra.mxu0 %v556
        %v1202 = vpop.f32.mrf.mxu0
        %v1203 = vadd.f32 0.0, %v1202
        %v1204 = vpop.f32.mrf.mxu0
        %v1205 = vadd.f32 0.0, %v1204
        %1206 = vdwg.mxu0
        %1207 = vmatpush.bf16.msra.mxu0 %v835
        %1208 = vmatpush.bf16.msra.mxu0 %v831
        %1209 = vmatpush.bf16.msra.mxu0 %v827
        %1210 = vmatpush.bf16.msra.mxu0 %v823
        %1211 = vmatpush.bf16.msra.mxu0 %v819
        %1212 = vmatpush.bf16.msra.mxu0 %v815
        %1213 = vmatpush.bf16.msra.mxu0 %v811
        %1214 = vmatpush.bf16.msra.mxu0 %v807
        %1215 = vmatmul.bf16.gmra.mxu0 %v693
        %v1216 = vpop.f32.mrf.mxu0
        %v1217 = vadd.f32 0.0, %v1216
        %v1218 = vpop.f32.mrf.mxu0
        %v1219 = vadd.f32 0.0, %v1218
        %1220 = vmatmul.bf16.gmra.mxu0 %v694
        %v1221 = vpop.f32.mrf.mxu0
        %v1222 = vadd.f32 0.0, %v1221
        %v1223 = vpop.f32.mrf.mxu0
        %v1224 = vadd.f32 0.0, %v1223
        %1225 = vmatmul.bf16.gmra.mxu0 %v695
        %v1226 = vpop.f32.mrf.mxu0
        %v1227 = vadd.f32 0.0, %v1226
        %v1228 = vpop.f32.mrf.mxu0
        %v1229 = vadd.f32 0.0, %v1228
        %1230 = vmatmul.bf16.gmra.mxu0 %v696
        %v1231 = vpop.f32.mrf.mxu0
        %v1232 = vadd.f32 0.0, %v1231
        %v1233 = vpop.f32.mrf.mxu0
        %v1234 = vadd.f32 0.0, %v1233
        %1235 = vmatmul.bf16.gmra.mxu0 %v697
        %v1236 = vpop.f32.mrf.mxu0
        %v1237 = vadd.f32 0.0, %v1236
        %v1238 = vpop.f32.mrf.mxu0
        %v1239 = vadd.f32 0.0, %v1238
        %1240 = vmatmul.bf16.gmra.mxu0 %v698
        %v1241 = vpop.f32.mrf.mxu0
        %v1242 = vadd.f32 0.0, %v1241
        %v1243 = vpop.f32.mrf.mxu0
        %v1244 = vadd.f32 0.0, %v1243
        %1245 = vmatmul.bf16.gmra.mxu0 %v699
        %v1246 = vpop.f32.mrf.mxu0
        %v1247 = vadd.f32 0.0, %v1246
        %v1248 = vpop.f32.mrf.mxu0
        %v1249 = vadd.f32 0.0, %v1248
        %1250 = vmatmul.bf16.gmra.mxu0 %v700
        %v1251 = vpop.f32.mrf.mxu0
        %v1252 = vadd.f32 0.0, %v1251
        %v1253 = vpop.f32.mrf.mxu0
        %v1254 = vadd.f32 0.0, %v1253
        %1255 = vmatmul.bf16.gmra.mxu0 %v533
        %v1256 = vpop.f32.mrf.mxu0
        %v1257 = vadd.f32 0.0, %v1256
        %v1258 = vpop.f32.mrf.mxu0
        %v1259 = vadd.f32 0.0, %v1258
        %1260 = vmatmul.bf16.gmra.mxu0 %v534
        %v1261 = vpop.f32.mrf.mxu0
        %v1262 = vadd.f32 0.0, %v1261
        %v1263 = vpop.f32.mrf.mxu0
        %v1264 = vadd.f32 0.0, %v1263
        %1265 = vmatmul.bf16.gmra.mxu0 %v535
        %v1266 = vpop.f32.mrf.mxu0
        %v1267 = vadd.f32 0.0, %v1266
        %v1268 = vpop.f32.mrf.mxu0
        %v1269 = vadd.f32 0.0, %v1268
        %1270 = vmatmul.bf16.gmra.mxu0 %v536
        %v1271 = vpop.f32.mrf.mxu0
        %v1272 = vadd.f32 0.0, %v1271
        %v1273 = vpop.f32.mrf.mxu0
        %v1274 = vadd.f32 0.0, %v1273
        %1275 = vmatmul.bf16.gmra.mxu0 %v537
        %v1276 = vpop.f32.mrf.mxu0
        %v1277 = vadd.f32 0.0, %v1276
        %v1278 = vpop.f32.mrf.mxu0
        %v1279 = vadd.f32 0.0, %v1278
        %1280 = vmatmul.bf16.gmra.mxu0 %v538
        %v1281 = vpop.f32.mrf.mxu0
        %v1282 = vadd.f32 0.0, %v1281
        %v1283 = vpop.f32.mrf.mxu0
        %v1284 = vadd.f32 0.0, %v1283
        %1285 = vmatmul.bf16.gmra.mxu0 %v539
        %v1286 = vpop.f32.mrf.mxu0
        %v1287 = vadd.f32 0.0, %v1286
        %v1288 = vpop.f32.mrf.mxu0
        %v1289 = vadd.f32 0.0, %v1288
        %1290 = vmatmul.bf16.gmra.mxu0 %v540
        %v1291 = vpop.f32.mrf.mxu0
        %v1292 = vadd.f32 0.0, %v1291
        %v1293 = vpop.f32.mrf.mxu0
        %v1294 = vadd.f32 0.0, %v1293
        %1295 = vmatmul.bf16.gmra.mxu0 %v541
        %v1296 = vpop.f32.mrf.mxu0
        %v1297 = vadd.f32 0.0, %v1296
        %v1298 = vpop.f32.mrf.mxu0
        %v1299 = vadd.f32 0.0, %v1298
        %1300 = vmatmul.bf16.gmra.mxu0 %v542
        %v1301 = vpop.f32.mrf.mxu0
        %v1302 = vadd.f32 0.0, %v1301
        %v1303 = vpop.f32.mrf.mxu0
        %v1304 = vadd.f32 0.0, %v1303
        %1305 = vmatmul.bf16.gmra.mxu0 %v543
        %v1306 = vpop.f32.mrf.mxu0
        %v1307 = vadd.f32 0.0, %v1306
        %v1308 = vpop.f32.mrf.mxu0
        %v1309 = vadd.f32 0.0, %v1308
        %1310 = vmatmul.bf16.gmra.mxu0 %v544
        %v1311 = vpop.f32.mrf.mxu0
        %v1312 = vadd.f32 0.0, %v1311
        %v1313 = vpop.f32.mrf.mxu0
        %v1314 = vadd.f32 0.0, %v1313
        %1315 = vmatmul.bf16.gmra.mxu0 %v545
        %v1316 = vpop.f32.mrf.mxu0
        %v1317 = vadd.f32 0.0, %v1316
        %v1318 = vpop.f32.mrf.mxu0
        %v1319 = vadd.f32 0.0, %v1318
        %1320 = vmatmul.bf16.gmra.mxu0 %v546
        %v1321 = vpop.f32.mrf.mxu0
        %v1322 = vadd.f32 0.0, %v1321
        %v1323 = vpop.f32.mrf.mxu0
        %v1324 = vadd.f32 0.0, %v1323
        %1325 = vmatmul.bf16.gmra.mxu0 %v547
        %v1326 = vpop.f32.mrf.mxu0
        %v1327 = vadd.f32 0.0, %v1326
        %v1328 = vpop.f32.mrf.mxu0
        %v1329 = vadd.f32 0.0, %v1328
        %1330 = vmatmul.bf16.gmra.mxu0 %v548
        %v1331 = vpop.f32.mrf.mxu0
        %v1332 = vadd.f32 0.0, %v1331
        %v1333 = vpop.f32.mrf.mxu0
        %v1334 = vadd.f32 0.0, %v1333
        %1335 = vmatmul.bf16.gmra.mxu0 %v549
        %v1336 = vpop.f32.mrf.mxu0
        %v1337 = vadd.f32 0.0, %v1336
        %v1338 = vpop.f32.mrf.mxu0
        %v1339 = vadd.f32 0.0, %v1338
        %1340 = vmatmul.bf16.gmra.mxu0 %v550
        %v1341 = vpop.f32.mrf.mxu0
        %v1342 = vadd.f32 0.0, %v1341
        %v1343 = vpop.f32.mrf.mxu0
        %v1344 = vadd.f32 0.0, %v1343
        %1345 = vmatmul.bf16.gmra.mxu0 %v551
        %v1346 = vpop.f32.mrf.mxu0
        %v1347 = vadd.f32 0.0, %v1346
        %v1348 = vpop.f32.mrf.mxu0
        %v1349 = vadd.f32 0.0, %v1348
        %1350 = vmatmul.bf16.gmra.mxu0 %v552
        %v1351 = vpop.f32.mrf.mxu0
        %v1352 = vadd.f32 0.0, %v1351
        %v1353 = vpop.f32.mrf.mxu0
        %v1354 = vadd.f32 0.0, %v1353
        %1355 = vmatmul.bf16.gmra.mxu0 %v553
        %v1356 = vpop.f32.mrf.mxu0
        %v1357 = vadd.f32 0.0, %v1356
        %v1358 = vpop.f32.mrf.mxu0
        %v1359 = vadd.f32 0.0, %v1358
        %1360 = vmatmul.bf16.gmra.mxu0 %v554
        %v1361 = vpop.f32.mrf.mxu0
        %v1362 = vadd.f32 0.0, %v1361
        %v1363 = vpop.f32.mrf.mxu0
        %v1364 = vadd.f32 0.0, %v1363
        %1365 = vmatmul.bf16.gmra.mxu0 %v555
        %v1366 = vpop.f32.mrf.mxu0
        %v1367 = vadd.f32 0.0, %v1366
        %v1368 = vpop.f32.mrf.mxu0
        %v1369 = vadd.f32 0.0, %v1368
        %1370 = vmatmul.bf16.gmra.mxu0 %v556
        %v1371 = vpop.f32.mrf.mxu0
        %v1372 = vadd.f32 0.0, %v1371
        %v1373 = vpop.f32.mrf.mxu0
        %v1374 = vadd.f32 0.0, %v1373
        %1375 = vdwg.mxu0
        %1376 = vmatpush.bf16.msra.mxu0 %v836
        %1377 = vmatpush.bf16.msra.mxu0 %v832
        %1378 = vmatpush.bf16.msra.mxu0 %v828
        %1379 = vmatpush.bf16.msra.mxu0 %v824
        %1380 = vmatpush.bf16.msra.mxu0 %v820
        %1381 = vmatpush.bf16.msra.mxu0 %v816
        %1382 = vmatpush.bf16.msra.mxu0 %v812
        %1383 = vmatpush.bf16.msra.mxu0 %v808
        %1384 = vmatmul.bf16.gmra.mxu0 %v693
        %v1385 = vpop.f32.mrf.mxu0
        %v1386 = vadd.f32 0.0, %v1385
        %v1387 = vpop.f32.mrf.mxu0
        %v1388 = vadd.f32 0.0, %v1387
        %1389 = vmatmul.bf16.gmra.mxu0 %v694
        %v1390 = vpop.f32.mrf.mxu0
        %v1391 = vadd.f32 0.0, %v1390
        %v1392 = vpop.f32.mrf.mxu0
        %v1393 = vadd.f32 0.0, %v1392
        %1394 = vmatmul.bf16.gmra.mxu0 %v695
        %v1395 = vpop.f32.mrf.mxu0
        %v1396 = vadd.f32 0.0, %v1395
        %v1397 = vpop.f32.mrf.mxu0
        %v1398 = vadd.f32 0.0, %v1397
        %1399 = vmatmul.bf16.gmra.mxu0 %v696
        %v1400 = vpop.f32.mrf.mxu0
        %v1401 = vadd.f32 0.0, %v1400
        %v1402 = vpop.f32.mrf.mxu0
        %v1403 = vadd.f32 0.0, %v1402
        %1404 = vmatmul.bf16.gmra.mxu0 %v697
        %v1405 = vpop.f32.mrf.mxu0
        %v1406 = vadd.f32 0.0, %v1405
        %v1407 = vpop.f32.mrf.mxu0
        %v1408 = vadd.f32 0.0, %v1407
        %1409 = vmatmul.bf16.gmra.mxu0 %v698
        %v1410 = vpop.f32.mrf.mxu0
        %v1411 = vadd.f32 0.0, %v1410
        %v1412 = vpop.f32.mrf.mxu0
        %v1413 = vadd.f32 0.0, %v1412
        %1414 = vmatmul.bf16.gmra.mxu0 %v699
        %v1415 = vpop.f32.mrf.mxu0
        %v1416 = vadd.f32 0.0, %v1415
        %v1417 = vpop.f32.mrf.mxu0
        %v1418 = vadd.f32 0.0, %v1417
        %1419 = vmatmul.bf16.gmra.mxu0 %v700
        %v1420 = vpop.f32.mrf.mxu0
        %v1421 = vadd.f32 0.0, %v1420
        %v1422 = vpop.f32.mrf.mxu0
        %v1423 = vadd.f32 0.0, %v1422
        %1424 = vmatmul.bf16.gmra.mxu0 %v533
        %v1425 = vpop.f32.mrf.mxu0
        %v1426 = vadd.f32 0.0, %v1425
        %v1427 = vpop.f32.mrf.mxu0
        %v1428 = vadd.f32 0.0, %v1427
        %1429 = vmatmul.bf16.gmra.mxu0 %v534
        %v1430 = vpop.f32.mrf.mxu0
        %v1431 = vadd.f32 0.0, %v1430
        %v1432 = vpop.f32.mrf.mxu0
        %v1433 = vadd.f32 0.0, %v1432
        %1434 = vmatmul.bf16.gmra.mxu0 %v535
        %v1435 = vpop.f32.mrf.mxu0
        %v1436 = vadd.f32 0.0, %v1435
        %v1437 = vpop.f32.mrf.mxu0
        %v1438 = vadd.f32 0.0, %v1437
        %1439 = vmatmul.bf16.gmra.mxu0 %v536
        %v1440 = vpop.f32.mrf.mxu0
        %v1441 = vadd.f32 0.0, %v1440
        %v1442 = vpop.f32.mrf.mxu0
        %v1443 = vadd.f32 0.0, %v1442
        %1444 = vmatmul.bf16.gmra.mxu0 %v537
        %v1445 = vpop.f32.mrf.mxu0
        %v1446 = vadd.f32 0.0, %v1445
        %v1447 = vpop.f32.mrf.mxu0
        %v1448 = vadd.f32 0.0, %v1447
        %1449 = vmatmul.bf16.gmra.mxu0 %v538
        %v1450 = vpop.f32.mrf.mxu0
        %v1451 = vadd.f32 0.0, %v1450
        %v1452 = vpop.f32.mrf.mxu0
        %v1453 = vadd.f32 0.0, %v1452
        %1454 = vmatmul.bf16.gmra.mxu0 %v539
        %v1455 = vpop.f32.mrf.mxu0
        %v1456 = vadd.f32 0.0, %v1455
        %v1457 = vpop.f32.mrf.mxu0
        %v1458 = vadd.f32 0.0, %v1457
        %1459 = vmatmul.bf16.gmra.mxu0 %v540
        %v1460 = vpop.f32.mrf.mxu0
        %v1461 = vadd.f32 0.0, %v1460
        %v1462 = vpop.f32.mrf.mxu0
        %v1463 = vadd.f32 0.0, %v1462
        %1464 = vmatmul.bf16.gmra.mxu0 %v541
        %v1465 = vpop.f32.mrf.mxu0
        %v1466 = vadd.f32 0.0, %v1465
        %v1467 = vpop.f32.mrf.mxu0
        %v1468 = vadd.f32 0.0, %v1467
        %1469 = vmatmul.bf16.gmra.mxu0 %v542
        %v1470 = vpop.f32.mrf.mxu0
        %v1471 = vadd.f32 0.0, %v1470
        %v1472 = vpop.f32.mrf.mxu0
        %v1473 = vadd.f32 0.0, %v1472
        %1474 = vmatmul.bf16.gmra.mxu0 %v543
        %v1475 = vpop.f32.mrf.mxu0
        %v1476 = vadd.f32 0.0, %v1475
        %v1477 = vpop.f32.mrf.mxu0
        %v1478 = vadd.f32 0.0, %v1477
        %1479 = vmatmul.bf16.gmra.mxu0 %v544
        %v1480 = vpop.f32.mrf.mxu0
        %v1481 = vadd.f32 0.0, %v1480
        %v1482 = vpop.f32.mrf.mxu0
        %v1483 = vadd.f32 0.0, %v1482
        %1484 = vmatmul.bf16.gmra.mxu0 %v545
        %v1485 = vpop.f32.mrf.mxu0
        %v1486 = vadd.f32 0.0, %v1485
        %v1487 = vpop.f32.mrf.mxu0
        %v1488 = vadd.f32 0.0, %v1487
        %1489 = vmatmul.bf16.gmra.mxu0 %v546
        %v1490 = vpop.f32.mrf.mxu0
        %v1491 = vadd.f32 0.0, %v1490
        %v1492 = vpop.f32.mrf.mxu0
        %v1493 = vadd.f32 0.0, %v1492
        %1494 = vmatmul.bf16.gmra.mxu0 %v547
        %v1495 = vpop.f32.mrf.mxu0
        %v1496 = vadd.f32 0.0, %v1495
        %v1497 = vpop.f32.mrf.mxu0
        %v1498 = vadd.f32 0.0, %v1497
        %1499 = vmatmul.bf16.gmra.mxu0 %v548
        %v1500 = vpop.f32.mrf.mxu0
        %v1501 = vadd.f32 0.0, %v1500
        %v1502 = vpop.f32.mrf.mxu0
        %v1503 = vadd.f32 0.0, %v1502
        %1504 = vmatmul.bf16.gmra.mxu0 %v549
        %v1505 = vpop.f32.mrf.mxu0
        %v1506 = vadd.f32 0.0, %v1505
        %v1507 = vpop.f32.mrf.mxu0
        %v1508 = vadd.f32 0.0, %v1507
        %1509 = vmatmul.bf16.gmra.mxu0 %v550
        %v1510 = vpop.f32.mrf.mxu0
        %v1511 = vadd.f32 0.0, %v1510
        %v1512 = vpop.f32.mrf.mxu0
        %v1513 = vadd.f32 0.0, %v1512
        %1514 = vmatmul.bf16.gmra.mxu0 %v551
        %v1515 = vpop.f32.mrf.mxu0
        %v1516 = vadd.f32 0.0, %v1515
        %v1517 = vpop.f32.mrf.mxu0
        %v1518 = vadd.f32 0.0, %v1517
        %1519 = vmatmul.bf16.gmra.mxu0 %v552
        %v1520 = vpop.f32.mrf.mxu0
        %v1521 = vadd.f32 0.0, %v1520
        %v1522 = vpop.f32.mrf.mxu0
        %v1523 = vadd.f32 0.0, %v1522
        %1524 = vmatmul.bf16.gmra.mxu0 %v553
        %v1525 = vpop.f32.mrf.mxu0
        %v1526 = vadd.f32 0.0, %v1525
        %v1527 = vpop.f32.mrf.mxu0
        %v1528 = vadd.f32 0.0, %v1527
        %1529 = vmatmul.bf16.gmra.mxu0 %v554
        %v1530 = vpop.f32.mrf.mxu0
        %v1531 = vadd.f32 0.0, %v1530
        %v1532 = vpop.f32.mrf.mxu0
        %v1533 = vadd.f32 0.0, %v1532
        %1534 = vmatmul.bf16.gmra.mxu0 %v555
        %v1535 = vpop.f32.mrf.mxu0
        %v1536 = vadd.f32 0.0, %v1535
        %v1537 = vpop.f32.mrf.mxu0
        %v1538 = vadd.f32 0.0, %v1537
        %1539 = vmatmul.bf16.gmra.mxu0 %v556
        %v1540 = vpop.f32.mrf.mxu0
        %v1541 = vadd.f32 0.0, %v1540
        %v1542 = vpop.f32.mrf.mxu0
        %v1543 = vadd.f32 0.0, %v1542
        %1544 = vdwg.mxu0
        %v1545 = vld [vmem:[%s3] sm:$0xff]
        %v1546 = vld [vmem:[%s3 + $0x8] sm:$0xff]
        %v1547 = vld [vmem:[%s3 + $0x10] sm:$0xff]
        %v1548 = vld [vmem:[%s3 + $0x18] sm:$0xff]
        %v1549 = vld [vmem:[%s3 + $0x20] sm:$0xff]
        %v1550 = vld [vmem:[%s3 + $0x28] sm:$0xff]
        %v1551 = vld [vmem:[%s3 + $0x30] sm:$0xff]
        %v1552 = vld [vmem:[%s3 + $0x38] sm:$0xff]
        %v1553 = vld [vmem:[%s3 + $0x40] sm:$0xff]
        %v1554 = vld [vmem:[%s3 + $0x48] sm:$0xff]
        %v1555 = vld [vmem:[%s3 + $0x50] sm:$0xff]
        %v1556 = vld [vmem:[%s3 + $0x58] sm:$0xff]
        %v1557 = vld [vmem:[%s3 + $0x60] sm:$0xff]
        %v1558 = vld [vmem:[%s3 + $0x68] sm:$0xff]
        %v1559 = vld [vmem:[%s3 + $0x70] sm:$0xff]
        %v1560 = vld [vmem:[%s3 + $0x78] sm:$0xff]
        %v1577 = vunpack.c.l.b16 %v1545
        %v1578 = vunpack.c.h.b16 %v1545
        %v1579 = vunpack.c.l.b16 %v1546
        %v1580 = vunpack.c.h.b16 %v1546
        %v1581 = vunpack.c.l.b16 %v1547
        %v1582 = vunpack.c.h.b16 %v1547
        %v1583 = vunpack.c.l.b16 %v1548
        %v1584 = vunpack.c.h.b16 %v1548
        %v1585 = vunpack.c.l.b16 %v1549
        %v1586 = vunpack.c.h.b16 %v1549
        %v1587 = vunpack.c.l.b16 %v1550
        %v1588 = vunpack.c.h.b16 %v1550
        %v1589 = vunpack.c.l.b16 %v1551
        %v1590 = vunpack.c.h.b16 %v1551
        %v1591 = vunpack.c.l.b16 %v1552
        %v1592 = vunpack.c.h.b16 %v1552
        %v1593 = vunpack.c.l.b16 %v1553
        %v1594 = vunpack.c.h.b16 %v1553
        %v1595 = vunpack.c.l.b16 %v1554
        %v1596 = vunpack.c.h.b16 %v1554
        %v1597 = vunpack.c.l.b16 %v1555
        %v1598 = vunpack.c.h.b16 %v1555
        %v1599 = vunpack.c.l.b16 %v1556
        %v1600 = vunpack.c.h.b16 %v1556
        %v1601 = vunpack.c.l.b16 %v1557
        %v1602 = vunpack.c.h.b16 %v1557
        %v1603 = vunpack.c.l.b16 %v1558
        %v1604 = vunpack.c.h.b16 %v1558
        %v1605 = vunpack.c.l.b16 %v1559
        %v1606 = vunpack.c.h.b16 %v1559
        %v1607 = vunpack.c.l.b16 %v1560
        %v1608 = vunpack.c.h.b16 %v1560
        %v1609 = vpack.c.b16 %v1579, %v1577
        %v1610 = vpack.c.b16 %v1580, %v1578
        %v1611 = vpack.c.b16 %v1583, %v1581
        %v1612 = vpack.c.b16 %v1584, %v1582
        %v1613 = vpack.c.b16 %v1587, %v1585
        %v1614 = vpack.c.b16 %v1588, %v1586
        %v1615 = vpack.c.b16 %v1591, %v1589
        %v1616 = vpack.c.b16 %v1592, %v1590
        %v1617 = vpack.c.b16 %v1595, %v1593
        %v1618 = vpack.c.b16 %v1596, %v1594
        %v1619 = vpack.c.b16 %v1599, %v1597
        %v1620 = vpack.c.b16 %v1600, %v1598
        %v1621 = vpack.c.b16 %v1603, %v1601
        %v1622 = vpack.c.b16 %v1604, %v1602
        %v1623 = vpack.c.b16 %v1607, %v1605
        %v1624 = vpack.c.b16 %v1608, %v1606
        %1641 = vmatpush.bf16.msra.mxu0 %v1623
        %1642 = vmatpush.bf16.msra.mxu0 %v1621
        %1643 = vmatpush.bf16.msra.mxu0 %v1619
        %1644 = vmatpush.bf16.msra.mxu0 %v1617
        %1645 = vmatpush.bf16.msra.mxu0 %v1615
        %1646 = vmatpush.bf16.msra.mxu0 %v1613
        %1647 = vmatpush.bf16.msra.mxu0 %v1611
        %1648 = vmatpush.bf16.msra.mxu0 %v1609
        %1649 = vmatmul.bf16.gmra.mxu0 %v533
        %v1650 = vpop.f32.mrf.mxu0
        %v1651 = vadd.f32 0.0, %v1650
        %v1652 = vpop.f32.mrf.mxu0
        %v1653 = vadd.f32 0.0, %v1652
        %1654 = vmatmul.bf16.gmra.mxu0 %v534
        %v1655 = vpop.f32.mrf.mxu0
        %v1656 = vadd.f32 0.0, %v1655
        %v1657 = vpop.f32.mrf.mxu0
        %v1658 = vadd.f32 0.0, %v1657
        %1659 = vmatmul.bf16.gmra.mxu0 %v535
        %v1660 = vpop.f32.mrf.mxu0
        %v1661 = vadd.f32 0.0, %v1660
        %v1662 = vpop.f32.mrf.mxu0
        %v1663 = vadd.f32 0.0, %v1662
        %1664 = vmatmul.bf16.gmra.mxu0 %v536
        %v1665 = vpop.f32.mrf.mxu0
        %v1666 = vadd.f32 0.0, %v1665
        %v1667 = vpop.f32.mrf.mxu0
        %v1668 = vadd.f32 0.0, %v1667
        %1669 = vmatmul.bf16.gmra.mxu0 %v537
        %v1670 = vpop.f32.mrf.mxu0
        %v1671 = vadd.f32 0.0, %v1670
        %v1672 = vpop.f32.mrf.mxu0
        %v1673 = vadd.f32 0.0, %v1672
        %1674 = vmatmul.bf16.gmra.mxu0 %v538
        %v1675 = vpop.f32.mrf.mxu0
        %v1676 = vadd.f32 0.0, %v1675
        %v1677 = vpop.f32.mrf.mxu0
        %v1678 = vadd.f32 0.0, %v1677
        %1679 = vmatmul.bf16.gmra.mxu0 %v539
        %v1680 = vpop.f32.mrf.mxu0
        %v1681 = vadd.f32 0.0, %v1680
        %v1682 = vpop.f32.mrf.mxu0
        %v1683 = vadd.f32 0.0, %v1682
        %1684 = vmatmul.bf16.gmra.mxu0 %v540
        %v1685 = vpop.f32.mrf.mxu0
        %v1686 = vadd.f32 0.0, %v1685
        %v1687 = vpop.f32.mrf.mxu0
        %v1688 = vadd.f32 0.0, %v1687
        %1689 = vmatmul.bf16.gmra.mxu0 %v541
        %v1690 = vpop.f32.mrf.mxu0
        %v1691 = vadd.f32 0.0, %v1690
        %v1692 = vpop.f32.mrf.mxu0
        %v1693 = vadd.f32 0.0, %v1692
        %1694 = vmatmul.bf16.gmra.mxu0 %v542
        %v1695 = vpop.f32.mrf.mxu0
        %v1696 = vadd.f32 0.0, %v1695
        %v1697 = vpop.f32.mrf.mxu0
        %v1698 = vadd.f32 0.0, %v1697
        %1699 = vmatmul.bf16.gmra.mxu0 %v543
        %v1700 = vpop.f32.mrf.mxu0
        %v1701 = vadd.f32 0.0, %v1700
        %v1702 = vpop.f32.mrf.mxu0
        %v1703 = vadd.f32 0.0, %v1702
        %1704 = vmatmul.bf16.gmra.mxu0 %v544
        %v1705 = vpop.f32.mrf.mxu0
        %v1706 = vadd.f32 0.0, %v1705
        %v1707 = vpop.f32.mrf.mxu0
        %v1708 = vadd.f32 0.0, %v1707
        %1709 = vmatmul.bf16.gmra.mxu0 %v545
        %v1710 = vpop.f32.mrf.mxu0
        %v1711 = vadd.f32 0.0, %v1710
        %v1712 = vpop.f32.mrf.mxu0
        %v1713 = vadd.f32 0.0, %v1712
        %1714 = vmatmul.bf16.gmra.mxu0 %v546
        %v1715 = vpop.f32.mrf.mxu0
        %v1716 = vadd.f32 0.0, %v1715
        %v1717 = vpop.f32.mrf.mxu0
        %v1718 = vadd.f32 0.0, %v1717
        %1719 = vmatmul.bf16.gmra.mxu0 %v547
        %v1720 = vpop.f32.mrf.mxu0
        %v1721 = vadd.f32 0.0, %v1720
        %v1722 = vpop.f32.mrf.mxu0
        %v1723 = vadd.f32 0.0, %v1722
        %1724 = vmatmul.bf16.gmra.mxu0 %v548
        %v1725 = vpop.f32.mrf.mxu0
        %v1726 = vadd.f32 0.0, %v1725
        %v1727 = vpop.f32.mrf.mxu0
        %v1728 = vadd.f32 0.0, %v1727
        %1729 = vmatmul.bf16.gmra.mxu0 %v549
        %v1730 = vpop.f32.mrf.mxu0
        %v1731 = vadd.f32 0.0, %v1730
        %v1732 = vpop.f32.mrf.mxu0
        %v1733 = vadd.f32 0.0, %v1732
        %1734 = vmatmul.bf16.gmra.mxu0 %v550
        %v1735 = vpop.f32.mrf.mxu0
        %v1736 = vadd.f32 0.0, %v1735
        %v1737 = vpop.f32.mrf.mxu0
        %v1738 = vadd.f32 0.0, %v1737
        %1739 = vmatmul.bf16.gmra.mxu0 %v551
        %v1740 = vpop.f32.mrf.mxu0
        %v1741 = vadd.f32 0.0, %v1740
        %v1742 = vpop.f32.mrf.mxu0
        %v1743 = vadd.f32 0.0, %v1742
        %1744 = vmatmul.bf16.gmra.mxu0 %v552
        %v1745 = vpop.f32.mrf.mxu0
        %v1746 = vadd.f32 0.0, %v1745
        %v1747 = vpop.f32.mrf.mxu0
        %v1748 = vadd.f32 0.0, %v1747
        %1749 = vmatmul.bf16.gmra.mxu0 %v553
        %v1750 = vpop.f32.mrf.mxu0
        %v1751 = vadd.f32 0.0, %v1750
        %v1752 = vpop.f32.mrf.mxu0
        %v1753 = vadd.f32 0.0, %v1752
        %1754 = vmatmul.bf16.gmra.mxu0 %v554
        %v1755 = vpop.f32.mrf.mxu0
        %v1756 = vadd.f32 0.0, %v1755
        %v1757 = vpop.f32.mrf.mxu0
        %v1758 = vadd.f32 0.0, %v1757
        %1759 = vmatmul.bf16.gmra.mxu0 %v555
        %v1760 = vpop.f32.mrf.mxu0
        %v1761 = vadd.f32 0.0, %v1760
        %v1762 = vpop.f32.mrf.mxu0
        %v1763 = vadd.f32 0.0, %v1762
        %1764 = vmatmul.bf16.gmra.mxu0 %v556
        %v1765 = vpop.f32.mrf.mxu0
        %v1766 = vadd.f32 0.0, %v1765
        %v1767 = vpop.f32.mrf.mxu0
        %v1768 = vadd.f32 0.0, %v1767
        %1769 = vmatmul.bf16.gmra.mxu0 %v613
        %v1770 = vpop.f32.mrf.mxu0
        %v1771 = vadd.f32 0.0, %v1770
        %v1772 = vpop.f32.mrf.mxu0
        %v1773 = vadd.f32 0.0, %v1772
        %1774 = vmatmul.bf16.gmra.mxu0 %v614
        %v1775 = vpop.f32.mrf.mxu0
        %v1776 = vadd.f32 0.0, %v1775
        %v1777 = vpop.f32.mrf.mxu0
        %v1778 = vadd.f32 0.0, %v1777
        %1779 = vmatmul.bf16.gmra.mxu0 %v615
        %v1780 = vpop.f32.mrf.mxu0
        %v1781 = vadd.f32 0.0, %v1780
        %v1782 = vpop.f32.mrf.mxu0
        %v1783 = vadd.f32 0.0, %v1782
        %1784 = vmatmul.bf16.gmra.mxu0 %v616
        %v1785 = vpop.f32.mrf.mxu0
        %v1786 = vadd.f32 0.0, %v1785
        %v1787 = vpop.f32.mrf.mxu0
        %v1788 = vadd.f32 0.0, %v1787
        %1789 = vmatmul.bf16.gmra.mxu0 %v617
        %v1790 = vpop.f32.mrf.mxu0
        %v1791 = vadd.f32 0.0, %v1790
        %v1792 = vpop.f32.mrf.mxu0
        %v1793 = vadd.f32 0.0, %v1792
        %1794 = vmatmul.bf16.gmra.mxu0 %v618
        %v1795 = vpop.f32.mrf.mxu0
        %v1796 = vadd.f32 0.0, %v1795
        %v1797 = vpop.f32.mrf.mxu0
        %v1798 = vadd.f32 0.0, %v1797
        %1799 = vmatmul.bf16.gmra.mxu0 %v619
        %v1800 = vpop.f32.mrf.mxu0
        %v1801 = vadd.f32 0.0, %v1800
        %v1802 = vpop.f32.mrf.mxu0
        %v1803 = vadd.f32 0.0, %v1802
        %1804 = vmatmul.bf16.gmra.mxu0 %v620
        %v1805 = vpop.f32.mrf.mxu0
        %v1806 = vadd.f32 0.0, %v1805
        %v1807 = vpop.f32.mrf.mxu0
        %v1808 = vadd.f32 0.0, %v1807
        %1809 = vdwg.mxu0
        %1810 = vmatpush.bf16.msra.mxu0 %v1624
        %1811 = vmatpush.bf16.msra.mxu0 %v1622
        %1812 = vmatpush.bf16.msra.mxu0 %v1620
        %1813 = vmatpush.bf16.msra.mxu0 %v1618
        %1814 = vmatpush.bf16.msra.mxu0 %v1616
        %1815 = vmatpush.bf16.msra.mxu0 %v1614
        %1816 = vmatpush.bf16.msra.mxu0 %v1612
        %1817 = vmatpush.bf16.msra.mxu0 %v1610
        %1818 = vmatmul.bf16.gmra.mxu0 %v533
        %v1819 = vpop.f32.mrf.mxu0
        %v1820 = vadd.f32 0.0, %v1819
        %v1821 = vpop.f32.mrf.mxu0
        %v1822 = vadd.f32 0.0, %v1821
        %1823 = vmatmul.bf16.gmra.mxu0 %v534
        %v1824 = vpop.f32.mrf.mxu0
        %v1825 = vadd.f32 0.0, %v1824
        %v1826 = vpop.f32.mrf.mxu0
        %v1827 = vadd.f32 0.0, %v1826
        %1828 = vmatmul.bf16.gmra.mxu0 %v535
        %v1829 = vpop.f32.mrf.mxu0
        %v1830 = vadd.f32 0.0, %v1829
        %v1831 = vpop.f32.mrf.mxu0
        %v1832 = vadd.f32 0.0, %v1831
        %1833 = vmatmul.bf16.gmra.mxu0 %v536
        %v1834 = vpop.f32.mrf.mxu0
        %v1835 = vadd.f32 0.0, %v1834
        %v1836 = vpop.f32.mrf.mxu0
        %v1837 = vadd.f32 0.0, %v1836
        %1838 = vmatmul.bf16.gmra.mxu0 %v537
        %v1839 = vpop.f32.mrf.mxu0
        %v1840 = vadd.f32 0.0, %v1839
        %v1841 = vpop.f32.mrf.mxu0
        %v1842 = vadd.f32 0.0, %v1841
        %1843 = vmatmul.bf16.gmra.mxu0 %v538
        %v1844 = vpop.f32.mrf.mxu0
        %v1845 = vadd.f32 0.0, %v1844
        %v1846 = vpop.f32.mrf.mxu0
        %v1847 = vadd.f32 0.0, %v1846
        %1848 = vmatmul.bf16.gmra.mxu0 %v539
        %v1849 = vpop.f32.mrf.mxu0
        %v1850 = vadd.f32 0.0, %v1849
        %v1851 = vpop.f32.mrf.mxu0
        %v1852 = vadd.f32 0.0, %v1851
        %1853 = vmatmul.bf16.gmra.mxu0 %v540
        %v1854 = vpop.f32.mrf.mxu0
        %v1855 = vadd.f32 0.0, %v1854
        %v1856 = vpop.f32.mrf.mxu0
        %v1857 = vadd.f32 0.0, %v1856
        %1858 = vmatmul.bf16.gmra.mxu0 %v541
        %v1859 = vpop.f32.mrf.mxu0
        %v1860 = vadd.f32 0.0, %v1859
        %v1861 = vpop.f32.mrf.mxu0
        %v1862 = vadd.f32 0.0, %v1861
        %1863 = vmatmul.bf16.gmra.mxu0 %v542
        %v1864 = vpop.f32.mrf.mxu0
        %v1865 = vadd.f32 0.0, %v1864
        %v1866 = vpop.f32.mrf.mxu0
        %v1867 = vadd.f32 0.0, %v1866
        %1868 = vmatmul.bf16.gmra.mxu0 %v543
        %v1869 = vpop.f32.mrf.mxu0
        %v1870 = vadd.f32 0.0, %v1869
        %v1871 = vpop.f32.mrf.mxu0
        %v1872 = vadd.f32 0.0, %v1871
        %1873 = vmatmul.bf16.gmra.mxu0 %v544
        %v1874 = vpop.f32.mrf.mxu0
        %v1875 = vadd.f32 0.0, %v1874
        %v1876 = vpop.f32.mrf.mxu0
        %v1877 = vadd.f32 0.0, %v1876
        %1878 = vmatmul.bf16.gmra.mxu0 %v545
        %v1879 = vpop.f32.mrf.mxu0
        %v1880 = vadd.f32 0.0, %v1879
        %v1881 = vpop.f32.mrf.mxu0
        %v1882 = vadd.f32 0.0, %v1881
        %1883 = vmatmul.bf16.gmra.mxu0 %v546
        %v1884 = vpop.f32.mrf.mxu0
        %v1885 = vadd.f32 0.0, %v1884
        %v1886 = vpop.f32.mrf.mxu0
        %v1887 = vadd.f32 0.0, %v1886
        %1888 = vmatmul.bf16.gmra.mxu0 %v547
        %v1889 = vpop.f32.mrf.mxu0
        %v1890 = vadd.f32 0.0, %v1889
        %v1891 = vpop.f32.mrf.mxu0
        %v1892 = vadd.f32 0.0, %v1891
        %1893 = vmatmul.bf16.gmra.mxu0 %v548
        %v1894 = vpop.f32.mrf.mxu0
        %v1895 = vadd.f32 0.0, %v1894
        %v1896 = vpop.f32.mrf.mxu0
        %v1897 = vadd.f32 0.0, %v1896
        %1898 = vmatmul.bf16.gmra.mxu0 %v549
        %v1899 = vpop.f32.mrf.mxu0
        %v1900 = vadd.f32 0.0, %v1899
        %v1901 = vpop.f32.mrf.mxu0
        %v1902 = vadd.f32 0.0, %v1901
        %1903 = vmatmul.bf16.gmra.mxu0 %v550
        %v1904 = vpop.f32.mrf.mxu0
        %v1905 = vadd.f32 0.0, %v1904
        %v1906 = vpop.f32.mrf.mxu0
        %v1907 = vadd.f32 0.0, %v1906
        %1908 = vmatmul.bf16.gmra.mxu0 %v551
        %v1909 = vpop.f32.mrf.mxu0
        %v1910 = vadd.f32 0.0, %v1909
        %v1911 = vpop.f32.mrf.mxu0
        %v1912 = vadd.f32 0.0, %v1911
        %1913 = vmatmul.bf16.gmra.mxu0 %v552
        %v1914 = vpop.f32.mrf.mxu0
        %v1915 = vadd.f32 0.0, %v1914
        %v1916 = vpop.f32.mrf.mxu0
        %v1917 = vadd.f32 0.0, %v1916
        %1918 = vmatmul.bf16.gmra.mxu0 %v553
        %v1919 = vpop.f32.mrf.mxu0
        %v1920 = vadd.f32 0.0, %v1919
        %v1921 = vpop.f32.mrf.mxu0
        %v1922 = vadd.f32 0.0, %v1921
        %1923 = vmatmul.bf16.gmra.mxu0 %v554
        %v1924 = vpop.f32.mrf.mxu0
        %v1925 = vadd.f32 0.0, %v1924
        %v1926 = vpop.f32.mrf.mxu0
        %v1927 = vadd.f32 0.0, %v1926
        %1928 = vmatmul.bf16.gmra.mxu0 %v555
        %v1929 = vpop.f32.mrf.mxu0
        %v1930 = vadd.f32 0.0, %v1929
        %v1931 = vpop.f32.mrf.mxu0
        %v1932 = vadd.f32 0.0, %v1931
        %1933 = vmatmul.bf16.gmra.mxu0 %v556
        %v1934 = vpop.f32.mrf.mxu0
        %v1935 = vadd.f32 0.0, %v1934
        %v1936 = vpop.f32.mrf.mxu0
        %v1937 = vadd.f32 0.0, %v1936
        %1938 = vmatmul.bf16.gmra.mxu0 %v613
        %v1939 = vpop.f32.mrf.mxu0
        %v1940 = vadd.f32 0.0, %v1939
        %v1941 = vpop.f32.mrf.mxu0
        %v1942 = vadd.f32 0.0, %v1941
        %1943 = vmatmul.bf16.gmra.mxu0 %v614
        %v1944 = vpop.f32.mrf.mxu0
        %v1945 = vadd.f32 0.0, %v1944
        %v1946 = vpop.f32.mrf.mxu0
        %v1947 = vadd.f32 0.0, %v1946
        %1948 = vmatmul.bf16.gmra.mxu0 %v615
        %v1949 = vpop.f32.mrf.mxu0
        %v1950 = vadd.f32 0.0, %v1949
        %v1951 = vpop.f32.mrf.mxu0
        %v1952 = vadd.f32 0.0, %v1951
        %1953 = vmatmul.bf16.gmra.mxu0 %v616
        %v1954 = vpop.f32.mrf.mxu0
        %v1955 = vadd.f32 0.0, %v1954
        %v1956 = vpop.f32.mrf.mxu0
        %v1957 = vadd.f32 0.0, %v1956
        %1958 = vmatmul.bf16.gmra.mxu0 %v617
        %v1959 = vpop.f32.mrf.mxu0
        %v1960 = vadd.f32 0.0, %v1959
        %v1961 = vpop.f32.mrf.mxu0
        %v1962 = vadd.f32 0.0, %v1961
        %1963 = vmatmul.bf16.gmra.mxu0 %v618
        %v1964 = vpop.f32.mrf.mxu0
        %v1965 = vadd.f32 0.0, %v1964
        %v1966 = vpop.f32.mrf.mxu0
        %v1967 = vadd.f32 0.0, %v1966
        %1968 = vmatmul.bf16.gmra.mxu0 %v619
        %v1969 = vpop.f32.mrf.mxu0
        %v1970 = vadd.f32 0.0, %v1969
        %v1971 = vpop.f32.mrf.mxu0
        %v1972 = vadd.f32 0.0, %v1971
        %1973 = vmatmul.bf16.gmra.mxu0 %v620
        %v1974 = vpop.f32.mrf.mxu0
        %v1975 = vadd.f32 0.0, %v1974
        %v1976 = vpop.f32.mrf.mxu0
        %v1977 = vadd.f32 0.0, %v1976
        %1978 = vdwg.mxu0
        %v1979 = vld [vmem:[%s4] sm:$0xff]
        %v1980 = vld [vmem:[%s4 + $0x8] sm:$0xff]
        %v1981 = vld [vmem:[%s4 + $0x10] sm:$0xff]
        %v1982 = vld [vmem:[%s4 + $0x18] sm:$0xff]
        %v1983 = vadd.f32 %v879, %v881
        %v1984 = vadd.f32 %v1983, %v884
        %v1985 = vadd.f32 %v1984, %v886
        %v1986 = vrot.slane %v1985, 4
        %v1987 = vadd.f32 %v1985, %v1986
        %v1988 = vrot.slane %v1987, 2
        %v1989 = vadd.f32 %v1987, %v1988
        %v1990 = vrot.slane %v1989, 1
        %v1991 = vadd.f32 %v1989, %v1990
        %v1992 = vadd.f32 %v889, %v891
        %v1993 = vadd.f32 %v1992, %v894
        %v1994 = vadd.f32 %v1993, %v896
        %v1995 = vrot.slane %v1994, 4
        %v1996 = vadd.f32 %v1994, %v1995
        %v1997 = vrot.slane %v1996, 2
        %v1998 = vadd.f32 %v1996, %v1997
        %v1999 = vrot.slane %v1998, 1
        %v2000 = vadd.f32 %v1998, %v1999
        %v2001 = vadd.f32 %v899, %v901
        %v2002 = vadd.f32 %v2001, %v904
        %v2003 = vadd.f32 %v2002, %v906
        %v2004 = vrot.slane %v2003, 4
        %v2005 = vadd.f32 %v2003, %v2004
        %v2006 = vrot.slane %v2005, 2
        %v2007 = vadd.f32 %v2005, %v2006
        %v2008 = vrot.slane %v2007, 1
        %v2009 = vadd.f32 %v2007, %v2008
        %v2010 = vadd.f32 %v909, %v911
        %v2011 = vadd.f32 %v2010, %v914
        %v2012 = vadd.f32 %v2011, %v916
        %v2013 = vrot.slane %v2012, 4
        %v2014 = vadd.f32 %v2012, %v2013
        %v2015 = vrot.slane %v2014, 2
        %v2016 = vadd.f32 %v2014, %v2015
        %v2017 = vrot.slane %v2016, 1
        %v2018 = vadd.f32 %v2016, %v2017
        %v2019 = vadd.f32 %v919, %v921
        %v2020 = vadd.f32 %v2019, %v924
        %v2021 = vadd.f32 %v2020, %v926
        %v2022 = vrot.slane %v2021, 4
        %v2023 = vadd.f32 %v2021, %v2022
        %v2024 = vrot.slane %v2023, 2
        %v2025 = vadd.f32 %v2023, %v2024
        %v2026 = vrot.slane %v2025, 1
        %v2027 = vadd.f32 %v2025, %v2026
        %v2028 = vadd.f32 %v929, %v931
        %v2029 = vadd.f32 %v2028, %v934
        %v2030 = vadd.f32 %v2029, %v936
        %v2031 = vrot.slane %v2030, 4
        %v2032 = vadd.f32 %v2030, %v2031
        %v2033 = vrot.slane %v2032, 2
        %v2034 = vadd.f32 %v2032, %v2033
        %v2035 = vrot.slane %v2034, 1
        %v2036 = vadd.f32 %v2034, %v2035
        %v2037 = vadd.f32 %v939, %v941
        %v2038 = vadd.f32 %v2037, %v944
        %v2039 = vadd.f32 %v2038, %v946
        %v2040 = vrot.slane %v2039, 4
        %v2041 = vadd.f32 %v2039, %v2040
        %v2042 = vrot.slane %v2041, 2
        %v2043 = vadd.f32 %v2041, %v2042
        %v2044 = vrot.slane %v2043, 1
        %v2045 = vadd.f32 %v2043, %v2044
        %v2046 = vadd.f32 %v949, %v951
        %v2047 = vadd.f32 %v2046, %v954
        %v2048 = vadd.f32 %v2047, %v956
        %v2049 = vrot.slane %v2048, 4
        %v2050 = vadd.f32 %v2048, %v2049
        %v2051 = vrot.slane %v2050, 2
        %v2052 = vadd.f32 %v2050, %v2051
        %v2053 = vrot.slane %v2052, 1
        %v2054 = vadd.f32 %v2052, %v2053
        %v2055 = vadd.f32 %v959, %v961
        %v2056 = vadd.f32 %v2055, %v964
        %v2057 = vadd.f32 %v2056, %v966
        %v2058 = vrot.slane %v2057, 4
        %v2059 = vadd.f32 %v2057, %v2058
        %v2060 = vrot.slane %v2059, 2
        %v2061 = vadd.f32 %v2059, %v2060
        %v2062 = vrot.slane %v2061, 1
        %v2063 = vadd.f32 %v2061, %v2062
        %v2064 = vadd.f32 %v969, %v971
        %v2065 = vadd.f32 %v2064, %v974
        %v2066 = vadd.f32 %v2065, %v976
        %v2067 = vrot.slane %v2066, 4
        %v2068 = vadd.f32 %v2066, %v2067
        %v2069 = vrot.slane %v2068, 2
        %v2070 = vadd.f32 %v2068, %v2069
        %v2071 = vrot.slane %v2070, 1
        %v2072 = vadd.f32 %v2070, %v2071
        %v2073 = vadd.f32 %v979, %v981
        %v2074 = vadd.f32 %v2073, %v984
        %v2075 = vadd.f32 %v2074, %v986
        %v2076 = vrot.slane %v2075, 4
        %v2077 = vadd.f32 %v2075, %v2076
        %v2078 = vrot.slane %v2077, 2
        %v2079 = vadd.f32 %v2077, %v2078
        %v2080 = vrot.slane %v2079, 1
        %v2081 = vadd.f32 %v2079, %v2080
        %v2082 = vadd.f32 %v989, %v991
        %v2083 = vadd.f32 %v2082, %v994
        %v2084 = vadd.f32 %v2083, %v996
        %v2085 = vrot.slane %v2084, 4
        %v2086 = vadd.f32 %v2084, %v2085
        %v2087 = vrot.slane %v2086, 2
        %v2088 = vadd.f32 %v2086, %v2087
        %v2089 = vrot.slane %v2088, 1
        %v2090 = vadd.f32 %v2088, %v2089
        %v2091 = vadd.f32 %v999, %v1001
        %v2092 = vadd.f32 %v2091, %v1004
        %v2093 = vadd.f32 %v2092, %v1006
        %v2094 = vrot.slane %v2093, 4
        %v2095 = vadd.f32 %v2093, %v2094
        %v2096 = vrot.slane %v2095, 2
        %v2097 = vadd.f32 %v2095, %v2096
        %v2098 = vrot.slane %v2097, 1
        %v2099 = vadd.f32 %v2097, %v2098
        %v2100 = vadd.f32 %v1009, %v1011
        %v2101 = vadd.f32 %v2100, %v1014
        %v2102 = vadd.f32 %v2101, %v1016
        %v2103 = vrot.slane %v2102, 4
        %v2104 = vadd.f32 %v2102, %v2103
        %v2105 = vrot.slane %v2104, 2
        %v2106 = vadd.f32 %v2104, %v2105
        %v2107 = vrot.slane %v2106, 1
        %v2108 = vadd.f32 %v2106, %v2107
        %v2109 = vadd.f32 %v1019, %v1021
        %v2110 = vadd.f32 %v2109, %v1024
        %v2111 = vadd.f32 %v2110, %v1026
        %v2112 = vrot.slane %v2111, 4
        %v2113 = vadd.f32 %v2111, %v2112
        %v2114 = vrot.slane %v2113, 2
        %v2115 = vadd.f32 %v2113, %v2114
        %v2116 = vrot.slane %v2115, 1
        %v2117 = vadd.f32 %v2115, %v2116
        %v2118 = vadd.f32 %v1029, %v1031
        %v2119 = vadd.f32 %v2118, %v1034
        %v2120 = vadd.f32 %v2119, %v1036
        %v2121 = vrot.slane %v2120, 4
        %v2122 = vadd.f32 %v2120, %v2121
        %v2123 = vrot.slane %v2122, 2
        %v2124 = vadd.f32 %v2122, %v2123
        %v2125 = vrot.slane %v2124, 1
        %v2126 = vadd.f32 %v2124, %v2125
        %2143 = vrot.lane.b32.xlu0 %v1991, 64
        %v2144 = vpop.permute.xlu0 %2143
        %2145 = vrot.lane.b32.xlu0 %v2000, 64
        %v2146 = vpop.permute.xlu0 %2145
        %2147 = vrot.lane.b32.xlu0 %v2009, 64
        %v2148 = vpop.permute.xlu0 %2147
        %2149 = vrot.lane.b32.xlu0 %v2018, 64
        %v2150 = vpop.permute.xlu0 %2149
        %2151 = vrot.lane.b32.xlu0 %v2027, 64
        %v2152 = vpop.permute.xlu0 %2151
        %2153 = vrot.lane.b32.xlu0 %v2036, 64
        %v2154 = vpop.permute.xlu0 %2153
        %2155 = vrot.lane.b32.xlu0 %v2045, 64
        %v2156 = vpop.permute.xlu0 %2155
        %2157 = vrot.lane.b32.xlu0 %v2054, 64
        %v2158 = vpop.permute.xlu0 %2157
        %2159 = vrot.lane.b32.xlu0 %v2063, 64
        %v2160 = vpop.permute.xlu0 %2159
        %2161 = vrot.lane.b32.xlu0 %v2072, 64
        %v2162 = vpop.permute.xlu0 %2161
        %2163 = vrot.lane.b32.xlu0 %v2081, 64
        %v2164 = vpop.permute.xlu0 %2163
        %2165 = vrot.lane.b32.xlu0 %v2090, 64
        %v2166 = vpop.permute.xlu0 %2165
        %2167 = vrot.lane.b32.xlu0 %v2099, 64
        %v2168 = vpop.permute.xlu0 %2167
        %2169 = vrot.lane.b32.xlu0 %v2108, 64
        %v2170 = vpop.permute.xlu0 %2169
        %2171 = vrot.lane.b32.xlu0 %v2117, 64
        %v2172 = vpop.permute.xlu0 %2171
        %2173 = vrot.lane.b32.xlu0 %v2126, 64
        %v2174 = vpop.permute.xlu0 %2173
        %v2191 = vadd.f32 %v1991, %v2144
        %v2192 = vadd.f32 %v2000, %v2146
        %v2193 = vadd.f32 %v2009, %v2148
        %v2194 = vadd.f32 %v2018, %v2150
        %v2195 = vadd.f32 %v2027, %v2152
        %v2196 = vadd.f32 %v2036, %v2154
        %v2197 = vadd.f32 %v2045, %v2156
        %v2198 = vadd.f32 %v2054, %v2158
        %v2199 = vadd.f32 %v2063, %v2160
        %v2200 = vadd.f32 %v2072, %v2162
        %v2201 = vadd.f32 %v2081, %v2164
        %v2202 = vadd.f32 %v2090, %v2166
        %v2203 = vadd.f32 %v2099, %v2168
        %v2204 = vadd.f32 %v2108, %v2170
        %v2205 = vadd.f32 %v2117, %v2172
        %v2206 = vadd.f32 %v2126, %v2174
        %v2207 = vmul.f32 %v2191, 0.015625
        %v2208 = vmul.f32 %v2192, 0.015625
        %v2209 = vmul.f32 %v2193, 0.015625
        %v2210 = vmul.f32 %v2194, 0.015625
        %v2211 = vmul.f32 %v2195, 0.015625
        %v2212 = vmul.f32 %v2196, 0.015625
        %v2213 = vmul.f32 %v2197, 0.015625
        %v2214 = vmul.f32 %v2198, 0.015625
        %v2215 = vmul.f32 %v2199, 0.015625
        %v2216 = vmul.f32 %v2200, 0.015625
        %v2217 = vmul.f32 %v2201, 0.015625
        %v2218 = vmul.f32 %v2202, 0.015625
        %v2219 = vmul.f32 %v2203, 0.015625
        %v2220 = vmul.f32 %v2204, 0.015625
        %v2221 = vmul.f32 %v2205, 0.015625
        %v2222 = vmul.f32 %v2206, 0.015625
        %v2239 = vrot.slane %v2208, 7
        %vm2240 = vcmask 1041409
        %v2241 = vsel %vm2240, %v2239, %v2207
        %v2242 = vrot.slane %v2209, 6
        %vm2243 = vcmask 1042434
        %v2244 = vsel %vm2243, %v2242, %v2241
        %v2245 = vrot.slane %v2210, 5
        %vm2246 = vcmask 1043459
        %v2247 = vsel %vm2246, %v2245, %v2244
        %v2248 = vrot.slane %v2211, 4
        %vm2249 = vcmask 1044484
        %v2250 = vsel %vm2249, %v2248, %v2247
        %v2251 = vrot.slane %v2212, 3
        %vm2252 = vcmask 1045509
        %v2253 = vsel %vm2252, %v2251, %v2250
        %v2254 = vrot.slane %v2213, 2
        %vm2255 = vcmask 1046534
        %v2256 = vsel %vm2255, %v2254, %v2253
        %v2257 = vrot.slane %v2214, 1
        %vm2258 = vcmask 1047559
        %v2259 = vsel %vm2258, %v2257, %v2256
        %v2260 = vrot.slane %v2216, 7
        %v2261 = vsel %vm2240, %v2260, %v2215
        %v2262 = vrot.slane %v2217, 6
        %v2263 = vsel %vm2243, %v2262, %v2261
        %v2264 = vrot.slane %v2218, 5
        %v2265 = vsel %vm2246, %v2264, %v2263
        %v2266 = vrot.slane %v2219, 4
        %v2267 = vsel %vm2249, %v2266, %v2265
        %v2268 = vrot.slane %v2220, 3
        %v2269 = vsel %vm2252, %v2268, %v2267
        %v2270 = vrot.slane %v2221, 2
        %v2271 = vsel %vm2255, %v2270, %v2269
        %v2272 = vrot.slane %v2222, 1
        %v2273 = vsel %vm2258, %v2272, %v2271
        %2276 = vrot.lane.b32.xlu0 %v2259, 64
        %v2277 = vpop.permute.xlu0 %2276
        %2278 = vrot.lane.b32.xlu0 %v2273, 64
        %v2279 = vpop.permute.xlu0 %2278
        %vm2282 = vcmask 523264
        %v2283 = vsel %vm2282, %v2259, %v2277
        %v2284 = vsel %vm2282, %v2273, %v2279
        %v2287 = vrot.slane %v2283, 1
        %v2288 = vrot.slane %v2283, 2
        %v2289 = vrot.slane %v2283, 3
        %v2290 = vrot.slane %v2283, 4
        %v2291 = vrot.slane %v2283, 5
        %v2292 = vrot.slane %v2283, 6
        %v2293 = vrot.slane %v2283, 7
        %v2294 = vrot.slane %v2284, 1
        %v2295 = vrot.slane %v2284, 2
        %v2296 = vrot.slane %v2284, 3
        %v2297 = vrot.slane %v2284, 4
        %v2298 = vrot.slane %v2284, 5
        %v2299 = vrot.slane %v2284, 6
        %v2300 = vrot.slane %v2284, 7
        %v2301 = vperm.slane %v2283, 0
        %v2302 = vperm.slane %v2287, 0
        %v2303 = vperm.slane %v2288, 0
        %v2304 = vperm.slane %v2289, 0
        %v2305 = vperm.slane %v2290, 0
        %v2306 = vperm.slane %v2291, 0
        %v2307 = vperm.slane %v2292, 0
        %v2308 = vperm.slane %v2293, 0
        %v2309 = vperm.slane %v2284, 0
        %v2310 = vperm.slane %v2294, 0
        %v2311 = vperm.slane %v2295, 0
        %v2312 = vperm.slane %v2296, 0
        %v2313 = vperm.slane %v2297, 0
        %v2314 = vperm.slane %v2298, 0
        %v2315 = vperm.slane %v2299, 0
        %v2316 = vperm.slane %v2300, 0
        %v2333 = vsub.f32 %v879, %v2301
        %v2334 = vsub.f32 %v881, %v2301
        %v2335 = vsub.f32 %v884, %v2301
        %v2336 = vsub.f32 %v886, %v2301
        %v2337 = vsub.f32 %v889, %v2302
        %v2338 = vsub.f32 %v891, %v2302
        %v2339 = vsub.f32 %v894, %v2302
        %v2340 = vsub.f32 %v896, %v2302
        %v2341 = vsub.f32 %v899, %v2303
        %v2342 = vsub.f32 %v901, %v2303
        %v2343 = vsub.f32 %v904, %v2303
        %v2344 = vsub.f32 %v906, %v2303
        %v2345 = vsub.f32 %v909, %v2304
        %v2346 = vsub.f32 %v911, %v2304
        %v2347 = vsub.f32 %v914, %v2304
        %v2348 = vsub.f32 %v916, %v2304
        %v2349 = vsub.f32 %v919, %v2305
        %v2350 = vsub.f32 %v921, %v2305
        %v2351 = vsub.f32 %v924, %v2305
        %v2352 = vsub.f32 %v926, %v2305
        %v2353 = vsub.f32 %v929, %v2306
        %v2354 = vsub.f32 %v931, %v2306
        %v2355 = vsub.f32 %v934, %v2306
        %v2356 = vsub.f32 %v936, %v2306
        %v2357 = vsub.f32 %v939, %v2307
        %v2358 = vsub.f32 %v941, %v2307
        %v2359 = vsub.f32 %v944, %v2307
        %v2360 = vsub.f32 %v946, %v2307
        %v2361 = vsub.f32 %v949, %v2308
        %v2362 = vsub.f32 %v951, %v2308
        %v2363 = vsub.f32 %v954, %v2308
        %v2364 = vsub.f32 %v956, %v2308
        %v2365 = vsub.f32 %v959, %v2309
        %v2366 = vsub.f32 %v961, %v2309
        %v2367 = vsub.f32 %v964, %v2309
        %v2368 = vsub.f32 %v966, %v2309
        %v2369 = vsub.f32 %v969, %v2310
        %v2370 = vsub.f32 %v971, %v2310
        %v2371 = vsub.f32 %v974, %v2310
        %v2372 = vsub.f32 %v976, %v2310
        %v2373 = vsub.f32 %v979, %v2311
        %v2374 = vsub.f32 %v981, %v2311
        %v2375 = vsub.f32 %v984, %v2311
        %v2376 = vsub.f32 %v986, %v2311
        %v2377 = vsub.f32 %v989, %v2312
        %v2378 = vsub.f32 %v991, %v2312
        %v2379 = vsub.f32 %v994, %v2312
        %v2380 = vsub.f32 %v996, %v2312
        %v2381 = vsub.f32 %v999, %v2313
        %v2382 = vsub.f32 %v1001, %v2313
        %v2383 = vsub.f32 %v1004, %v2313
        %v2384 = vsub.f32 %v1006, %v2313
        %v2385 = vsub.f32 %v1009, %v2314
        %v2386 = vsub.f32 %v1011, %v2314
        %v2387 = vsub.f32 %v1014, %v2314
        %v2388 = vsub.f32 %v1016, %v2314
        %v2389 = vsub.f32 %v1019, %v2315
        %v2390 = vsub.f32 %v1021, %v2315
        %v2391 = vsub.f32 %v1024, %v2315
        %v2392 = vsub.f32 %v1026, %v2315
        %v2393 = vsub.f32 %v1029, %v2316
        %v2394 = vsub.f32 %v1031, %v2316
        %v2395 = vsub.f32 %v1034, %v2316
        %v2396 = vsub.f32 %v1036, %v2316
        %v2397 = vmul.f32 %v2333, %v2333
        %v2398 = vmul.f32 %v2334, %v2334
        %v2399 = vmul.f32 %v2335, %v2335
        %v2400 = vmul.f32 %v2336, %v2336
        %v2401 = vmul.f32 %v2337, %v2337
        %v2402 = vmul.f32 %v2338, %v2338
        %v2403 = vmul.f32 %v2339, %v2339
        %v2404 = vmul.f32 %v2340, %v2340
        %v2405 = vmul.f32 %v2341, %v2341
        %v2406 = vmul.f32 %v2342, %v2342
        %v2407 = vmul.f32 %v2343, %v2343
        %v2408 = vmul.f32 %v2344, %v2344
        %v2409 = vmul.f32 %v2345, %v2345
        %v2410 = vmul.f32 %v2346, %v2346
        %v2411 = vmul.f32 %v2347, %v2347
        %v2412 = vmul.f32 %v2348, %v2348
        %v2413 = vmul.f32 %v2349, %v2349
        %v2414 = vmul.f32 %v2350, %v2350
        %v2415 = vmul.f32 %v2351, %v2351
        %v2416 = vmul.f32 %v2352, %v2352
        %v2417 = vmul.f32 %v2353, %v2353
        %v2418 = vmul.f32 %v2354, %v2354
        %v2419 = vmul.f32 %v2355, %v2355
        %v2420 = vmul.f32 %v2356, %v2356
        %v2421 = vmul.f32 %v2357, %v2357
        %v2422 = vmul.f32 %v2358, %v2358
        %v2423 = vmul.f32 %v2359, %v2359
        %v2424 = vmul.f32 %v2360, %v2360
        %v2425 = vmul.f32 %v2361, %v2361
        %v2426 = vmul.f32 %v2362, %v2362
        %v2427 = vmul.f32 %v2363, %v2363
        %v2428 = vmul.f32 %v2364, %v2364
        %v2429 = vmul.f32 %v2365, %v2365
        %v2430 = vmul.f32 %v2366, %v2366
        %v2431 = vmul.f32 %v2367, %v2367
        %v2432 = vmul.f32 %v2368, %v2368
        %v2433 = vmul.f32 %v2369, %v2369
        %v2434 = vmul.f32 %v2370, %v2370
        %v2435 = vmul.f32 %v2371, %v2371
        %v2436 = vmul.f32 %v2372, %v2372
        %v2437 = vmul.f32 %v2373, %v2373
        %v2438 = vmul.f32 %v2374, %v2374
        %v2439 = vmul.f32 %v2375, %v2375
        %v2440 = vmul.f32 %v2376, %v2376
        %v2441 = vmul.f32 %v2377, %v2377
        %v2442 = vmul.f32 %v2378, %v2378
        %v2443 = vmul.f32 %v2379, %v2379
        %v2444 = vmul.f32 %v2380, %v2380
        %v2445 = vmul.f32 %v2381, %v2381
        %v2446 = vmul.f32 %v2382, %v2382
        %v2447 = vmul.f32 %v2383, %v2383
        %v2448 = vmul.f32 %v2384, %v2384
        %v2449 = vmul.f32 %v2385, %v2385
        %v2450 = vmul.f32 %v2386, %v2386
        %v2451 = vmul.f32 %v2387, %v2387
        %v2452 = vmul.f32 %v2388, %v2388
        %v2453 = vmul.f32 %v2389, %v2389
        %v2454 = vmul.f32 %v2390, %v2390
        %v2455 = vmul.f32 %v2391, %v2391
        %v2456 = vmul.f32 %v2392, %v2392
        %v2457 = vmul.f32 %v2393, %v2393
        %v2458 = vmul.f32 %v2394, %v2394
        %v2459 = vmul.f32 %v2395, %v2395
        %v2460 = vmul.f32 %v2396, %v2396
        %v2461 = vadd.f32 %v2397, %v2398
        %v2462 = vadd.f32 %v2461, %v2399
        %v2463 = vadd.f32 %v2462, %v2400
        %v2464 = vrot.slane %v2463, 4
        %v2465 = vadd.f32 %v2463, %v2464
        %v2466 = vrot.slane %v2465, 2
        %v2467 = vadd.f32 %v2465, %v2466
        %v2468 = vrot.slane %v2467, 1
        %v2469 = vadd.f32 %v2467, %v2468
        %v2470 = vadd.f32 %v2401, %v2402
        %v2471 = vadd.f32 %v2470, %v2403
        %v2472 = vadd.f32 %v2471, %v2404
        %v2473 = vrot.slane %v2472, 4
        %v2474 = vadd.f32 %v2472, %v2473
        %v2475 = vrot.slane %v2474, 2
        %v2476 = vadd.f32 %v2474, %v2475
        %v2477 = vrot.slane %v2476, 1
        %v2478 = vadd.f32 %v2476, %v2477
        %v2479 = vadd.f32 %v2405, %v2406
        %v2480 = vadd.f32 %v2479, %v2407
        %v2481 = vadd.f32 %v2480, %v2408
        %v2482 = vrot.slane %v2481, 4
        %v2483 = vadd.f32 %v2481, %v2482
        %v2484 = vrot.slane %v2483, 2
        %v2485 = vadd.f32 %v2483, %v2484
        %v2486 = vrot.slane %v2485, 1
        %v2487 = vadd.f32 %v2485, %v2486
        %v2488 = vadd.f32 %v2409, %v2410
        %v2489 = vadd.f32 %v2488, %v2411
        %v2490 = vadd.f32 %v2489, %v2412
        %v2491 = vrot.slane %v2490, 4
        %v2492 = vadd.f32 %v2490, %v2491
        %v2493 = vrot.slane %v2492, 2
        %v2494 = vadd.f32 %v2492, %v2493
        %v2495 = vrot.slane %v2494, 1
        %v2496 = vadd.f32 %v2494, %v2495
        %v2497 = vadd.f32 %v2413, %v2414
        %v2498 = vadd.f32 %v2497, %v2415
        %v2499 = vadd.f32 %v2498, %v2416
        %v2500 = vrot.slane %v2499, 4
        %v2501 = vadd.f32 %v2499, %v2500
        %v2502 = vrot.slane %v2501, 2
        %v2503 = vadd.f32 %v2501, %v2502
        %v2504 = vrot.slane %v2503, 1
        %v2505 = vadd.f32 %v2503, %v2504
        %v2506 = vadd.f32 %v2417, %v2418
        %v2507 = vadd.f32 %v2506, %v2419
        %v2508 = vadd.f32 %v2507, %v2420
        %v2509 = vrot.slane %v2508, 4
        %v2510 = vadd.f32 %v2508, %v2509
        %v2511 = vrot.slane %v2510, 2
        %v2512 = vadd.f32 %v2510, %v2511
        %v2513 = vrot.slane %v2512, 1
        %v2514 = vadd.f32 %v2512, %v2513
        %v2515 = vadd.f32 %v2421, %v2422
        %v2516 = vadd.f32 %v2515, %v2423
        %v2517 = vadd.f32 %v2516, %v2424
        %v2518 = vrot.slane %v2517, 4
        %v2519 = vadd.f32 %v2517, %v2518
        %v2520 = vrot.slane %v2519, 2
        %v2521 = vadd.f32 %v2519, %v2520
        %v2522 = vrot.slane %v2521, 1
        %v2523 = vadd.f32 %v2521, %v2522
        %v2524 = vadd.f32 %v2425, %v2426
        %v2525 = vadd.f32 %v2524, %v2427
        %v2526 = vadd.f32 %v2525, %v2428
        %v2527 = vrot.slane %v2526, 4
        %v2528 = vadd.f32 %v2526, %v2527
        %v2529 = vrot.slane %v2528, 2
        %v2530 = vadd.f32 %v2528, %v2529
        %v2531 = vrot.slane %v2530, 1
        %v2532 = vadd.f32 %v2530, %v2531
        %v2533 = vadd.f32 %v2429, %v2430
        %v2534 = vadd.f32 %v2533, %v2431
        %v2535 = vadd.f32 %v2534, %v2432
        %v2536 = vrot.slane %v2535, 4
        %v2537 = vadd.f32 %v2535, %v2536
        %v2538 = vrot.slane %v2537, 2
        %v2539 = vadd.f32 %v2537, %v2538
        %v2540 = vrot.slane %v2539, 1
        %v2541 = vadd.f32 %v2539, %v2540
        %v2542 = vadd.f32 %v2433, %v2434
        %v2543 = vadd.f32 %v2542, %v2435
        %v2544 = vadd.f32 %v2543, %v2436
        %v2545 = vrot.slane %v2544, 4
        %v2546 = vadd.f32 %v2544, %v2545
        %v2547 = vrot.slane %v2546, 2
        %v2548 = vadd.f32 %v2546, %v2547
        %v2549 = vrot.slane %v2548, 1
        %v2550 = vadd.f32 %v2548, %v2549
        %v2551 = vadd.f32 %v2437, %v2438
        %v2552 = vadd.f32 %v2551, %v2439
        %v2553 = vadd.f32 %v2552, %v2440
        %v2554 = vrot.slane %v2553, 4
        %v2555 = vadd.f32 %v2553, %v2554
        %v2556 = vrot.slane %v2555, 2
        %v2557 = vadd.f32 %v2555, %v2556
        %v2558 = vrot.slane %v2557, 1
        %v2559 = vadd.f32 %v2557, %v2558
        %v2560 = vadd.f32 %v2441, %v2442
        %v2561 = vadd.f32 %v2560, %v2443
        %v2562 = vadd.f32 %v2561, %v2444
        %v2563 = vrot.slane %v2562, 4
        %v2564 = vadd.f32 %v2562, %v2563
        %v2565 = vrot.slane %v2564, 2
        %v2566 = vadd.f32 %v2564, %v2565
        %v2567 = vrot.slane %v2566, 1
        %v2568 = vadd.f32 %v2566, %v2567
        %v2569 = vadd.f32 %v2445, %v2446
        %v2570 = vadd.f32 %v2569, %v2447
        %v2571 = vadd.f32 %v2570, %v2448
        %v2572 = vrot.slane %v2571, 4
        %v2573 = vadd.f32 %v2571, %v2572
        %v2574 = vrot.slane %v2573, 2
        %v2575 = vadd.f32 %v2573, %v2574
        %v2576 = vrot.slane %v2575, 1
        %v2577 = vadd.f32 %v2575, %v2576
        %v2578 = vadd.f32 %v2449, %v2450
        %v2579 = vadd.f32 %v2578, %v2451
        %v2580 = vadd.f32 %v2579, %v2452
        %v2581 = vrot.slane %v2580, 4
        %v2582 = vadd.f32 %v2580, %v2581
        %v2583 = vrot.slane %v2582, 2
        %v2584 = vadd.f32 %v2582, %v2583
        %v2585 = vrot.slane %v2584, 1
        %v2586 = vadd.f32 %v2584, %v2585
        %v2587 = vadd.f32 %v2453, %v2454
        %v2588 = vadd.f32 %v2587, %v2455
        %v2589 = vadd.f32 %v2588, %v2456
        %v2590 = vrot.slane %v2589, 4
        %v2591 = vadd.f32 %v2589, %v2590
        %v2592 = vrot.slane %v2591, 2
        %v2593 = vadd.f32 %v2591, %v2592
        %v2594 = vrot.slane %v2593, 1
        %v2595 = vadd.f32 %v2593, %v2594
        %v2596 = vadd.f32 %v2457, %v2458
        %v2597 = vadd.f32 %v2596, %v2459
        %v2598 = vadd.f32 %v2597, %v2460
        %v2599 = vrot.slane %v2598, 4
        %v2600 = vadd.f32 %v2598, %v2599
        %v2601 = vrot.slane %v2600, 2
        %v2602 = vadd.f32 %v2600, %v2601
        %v2603 = vrot.slane %v2602, 1
        %v2604 = vadd.f32 %v2602, %v2603
        %2621 = vrot.lane.b32.xlu0 %v2469, 64
        %v2622 = vpop.permute.xlu0 %2621
        %2623 = vrot.lane.b32.xlu0 %v2478, 64
        %v2624 = vpop.permute.xlu0 %2623
        %2625 = vrot.lane.b32.xlu0 %v2487, 64
        %v2626 = vpop.permute.xlu0 %2625
        %2627 = vrot.lane.b32.xlu0 %v2496, 64
        %v2628 = vpop.permute.xlu0 %2627
        %2629 = vrot.lane.b32.xlu0 %v2505, 64
        %v2630 = vpop.permute.xlu0 %2629
        %2631 = vrot.lane.b32.xlu0 %v2514, 64
        %v2632 = vpop.permute.xlu0 %2631
        %2633 = vrot.lane.b32.xlu0 %v2523, 64
        %v2634 = vpop.permute.xlu0 %2633
        %2635 = vrot.lane.b32.xlu0 %v2532, 64
        %v2636 = vpop.permute.xlu0 %2635
        %2637 = vrot.lane.b32.xlu0 %v2541, 64
        %v2638 = vpop.permute.xlu0 %2637
        %2639 = vrot.lane.b32.xlu0 %v2550, 64
        %v2640 = vpop.permute.xlu0 %2639
        %2641 = vrot.lane.b32.xlu0 %v2559, 64
        %v2642 = vpop.permute.xlu0 %2641
        %2643 = vrot.lane.b32.xlu0 %v2568, 64
        %v2644 = vpop.permute.xlu0 %2643
        %2645 = vrot.lane.b32.xlu0 %v2577, 64
        %v2646 = vpop.permute.xlu0 %2645
        %2647 = vrot.lane.b32.xlu0 %v2586, 64
        %v2648 = vpop.permute.xlu0 %2647
        %2649 = vrot.lane.b32.xlu0 %v2595, 64
        %v2650 = vpop.permute.xlu0 %2649
        %2651 = vrot.lane.b32.xlu0 %v2604, 64
        %v2652 = vpop.permute.xlu0 %2651
        %v2669 = vadd.f32 %v2469, %v2622
        %v2670 = vadd.f32 %v2478, %v2624
        %v2671 = vadd.f32 %v2487, %v2626
        %v2672 = vadd.f32 %v2496, %v2628
        %v2673 = vadd.f32 %v2505, %v2630
        %v2674 = vadd.f32 %v2514, %v2632
        %v2675 = vadd.f32 %v2523, %v2634
        %v2676 = vadd.f32 %v2532, %v2636
        %v2677 = vadd.f32 %v2541, %v2638
        %v2678 = vadd.f32 %v2550, %v2640
        %v2679 = vadd.f32 %v2559, %v2642
        %v2680 = vadd.f32 %v2568, %v2644
        %v2681 = vadd.f32 %v2577, %v2646
        %v2682 = vadd.f32 %v2586, %v2648
        %v2683 = vadd.f32 %v2595, %v2650
        %v2684 = vadd.f32 %v2604, %v2652
        %v2685 = vmul.f32 %v2669, 0.015625
        %v2686 = vmul.f32 %v2670, 0.015625
        %v2687 = vmul.f32 %v2671, 0.015625
        %v2688 = vmul.f32 %v2672, 0.015625
        %v2689 = vmul.f32 %v2673, 0.015625
        %v2690 = vmul.f32 %v2674, 0.015625
        %v2691 = vmul.f32 %v2675, 0.015625
        %v2692 = vmul.f32 %v2676, 0.015625
        %v2693 = vmul.f32 %v2677, 0.015625
        %v2694 = vmul.f32 %v2678, 0.015625
        %v2695 = vmul.f32 %v2679, 0.015625
        %v2696 = vmul.f32 %v2680, 0.015625
        %v2697 = vmul.f32 %v2681, 0.015625
        %v2698 = vmul.f32 %v2682, 0.015625
        %v2699 = vmul.f32 %v2683, 0.015625
        %v2700 = vmul.f32 %v2684, 0.015625
        %v2701 = vadd.f32 %v2685, 1e-05
        %v2702 = vadd.f32 %v2686, 1e-05
        %v2703 = vadd.f32 %v2687, 1e-05
        %v2704 = vadd.f32 %v2688, 1e-05
        %v2705 = vadd.f32 %v2689, 1e-05
        %v2706 = vadd.f32 %v2690, 1e-05
        %v2707 = vadd.f32 %v2691, 1e-05
        %v2708 = vadd.f32 %v2692, 1e-05
        %v2709 = vadd.f32 %v2693, 1e-05
        %v2710 = vadd.f32 %v2694, 1e-05
        %v2711 = vadd.f32 %v2695, 1e-05
        %v2712 = vadd.f32 %v2696, 1e-05
        %v2713 = vadd.f32 %v2697, 1e-05
        %v2714 = vadd.f32 %v2698, 1e-05
        %v2715 = vadd.f32 %v2699, 1e-05
        %v2716 = vadd.f32 %v2700, 1e-05
        %v2717 = vrsqrt.pop %v2701
        %v2718 = vmul.f32 %v2717, %v2701
        %v2719 = vmul.f32 %v2718, %v2717
        %v2720 = vmul.f32 0.5, %v2719
        %v2721 = vsub.f32 1.5, %v2720
        %v2722 = vmul.f32 %v2717, %v2721
        %vm2723 = vweird.f32 %v2701
        %vm2724 = vweird.f32 %v2717
        %vm2725 = vmor %vm2723, %vm2724
        %v2726 = vsel %vm2725, %v2717, %v2722
        %v2727 = vrsqrt.pop %v2702
        %v2728 = vmul.f32 %v2727, %v2702
        %v2729 = vmul.f32 %v2728, %v2727
        %v2730 = vmul.f32 0.5, %v2729
        %v2731 = vsub.f32 1.5, %v2730
        %v2732 = vmul.f32 %v2727, %v2731
        %vm2733 = vweird.f32 %v2702
        %vm2734 = vweird.f32 %v2727
        %vm2735 = vmor %vm2733, %vm2734
        %v2736 = vsel %vm2735, %v2727, %v2732
        %v2737 = vrsqrt.pop %v2703
        %v2738 = vmul.f32 %v2737, %v2703
        %v2739 = vmul.f32 %v2738, %v2737
        %v2740 = vmul.f32 0.5, %v2739
        %v2741 = vsub.f32 1.5, %v2740
        %v2742 = vmul.f32 %v2737, %v2741
        %vm2743 = vweird.f32 %v2703
        %vm2744 = vweird.f32 %v2737
        %vm2745 = vmor %vm2743, %vm2744
        %v2746 = vsel %vm2745, %v2737, %v2742
        %v2747 = vrsqrt.pop %v2704
        %v2748 = vmul.f32 %v2747, %v2704
        %v2749 = vmul.f32 %v2748, %v2747
        %v2750 = vmul.f32 0.5, %v2749
        %v2751 = vsub.f32 1.5, %v2750
        %v2752 = vmul.f32 %v2747, %v2751
        %vm2753 = vweird.f32 %v2704
        %vm2754 = vweird.f32 %v2747
        %vm2755 = vmor %vm2753, %vm2754
        %v2756 = vsel %vm2755, %v2747, %v2752
        %v2757 = vrsqrt.pop %v2705
        %v2758 = vmul.f32 %v2757, %v2705
        %v2759 = vmul.f32 %v2758, %v2757
        %v2760 = vmul.f32 0.5, %v2759
        %v2761 = vsub.f32 1.5, %v2760
        %v2762 = vmul.f32 %v2757, %v2761
        %vm2763 = vweird.f32 %v2705
        %vm2764 = vweird.f32 %v2757
        %vm2765 = vmor %vm2763, %vm2764
        %v2766 = vsel %vm2765, %v2757, %v2762
        %v2767 = vrsqrt.pop %v2706
        %v2768 = vmul.f32 %v2767, %v2706
        %v2769 = vmul.f32 %v2768, %v2767
        %v2770 = vmul.f32 0.5, %v2769
        %v2771 = vsub.f32 1.5, %v2770
        %v2772 = vmul.f32 %v2767, %v2771
        %vm2773 = vweird.f32 %v2706
        %vm2774 = vweird.f32 %v2767
        %vm2775 = vmor %vm2773, %vm2774
        %v2776 = vsel %vm2775, %v2767, %v2772
        %v2777 = vrsqrt.pop %v2707
        %v2778 = vmul.f32 %v2777, %v2707
        %v2779 = vmul.f32 %v2778, %v2777
        %v2780 = vmul.f32 0.5, %v2779
        %v2781 = vsub.f32 1.5, %v2780
        %v2782 = vmul.f32 %v2777, %v2781
        %vm2783 = vweird.f32 %v2707
        %vm2784 = vweird.f32 %v2777
        %vm2785 = vmor %vm2783, %vm2784
        %v2786 = vsel %vm2785, %v2777, %v2782
        %v2787 = vrsqrt.pop %v2708
        %v2788 = vmul.f32 %v2787, %v2708
        %v2789 = vmul.f32 %v2788, %v2787
        %v2790 = vmul.f32 0.5, %v2789
        %v2791 = vsub.f32 1.5, %v2790
        %v2792 = vmul.f32 %v2787, %v2791
        %vm2793 = vweird.f32 %v2708
        %vm2794 = vweird.f32 %v2787
        %vm2795 = vmor %vm2793, %vm2794
        %v2796 = vsel %vm2795, %v2787, %v2792
        %v2797 = vrsqrt.pop %v2709
        %v2798 = vmul.f32 %v2797, %v2709
        %v2799 = vmul.f32 %v2798, %v2797
        %v2800 = vmul.f32 0.5, %v2799
        %v2801 = vsub.f32 1.5, %v2800
        %v2802 = vmul.f32 %v2797, %v2801
        %vm2803 = vweird.f32 %v2709
        %vm2804 = vweird.f32 %v2797
        %vm2805 = vmor %vm2803, %vm2804
        %v2806 = vsel %vm2805, %v2797, %v2802
        %v2807 = vrsqrt.pop %v2710
        %v2808 = vmul.f32 %v2807, %v2710
        %v2809 = vmul.f32 %v2808, %v2807
        %v2810 = vmul.f32 0.5, %v2809
        %v2811 = vsub.f32 1.5, %v2810
        %v2812 = vmul.f32 %v2807, %v2811
        %vm2813 = vweird.f32 %v2710
        %vm2814 = vweird.f32 %v2807
        %vm2815 = vmor %vm2813, %vm2814
        %v2816 = vsel %vm2815, %v2807, %v2812
        %v2817 = vrsqrt.pop %v2711
        %v2818 = vmul.f32 %v2817, %v2711
        %v2819 = vmul.f32 %v2818, %v2817
        %v2820 = vmul.f32 0.5, %v2819
        %v2821 = vsub.f32 1.5, %v2820
        %v2822 = vmul.f32 %v2817, %v2821
        %vm2823 = vweird.f32 %v2711
        %vm2824 = vweird.f32 %v2817
        %vm2825 = vmor %vm2823, %vm2824
        %v2826 = vsel %vm2825, %v2817, %v2822
        %v2827 = vrsqrt.pop %v2712
        %v2828 = vmul.f32 %v2827, %v2712
        %v2829 = vmul.f32 %v2828, %v2827
        %v2830 = vmul.f32 0.5, %v2829
        %v2831 = vsub.f32 1.5, %v2830
        %v2832 = vmul.f32 %v2827, %v2831
        %vm2833 = vweird.f32 %v2712
        %vm2834 = vweird.f32 %v2827
        %vm2835 = vmor %vm2833, %vm2834
        %v2836 = vsel %vm2835, %v2827, %v2832
        %v2837 = vrsqrt.pop %v2713
        %v2838 = vmul.f32 %v2837, %v2713
        %v2839 = vmul.f32 %v2838, %v2837
        %v2840 = vmul.f32 0.5, %v2839
        %v2841 = vsub.f32 1.5, %v2840
        %v2842 = vmul.f32 %v2837, %v2841
        %vm2843 = vweird.f32 %v2713
        %vm2844 = vweird.f32 %v2837
        %vm2845 = vmor %vm2843, %vm2844
        %v2846 = vsel %vm2845, %v2837, %v2842
        %v2847 = vrsqrt.pop %v2714
        %v2848 = vmul.f32 %v2847, %v2714
        %v2849 = vmul.f32 %v2848, %v2847
        %v2850 = vmul.f32 0.5, %v2849
        %v2851 = vsub.f32 1.5, %v2850
        %v2852 = vmul.f32 %v2847, %v2851
        %vm2853 = vweird.f32 %v2714
        %vm2854 = vweird.f32 %v2847
        %vm2855 = vmor %vm2853, %vm2854
        %v2856 = vsel %vm2855, %v2847, %v2852
        %v2857 = vrsqrt.pop %v2715
        %v2858 = vmul.f32 %v2857, %v2715
        %v2859 = vmul.f32 %v2858, %v2857
        %v2860 = vmul.f32 0.5, %v2859
        %v2861 = vsub.f32 1.5, %v2860
        %v2862 = vmul.f32 %v2857, %v2861
        %vm2863 = vweird.f32 %v2715
        %vm2864 = vweird.f32 %v2857
        %vm2865 = vmor %vm2863, %vm2864
        %v2866 = vsel %vm2865, %v2857, %v2862
        %v2867 = vrsqrt.pop %v2716
        %v2868 = vmul.f32 %v2867, %v2716
        %v2869 = vmul.f32 %v2868, %v2867
        %v2870 = vmul.f32 0.5, %v2869
        %v2871 = vsub.f32 1.5, %v2870
        %v2872 = vmul.f32 %v2867, %v2871
        %vm2873 = vweird.f32 %v2716
        %vm2874 = vweird.f32 %v2867
        %vm2875 = vmor %vm2873, %vm2874
        %v2876 = vsel %vm2875, %v2867, %v2872
        %v2893 = vrot.slane %v2736, 7
        %v2894 = vsel %vm2240, %v2893, %v2726
        %v2895 = vrot.slane %v2746, 6
        %v2896 = vsel %vm2243, %v2895, %v2894
        %v2897 = vrot.slane %v2756, 5
        %v2898 = vsel %vm2246, %v2897, %v2896
        %v2899 = vrot.slane %v2766, 4
        %v2900 = vsel %vm2249, %v2899, %v2898
        %v2901 = vrot.slane %v2776, 3
        %v2902 = vsel %vm2252, %v2901, %v2900
        %v2903 = vrot.slane %v2786, 2
        %v2904 = vsel %vm2255, %v2903, %v2902
        %v2905 = vrot.slane %v2796, 1
        %v2906 = vsel %vm2258, %v2905, %v2904
        %v2907 = vrot.slane %v2816, 7
        %v2908 = vsel %vm2240, %v2907, %v2806
        %v2909 = vrot.slane %v2826, 6
        %v2910 = vsel %vm2243, %v2909, %v2908
        %v2911 = vrot.slane %v2836, 5
        %v2912 = vsel %vm2246, %v2911, %v2910
        %v2913 = vrot.slane %v2846, 4
        %v2914 = vsel %vm2249, %v2913, %v2912
        %v2915 = vrot.slane %v2856, 3
        %v2916 = vsel %vm2252, %v2915, %v2914
        %v2917 = vrot.slane %v2866, 2
        %v2918 = vsel %vm2255, %v2917, %v2916
        %v2919 = vrot.slane %v2876, 1
        %v2920 = vsel %vm2258, %v2919, %v2918
        %2923 = vrot.lane.b32.xlu0 %v2906, 64
        %v2924 = vpop.permute.xlu0 %2923
        %2925 = vrot.lane.b32.xlu0 %v2920, 64
        %v2926 = vpop.permute.xlu0 %2925
        %v2929 = vsel %vm2282, %v2906, %v2924
        %v2930 = vsel %vm2282, %v2920, %v2926
        %v2933 = vrot.slane %v2929, 1
        %v2934 = vrot.slane %v2929, 2
        %v2935 = vrot.slane %v2929, 3
        %v2936 = vrot.slane %v2929, 4
        %v2937 = vrot.slane %v2929, 5
        %v2938 = vrot.slane %v2929, 6
        %v2939 = vrot.slane %v2929, 7
        %v2940 = vrot.slane %v2930, 1
        %v2941 = vrot.slane %v2930, 2
        %v2942 = vrot.slane %v2930, 3
        %v2943 = vrot.slane %v2930, 4
        %v2944 = vrot.slane %v2930, 5
        %v2945 = vrot.slane %v2930, 6
        %v2946 = vrot.slane %v2930, 7
        %v2947 = vperm.slane %v2929, 0
        %v2948 = vperm.slane %v2933, 0
        %v2949 = vperm.slane %v2934, 0
        %v2950 = vperm.slane %v2935, 0
        %v2951 = vperm.slane %v2936, 0
        %v2952 = vperm.slane %v2937, 0
        %v2953 = vperm.slane %v2938, 0
        %v2954 = vperm.slane %v2939, 0
        %v2955 = vperm.slane %v2930, 0
        %v2956 = vperm.slane %v2940, 0
        %v2957 = vperm.slane %v2941, 0
        %v2958 = vperm.slane %v2942, 0
        %v2959 = vperm.slane %v2943, 0
        %v2960 = vperm.slane %v2944, 0
        %v2961 = vperm.slane %v2945, 0
        %v2962 = vperm.slane %v2946, 0
        %v2979 = vmul.f32 %v2333, %v2947
        %v2980 = vmul.f32 %v2334, %v2947
        %v2981 = vmul.f32 %v2335, %v2947
        %v2982 = vmul.f32 %v2336, %v2947
        %v2983 = vmul.f32 %v2337, %v2948
        %v2984 = vmul.f32 %v2338, %v2948
        %v2985 = vmul.f32 %v2339, %v2948
        %v2986 = vmul.f32 %v2340, %v2948
        %v2987 = vmul.f32 %v2341, %v2949
        %v2988 = vmul.f32 %v2342, %v2949
        %v2989 = vmul.f32 %v2343, %v2949
        %v2990 = vmul.f32 %v2344, %v2949
        %v2991 = vmul.f32 %v2345, %v2950
        %v2992 = vmul.f32 %v2346, %v2950
        %v2993 = vmul.f32 %v2347, %v2950
        %v2994 = vmul.f32 %v2348, %v2950
        %v2995 = vmul.f32 %v2349, %v2951
        %v2996 = vmul.f32 %v2350, %v2951
        %v2997 = vmul.f32 %v2351, %v2951
        %v2998 = vmul.f32 %v2352, %v2951
        %v2999 = vmul.f32 %v2353, %v2952
        %v3000 = vmul.f32 %v2354, %v2952
        %v3001 = vmul.f32 %v2355, %v2952
        %v3002 = vmul.f32 %v2356, %v2952
        %v3003 = vmul.f32 %v2357, %v2953
        %v3004 = vmul.f32 %v2358, %v2953
        %v3005 = vmul.f32 %v2359, %v2953
        %v3006 = vmul.f32 %v2360, %v2953
        %v3007 = vmul.f32 %v2361, %v2954
        %v3008 = vmul.f32 %v2362, %v2954
        %v3009 = vmul.f32 %v2363, %v2954
        %v3010 = vmul.f32 %v2364, %v2954
        %v3011 = vmul.f32 %v2365, %v2955
        %v3012 = vmul.f32 %v2366, %v2955
        %v3013 = vmul.f32 %v2367, %v2955
        %v3014 = vmul.f32 %v2368, %v2955
        %v3015 = vmul.f32 %v2369, %v2956
        %v3016 = vmul.f32 %v2370, %v2956
        %v3017 = vmul.f32 %v2371, %v2956
        %v3018 = vmul.f32 %v2372, %v2956
        %v3019 = vmul.f32 %v2373, %v2957
        %v3020 = vmul.f32 %v2374, %v2957
        %v3021 = vmul.f32 %v2375, %v2957
        %v3022 = vmul.f32 %v2376, %v2957
        %v3023 = vmul.f32 %v2377, %v2958
        %v3024 = vmul.f32 %v2378, %v2958
        %v3025 = vmul.f32 %v2379, %v2958
        %v3026 = vmul.f32 %v2380, %v2958
        %v3027 = vmul.f32 %v2381, %v2959
        %v3028 = vmul.f32 %v2382, %v2959
        %v3029 = vmul.f32 %v2383, %v2959
        %v3030 = vmul.f32 %v2384, %v2959
        %v3031 = vmul.f32 %v2385, %v2960
        %v3032 = vmul.f32 %v2386, %v2960
        %v3033 = vmul.f32 %v2387, %v2960
        %v3034 = vmul.f32 %v2388, %v2960
        %v3035 = vmul.f32 %v2389, %v2961
        %v3036 = vmul.f32 %v2390, %v2961
        %v3037 = vmul.f32 %v2391, %v2961
        %v3038 = vmul.f32 %v2392, %v2961
        %v3039 = vmul.f32 %v2393, %v2962
        %v3040 = vmul.f32 %v2394, %v2962
        %v3041 = vmul.f32 %v2395, %v2962
        %v3042 = vmul.f32 %v2396, %v2962
        %v3043 = vmul.f32 %v2979, %v1979
        %v3044 = vmul.f32 %v2980, %v1980
        %v3045 = vmul.f32 %v2981, %v1981
        %v3046 = vmul.f32 %v2982, %v1982
        %v3047 = vmul.f32 %v2983, %v1979
        %v3048 = vmul.f32 %v2984, %v1980
        %v3049 = vmul.f32 %v2985, %v1981
        %v3050 = vmul.f32 %v2986, %v1982
        %v3051 = vmul.f32 %v2987, %v1979
        %v3052 = vmul.f32 %v2988, %v1980
        %v3053 = vmul.f32 %v2989, %v1981
        %v3054 = vmul.f32 %v2990, %v1982
        %v3055 = vmul.f32 %v2991, %v1979
        %v3056 = vmul.f32 %v2992, %v1980
        %v3057 = vmul.f32 %v2993, %v1981
        %v3058 = vmul.f32 %v2994, %v1982
        %v3059 = vmul.f32 %v2995, %v1979
        %v3060 = vmul.f32 %v2996, %v1980
        %v3061 = vmul.f32 %v2997, %v1981
        %v3062 = vmul.f32 %v2998, %v1982
        %v3063 = vmul.f32 %v2999, %v1979
        %v3064 = vmul.f32 %v3000, %v1980
        %v3065 = vmul.f32 %v3001, %v1981
        %v3066 = vmul.f32 %v3002, %v1982
        %v3067 = vmul.f32 %v3003, %v1979
        %v3068 = vmul.f32 %v3004, %v1980
        %v3069 = vmul.f32 %v3005, %v1981
        %v3070 = vmul.f32 %v3006, %v1982
        %v3071 = vmul.f32 %v3007, %v1979
        %v3072 = vmul.f32 %v3008, %v1980
        %v3073 = vmul.f32 %v3009, %v1981
        %v3074 = vmul.f32 %v3010, %v1982
        %v3075 = vmul.f32 %v3011, %v1979
        %v3076 = vmul.f32 %v3012, %v1980
        %v3077 = vmul.f32 %v3013, %v1981
        %v3078 = vmul.f32 %v3014, %v1982
        %v3079 = vmul.f32 %v3015, %v1979
        %v3080 = vmul.f32 %v3016, %v1980
        %v3081 = vmul.f32 %v3017, %v1981
        %v3082 = vmul.f32 %v3018, %v1982
        %v3083 = vmul.f32 %v3019, %v1979
        %v3084 = vmul.f32 %v3020, %v1980
        %v3085 = vmul.f32 %v3021, %v1981
        %v3086 = vmul.f32 %v3022, %v1982
        %v3087 = vmul.f32 %v3023, %v1979
        %v3088 = vmul.f32 %v3024, %v1980
        %v3089 = vmul.f32 %v3025, %v1981
        %v3090 = vmul.f32 %v3026, %v1982
        %v3091 = vmul.f32 %v3027, %v1979
        %v3092 = vmul.f32 %v3028, %v1980
        %v3093 = vmul.f32 %v3029, %v1981
        %v3094 = vmul.f32 %v3030, %v1982
        %v3095 = vmul.f32 %v3031, %v1979
        %v3096 = vmul.f32 %v3032, %v1980
        %v3097 = vmul.f32 %v3033, %v1981
        %v3098 = vmul.f32 %v3034, %v1982
        %v3099 = vmul.f32 %v3035, %v1979
        %v3100 = vmul.f32 %v3036, %v1980
        %v3101 = vmul.f32 %v3037, %v1981
        %v3102 = vmul.f32 %v3038, %v1982
        %v3103 = vmul.f32 %v3039, %v1979
        %v3104 = vmul.f32 %v3040, %v1980
        %v3105 = vmul.f32 %v3041, %v1981
        %v3106 = vmul.f32 %v3042, %v1982
        %v3107 = vadd.f32 %v3043, 0.0
        %v3108 = vadd.f32 %v3044, 0.0
        %v3109 = vadd.f32 %v3045, 0.0
        %v3110 = vadd.f32 %v3046, 0.0
        %v3111 = vadd.f32 %v3047, 0.0
        %v3112 = vadd.f32 %v3048, 0.0
        %v3113 = vadd.f32 %v3049, 0.0
        %v3114 = vadd.f32 %v3050, 0.0
        %v3115 = vadd.f32 %v3051, 0.0
        %v3116 = vadd.f32 %v3052, 0.0
        %v3117 = vadd.f32 %v3053, 0.0
        %v3118 = vadd.f32 %v3054, 0.0
        %v3119 = vadd.f32 %v3055, 0.0
        %v3120 = vadd.f32 %v3056, 0.0
        %v3121 = vadd.f32 %v3057, 0.0
        %v3122 = vadd.f32 %v3058, 0.0
        %v3123 = vadd.f32 %v3059, 0.0
        %v3124 = vadd.f32 %v3060, 0.0
        %v3125 = vadd.f32 %v3061, 0.0
        %v3126 = vadd.f32 %v3062, 0.0
        %v3127 = vadd.f32 %v3063, 0.0
        %v3128 = vadd.f32 %v3064, 0.0
        %v3129 = vadd.f32 %v3065, 0.0
        %v3130 = vadd.f32 %v3066, 0.0
        %v3131 = vadd.f32 %v3067, 0.0
        %v3132 = vadd.f32 %v3068, 0.0
        %v3133 = vadd.f32 %v3069, 0.0
        %v3134 = vadd.f32 %v3070, 0.0
        %v3135 = vadd.f32 %v3071, 0.0
        %v3136 = vadd.f32 %v3072, 0.0
        %v3137 = vadd.f32 %v3073, 0.0
        %v3138 = vadd.f32 %v3074, 0.0
        %v3139 = vadd.f32 %v3075, 0.0
        %v3140 = vadd.f32 %v3076, 0.0
        %v3141 = vadd.f32 %v3077, 0.0
        %v3142 = vadd.f32 %v3078, 0.0
        %v3143 = vadd.f32 %v3079, 0.0
        %v3144 = vadd.f32 %v3080, 0.0
        %v3145 = vadd.f32 %v3081, 0.0
        %v3146 = vadd.f32 %v3082, 0.0
        %v3147 = vadd.f32 %v3083, 0.0
        %v3148 = vadd.f32 %v3084, 0.0
        %v3149 = vadd.f32 %v3085, 0.0
        %v3150 = vadd.f32 %v3086, 0.0
        %v3151 = vadd.f32 %v3087, 0.0
        %v3152 = vadd.f32 %v3088, 0.0
        %v3153 = vadd.f32 %v3089, 0.0
        %v3154 = vadd.f32 %v3090, 0.0
        %v3155 = vadd.f32 %v3091, 0.0
        %v3156 = vadd.f32 %v3092, 0.0
        %v3157 = vadd.f32 %v3093, 0.0
        %v3158 = vadd.f32 %v3094, 0.0
        %v3159 = vadd.f32 %v3095, 0.0
        %v3160 = vadd.f32 %v3096, 0.0
        %v3161 = vadd.f32 %v3097, 0.0
        %v3162 = vadd.f32 %v3098, 0.0
        %v3163 = vadd.f32 %v3099, 0.0
        %v3164 = vadd.f32 %v3100, 0.0
        %v3165 = vadd.f32 %v3101, 0.0
        %v3166 = vadd.f32 %v3102, 0.0
        %v3167 = vadd.f32 %v3103, 0.0
        %v3168 = vadd.f32 %v3104, 0.0
        %v3169 = vadd.f32 %v3105, 0.0
        %v3170 = vadd.f32 %v3106, 0.0
        %3235 = vrot.lane.b32.xlu0 %v3043, 64
        %v3236 = vpop.permute.xlu0 %3235
        %3237 = vrot.lane.b32.xlu0 %v3044, 64
        %v3238 = vpop.permute.xlu0 %3237
        %3239 = vrot.lane.b32.xlu0 %v3045, 64
        %v3240 = vpop.permute.xlu0 %3239
        %3241 = vrot.lane.b32.xlu0 %v3046, 64
        %v3242 = vpop.permute.xlu0 %3241
        %3243 = vrot.lane.b32.xlu0 %v3047, 64
        %v3244 = vpop.permute.xlu0 %3243
        %3245 = vrot.lane.b32.xlu0 %v3048, 64
        %v3246 = vpop.permute.xlu0 %3245
        %3247 = vrot.lane.b32.xlu0 %v3049, 64
        %v3248 = vpop.permute.xlu0 %3247
        %3249 = vrot.lane.b32.xlu0 %v3050, 64
        %v3250 = vpop.permute.xlu0 %3249
        %3251 = vrot.lane.b32.xlu0 %v3051, 64
        %v3252 = vpop.permute.xlu0 %3251
        %3253 = vrot.lane.b32.xlu0 %v3052, 64
        %v3254 = vpop.permute.xlu0 %3253
        %3255 = vrot.lane.b32.xlu0 %v3053, 64
        %v3256 = vpop.permute.xlu0 %3255
        %3257 = vrot.lane.b32.xlu0 %v3054, 64
        %v3258 = vpop.permute.xlu0 %3257
        %3259 = vrot.lane.b32.xlu0 %v3055, 64
        %v3260 = vpop.permute.xlu0 %3259
        %3261 = vrot.lane.b32.xlu0 %v3056, 64
        %v3262 = vpop.permute.xlu0 %3261
        %3263 = vrot.lane.b32.xlu0 %v3057, 64
        %v3264 = vpop.permute.xlu0 %3263
        %3265 = vrot.lane.b32.xlu0 %v3058, 64
        %v3266 = vpop.permute.xlu0 %3265
        %3267 = vrot.lane.b32.xlu0 %v3059, 64
        %v3268 = vpop.permute.xlu0 %3267
        %3269 = vrot.lane.b32.xlu0 %v3060, 64
        %v3270 = vpop.permute.xlu0 %3269
        %3271 = vrot.lane.b32.xlu0 %v3061, 64
        %v3272 = vpop.permute.xlu0 %3271
        %3273 = vrot.lane.b32.xlu0 %v3062, 64
        %v3274 = vpop.permute.xlu0 %3273
        %3275 = vrot.lane.b32.xlu0 %v3063, 64
        %v3276 = vpop.permute.xlu0 %3275
        %3277 = vrot.lane.b32.xlu0 %v3064, 64
        %v3278 = vpop.permute.xlu0 %3277
        %3279 = vrot.lane.b32.xlu0 %v3065, 64
        %v3280 = vpop.permute.xlu0 %3279
        %3281 = vrot.lane.b32.xlu0 %v3066, 64
        %v3282 = vpop.permute.xlu0 %3281
        %3283 = vrot.lane.b32.xlu0 %v3067, 64
        %v3284 = vpop.permute.xlu0 %3283
        %3285 = vrot.lane.b32.xlu0 %v3068, 64
        %v3286 = vpop.permute.xlu0 %3285
        %3287 = vrot.lane.b32.xlu0 %v3069, 64
        %v3288 = vpop.permute.xlu0 %3287
        %3289 = vrot.lane.b32.xlu0 %v3070, 64
        %v3290 = vpop.permute.xlu0 %3289
        %3291 = vrot.lane.b32.xlu0 %v3071, 64
        %v3292 = vpop.permute.xlu0 %3291
        %3293 = vrot.lane.b32.xlu0 %v3072, 64
        %v3294 = vpop.permute.xlu0 %3293
        %3295 = vrot.lane.b32.xlu0 %v3073, 64
        %v3296 = vpop.permute.xlu0 %3295
        %3297 = vrot.lane.b32.xlu0 %v3074, 64
        %v3298 = vpop.permute.xlu0 %3297
        %3299 = vrot.lane.b32.xlu0 %v3075, 64
        %v3300 = vpop.permute.xlu0 %3299
        %3301 = vrot.lane.b32.xlu0 %v3076, 64
        %v3302 = vpop.permute.xlu0 %3301
        %3303 = vrot.lane.b32.xlu0 %v3077, 64
        %v3304 = vpop.permute.xlu0 %3303
        %3305 = vrot.lane.b32.xlu0 %v3078, 64
        %v3306 = vpop.permute.xlu0 %3305
        %3307 = vrot.lane.b32.xlu0 %v3079, 64
        %v3308 = vpop.permute.xlu0 %3307
        %3309 = vrot.lane.b32.xlu0 %v3080, 64
        %v3310 = vpop.permute.xlu0 %3309
        %3311 = vrot.lane.b32.xlu0 %v3081, 64
        %v3312 = vpop.permute.xlu0 %3311
        %3313 = vrot.lane.b32.xlu0 %v3082, 64
        %v3314 = vpop.permute.xlu0 %3313
        %3315 = vrot.lane.b32.xlu0 %v3083, 64
        %v3316 = vpop.permute.xlu0 %3315
        %3317 = vrot.lane.b32.xlu0 %v3084, 64
        %v3318 = vpop.permute.xlu0 %3317
        %3319 = vrot.lane.b32.xlu0 %v3085, 64
        %v3320 = vpop.permute.xlu0 %3319
        %3321 = vrot.lane.b32.xlu0 %v3086, 64
        %v3322 = vpop.permute.xlu0 %3321
        %3323 = vrot.lane.b32.xlu0 %v3087, 64
        %v3324 = vpop.permute.xlu0 %3323
        %3325 = vrot.lane.b32.xlu0 %v3088, 64
        %v3326 = vpop.permute.xlu0 %3325
        %3327 = vrot.lane.b32.xlu0 %v3089, 64
        %v3328 = vpop.permute.xlu0 %3327
        %3329 = vrot.lane.b32.xlu0 %v3090, 64
        %v3330 = vpop.permute.xlu0 %3329
        %3331 = vrot.lane.b32.xlu0 %v3091, 64
        %v3332 = vpop.permute.xlu0 %3331
        %3333 = vrot.lane.b32.xlu0 %v3092, 64
        %v3334 = vpop.permute.xlu0 %3333
        %3335 = vrot.lane.b32.xlu0 %v3093, 64
        %v3336 = vpop.permute.xlu0 %3335
        %3337 = vrot.lane.b32.xlu0 %v3094, 64
        %v3338 = vpop.permute.xlu0 %3337
        %3339 = vrot.lane.b32.xlu0 %v3095, 64
        %v3340 = vpop.permute.xlu0 %3339
        %3341 = vrot.lane.b32.xlu0 %v3096, 64
        %v3342 = vpop.permute.xlu0 %3341
        %3343 = vrot.lane.b32.xlu0 %v3097, 64
        %v3344 = vpop.permute.xlu0 %3343
        %3345 = vrot.lane.b32.xlu0 %v3098, 64
        %v3346 = vpop.permute.xlu0 %3345
        %3347 = vrot.lane.b32.xlu0 %v3099, 64
        %v3348 = vpop.permute.xlu0 %3347
        %3349 = vrot.lane.b32.xlu0 %v3100, 64
        %v3350 = vpop.permute.xlu0 %3349
        %3351 = vrot.lane.b32.xlu0 %v3101, 64
        %v3352 = vpop.permute.xlu0 %3351
        %3353 = vrot.lane.b32.xlu0 %v3102, 64
        %v3354 = vpop.permute.xlu0 %3353
        %3355 = vrot.lane.b32.xlu0 %v3103, 64
        %v3356 = vpop.permute.xlu0 %3355
        %3357 = vrot.lane.b32.xlu0 %v3104, 64
        %v3358 = vpop.permute.xlu0 %3357
        %3359 = vrot.lane.b32.xlu0 %v3105, 64
        %v3360 = vpop.permute.xlu0 %3359
        %3361 = vrot.lane.b32.xlu0 %v3106, 64
        %v3362 = vpop.permute.xlu0 %3361
        %v3427 = vadd.f32 %v3107, %v3236
        %v3428 = vadd.f32 %v3108, %v3238
        %v3429 = vadd.f32 %v3109, %v3240
        %v3430 = vadd.f32 %v3110, %v3242
        %v3431 = vadd.f32 %v3111, %v3244
        %v3432 = vadd.f32 %v3112, %v3246
        %v3433 = vadd.f32 %v3113, %v3248
        %v3434 = vadd.f32 %v3114, %v3250
        %v3435 = vadd.f32 %v3115, %v3252
        %v3436 = vadd.f32 %v3116, %v3254
        %v3437 = vadd.f32 %v3117, %v3256
        %v3438 = vadd.f32 %v3118, %v3258
        %v3439 = vadd.f32 %v3119, %v3260
        %v3440 = vadd.f32 %v3120, %v3262
        %v3441 = vadd.f32 %v3121, %v3264
        %v3442 = vadd.f32 %v3122, %v3266
        %v3443 = vadd.f32 %v3123, %v3268
        %v3444 = vadd.f32 %v3124, %v3270
        %v3445 = vadd.f32 %v3125, %v3272
        %v3446 = vadd.f32 %v3126, %v3274
        %v3447 = vadd.f32 %v3127, %v3276
        %v3448 = vadd.f32 %v3128, %v3278
        %v3449 = vadd.f32 %v3129, %v3280
        %v3450 = vadd.f32 %v3130, %v3282
        %v3451 = vadd.f32 %v3131, %v3284
        %v3452 = vadd.f32 %v3132, %v3286
        %v3453 = vadd.f32 %v3133, %v3288
        %v3454 = vadd.f32 %v3134, %v3290
        %v3455 = vadd.f32 %v3135, %v3292
        %v3456 = vadd.f32 %v3136, %v3294
        %v3457 = vadd.f32 %v3137, %v3296
        %v3458 = vadd.f32 %v3138, %v3298
        %v3459 = vadd.f32 %v3139, %v3300
        %v3460 = vadd.f32 %v3140, %v3302
        %v3461 = vadd.f32 %v3141, %v3304
        %v3462 = vadd.f32 %v3142, %v3306
        %v3463 = vadd.f32 %v3143, %v3308
        %v3464 = vadd.f32 %v3144, %v3310
        %v3465 = vadd.f32 %v3145, %v3312
        %v3466 = vadd.f32 %v3146, %v3314
        %v3467 = vadd.f32 %v3147, %v3316
        %v3468 = vadd.f32 %v3148, %v3318
        %v3469 = vadd.f32 %v3149, %v3320
        %v3470 = vadd.f32 %v3150, %v3322
        %v3471 = vadd.f32 %v3151, %v3324
        %v3472 = vadd.f32 %v3152, %v3326
        %v3473 = vadd.f32 %v3153, %v3328
        %v3474 = vadd.f32 %v3154, %v3330
        %v3475 = vadd.f32 %v3155, %v3332
        %v3476 = vadd.f32 %v3156, %v3334
        %v3477 = vadd.f32 %v3157, %v3336
        %v3478 = vadd.f32 %v3158, %v3338
        %v3479 = vadd.f32 %v3159, %v3340
        %v3480 = vadd.f32 %v3160, %v3342
        %v3481 = vadd.f32 %v3161, %v3344
        %v3482 = vadd.f32 %v3162, %v3346
        %v3483 = vadd.f32 %v3163, %v3348
        %v3484 = vadd.f32 %v3164, %v3350
        %v3485 = vadd.f32 %v3165, %v3352
        %v3486 = vadd.f32 %v3166, %v3354
        %v3487 = vadd.f32 %v3167, %v3356
        %v3488 = vadd.f32 %v3168, %v3358
        %v3489 = vadd.f32 %v3169, %v3360
        %v3490 = vadd.f32 %v3170, %v3362
        %v3491 = vadd.f32 %v1048, %v1050
        %v3492 = vadd.f32 %v3491, %v1053
        %v3493 = vadd.f32 %v3492, %v1055
        %v3494 = vrot.slane %v3493, 4
        %v3495 = vadd.f32 %v3493, %v3494
        %v3496 = vrot.slane %v3495, 2
        %v3497 = vadd.f32 %v3495, %v3496
        %v3498 = vrot.slane %v3497, 1
        %v3499 = vadd.f32 %v3497, %v3498
        %v3500 = vadd.f32 %v1058, %v1060
        %v3501 = vadd.f32 %v3500, %v1063
        %v3502 = vadd.f32 %v3501, %v1065
        %v3503 = vrot.slane %v3502, 4
        %v3504 = vadd.f32 %v3502, %v3503
        %v3505 = vrot.slane %v3504, 2
        %v3506 = vadd.f32 %v3504, %v3505
        %v3507 = vrot.slane %v3506, 1
        %v3508 = vadd.f32 %v3506, %v3507
        %v3509 = vadd.f32 %v1068, %v1070
        %v3510 = vadd.f32 %v3509, %v1073
        %v3511 = vadd.f32 %v3510, %v1075
        %v3512 = vrot.slane %v3511, 4
        %v3513 = vadd.f32 %v3511, %v3512
        %v3514 = vrot.slane %v3513, 2
        %v3515 = vadd.f32 %v3513, %v3514
        %v3516 = vrot.slane %v3515, 1
        %v3517 = vadd.f32 %v3515, %v3516
        %v3518 = vadd.f32 %v1078, %v1080
        %v3519 = vadd.f32 %v3518, %v1083
        %v3520 = vadd.f32 %v3519, %v1085
        %v3521 = vrot.slane %v3520, 4
        %v3522 = vadd.f32 %v3520, %v3521
        %v3523 = vrot.slane %v3522, 2
        %v3524 = vadd.f32 %v3522, %v3523
        %v3525 = vrot.slane %v3524, 1
        %v3526 = vadd.f32 %v3524, %v3525
        %v3527 = vadd.f32 %v1088, %v1090
        %v3528 = vadd.f32 %v3527, %v1093
        %v3529 = vadd.f32 %v3528, %v1095
        %v3530 = vrot.slane %v3529, 4
        %v3531 = vadd.f32 %v3529, %v3530
        %v3532 = vrot.slane %v3531, 2
        %v3533 = vadd.f32 %v3531, %v3532
        %v3534 = vrot.slane %v3533, 1
        %v3535 = vadd.f32 %v3533, %v3534
        %v3536 = vadd.f32 %v1098, %v1100
        %v3537 = vadd.f32 %v3536, %v1103
        %v3538 = vadd.f32 %v3537, %v1105
        %v3539 = vrot.slane %v3538, 4
        %v3540 = vadd.f32 %v3538, %v3539
        %v3541 = vrot.slane %v3540, 2
        %v3542 = vadd.f32 %v3540, %v3541
        %v3543 = vrot.slane %v3542, 1
        %v3544 = vadd.f32 %v3542, %v3543
        %v3545 = vadd.f32 %v1108, %v1110
        %v3546 = vadd.f32 %v3545, %v1113
        %v3547 = vadd.f32 %v3546, %v1115
        %v3548 = vrot.slane %v3547, 4
        %v3549 = vadd.f32 %v3547, %v3548
        %v3550 = vrot.slane %v3549, 2
        %v3551 = vadd.f32 %v3549, %v3550
        %v3552 = vrot.slane %v3551, 1
        %v3553 = vadd.f32 %v3551, %v3552
        %v3554 = vadd.f32 %v1118, %v1120
        %v3555 = vadd.f32 %v3554, %v1123
        %v3556 = vadd.f32 %v3555, %v1125
        %v3557 = vrot.slane %v3556, 4
        %v3558 = vadd.f32 %v3556, %v3557
        %v3559 = vrot.slane %v3558, 2
        %v3560 = vadd.f32 %v3558, %v3559
        %v3561 = vrot.slane %v3560, 1
        %v3562 = vadd.f32 %v3560, %v3561
        %v3563 = vadd.f32 %v1128, %v1130
        %v3564 = vadd.f32 %v3563, %v1133
        %v3565 = vadd.f32 %v3564, %v1135
        %v3566 = vrot.slane %v3565, 4
        %v3567 = vadd.f32 %v3565, %v3566
        %v3568 = vrot.slane %v3567, 2
        %v3569 = vadd.f32 %v3567, %v3568
        %v3570 = vrot.slane %v3569, 1
        %v3571 = vadd.f32 %v3569, %v3570
        %v3572 = vadd.f32 %v1138, %v1140
        %v3573 = vadd.f32 %v3572, %v1143
        %v3574 = vadd.f32 %v3573, %v1145
        %v3575 = vrot.slane %v3574, 4
        %v3576 = vadd.f32 %v3574, %v3575
        %v3577 = vrot.slane %v3576, 2
        %v3578 = vadd.f32 %v3576, %v3577
        %v3579 = vrot.slane %v3578, 1
        %v3580 = vadd.f32 %v3578, %v3579
        %v3581 = vadd.f32 %v1148, %v1150
        %v3582 = vadd.f32 %v3581, %v1153
        %v3583 = vadd.f32 %v3582, %v1155
        %v3584 = vrot.slane %v3583, 4
        %v3585 = vadd.f32 %v3583, %v3584
        %v3586 = vrot.slane %v3585, 2
        %v3587 = vadd.f32 %v3585, %v3586
        %v3588 = vrot.slane %v3587, 1
        %v3589 = vadd.f32 %v3587, %v3588
        %v3590 = vadd.f32 %v1158, %v1160
        %v3591 = vadd.f32 %v3590, %v1163
        %v3592 = vadd.f32 %v3591, %v1165
        %v3593 = vrot.slane %v3592, 4
        %v3594 = vadd.f32 %v3592, %v3593
        %v3595 = vrot.slane %v3594, 2
        %v3596 = vadd.f32 %v3594, %v3595
        %v3597 = vrot.slane %v3596, 1
        %v3598 = vadd.f32 %v3596, %v3597
        %v3599 = vadd.f32 %v1168, %v1170
        %v3600 = vadd.f32 %v3599, %v1173
        %v3601 = vadd.f32 %v3600, %v1175
        %v3602 = vrot.slane %v3601, 4
        %v3603 = vadd.f32 %v3601, %v3602
        %v3604 = vrot.slane %v3603, 2
        %v3605 = vadd.f32 %v3603, %v3604
        %v3606 = vrot.slane %v3605, 1
        %v3607 = vadd.f32 %v3605, %v3606
        %v3608 = vadd.f32 %v1178, %v1180
        %v3609 = vadd.f32 %v3608, %v1183
        %v3610 = vadd.f32 %v3609, %v1185
        %v3611 = vrot.slane %v3610, 4
        %v3612 = vadd.f32 %v3610, %v3611
        %v3613 = vrot.slane %v3612, 2
        %v3614 = vadd.f32 %v3612, %v3613
        %v3615 = vrot.slane %v3614, 1
        %v3616 = vadd.f32 %v3614, %v3615
        %v3617 = vadd.f32 %v1188, %v1190
        %v3618 = vadd.f32 %v3617, %v1193
        %v3619 = vadd.f32 %v3618, %v1195
        %v3620 = vrot.slane %v3619, 4
        %v3621 = vadd.f32 %v3619, %v3620
        %v3622 = vrot.slane %v3621, 2
        %v3623 = vadd.f32 %v3621, %v3622
        %v3624 = vrot.slane %v3623, 1
        %v3625 = vadd.f32 %v3623, %v3624
        %v3626 = vadd.f32 %v1198, %v1200
        %v3627 = vadd.f32 %v3626, %v1203
        %v3628 = vadd.f32 %v3627, %v1205
        %v3629 = vrot.slane %v3628, 4
        %v3630 = vadd.f32 %v3628, %v3629
        %v3631 = vrot.slane %v3630, 2
        %v3632 = vadd.f32 %v3630, %v3631
        %v3633 = vrot.slane %v3632, 1
        %v3634 = vadd.f32 %v3632, %v3633
        %3651 = vrot.lane.b32.xlu0 %v3499, 64
        %v3652 = vpop.permute.xlu0 %3651
        %3653 = vrot.lane.b32.xlu0 %v3508, 64
        %v3654 = vpop.permute.xlu0 %3653
        %3655 = vrot.lane.b32.xlu0 %v3517, 64
        %v3656 = vpop.permute.xlu0 %3655
        %3657 = vrot.lane.b32.xlu0 %v3526, 64
        %v3658 = vpop.permute.xlu0 %3657
        %3659 = vrot.lane.b32.xlu0 %v3535, 64
        %v3660 = vpop.permute.xlu0 %3659
        %3661 = vrot.lane.b32.xlu0 %v3544, 64
        %v3662 = vpop.permute.xlu0 %3661
        %3663 = vrot.lane.b32.xlu0 %v3553, 64
        %v3664 = vpop.permute.xlu0 %3663
        %3665 = vrot.lane.b32.xlu0 %v3562, 64
        %v3666 = vpop.permute.xlu0 %3665
        %3667 = vrot.lane.b32.xlu0 %v3571, 64
        %v3668 = vpop.permute.xlu0 %3667
        %3669 = vrot.lane.b32.xlu0 %v3580, 64
        %v3670 = vpop.permute.xlu0 %3669
        %3671 = vrot.lane.b32.xlu0 %v3589, 64
        %v3672 = vpop.permute.xlu0 %3671
        %3673 = vrot.lane.b32.xlu0 %v3598, 64
        %v3674 = vpop.permute.xlu0 %3673
        %3675 = vrot.lane.b32.xlu0 %v3607, 64
        %v3676 = vpop.permute.xlu0 %3675
        %3677 = vrot.lane.b32.xlu0 %v3616, 64
        %v3678 = vpop.permute.xlu0 %3677
        %3679 = vrot.lane.b32.xlu0 %v3625, 64
        %v3680 = vpop.permute.xlu0 %3679
        %3681 = vrot.lane.b32.xlu0 %v3634, 64
        %v3682 = vpop.permute.xlu0 %3681
        %v3699 = vadd.f32 %v3499, %v3652
        %v3700 = vadd.f32 %v3508, %v3654
        %v3701 = vadd.f32 %v3517, %v3656
        %v3702 = vadd.f32 %v3526, %v3658
        %v3703 = vadd.f32 %v3535, %v3660
        %v3704 = vadd.f32 %v3544, %v3662
        %v3705 = vadd.f32 %v3553, %v3664
        %v3706 = vadd.f32 %v3562, %v3666
        %v3707 = vadd.f32 %v3571, %v3668
        %v3708 = vadd.f32 %v3580, %v3670
        %v3709 = vadd.f32 %v3589, %v3672
        %v3710 = vadd.f32 %v3598, %v3674
        %v3711 = vadd.f32 %v3607, %v3676
        %v3712 = vadd.f32 %v3616, %v3678
        %v3713 = vadd.f32 %v3625, %v3680
        %v3714 = vadd.f32 %v3634, %v3682
        %v3715 = vmul.f32 %v3699, 0.015625
        %v3716 = vmul.f32 %v3700, 0.015625
        %v3717 = vmul.f32 %v3701, 0.015625
        %v3718 = vmul.f32 %v3702, 0.015625
        %v3719 = vmul.f32 %v3703, 0.015625
        %v3720 = vmul.f32 %v3704, 0.015625
        %v3721 = vmul.f32 %v3705, 0.015625
        %v3722 = vmul.f32 %v3706, 0.015625
        %v3723 = vmul.f32 %v3707, 0.015625
        %v3724 = vmul.f32 %v3708, 0.015625
        %v3725 = vmul.f32 %v3709, 0.015625
        %v3726 = vmul.f32 %v3710, 0.015625
        %v3727 = vmul.f32 %v3711, 0.015625
        %v3728 = vmul.f32 %v3712, 0.015625
        %v3729 = vmul.f32 %v3713, 0.015625
        %v3730 = vmul.f32 %v3714, 0.015625
        %v3747 = vrot.slane %v3716, 7
        %v3748 = vsel %vm2240, %v3747, %v3715
        %v3749 = vrot.slane %v3717, 6
        %v3750 = vsel %vm2243, %v3749, %v3748
        %v3751 = vrot.slane %v3718, 5
        %v3752 = vsel %vm2246, %v3751, %v3750
        %v3753 = vrot.slane %v3719, 4
        %v3754 = vsel %vm2249, %v3753, %v3752
        %v3755 = vrot.slane %v3720, 3
        %v3756 = vsel %vm2252, %v3755, %v3754
        %v3757 = vrot.slane %v3721, 2
        %v3758 = vsel %vm2255, %v3757, %v3756
        %v3759 = vrot.slane %v3722, 1
        %v3760 = vsel %vm2258, %v3759, %v3758
        %v3761 = vrot.slane %v3724, 7
        %v3762 = vsel %vm2240, %v3761, %v3723
        %v3763 = vrot.slane %v3725, 6
        %v3764 = vsel %vm2243, %v3763, %v3762
        %v3765 = vrot.slane %v3726, 5
        %v3766 = vsel %vm2246, %v3765, %v3764
        %v3767 = vrot.slane %v3727, 4
        %v3768 = vsel %vm2249, %v3767, %v3766
        %v3769 = vrot.slane %v3728, 3
        %v3770 = vsel %vm2252, %v3769, %v3768
        %v3771 = vrot.slane %v3729, 2
        %v3772 = vsel %vm2255, %v3771, %v3770
        %v3773 = vrot.slane %v3730, 1
        %v3774 = vsel %vm2258, %v3773, %v3772
        %3777 = vrot.lane.b32.xlu0 %v3760, 64
        %v3778 = vpop.permute.xlu0 %3777
        %3779 = vrot.lane.b32.xlu0 %v3774, 64
        %v3780 = vpop.permute.xlu0 %3779
        %v3783 = vsel %vm2282, %v3760, %v3778
        %v3784 = vsel %vm2282, %v3774, %v3780
        %v3787 = vrot.slane %v3783, 1
        %v3788 = vrot.slane %v3783, 2
        %v3789 = vrot.slane %v3783, 3
        %v3790 = vrot.slane %v3783, 4
        %v3791 = vrot.slane %v3783, 5
        %v3792 = vrot.slane %v3783, 6
        %v3793 = vrot.slane %v3783, 7
        %v3794 = vrot.slane %v3784, 1
        %v3795 = vrot.slane %v3784, 2
        %v3796 = vrot.slane %v3784, 3
        %v3797 = vrot.slane %v3784, 4
        %v3798 = vrot.slane %v3784, 5
        %v3799 = vrot.slane %v3784, 6
        %v3800 = vrot.slane %v3784, 7
        %v3801 = vperm.slane %v3783, 0
        %v3802 = vperm.slane %v3787, 0
        %v3803 = vperm.slane %v3788, 0
        %v3804 = vperm.slane %v3789, 0
        %v3805 = vperm.slane %v3790, 0
        %v3806 = vperm.slane %v3791, 0
        %v3807 = vperm.slane %v3792, 0
        %v3808 = vperm.slane %v3793, 0
        %v3809 = vperm.slane %v3784, 0
        %v3810 = vperm.slane %v3794, 0
        %v3811 = vperm.slane %v3795, 0
        %v3812 = vperm.slane %v3796, 0
        %v3813 = vperm.slane %v3797, 0
        %v3814 = vperm.slane %v3798, 0
        %v3815 = vperm.slane %v3799, 0
        %v3816 = vperm.slane %v3800, 0
        %v3833 = vsub.f32 %v1048, %v3801
        %v3834 = vsub.f32 %v1050, %v3801
        %v3835 = vsub.f32 %v1053, %v3801
        %v3836 = vsub.f32 %v1055, %v3801
        %v3837 = vsub.f32 %v1058, %v3802
        %v3838 = vsub.f32 %v1060, %v3802
        %v3839 = vsub.f32 %v1063, %v3802
        %v3840 = vsub.f32 %v1065, %v3802
        %v3841 = vsub.f32 %v1068, %v3803
        %v3842 = vsub.f32 %v1070, %v3803
        %v3843 = vsub.f32 %v1073, %v3803
        %v3844 = vsub.f32 %v1075, %v3803
        %v3845 = vsub.f32 %v1078, %v3804
        %v3846 = vsub.f32 %v1080, %v3804
        %v3847 = vsub.f32 %v1083, %v3804
        %v3848 = vsub.f32 %v1085, %v3804
        %v3849 = vsub.f32 %v1088, %v3805
        %v3850 = vsub.f32 %v1090, %v3805
        %v3851 = vsub.f32 %v1093, %v3805
        %v3852 = vsub.f32 %v1095, %v3805
        %v3853 = vsub.f32 %v1098, %v3806
        %v3854 = vsub.f32 %v1100, %v3806
        %v3855 = vsub.f32 %v1103, %v3806
        %v3856 = vsub.f32 %v1105, %v3806
        %v3857 = vsub.f32 %v1108, %v3807
        %v3858 = vsub.f32 %v1110, %v3807
        %v3859 = vsub.f32 %v1113, %v3807
        %v3860 = vsub.f32 %v1115, %v3807
        %v3861 = vsub.f32 %v1118, %v3808
        %v3862 = vsub.f32 %v1120, %v3808
        %v3863 = vsub.f32 %v1123, %v3808
        %v3864 = vsub.f32 %v1125, %v3808
        %v3865 = vsub.f32 %v1128, %v3809
        %v3866 = vsub.f32 %v1130, %v3809
        %v3867 = vsub.f32 %v1133, %v3809
        %v3868 = vsub.f32 %v1135, %v3809
        %v3869 = vsub.f32 %v1138, %v3810
        %v3870 = vsub.f32 %v1140, %v3810
        %v3871 = vsub.f32 %v1143, %v3810
        %v3872 = vsub.f32 %v1145, %v3810
        %v3873 = vsub.f32 %v1148, %v3811
        %v3874 = vsub.f32 %v1150, %v3811
        %v3875 = vsub.f32 %v1153, %v3811
        %v3876 = vsub.f32 %v1155, %v3811
        %v3877 = vsub.f32 %v1158, %v3812
        %v3878 = vsub.f32 %v1160, %v3812
        %v3879 = vsub.f32 %v1163, %v3812
        %v3880 = vsub.f32 %v1165, %v3812
        %v3881 = vsub.f32 %v1168, %v3813
        %v3882 = vsub.f32 %v1170, %v3813
        %v3883 = vsub.f32 %v1173, %v3813
        %v3884 = vsub.f32 %v1175, %v3813
        %v3885 = vsub.f32 %v1178, %v3814
        %v3886 = vsub.f32 %v1180, %v3814
        %v3887 = vsub.f32 %v1183, %v3814
        %v3888 = vsub.f32 %v1185, %v3814
        %v3889 = vsub.f32 %v1188, %v3815
        %v3890 = vsub.f32 %v1190, %v3815
        %v3891 = vsub.f32 %v1193, %v3815
        %v3892 = vsub.f32 %v1195, %v3815
        %v3893 = vsub.f32 %v1198, %v3816
        %v3894 = vsub.f32 %v1200, %v3816
        %v3895 = vsub.f32 %v1203, %v3816
        %v3896 = vsub.f32 %v1205, %v3816
        %v3897 = vmul.f32 %v3833, %v3833
        %v3898 = vmul.f32 %v3834, %v3834
        %v3899 = vmul.f32 %v3835, %v3835
        %v3900 = vmul.f32 %v3836, %v3836
        %v3901 = vmul.f32 %v3837, %v3837
        %v3902 = vmul.f32 %v3838, %v3838
        %v3903 = vmul.f32 %v3839, %v3839
        %v3904 = vmul.f32 %v3840, %v3840
        %v3905 = vmul.f32 %v3841, %v3841
        %v3906 = vmul.f32 %v3842, %v3842
        %v3907 = vmul.f32 %v3843, %v3843
        %v3908 = vmul.f32 %v3844, %v3844
        %v3909 = vmul.f32 %v3845, %v3845
        %v3910 = vmul.f32 %v3846, %v3846
        %v3911 = vmul.f32 %v3847, %v3847
        %v3912 = vmul.f32 %v3848, %v3848
        %v3913 = vmul.f32 %v3849, %v3849
        %v3914 = vmul.f32 %v3850, %v3850
        %v3915 = vmul.f32 %v3851, %v3851
        %v3916 = vmul.f32 %v3852, %v3852
        %v3917 = vmul.f32 %v3853, %v3853
        %v3918 = vmul.f32 %v3854, %v3854
        %v3919 = vmul.f32 %v3855, %v3855
        %v3920 = vmul.f32 %v3856, %v3856
        %v3921 = vmul.f32 %v3857, %v3857
        %v3922 = vmul.f32 %v3858, %v3858
        %v3923 = vmul.f32 %v3859, %v3859
        %v3924 = vmul.f32 %v3860, %v3860
        %v3925 = vmul.f32 %v3861, %v3861
        %v3926 = vmul.f32 %v3862, %v3862
        %v3927 = vmul.f32 %v3863, %v3863
        %v3928 = vmul.f32 %v3864, %v3864
        %v3929 = vmul.f32 %v3865, %v3865
        %v3930 = vmul.f32 %v3866, %v3866
        %v3931 = vmul.f32 %v3867, %v3867
        %v3932 = vmul.f32 %v3868, %v3868
        %v3933 = vmul.f32 %v3869, %v3869
        %v3934 = vmul.f32 %v3870, %v3870
        %v3935 = vmul.f32 %v3871, %v3871
        %v3936 = vmul.f32 %v3872, %v3872
        %v3937 = vmul.f32 %v3873, %v3873
        %v3938 = vmul.f32 %v3874, %v3874
        %v3939 = vmul.f32 %v3875, %v3875
        %v3940 = vmul.f32 %v3876, %v3876
        %v3941 = vmul.f32 %v3877, %v3877
        %v3942 = vmul.f32 %v3878, %v3878
        %v3943 = vmul.f32 %v3879, %v3879
        %v3944 = vmul.f32 %v3880, %v3880
        %v3945 = vmul.f32 %v3881, %v3881
        %v3946 = vmul.f32 %v3882, %v3882
        %v3947 = vmul.f32 %v3883, %v3883
        %v3948 = vmul.f32 %v3884, %v3884
        %v3949 = vmul.f32 %v3885, %v3885
        %v3950 = vmul.f32 %v3886, %v3886
        %v3951 = vmul.f32 %v3887, %v3887
        %v3952 = vmul.f32 %v3888, %v3888
        %v3953 = vmul.f32 %v3889, %v3889
        %v3954 = vmul.f32 %v3890, %v3890
        %v3955 = vmul.f32 %v3891, %v3891
        %v3956 = vmul.f32 %v3892, %v3892
        %v3957 = vmul.f32 %v3893, %v3893
        %v3958 = vmul.f32 %v3894, %v3894
        %v3959 = vmul.f32 %v3895, %v3895
        %v3960 = vmul.f32 %v3896, %v3896
        %v3961 = vadd.f32 %v3897, %v3898
        %v3962 = vadd.f32 %v3961, %v3899
        %v3963 = vadd.f32 %v3962, %v3900
        %v3964 = vrot.slane %v3963, 4
        %v3965 = vadd.f32 %v3963, %v3964
        %v3966 = vrot.slane %v3965, 2
        %v3967 = vadd.f32 %v3965, %v3966
        %v3968 = vrot.slane %v3967, 1
        %v3969 = vadd.f32 %v3967, %v3968
        %v3970 = vadd.f32 %v3901, %v3902
        %v3971 = vadd.f32 %v3970, %v3903
        %v3972 = vadd.f32 %v3971, %v3904
        %v3973 = vrot.slane %v3972, 4
        %v3974 = vadd.f32 %v3972, %v3973
        %v3975 = vrot.slane %v3974, 2
        %v3976 = vadd.f32 %v3974, %v3975
        %v3977 = vrot.slane %v3976, 1
        %v3978 = vadd.f32 %v3976, %v3977
        %v3979 = vadd.f32 %v3905, %v3906
        %v3980 = vadd.f32 %v3979, %v3907
        %v3981 = vadd.f32 %v3980, %v3908
        %v3982 = vrot.slane %v3981, 4
        %v3983 = vadd.f32 %v3981, %v3982
        %v3984 = vrot.slane %v3983, 2
        %v3985 = vadd.f32 %v3983, %v3984
        %v3986 = vrot.slane %v3985, 1
        %v3987 = vadd.f32 %v3985, %v3986
        %v3988 = vadd.f32 %v3909, %v3910
        %v3989 = vadd.f32 %v3988, %v3911
        %v3990 = vadd.f32 %v3989, %v3912
        %v3991 = vrot.slane %v3990, 4
        %v3992 = vadd.f32 %v3990, %v3991
        %v3993 = vrot.slane %v3992, 2
        %v3994 = vadd.f32 %v3992, %v3993
        %v3995 = vrot.slane %v3994, 1
        %v3996 = vadd.f32 %v3994, %v3995
        %v3997 = vadd.f32 %v3913, %v3914
        %v3998 = vadd.f32 %v3997, %v3915
        %v3999 = vadd.f32 %v3998, %v3916
        %v4000 = vrot.slane %v3999, 4
        %v4001 = vadd.f32 %v3999, %v4000
        %v4002 = vrot.slane %v4001, 2
        %v4003 = vadd.f32 %v4001, %v4002
        %v4004 = vrot.slane %v4003, 1
        %v4005 = vadd.f32 %v4003, %v4004
        %v4006 = vadd.f32 %v3917, %v3918
        %v4007 = vadd.f32 %v4006, %v3919
        %v4008 = vadd.f32 %v4007, %v3920
        %v4009 = vrot.slane %v4008, 4
        %v4010 = vadd.f32 %v4008, %v4009
        %v4011 = vrot.slane %v4010, 2
        %v4012 = vadd.f32 %v4010, %v4011
        %v4013 = vrot.slane %v4012, 1
        %v4014 = vadd.f32 %v4012, %v4013
        %v4015 = vadd.f32 %v3921, %v3922
        %v4016 = vadd.f32 %v4015, %v3923
        %v4017 = vadd.f32 %v4016, %v3924
        %v4018 = vrot.slane %v4017, 4
        %v4019 = vadd.f32 %v4017, %v4018
        %v4020 = vrot.slane %v4019, 2
        %v4021 = vadd.f32 %v4019, %v4020
        %v4022 = vrot.slane %v4021, 1
        %v4023 = vadd.f32 %v4021, %v4022
        %v4024 = vadd.f32 %v3925, %v3926
        %v4025 = vadd.f32 %v4024, %v3927
        %v4026 = vadd.f32 %v4025, %v3928
        %v4027 = vrot.slane %v4026, 4
        %v4028 = vadd.f32 %v4026, %v4027
        %v4029 = vrot.slane %v4028, 2
        %v4030 = vadd.f32 %v4028, %v4029
        %v4031 = vrot.slane %v4030, 1
        %v4032 = vadd.f32 %v4030, %v4031
        %v4033 = vadd.f32 %v3929, %v3930
        %v4034 = vadd.f32 %v4033, %v3931
        %v4035 = vadd.f32 %v4034, %v3932
        %v4036 = vrot.slane %v4035, 4
        %v4037 = vadd.f32 %v4035, %v4036
        %v4038 = vrot.slane %v4037, 2
        %v4039 = vadd.f32 %v4037, %v4038
        %v4040 = vrot.slane %v4039, 1
        %v4041 = vadd.f32 %v4039, %v4040
        %v4042 = vadd.f32 %v3933, %v3934
        %v4043 = vadd.f32 %v4042, %v3935
        %v4044 = vadd.f32 %v4043, %v3936
        %v4045 = vrot.slane %v4044, 4
        %v4046 = vadd.f32 %v4044, %v4045
        %v4047 = vrot.slane %v4046, 2
        %v4048 = vadd.f32 %v4046, %v4047
        %v4049 = vrot.slane %v4048, 1
        %v4050 = vadd.f32 %v4048, %v4049
        %v4051 = vadd.f32 %v3937, %v3938
        %v4052 = vadd.f32 %v4051, %v3939
        %v4053 = vadd.f32 %v4052, %v3940
        %v4054 = vrot.slane %v4053, 4
        %v4055 = vadd.f32 %v4053, %v4054
        %v4056 = vrot.slane %v4055, 2
        %v4057 = vadd.f32 %v4055, %v4056
        %v4058 = vrot.slane %v4057, 1
        %v4059 = vadd.f32 %v4057, %v4058
        %v4060 = vadd.f32 %v3941, %v3942
        %v4061 = vadd.f32 %v4060, %v3943
        %v4062 = vadd.f32 %v4061, %v3944
        %v4063 = vrot.slane %v4062, 4
        %v4064 = vadd.f32 %v4062, %v4063
        %v4065 = vrot.slane %v4064, 2
        %v4066 = vadd.f32 %v4064, %v4065
        %v4067 = vrot.slane %v4066, 1
        %v4068 = vadd.f32 %v4066, %v4067
        %v4069 = vadd.f32 %v3945, %v3946
        %v4070 = vadd.f32 %v4069, %v3947
        %v4071 = vadd.f32 %v4070, %v3948
        %v4072 = vrot.slane %v4071, 4
        %v4073 = vadd.f32 %v4071, %v4072
        %v4074 = vrot.slane %v4073, 2
        %v4075 = vadd.f32 %v4073, %v4074
        %v4076 = vrot.slane %v4075, 1
        %v4077 = vadd.f32 %v4075, %v4076
        %v4078 = vadd.f32 %v3949, %v3950
        %v4079 = vadd.f32 %v4078, %v3951
        %v4080 = vadd.f32 %v4079, %v3952
        %v4081 = vrot.slane %v4080, 4
        %v4082 = vadd.f32 %v4080, %v4081
        %v4083 = vrot.slane %v4082, 2
        %v4084 = vadd.f32 %v4082, %v4083
        %v4085 = vrot.slane %v4084, 1
        %v4086 = vadd.f32 %v4084, %v4085
        %v4087 = vadd.f32 %v3953, %v3954
        %v4088 = vadd.f32 %v4087, %v3955
        %v4089 = vadd.f32 %v4088, %v3956
        %v4090 = vrot.slane %v4089, 4
        %v4091 = vadd.f32 %v4089, %v4090
        %v4092 = vrot.slane %v4091, 2
        %v4093 = vadd.f32 %v4091, %v4092
        %v4094 = vrot.slane %v4093, 1
        %v4095 = vadd.f32 %v4093, %v4094
        %v4096 = vadd.f32 %v3957, %v3958
        %v4097 = vadd.f32 %v4096, %v3959
        %v4098 = vadd.f32 %v4097, %v3960
        %v4099 = vrot.slane %v4098, 4
        %v4100 = vadd.f32 %v4098, %v4099
        %v4101 = vrot.slane %v4100, 2
        %v4102 = vadd.f32 %v4100, %v4101
        %v4103 = vrot.slane %v4102, 1
        %v4104 = vadd.f32 %v4102, %v4103
        %4121 = vrot.lane.b32.xlu0 %v3969, 64
        %v4122 = vpop.permute.xlu0 %4121
        %4123 = vrot.lane.b32.xlu0 %v3978, 64
        %v4124 = vpop.permute.xlu0 %4123
        %4125 = vrot.lane.b32.xlu0 %v3987, 64
        %v4126 = vpop.permute.xlu0 %4125
        %4127 = vrot.lane.b32.xlu0 %v3996, 64
        %v4128 = vpop.permute.xlu0 %4127
        %4129 = vrot.lane.b32.xlu0 %v4005, 64
        %v4130 = vpop.permute.xlu0 %4129
        %4131 = vrot.lane.b32.xlu0 %v4014, 64
        %v4132 = vpop.permute.xlu0 %4131
        %4133 = vrot.lane.b32.xlu0 %v4023, 64
        %v4134 = vpop.permute.xlu0 %4133
        %4135 = vrot.lane.b32.xlu0 %v4032, 64
        %v4136 = vpop.permute.xlu0 %4135
        %4137 = vrot.lane.b32.xlu0 %v4041, 64
        %v4138 = vpop.permute.xlu0 %4137
        %4139 = vrot.lane.b32.xlu0 %v4050, 64
        %v4140 = vpop.permute.xlu0 %4139
        %4141 = vrot.lane.b32.xlu0 %v4059, 64
        %v4142 = vpop.permute.xlu0 %4141
        %4143 = vrot.lane.b32.xlu0 %v4068, 64
        %v4144 = vpop.permute.xlu0 %4143
        %4145 = vrot.lane.b32.xlu0 %v4077, 64
        %v4146 = vpop.permute.xlu0 %4145
        %4147 = vrot.lane.b32.xlu0 %v4086, 64
        %v4148 = vpop.permute.xlu0 %4147
        %4149 = vrot.lane.b32.xlu0 %v4095, 64
        %v4150 = vpop.permute.xlu0 %4149
        %4151 = vrot.lane.b32.xlu0 %v4104, 64
        %v4152 = vpop.permute.xlu0 %4151
        %v4169 = vadd.f32 %v3969, %v4122
        %v4170 = vadd.f32 %v3978, %v4124
        %v4171 = vadd.f32 %v3987, %v4126
        %v4172 = vadd.f32 %v3996, %v4128
        %v4173 = vadd.f32 %v4005, %v4130
        %v4174 = vadd.f32 %v4014, %v4132
        %v4175 = vadd.f32 %v4023, %v4134
        %v4176 = vadd.f32 %v4032, %v4136
        %v4177 = vadd.f32 %v4041, %v4138
        %v4178 = vadd.f32 %v4050, %v4140
        %v4179 = vadd.f32 %v4059, %v4142
        %v4180 = vadd.f32 %v4068, %v4144
        %v4181 = vadd.f32 %v4077, %v4146
        %v4182 = vadd.f32 %v4086, %v4148
        %v4183 = vadd.f32 %v4095, %v4150
        %v4184 = vadd.f32 %v4104, %v4152
        %v4185 = vmul.f32 %v4169, 0.015625
        %v4186 = vmul.f32 %v4170, 0.015625
        %v4187 = vmul.f32 %v4171, 0.015625
        %v4188 = vmul.f32 %v4172, 0.015625
        %v4189 = vmul.f32 %v4173, 0.015625
        %v4190 = vmul.f32 %v4174, 0.015625
        %v4191 = vmul.f32 %v4175, 0.015625
        %v4192 = vmul.f32 %v4176, 0.015625
        %v4193 = vmul.f32 %v4177, 0.015625
        %v4194 = vmul.f32 %v4178, 0.015625
        %v4195 = vmul.f32 %v4179, 0.015625
        %v4196 = vmul.f32 %v4180, 0.015625
        %v4197 = vmul.f32 %v4181, 0.015625
        %v4198 = vmul.f32 %v4182, 0.015625
        %v4199 = vmul.f32 %v4183, 0.015625
        %v4200 = vmul.f32 %v4184, 0.015625
        %v4201 = vadd.f32 %v4185, 1e-05
        %v4202 = vadd.f32 %v4186, 1e-05
        %v4203 = vadd.f32 %v4187, 1e-05
        %v4204 = vadd.f32 %v4188, 1e-05
        %v4205 = vadd.f32 %v4189, 1e-05
        %v4206 = vadd.f32 %v4190, 1e-05
        %v4207 = vadd.f32 %v4191, 1e-05
        %v4208 = vadd.f32 %v4192, 1e-05
        %v4209 = vadd.f32 %v4193, 1e-05
        %v4210 = vadd.f32 %v4194, 1e-05
        %v4211 = vadd.f32 %v4195, 1e-05
        %v4212 = vadd.f32 %v4196, 1e-05
        %v4213 = vadd.f32 %v4197, 1e-05
        %v4214 = vadd.f32 %v4198, 1e-05
        %v4215 = vadd.f32 %v4199, 1e-05
        %v4216 = vadd.f32 %v4200, 1e-05
        %v4217 = vrsqrt.pop %v4201
        %v4218 = vmul.f32 %v4217, %v4201
        %v4219 = vmul.f32 %v4218, %v4217
        %v4220 = vmul.f32 0.5, %v4219
        %v4221 = vsub.f32 1.5, %v4220
        %v4222 = vmul.f32 %v4217, %v4221
        %vm4223 = vweird.f32 %v4201
        %vm4224 = vweird.f32 %v4217
        %vm4225 = vmor %vm4223, %vm4224
        %v4226 = vsel %vm4225, %v4217, %v4222
        %v4227 = vrsqrt.pop %v4202
        %v4228 = vmul.f32 %v4227, %v4202
        %v4229 = vmul.f32 %v4228, %v4227
        %v4230 = vmul.f32 0.5, %v4229
        %v4231 = vsub.f32 1.5, %v4230
        %v4232 = vmul.f32 %v4227, %v4231
        %vm4233 = vweird.f32 %v4202
        %vm4234 = vweird.f32 %v4227
        %vm4235 = vmor %vm4233, %vm4234
        %v4236 = vsel %vm4235, %v4227, %v4232
        %v4237 = vrsqrt.pop %v4203
        %v4238 = vmul.f32 %v4237, %v4203
        %v4239 = vmul.f32 %v4238, %v4237
        %v4240 = vmul.f32 0.5, %v4239
        %v4241 = vsub.f32 1.5, %v4240
        %v4242 = vmul.f32 %v4237, %v4241
        %vm4243 = vweird.f32 %v4203
        %vm4244 = vweird.f32 %v4237
        %vm4245 = vmor %vm4243, %vm4244
        %v4246 = vsel %vm4245, %v4237, %v4242
        %v4247 = vrsqrt.pop %v4204
        %v4248 = vmul.f32 %v4247, %v4204
        %v4249 = vmul.f32 %v4248, %v4247
        %v4250 = vmul.f32 0.5, %v4249
        %v4251 = vsub.f32 1.5, %v4250
        %v4252 = vmul.f32 %v4247, %v4251
        %vm4253 = vweird.f32 %v4204
        %vm4254 = vweird.f32 %v4247
        %vm4255 = vmor %vm4253, %vm4254
        %v4256 = vsel %vm4255, %v4247, %v4252
        %v4257 = vrsqrt.pop %v4205
        %v4258 = vmul.f32 %v4257, %v4205
        %v4259 = vmul.f32 %v4258, %v4257
        %v4260 = vmul.f32 0.5, %v4259
        %v4261 = vsub.f32 1.5, %v4260
        %v4262 = vmul.f32 %v4257, %v4261
        %vm4263 = vweird.f32 %v4205
        %vm4264 = vweird.f32 %v4257
        %vm4265 = vmor %vm4263, %vm4264
        %v4266 = vsel %vm4265, %v4257, %v4262
        %v4267 = vrsqrt.pop %v4206
        %v4268 = vmul.f32 %v4267, %v4206
        %v4269 = vmul.f32 %v4268, %v4267
        %v4270 = vmul.f32 0.5, %v4269
        %v4271 = vsub.f32 1.5, %v4270
        %v4272 = vmul.f32 %v4267, %v4271
        %vm4273 = vweird.f32 %v4206
        %vm4274 = vweird.f32 %v4267
        %vm4275 = vmor %vm4273, %vm4274
        %v4276 = vsel %vm4275, %v4267, %v4272
        %v4277 = vrsqrt.pop %v4207
        %v4278 = vmul.f32 %v4277, %v4207
        %v4279 = vmul.f32 %v4278, %v4277
        %v4280 = vmul.f32 0.5, %v4279
        %v4281 = vsub.f32 1.5, %v4280
        %v4282 = vmul.f32 %v4277, %v4281
        %vm4283 = vweird.f32 %v4207
        %vm4284 = vweird.f32 %v4277
        %vm4285 = vmor %vm4283, %vm4284
        %v4286 = vsel %vm4285, %v4277, %v4282
        %v4287 = vrsqrt.pop %v4208
        %v4288 = vmul.f32 %v4287, %v4208
        %v4289 = vmul.f32 %v4288, %v4287
        %v4290 = vmul.f32 0.5, %v4289
        %v4291 = vsub.f32 1.5, %v4290
        %v4292 = vmul.f32 %v4287, %v4291
        %vm4293 = vweird.f32 %v4208
        %vm4294 = vweird.f32 %v4287
        %vm4295 = vmor %vm4293, %vm4294
        %v4296 = vsel %vm4295, %v4287, %v4292
        %v4297 = vrsqrt.pop %v4209
        %v4298 = vmul.f32 %v4297, %v4209
        %v4299 = vmul.f32 %v4298, %v4297
        %v4300 = vmul.f32 0.5, %v4299
        %v4301 = vsub.f32 1.5, %v4300
        %v4302 = vmul.f32 %v4297, %v4301
        %vm4303 = vweird.f32 %v4209
        %vm4304 = vweird.f32 %v4297
        %vm4305 = vmor %vm4303, %vm4304
        %v4306 = vsel %vm4305, %v4297, %v4302
        %v4307 = vrsqrt.pop %v4210
        %v4308 = vmul.f32 %v4307, %v4210
        %v4309 = vmul.f32 %v4308, %v4307
        %v4310 = vmul.f32 0.5, %v4309
        %v4311 = vsub.f32 1.5, %v4310
        %v4312 = vmul.f32 %v4307, %v4311
        %vm4313 = vweird.f32 %v4210
        %vm4314 = vweird.f32 %v4307
        %vm4315 = vmor %vm4313, %vm4314
        %v4316 = vsel %vm4315, %v4307, %v4312
        %v4317 = vrsqrt.pop %v4211
        %v4318 = vmul.f32 %v4317, %v4211
        %v4319 = vmul.f32 %v4318, %v4317
        %v4320 = vmul.f32 0.5, %v4319
        %v4321 = vsub.f32 1.5, %v4320
        %v4322 = vmul.f32 %v4317, %v4321
        %vm4323 = vweird.f32 %v4211
        %vm4324 = vweird.f32 %v4317
        %vm4325 = vmor %vm4323, %vm4324
        %v4326 = vsel %vm4325, %v4317, %v4322
        %v4327 = vrsqrt.pop %v4212
        %v4328 = vmul.f32 %v4327, %v4212
        %v4329 = vmul.f32 %v4328, %v4327
        %v4330 = vmul.f32 0.5, %v4329
        %v4331 = vsub.f32 1.5, %v4330
        %v4332 = vmul.f32 %v4327, %v4331
        %vm4333 = vweird.f32 %v4212
        %vm4334 = vweird.f32 %v4327
        %vm4335 = vmor %vm4333, %vm4334
        %v4336 = vsel %vm4335, %v4327, %v4332
        %v4337 = vrsqrt.pop %v4213
        %v4338 = vmul.f32 %v4337, %v4213
        %v4339 = vmul.f32 %v4338, %v4337
        %v4340 = vmul.f32 0.5, %v4339
        %v4341 = vsub.f32 1.5, %v4340
        %v4342 = vmul.f32 %v4337, %v4341
        %vm4343 = vweird.f32 %v4213
        %vm4344 = vweird.f32 %v4337
        %vm4345 = vmor %vm4343, %vm4344
        %v4346 = vsel %vm4345, %v4337, %v4342
        %v4347 = vrsqrt.pop %v4214
        %v4348 = vmul.f32 %v4347, %v4214
        %v4349 = vmul.f32 %v4348, %v4347
        %v4350 = vmul.f32 0.5, %v4349
        %v4351 = vsub.f32 1.5, %v4350
        %v4352 = vmul.f32 %v4347, %v4351
        %vm4353 = vweird.f32 %v4214
        %vm4354 = vweird.f32 %v4347
        %vm4355 = vmor %vm4353, %vm4354
        %v4356 = vsel %vm4355, %v4347, %v4352
        %v4357 = vrsqrt.pop %v4215
        %v4358 = vmul.f32 %v4357, %v4215
        %v4359 = vmul.f32 %v4358, %v4357
        %v4360 = vmul.f32 0.5, %v4359
        %v4361 = vsub.f32 1.5, %v4360
        %v4362 = vmul.f32 %v4357, %v4361
        %vm4363 = vweird.f32 %v4215
        %vm4364 = vweird.f32 %v4357
        %vm4365 = vmor %vm4363, %vm4364
        %v4366 = vsel %vm4365, %v4357, %v4362
        %v4367 = vrsqrt.pop %v4216
        %v4368 = vmul.f32 %v4367, %v4216
        %v4369 = vmul.f32 %v4368, %v4367
        %v4370 = vmul.f32 0.5, %v4369
        %v4371 = vsub.f32 1.5, %v4370
        %v4372 = vmul.f32 %v4367, %v4371
        %vm4373 = vweird.f32 %v4216
        %vm4374 = vweird.f32 %v4367
        %vm4375 = vmor %vm4373, %vm4374
        %v4376 = vsel %vm4375, %v4367, %v4372
        %v4393 = vrot.slane %v4236, 7
        %v4394 = vsel %vm2240, %v4393, %v4226
        %v4395 = vrot.slane %v4246, 6
        %v4396 = vsel %vm2243, %v4395, %v4394
        %v4397 = vrot.slane %v4256, 5
        %v4398 = vsel %vm2246, %v4397, %v4396
        %v4399 = vrot.slane %v4266, 4
        %v4400 = vsel %vm2249, %v4399, %v4398
        %v4401 = vrot.slane %v4276, 3
        %v4402 = vsel %vm2252, %v4401, %v4400
        %v4403 = vrot.slane %v4286, 2
        %v4404 = vsel %vm2255, %v4403, %v4402
        %v4405 = vrot.slane %v4296, 1
        %v4406 = vsel %vm2258, %v4405, %v4404
        %v4407 = vrot.slane %v4316, 7
        %v4408 = vsel %vm2240, %v4407, %v4306
        %v4409 = vrot.slane %v4326, 6
        %v4410 = vsel %vm2243, %v4409, %v4408
        %v4411 = vrot.slane %v4336, 5
        %v4412 = vsel %vm2246, %v4411, %v4410
        %v4413 = vrot.slane %v4346, 4
        %v4414 = vsel %vm2249, %v4413, %v4412
        %v4415 = vrot.slane %v4356, 3
        %v4416 = vsel %vm2252, %v4415, %v4414
        %v4417 = vrot.slane %v4366, 2
        %v4418 = vsel %vm2255, %v4417, %v4416
        %v4419 = vrot.slane %v4376, 1
        %v4420 = vsel %vm2258, %v4419, %v4418
        %4423 = vrot.lane.b32.xlu0 %v4406, 64
        %v4424 = vpop.permute.xlu0 %4423
        %4425 = vrot.lane.b32.xlu0 %v4420, 64
        %v4426 = vpop.permute.xlu0 %4425
        %v4429 = vsel %vm2282, %v4406, %v4424
        %v4430 = vsel %vm2282, %v4420, %v4426
        %v4433 = vrot.slane %v4429, 1
        %v4434 = vrot.slane %v4429, 2
        %v4435 = vrot.slane %v4429, 3
        %v4436 = vrot.slane %v4429, 4
        %v4437 = vrot.slane %v4429, 5
        %v4438 = vrot.slane %v4429, 6
        %v4439 = vrot.slane %v4429, 7
        %v4440 = vrot.slane %v4430, 1
        %v4441 = vrot.slane %v4430, 2
        %v4442 = vrot.slane %v4430, 3
        %v4443 = vrot.slane %v4430, 4
        %v4444 = vrot.slane %v4430, 5
        %v4445 = vrot.slane %v4430, 6
        %v4446 = vrot.slane %v4430, 7
        %v4447 = vperm.slane %v4429, 0
        %v4448 = vperm.slane %v4433, 0
        %v4449 = vperm.slane %v4434, 0
        %v4450 = vperm.slane %v4435, 0
        %v4451 = vperm.slane %v4436, 0
        %v4452 = vperm.slane %v4437, 0
        %v4453 = vperm.slane %v4438, 0
        %v4454 = vperm.slane %v4439, 0
        %v4455 = vperm.slane %v4430, 0
        %v4456 = vperm.slane %v4440, 0
        %v4457 = vperm.slane %v4441, 0
        %v4458 = vperm.slane %v4442, 0
        %v4459 = vperm.slane %v4443, 0
        %v4460 = vperm.slane %v4444, 0
        %v4461 = vperm.slane %v4445, 0
        %v4462 = vperm.slane %v4446, 0
        %v4479 = vmul.f32 %v3833, %v4447
        %v4480 = vmul.f32 %v3834, %v4447
        %v4481 = vmul.f32 %v3835, %v4447
        %v4482 = vmul.f32 %v3836, %v4447
        %v4483 = vmul.f32 %v3837, %v4448
        %v4484 = vmul.f32 %v3838, %v4448
        %v4485 = vmul.f32 %v3839, %v4448
        %v4486 = vmul.f32 %v3840, %v4448
        %v4487 = vmul.f32 %v3841, %v4449
        %v4488 = vmul.f32 %v3842, %v4449
        %v4489 = vmul.f32 %v3843, %v4449
        %v4490 = vmul.f32 %v3844, %v4449
        %v4491 = vmul.f32 %v3845, %v4450
        %v4492 = vmul.f32 %v3846, %v4450
        %v4493 = vmul.f32 %v3847, %v4450
        %v4494 = vmul.f32 %v3848, %v4450
        %v4495 = vmul.f32 %v3849, %v4451
        %v4496 = vmul.f32 %v3850, %v4451
        %v4497 = vmul.f32 %v3851, %v4451
        %v4498 = vmul.f32 %v3852, %v4451
        %v4499 = vmul.f32 %v3853, %v4452
        %v4500 = vmul.f32 %v3854, %v4452
        %v4501 = vmul.f32 %v3855, %v4452
        %v4502 = vmul.f32 %v3856, %v4452
        %v4503 = vmul.f32 %v3857, %v4453
        %v4504 = vmul.f32 %v3858, %v4453
        %v4505 = vmul.f32 %v3859, %v4453
        %v4506 = vmul.f32 %v3860, %v4453
        %v4507 = vmul.f32 %v3861, %v4454
        %v4508 = vmul.f32 %v3862, %v4454
        %v4509 = vmul.f32 %v3863, %v4454
        %v4510 = vmul.f32 %v3864, %v4454
        %v4511 = vmul.f32 %v3865, %v4455
        %v4512 = vmul.f32 %v3866, %v4455
        %v4513 = vmul.f32 %v3867, %v4455
        %v4514 = vmul.f32 %v3868, %v4455
        %v4515 = vmul.f32 %v3869, %v4456
        %v4516 = vmul.f32 %v3870, %v4456
        %v4517 = vmul.f32 %v3871, %v4456
        %v4518 = vmul.f32 %v3872, %v4456
        %v4519 = vmul.f32 %v3873, %v4457
        %v4520 = vmul.f32 %v3874, %v4457
        %v4521 = vmul.f32 %v3875, %v4457
        %v4522 = vmul.f32 %v3876, %v4457
        %v4523 = vmul.f32 %v3877, %v4458
        %v4524 = vmul.f32 %v3878, %v4458
        %v4525 = vmul.f32 %v3879, %v4458
        %v4526 = vmul.f32 %v3880, %v4458
        %v4527 = vmul.f32 %v3881, %v4459
        %v4528 = vmul.f32 %v3882, %v4459
        %v4529 = vmul.f32 %v3883, %v4459
        %v4530 = vmul.f32 %v3884, %v4459
        %v4531 = vmul.f32 %v3885, %v4460
        %v4532 = vmul.f32 %v3886, %v4460
        %v4533 = vmul.f32 %v3887, %v4460
        %v4534 = vmul.f32 %v3888, %v4460
        %v4535 = vmul.f32 %v3889, %v4461
        %v4536 = vmul.f32 %v3890, %v4461
        %v4537 = vmul.f32 %v3891, %v4461
        %v4538 = vmul.f32 %v3892, %v4461
        %v4539 = vmul.f32 %v3893, %v4462
        %v4540 = vmul.f32 %v3894, %v4462
        %v4541 = vmul.f32 %v3895, %v4462
        %v4542 = vmul.f32 %v3896, %v4462
        %v4543 = vmul.f32 %v4479, %v1979
        %v4544 = vmul.f32 %v4480, %v1980
        %v4545 = vmul.f32 %v4481, %v1981
        %v4546 = vmul.f32 %v4482, %v1982
        %v4547 = vmul.f32 %v4483, %v1979
        %v4548 = vmul.f32 %v4484, %v1980
        %v4549 = vmul.f32 %v4485, %v1981
        %v4550 = vmul.f32 %v4486, %v1982
        %v4551 = vmul.f32 %v4487, %v1979
        %v4552 = vmul.f32 %v4488, %v1980
        %v4553 = vmul.f32 %v4489, %v1981
        %v4554 = vmul.f32 %v4490, %v1982
        %v4555 = vmul.f32 %v4491, %v1979
        %v4556 = vmul.f32 %v4492, %v1980
        %v4557 = vmul.f32 %v4493, %v1981
        %v4558 = vmul.f32 %v4494, %v1982
        %v4559 = vmul.f32 %v4495, %v1979
        %v4560 = vmul.f32 %v4496, %v1980
        %v4561 = vmul.f32 %v4497, %v1981
        %v4562 = vmul.f32 %v4498, %v1982
        %v4563 = vmul.f32 %v4499, %v1979
        %v4564 = vmul.f32 %v4500, %v1980
        %v4565 = vmul.f32 %v4501, %v1981
        %v4566 = vmul.f32 %v4502, %v1982
        %v4567 = vmul.f32 %v4503, %v1979
        %v4568 = vmul.f32 %v4504, %v1980
        %v4569 = vmul.f32 %v4505, %v1981
        %v4570 = vmul.f32 %v4506, %v1982
        %v4571 = vmul.f32 %v4507, %v1979
        %v4572 = vmul.f32 %v4508, %v1980
        %v4573 = vmul.f32 %v4509, %v1981
        %v4574 = vmul.f32 %v4510, %v1982
        %v4575 = vmul.f32 %v4511, %v1979
        %v4576 = vmul.f32 %v4512, %v1980
        %v4577 = vmul.f32 %v4513, %v1981
        %v4578 = vmul.f32 %v4514, %v1982
        %v4579 = vmul.f32 %v4515, %v1979
        %v4580 = vmul.f32 %v4516, %v1980
        %v4581 = vmul.f32 %v4517, %v1981
        %v4582 = vmul.f32 %v4518, %v1982
        %v4583 = vmul.f32 %v4519, %v1979
        %v4584 = vmul.f32 %v4520, %v1980
        %v4585 = vmul.f32 %v4521, %v1981
        %v4586 = vmul.f32 %v4522, %v1982
        %v4587 = vmul.f32 %v4523, %v1979
        %v4588 = vmul.f32 %v4524, %v1980
        %v4589 = vmul.f32 %v4525, %v1981
        %v4590 = vmul.f32 %v4526, %v1982
        %v4591 = vmul.f32 %v4527, %v1979
        %v4592 = vmul.f32 %v4528, %v1980
        %v4593 = vmul.f32 %v4529, %v1981
        %v4594 = vmul.f32 %v4530, %v1982
        %v4595 = vmul.f32 %v4531, %v1979
        %v4596 = vmul.f32 %v4532, %v1980
        %v4597 = vmul.f32 %v4533, %v1981
        %v4598 = vmul.f32 %v4534, %v1982
        %v4599 = vmul.f32 %v4535, %v1979
        %v4600 = vmul.f32 %v4536, %v1980
        %v4601 = vmul.f32 %v4537, %v1981
        %v4602 = vmul.f32 %v4538, %v1982
        %v4603 = vmul.f32 %v4539, %v1979
        %v4604 = vmul.f32 %v4540, %v1980
        %v4605 = vmul.f32 %v4541, %v1981
        %v4606 = vmul.f32 %v4542, %v1982
        %v4607 = vadd.f32 %v3427, %v4543
        %v4608 = vadd.f32 %v3428, %v4544
        %v4609 = vadd.f32 %v3429, %v4545
        %v4610 = vadd.f32 %v3430, %v4546
        %v4611 = vadd.f32 %v3431, %v4547
        %v4612 = vadd.f32 %v3432, %v4548
        %v4613 = vadd.f32 %v3433, %v4549
        %v4614 = vadd.f32 %v3434, %v4550
        %v4615 = vadd.f32 %v3435, %v4551
        %v4616 = vadd.f32 %v3436, %v4552
        %v4617 = vadd.f32 %v3437, %v4553
        %v4618 = vadd.f32 %v3438, %v4554
        %v4619 = vadd.f32 %v3439, %v4555
        %v4620 = vadd.f32 %v3440, %v4556
        %v4621 = vadd.f32 %v3441, %v4557
        %v4622 = vadd.f32 %v3442, %v4558
        %v4623 = vadd.f32 %v3443, %v4559
        %v4624 = vadd.f32 %v3444, %v4560
        %v4625 = vadd.f32 %v3445, %v4561
        %v4626 = vadd.f32 %v3446, %v4562
        %v4627 = vadd.f32 %v3447, %v4563
        %v4628 = vadd.f32 %v3448, %v4564
        %v4629 = vadd.f32 %v3449, %v4565
        %v4630 = vadd.f32 %v3450, %v4566
        %v4631 = vadd.f32 %v3451, %v4567
        %v4632 = vadd.f32 %v3452, %v4568
        %v4633 = vadd.f32 %v3453, %v4569
        %v4634 = vadd.f32 %v3454, %v4570
        %v4635 = vadd.f32 %v3455, %v4571
        %v4636 = vadd.f32 %v3456, %v4572
        %v4637 = vadd.f32 %v3457, %v4573
        %v4638 = vadd.f32 %v3458, %v4574
        %v4639 = vadd.f32 %v3459, %v4575
        %v4640 = vadd.f32 %v3460, %v4576
        %v4641 = vadd.f32 %v3461, %v4577
        %v4642 = vadd.f32 %v3462, %v4578
        %v4643 = vadd.f32 %v3463, %v4579
        %v4644 = vadd.f32 %v3464, %v4580
        %v4645 = vadd.f32 %v3465, %v4581
        %v4646 = vadd.f32 %v3466, %v4582
        %v4647 = vadd.f32 %v3467, %v4583
        %v4648 = vadd.f32 %v3468, %v4584
        %v4649 = vadd.f32 %v3469, %v4585
        %v4650 = vadd.f32 %v3470, %v4586
        %v4651 = vadd.f32 %v3471, %v4587
        %v4652 = vadd.f32 %v3472, %v4588
        %v4653 = vadd.f32 %v3473, %v4589
        %v4654 = vadd.f32 %v3474, %v4590
        %v4655 = vadd.f32 %v3475, %v4591
        %v4656 = vadd.f32 %v3476, %v4592
        %v4657 = vadd.f32 %v3477, %v4593
        %v4658 = vadd.f32 %v3478, %v4594
        %v4659 = vadd.f32 %v3479, %v4595
        %v4660 = vadd.f32 %v3480, %v4596
        %v4661 = vadd.f32 %v3481, %v4597
        %v4662 = vadd.f32 %v3482, %v4598
        %v4663 = vadd.f32 %v3483, %v4599
        %v4664 = vadd.f32 %v3484, %v4600
        %v4665 = vadd.f32 %v3485, %v4601
        %v4666 = vadd.f32 %v3486, %v4602
        %v4667 = vadd.f32 %v3487, %v4603
        %v4668 = vadd.f32 %v3488, %v4604
        %v4669 = vadd.f32 %v3489, %v4605
        %v4670 = vadd.f32 %v3490, %v4606
        %4735 = vrot.lane.b32.xlu0 %v4543, 64
        %v4736 = vpop.permute.xlu0 %4735
        %4737 = vrot.lane.b32.xlu0 %v4544, 64
        %v4738 = vpop.permute.xlu0 %4737
        %4739 = vrot.lane.b32.xlu0 %v4545, 64
        %v4740 = vpop.permute.xlu0 %4739
        %4741 = vrot.lane.b32.xlu0 %v4546, 64
        %v4742 = vpop.permute.xlu0 %4741
        %4743 = vrot.lane.b32.xlu0 %v4547, 64
        %v4744 = vpop.permute.xlu0 %4743
        %4745 = vrot.lane.b32.xlu0 %v4548, 64
        %v4746 = vpop.permute.xlu0 %4745
        %4747 = vrot.lane.b32.xlu0 %v4549, 64
        %v4748 = vpop.permute.xlu0 %4747
        %4749 = vrot.lane.b32.xlu0 %v4550, 64
        %v4750 = vpop.permute.xlu0 %4749
        %4751 = vrot.lane.b32.xlu0 %v4551, 64
        %v4752 = vpop.permute.xlu0 %4751
        %4753 = vrot.lane.b32.xlu0 %v4552, 64
        %v4754 = vpop.permute.xlu0 %4753
        %4755 = vrot.lane.b32.xlu0 %v4553, 64
        %v4756 = vpop.permute.xlu0 %4755
        %4757 = vrot.lane.b32.xlu0 %v4554, 64
        %v4758 = vpop.permute.xlu0 %4757
        %4759 = vrot.lane.b32.xlu0 %v4555, 64
        %v4760 = vpop.permute.xlu0 %4759
        %4761 = vrot.lane.b32.xlu0 %v4556, 64
        %v4762 = vpop.permute.xlu0 %4761
        %4763 = vrot.lane.b32.xlu0 %v4557, 64
        %v4764 = vpop.permute.xlu0 %4763
        %4765 = vrot.lane.b32.xlu0 %v4558, 64
        %v4766 = vpop.permute.xlu0 %4765
        %4767 = vrot.lane.b32.xlu0 %v4559, 64
        %v4768 = vpop.permute.xlu0 %4767
        %4769 = vrot.lane.b32.xlu0 %v4560, 64
        %v4770 = vpop.permute.xlu0 %4769
        %4771 = vrot.lane.b32.xlu0 %v4561, 64
        %v4772 = vpop.permute.xlu0 %4771
        %4773 = vrot.lane.b32.xlu0 %v4562, 64
        %v4774 = vpop.permute.xlu0 %4773
        %4775 = vrot.lane.b32.xlu0 %v4563, 64
        %v4776 = vpop.permute.xlu0 %4775
        %4777 = vrot.lane.b32.xlu0 %v4564, 64
        %v4778 = vpop.permute.xlu0 %4777
        %4779 = vrot.lane.b32.xlu0 %v4565, 64
        %v4780 = vpop.permute.xlu0 %4779
        %4781 = vrot.lane.b32.xlu0 %v4566, 64
        %v4782 = vpop.permute.xlu0 %4781
        %4783 = vrot.lane.b32.xlu0 %v4567, 64
        %v4784 = vpop.permute.xlu0 %4783
        %4785 = vrot.lane.b32.xlu0 %v4568, 64
        %v4786 = vpop.permute.xlu0 %4785
        %4787 = vrot.lane.b32.xlu0 %v4569, 64
        %v4788 = vpop.permute.xlu0 %4787
        %4789 = vrot.lane.b32.xlu0 %v4570, 64
        %v4790 = vpop.permute.xlu0 %4789
        %4791 = vrot.lane.b32.xlu0 %v4571, 64
        %v4792 = vpop.permute.xlu0 %4791
        %4793 = vrot.lane.b32.xlu0 %v4572, 64
        %v4794 = vpop.permute.xlu0 %4793
        %4795 = vrot.lane.b32.xlu0 %v4573, 64
        %v4796 = vpop.permute.xlu0 %4795
        %4797 = vrot.lane.b32.xlu0 %v4574, 64
        %v4798 = vpop.permute.xlu0 %4797
        %4799 = vrot.lane.b32.xlu0 %v4575, 64
        %v4800 = vpop.permute.xlu0 %4799
        %4801 = vrot.lane.b32.xlu0 %v4576, 64
        %v4802 = vpop.permute.xlu0 %4801
        %4803 = vrot.lane.b32.xlu0 %v4577, 64
        %v4804 = vpop.permute.xlu0 %4803
        %4805 = vrot.lane.b32.xlu0 %v4578, 64
        %v4806 = vpop.permute.xlu0 %4805
        %4807 = vrot.lane.b32.xlu0 %v4579, 64
        %v4808 = vpop.permute.xlu0 %4807
        %4809 = vrot.lane.b32.xlu0 %v4580, 64
        %v4810 = vpop.permute.xlu0 %4809
        %4811 = vrot.lane.b32.xlu0 %v4581, 64
        %v4812 = vpop.permute.xlu0 %4811
        %4813 = vrot.lane.b32.xlu0 %v4582, 64
        %v4814 = vpop.permute.xlu0 %4813
        %4815 = vrot.lane.b32.xlu0 %v4583, 64
        %v4816 = vpop.permute.xlu0 %4815
        %4817 = vrot.lane.b32.xlu0 %v4584, 64
        %v4818 = vpop.permute.xlu0 %4817
        %4819 = vrot.lane.b32.xlu0 %v4585, 64
        %v4820 = vpop.permute.xlu0 %4819
        %4821 = vrot.lane.b32.xlu0 %v4586, 64
        %v4822 = vpop.permute.xlu0 %4821
        %4823 = vrot.lane.b32.xlu0 %v4587, 64
        %v4824 = vpop.permute.xlu0 %4823
        %4825 = vrot.lane.b32.xlu0 %v4588, 64
        %v4826 = vpop.permute.xlu0 %4825
        %4827 = vrot.lane.b32.xlu0 %v4589, 64
        %v4828 = vpop.permute.xlu0 %4827
        %4829 = vrot.lane.b32.xlu0 %v4590, 64
        %v4830 = vpop.permute.xlu0 %4829
        %4831 = vrot.lane.b32.xlu0 %v4591, 64
        %v4832 = vpop.permute.xlu0 %4831
        %4833 = vrot.lane.b32.xlu0 %v4592, 64
        %v4834 = vpop.permute.xlu0 %4833
        %4835 = vrot.lane.b32.xlu0 %v4593, 64
        %v4836 = vpop.permute.xlu0 %4835
        %4837 = vrot.lane.b32.xlu0 %v4594, 64
        %v4838 = vpop.permute.xlu0 %4837
        %4839 = vrot.lane.b32.xlu0 %v4595, 64
        %v4840 = vpop.permute.xlu0 %4839
        %4841 = vrot.lane.b32.xlu0 %v4596, 64
        %v4842 = vpop.permute.xlu0 %4841
        %4843 = vrot.lane.b32.xlu0 %v4597, 64
        %v4844 = vpop.permute.xlu0 %4843
        %4845 = vrot.lane.b32.xlu0 %v4598, 64
        %v4846 = vpop.permute.xlu0 %4845
        %4847 = vrot.lane.b32.xlu0 %v4599, 64
        %v4848 = vpop.permute.xlu0 %4847
        %4849 = vrot.lane.b32.xlu0 %v4600, 64
        %v4850 = vpop.permute.xlu0 %4849
        %4851 = vrot.lane.b32.xlu0 %v4601, 64
        %v4852 = vpop.permute.xlu0 %4851
        %4853 = vrot.lane.b32.xlu0 %v4602, 64
        %v4854 = vpop.permute.xlu0 %4853
        %4855 = vrot.lane.b32.xlu0 %v4603, 64
        %v4856 = vpop.permute.xlu0 %4855
        %4857 = vrot.lane.b32.xlu0 %v4604, 64
        %v4858 = vpop.permute.xlu0 %4857
        %4859 = vrot.lane.b32.xlu0 %v4605, 64
        %v4860 = vpop.permute.xlu0 %4859
        %4861 = vrot.lane.b32.xlu0 %v4606, 64
        %v4862 = vpop.permute.xlu0 %4861
        %v4927 = vadd.f32 %v4607, %v4736
        %v4928 = vadd.f32 %v4608, %v4738
        %v4929 = vadd.f32 %v4609, %v4740
        %v4930 = vadd.f32 %v4610, %v4742
        %v4931 = vadd.f32 %v4611, %v4744
        %v4932 = vadd.f32 %v4612, %v4746
        %v4933 = vadd.f32 %v4613, %v4748
        %v4934 = vadd.f32 %v4614, %v4750
        %v4935 = vadd.f32 %v4615, %v4752
        %v4936 = vadd.f32 %v4616, %v4754
        %v4937 = vadd.f32 %v4617, %v4756
        %v4938 = vadd.f32 %v4618, %v4758
        %v4939 = vadd.f32 %v4619, %v4760
        %v4940 = vadd.f32 %v4620, %v4762
        %v4941 = vadd.f32 %v4621, %v4764
        %v4942 = vadd.f32 %v4622, %v4766
        %v4943 = vadd.f32 %v4623, %v4768
        %v4944 = vadd.f32 %v4624, %v4770
        %v4945 = vadd.f32 %v4625, %v4772
        %v4946 = vadd.f32 %v4626, %v4774
        %v4947 = vadd.f32 %v4627, %v4776
        %v4948 = vadd.f32 %v4628, %v4778
        %v4949 = vadd.f32 %v4629, %v4780
        %v4950 = vadd.f32 %v4630, %v4782
        %v4951 = vadd.f32 %v4631, %v4784
        %v4952 = vadd.f32 %v4632, %v4786
        %v4953 = vadd.f32 %v4633, %v4788
        %v4954 = vadd.f32 %v4634, %v4790
        %v4955 = vadd.f32 %v4635, %v4792
        %v4956 = vadd.f32 %v4636, %v4794
        %v4957 = vadd.f32 %v4637, %v4796
        %v4958 = vadd.f32 %v4638, %v4798
        %v4959 = vadd.f32 %v4639, %v4800
        %v4960 = vadd.f32 %v4640, %v4802
        %v4961 = vadd.f32 %v4641, %v4804
        %v4962 = vadd.f32 %v4642, %v4806
        %v4963 = vadd.f32 %v4643, %v4808
        %v4964 = vadd.f32 %v4644, %v4810
        %v4965 = vadd.f32 %v4645, %v4812
        %v4966 = vadd.f32 %v4646, %v4814
        %v4967 = vadd.f32 %v4647, %v4816
        %v4968 = vadd.f32 %v4648, %v4818
        %v4969 = vadd.f32 %v4649, %v4820
        %v4970 = vadd.f32 %v4650, %v4822
        %v4971 = vadd.f32 %v4651, %v4824
        %v4972 = vadd.f32 %v4652, %v4826
        %v4973 = vadd.f32 %v4653, %v4828
        %v4974 = vadd.f32 %v4654, %v4830
        %v4975 = vadd.f32 %v4655, %v4832
        %v4976 = vadd.f32 %v4656, %v4834
        %v4977 = vadd.f32 %v4657, %v4836
        %v4978 = vadd.f32 %v4658, %v4838
        %v4979 = vadd.f32 %v4659, %v4840
        %v4980 = vadd.f32 %v4660, %v4842
        %v4981 = vadd.f32 %v4661, %v4844
        %v4982 = vadd.f32 %v4662, %v4846
        %v4983 = vadd.f32 %v4663, %v4848
        %v4984 = vadd.f32 %v4664, %v4850
        %v4985 = vadd.f32 %v4665, %v4852
        %v4986 = vadd.f32 %v4666, %v4854
        %v4987 = vadd.f32 %v4667, %v4856
        %v4988 = vadd.f32 %v4668, %v4858
        %v4989 = vadd.f32 %v4669, %v4860
        %v4990 = vadd.f32 %v4670, %v4862
        %v4991 = vadd.f32 %v1217, %v1651
        %v4992 = vadd.f32 %v1219, %v1653
        %v4993 = vadd.f32 %v1222, %v1656
        %v4994 = vadd.f32 %v1224, %v1658
        %v4995 = vadd.f32 %v1227, %v1661
        %v4996 = vadd.f32 %v1229, %v1663
        %v4997 = vadd.f32 %v1232, %v1666
        %v4998 = vadd.f32 %v1234, %v1668
        %v4999 = vadd.f32 %v1237, %v1671
        %v5000 = vadd.f32 %v1239, %v1673
        %v5001 = vadd.f32 %v1242, %v1676
        %v5002 = vadd.f32 %v1244, %v1678
        %v5003 = vadd.f32 %v1247, %v1681
        %v5004 = vadd.f32 %v1249, %v1683
        %v5005 = vadd.f32 %v1252, %v1686
        %v5006 = vadd.f32 %v1254, %v1688
        %v5007 = vadd.f32 %v1257, %v1691
        %v5008 = vadd.f32 %v1259, %v1693
        %v5009 = vadd.f32 %v1262, %v1696
        %v5010 = vadd.f32 %v1264, %v1698
        %v5011 = vadd.f32 %v1267, %v1701
        %v5012 = vadd.f32 %v1269, %v1703
        %v5013 = vadd.f32 %v1272, %v1706
        %v5014 = vadd.f32 %v1274, %v1708
        %v5015 = vadd.f32 %v1277, %v1711
        %v5016 = vadd.f32 %v1279, %v1713
        %v5017 = vadd.f32 %v1282, %v1716
        %v5018 = vadd.f32 %v1284, %v1718
        %v5019 = vadd.f32 %v1287, %v1721
        %v5020 = vadd.f32 %v1289, %v1723
        %v5021 = vadd.f32 %v1292, %v1726
        %v5022 = vadd.f32 %v1294, %v1728
        %v5023 = vadd.f32 %v1297, %v1731
        %v5024 = vadd.f32 %v1299, %v1733
        %v5025 = vadd.f32 %v1302, %v1736
        %v5026 = vadd.f32 %v1304, %v1738
        %v5027 = vadd.f32 %v1307, %v1741
        %v5028 = vadd.f32 %v1309, %v1743
        %v5029 = vadd.f32 %v1312, %v1746
        %v5030 = vadd.f32 %v1314, %v1748
        %v5031 = vadd.f32 %v1317, %v1751
        %v5032 = vadd.f32 %v1319, %v1753
        %v5033 = vadd.f32 %v1322, %v1756
        %v5034 = vadd.f32 %v1324, %v1758
        %v5035 = vadd.f32 %v1327, %v1761
        %v5036 = vadd.f32 %v1329, %v1763
        %v5037 = vadd.f32 %v1332, %v1766
        %v5038 = vadd.f32 %v1334, %v1768
        %v5039 = vadd.f32 %v1337, %v1771
        %v5040 = vadd.f32 %v1339, %v1773
        %v5041 = vadd.f32 %v1342, %v1776
        %v5042 = vadd.f32 %v1344, %v1778
        %v5043 = vadd.f32 %v1347, %v1781
        %v5044 = vadd.f32 %v1349, %v1783
        %v5045 = vadd.f32 %v1352, %v1786
        %v5046 = vadd.f32 %v1354, %v1788
        %v5047 = vadd.f32 %v1357, %v1791
        %v5048 = vadd.f32 %v1359, %v1793
        %v5049 = vadd.f32 %v1362, %v1796
        %v5050 = vadd.f32 %v1364, %v1798
        %v5051 = vadd.f32 %v1367, %v1801
        %v5052 = vadd.f32 %v1369, %v1803
        %v5053 = vadd.f32 %v1372, %v1806
        %v5054 = vadd.f32 %v1374, %v1808
        %v5055 = vadd.f32 %v4991, %v4992
        %v5056 = vadd.f32 %v5055, %v4993
        %v5057 = vadd.f32 %v5056, %v4994
        %v5058 = vrot.slane %v5057, 4
        %v5059 = vadd.f32 %v5057, %v5058
        %v5060 = vrot.slane %v5059, 2
        %v5061 = vadd.f32 %v5059, %v5060
        %v5062 = vrot.slane %v5061, 1
        %v5063 = vadd.f32 %v5061, %v5062
        %v5064 = vadd.f32 %v4995, %v4996
        %v5065 = vadd.f32 %v5064, %v4997
        %v5066 = vadd.f32 %v5065, %v4998
        %v5067 = vrot.slane %v5066, 4
        %v5068 = vadd.f32 %v5066, %v5067
        %v5069 = vrot.slane %v5068, 2
        %v5070 = vadd.f32 %v5068, %v5069
        %v5071 = vrot.slane %v5070, 1
        %v5072 = vadd.f32 %v5070, %v5071
        %v5073 = vadd.f32 %v4999, %v5000
        %v5074 = vadd.f32 %v5073, %v5001
        %v5075 = vadd.f32 %v5074, %v5002
        %v5076 = vrot.slane %v5075, 4
        %v5077 = vadd.f32 %v5075, %v5076
        %v5078 = vrot.slane %v5077, 2
        %v5079 = vadd.f32 %v5077, %v5078
        %v5080 = vrot.slane %v5079, 1
        %v5081 = vadd.f32 %v5079, %v5080
        %v5082 = vadd.f32 %v5003, %v5004
        %v5083 = vadd.f32 %v5082, %v5005
        %v5084 = vadd.f32 %v5083, %v5006
        %v5085 = vrot.slane %v5084, 4
        %v5086 = vadd.f32 %v5084, %v5085
        %v5087 = vrot.slane %v5086, 2
        %v5088 = vadd.f32 %v5086, %v5087
        %v5089 = vrot.slane %v5088, 1
        %v5090 = vadd.f32 %v5088, %v5089
        %v5091 = vadd.f32 %v5007, %v5008
        %v5092 = vadd.f32 %v5091, %v5009
        %v5093 = vadd.f32 %v5092, %v5010
        %v5094 = vrot.slane %v5093, 4
        %v5095 = vadd.f32 %v5093, %v5094
        %v5096 = vrot.slane %v5095, 2
        %v5097 = vadd.f32 %v5095, %v5096
        %v5098 = vrot.slane %v5097, 1
        %v5099 = vadd.f32 %v5097, %v5098
        %v5100 = vadd.f32 %v5011, %v5012
        %v5101 = vadd.f32 %v5100, %v5013
        %v5102 = vadd.f32 %v5101, %v5014
        %v5103 = vrot.slane %v5102, 4
        %v5104 = vadd.f32 %v5102, %v5103
        %v5105 = vrot.slane %v5104, 2
        %v5106 = vadd.f32 %v5104, %v5105
        %v5107 = vrot.slane %v5106, 1
        %v5108 = vadd.f32 %v5106, %v5107
        %v5109 = vadd.f32 %v5015, %v5016
        %v5110 = vadd.f32 %v5109, %v5017
        %v5111 = vadd.f32 %v5110, %v5018
        %v5112 = vrot.slane %v5111, 4
        %v5113 = vadd.f32 %v5111, %v5112
        %v5114 = vrot.slane %v5113, 2
        %v5115 = vadd.f32 %v5113, %v5114
        %v5116 = vrot.slane %v5115, 1
        %v5117 = vadd.f32 %v5115, %v5116
        %v5118 = vadd.f32 %v5019, %v5020
        %v5119 = vadd.f32 %v5118, %v5021
        %v5120 = vadd.f32 %v5119, %v5022
        %v5121 = vrot.slane %v5120, 4
        %v5122 = vadd.f32 %v5120, %v5121
        %v5123 = vrot.slane %v5122, 2
        %v5124 = vadd.f32 %v5122, %v5123
        %v5125 = vrot.slane %v5124, 1
        %v5126 = vadd.f32 %v5124, %v5125
        %v5127 = vadd.f32 %v5023, %v5024
        %v5128 = vadd.f32 %v5127, %v5025
        %v5129 = vadd.f32 %v5128, %v5026
        %v5130 = vrot.slane %v5129, 4
        %v5131 = vadd.f32 %v5129, %v5130
        %v5132 = vrot.slane %v5131, 2
        %v5133 = vadd.f32 %v5131, %v5132
        %v5134 = vrot.slane %v5133, 1
        %v5135 = vadd.f32 %v5133, %v5134
        %v5136 = vadd.f32 %v5027, %v5028
        %v5137 = vadd.f32 %v5136, %v5029
        %v5138 = vadd.f32 %v5137, %v5030
        %v5139 = vrot.slane %v5138, 4
        %v5140 = vadd.f32 %v5138, %v5139
        %v5141 = vrot.slane %v5140, 2
        %v5142 = vadd.f32 %v5140, %v5141
        %v5143 = vrot.slane %v5142, 1
        %v5144 = vadd.f32 %v5142, %v5143
        %v5145 = vadd.f32 %v5031, %v5032
        %v5146 = vadd.f32 %v5145, %v5033
        %v5147 = vadd.f32 %v5146, %v5034
        %v5148 = vrot.slane %v5147, 4
        %v5149 = vadd.f32 %v5147, %v5148
        %v5150 = vrot.slane %v5149, 2
        %v5151 = vadd.f32 %v5149, %v5150
        %v5152 = vrot.slane %v5151, 1
        %v5153 = vadd.f32 %v5151, %v5152
        %v5154 = vadd.f32 %v5035, %v5036
        %v5155 = vadd.f32 %v5154, %v5037
        %v5156 = vadd.f32 %v5155, %v5038
        %v5157 = vrot.slane %v5156, 4
        %v5158 = vadd.f32 %v5156, %v5157
        %v5159 = vrot.slane %v5158, 2
        %v5160 = vadd.f32 %v5158, %v5159
        %v5161 = vrot.slane %v5160, 1
        %v5162 = vadd.f32 %v5160, %v5161
        %v5163 = vadd.f32 %v5039, %v5040
        %v5164 = vadd.f32 %v5163, %v5041
        %v5165 = vadd.f32 %v5164, %v5042
        %v5166 = vrot.slane %v5165, 4
        %v5167 = vadd.f32 %v5165, %v5166
        %v5168 = vrot.slane %v5167, 2
        %v5169 = vadd.f32 %v5167, %v5168
        %v5170 = vrot.slane %v5169, 1
        %v5171 = vadd.f32 %v5169, %v5170
        %v5172 = vadd.f32 %v5043, %v5044
        %v5173 = vadd.f32 %v5172, %v5045
        %v5174 = vadd.f32 %v5173, %v5046
        %v5175 = vrot.slane %v5174, 4
        %v5176 = vadd.f32 %v5174, %v5175
        %v5177 = vrot.slane %v5176, 2
        %v5178 = vadd.f32 %v5176, %v5177
        %v5179 = vrot.slane %v5178, 1
        %v5180 = vadd.f32 %v5178, %v5179
        %v5181 = vadd.f32 %v5047, %v5048
        %v5182 = vadd.f32 %v5181, %v5049
        %v5183 = vadd.f32 %v5182, %v5050
        %v5184 = vrot.slane %v5183, 4
        %v5185 = vadd.f32 %v5183, %v5184
        %v5186 = vrot.slane %v5185, 2
        %v5187 = vadd.f32 %v5185, %v5186
        %v5188 = vrot.slane %v5187, 1
        %v5189 = vadd.f32 %v5187, %v5188
        %v5190 = vadd.f32 %v5051, %v5052
        %v5191 = vadd.f32 %v5190, %v5053
        %v5192 = vadd.f32 %v5191, %v5054
        %v5193 = vrot.slane %v5192, 4
        %v5194 = vadd.f32 %v5192, %v5193
        %v5195 = vrot.slane %v5194, 2
        %v5196 = vadd.f32 %v5194, %v5195
        %v5197 = vrot.slane %v5196, 1
        %v5198 = vadd.f32 %v5196, %v5197
        %5215 = vrot.lane.b32.xlu0 %v5063, 64
        %v5216 = vpop.permute.xlu0 %5215
        %5217 = vrot.lane.b32.xlu0 %v5072, 64
        %v5218 = vpop.permute.xlu0 %5217
        %5219 = vrot.lane.b32.xlu0 %v5081, 64
        %v5220 = vpop.permute.xlu0 %5219
        %5221 = vrot.lane.b32.xlu0 %v5090, 64
        %v5222 = vpop.permute.xlu0 %5221
        %5223 = vrot.lane.b32.xlu0 %v5099, 64
        %v5224 = vpop.permute.xlu0 %5223
        %5225 = vrot.lane.b32.xlu0 %v5108, 64
        %v5226 = vpop.permute.xlu0 %5225
        %5227 = vrot.lane.b32.xlu0 %v5117, 64
        %v5228 = vpop.permute.xlu0 %5227
        %5229 = vrot.lane.b32.xlu0 %v5126, 64
        %v5230 = vpop.permute.xlu0 %5229
        %5231 = vrot.lane.b32.xlu0 %v5135, 64
        %v5232 = vpop.permute.xlu0 %5231
        %5233 = vrot.lane.b32.xlu0 %v5144, 64
        %v5234 = vpop.permute.xlu0 %5233
        %5235 = vrot.lane.b32.xlu0 %v5153, 64
        %v5236 = vpop.permute.xlu0 %5235
        %5237 = vrot.lane.b32.xlu0 %v5162, 64
        %v5238 = vpop.permute.xlu0 %5237
        %5239 = vrot.lane.b32.xlu0 %v5171, 64
        %v5240 = vpop.permute.xlu0 %5239
        %5241 = vrot.lane.b32.xlu0 %v5180, 64
        %v5242 = vpop.permute.xlu0 %5241
        %5243 = vrot.lane.b32.xlu0 %v5189, 64
        %v5244 = vpop.permute.xlu0 %5243
        %5245 = vrot.lane.b32.xlu0 %v5198, 64
        %v5246 = vpop.permute.xlu0 %5245
        %v5263 = vadd.f32 %v5063, %v5216
        %v5264 = vadd.f32 %v5072, %v5218
        %v5265 = vadd.f32 %v5081, %v5220
        %v5266 = vadd.f32 %v5090, %v5222
        %v5267 = vadd.f32 %v5099, %v5224
        %v5268 = vadd.f32 %v5108, %v5226
        %v5269 = vadd.f32 %v5117, %v5228
        %v5270 = vadd.f32 %v5126, %v5230
        %v5271 = vadd.f32 %v5135, %v5232
        %v5272 = vadd.f32 %v5144, %v5234
        %v5273 = vadd.f32 %v5153, %v5236
        %v5274 = vadd.f32 %v5162, %v5238
        %v5275 = vadd.f32 %v5171, %v5240
        %v5276 = vadd.f32 %v5180, %v5242
        %v5277 = vadd.f32 %v5189, %v5244
        %v5278 = vadd.f32 %v5198, %v5246
        %v5279 = vmul.f32 %v5263, 0.015625
        %v5280 = vmul.f32 %v5264, 0.015625
        %v5281 = vmul.f32 %v5265, 0.015625
        %v5282 = vmul.f32 %v5266, 0.015625
        %v5283 = vmul.f32 %v5267, 0.015625
        %v5284 = vmul.f32 %v5268, 0.015625
        %v5285 = vmul.f32 %v5269, 0.015625
        %v5286 = vmul.f32 %v5270, 0.015625
        %v5287 = vmul.f32 %v5271, 0.015625
        %v5288 = vmul.f32 %v5272, 0.015625
        %v5289 = vmul.f32 %v5273, 0.015625
        %v5290 = vmul.f32 %v5274, 0.015625
        %v5291 = vmul.f32 %v5275, 0.015625
        %v5292 = vmul.f32 %v5276, 0.015625
        %v5293 = vmul.f32 %v5277, 0.015625
        %v5294 = vmul.f32 %v5278, 0.015625
        %v5311 = vrot.slane %v5280, 7
        %v5312 = vsel %vm2240, %v5311, %v5279
        %v5313 = vrot.slane %v5281, 6
        %v5314 = vsel %vm2243, %v5313, %v5312
        %v5315 = vrot.slane %v5282, 5
        %v5316 = vsel %vm2246, %v5315, %v5314
        %v5317 = vrot.slane %v5283, 4
        %v5318 = vsel %vm2249, %v5317, %v5316
        %v5319 = vrot.slane %v5284, 3
        %v5320 = vsel %vm2252, %v5319, %v5318
        %v5321 = vrot.slane %v5285, 2
        %v5322 = vsel %vm2255, %v5321, %v5320
        %v5323 = vrot.slane %v5286, 1
        %v5324 = vsel %vm2258, %v5323, %v5322
        %v5325 = vrot.slane %v5288, 7
        %v5326 = vsel %vm2240, %v5325, %v5287
        %v5327 = vrot.slane %v5289, 6
        %v5328 = vsel %vm2243, %v5327, %v5326
        %v5329 = vrot.slane %v5290, 5
        %v5330 = vsel %vm2246, %v5329, %v5328
        %v5331 = vrot.slane %v5291, 4
        %v5332 = vsel %vm2249, %v5331, %v5330
        %v5333 = vrot.slane %v5292, 3
        %v5334 = vsel %vm2252, %v5333, %v5332
        %v5335 = vrot.slane %v5293, 2
        %v5336 = vsel %vm2255, %v5335, %v5334
        %v5337 = vrot.slane %v5294, 1
        %v5338 = vsel %vm2258, %v5337, %v5336
        %5341 = vrot.lane.b32.xlu0 %v5324, 64
        %v5342 = vpop.permute.xlu0 %5341
        %5343 = vrot.lane.b32.xlu0 %v5338, 64
        %v5344 = vpop.permute.xlu0 %5343
        %v5347 = vsel %vm2282, %v5324, %v5342
        %v5348 = vsel %vm2282, %v5338, %v5344
        %v5351 = vrot.slane %v5347, 1
        %v5352 = vrot.slane %v5347, 2
        %v5353 = vrot.slane %v5347, 3
        %v5354 = vrot.slane %v5347, 4
        %v5355 = vrot.slane %v5347, 5
        %v5356 = vrot.slane %v5347, 6
        %v5357 = vrot.slane %v5347, 7
        %v5358 = vrot.slane %v5348, 1
        %v5359 = vrot.slane %v5348, 2
        %v5360 = vrot.slane %v5348, 3
        %v5361 = vrot.slane %v5348, 4
        %v5362 = vrot.slane %v5348, 5
        %v5363 = vrot.slane %v5348, 6
        %v5364 = vrot.slane %v5348, 7
        %v5365 = vperm.slane %v5347, 0
        %v5366 = vperm.slane %v5351, 0
        %v5367 = vperm.slane %v5352, 0
        %v5368 = vperm.slane %v5353, 0
        %v5369 = vperm.slane %v5354, 0
        %v5370 = vperm.slane %v5355, 0
        %v5371 = vperm.slane %v5356, 0
        %v5372 = vperm.slane %v5357, 0
        %v5373 = vperm.slane %v5348, 0
        %v5374 = vperm.slane %v5358, 0
        %v5375 = vperm.slane %v5359, 0
        %v5376 = vperm.slane %v5360, 0
        %v5377 = vperm.slane %v5361, 0
        %v5378 = vperm.slane %v5362, 0
        %v5379 = vperm.slane %v5363, 0
        %v5380 = vperm.slane %v5364, 0
        %v5397 = vsub.f32 %v4991, %v5365
        %v5398 = vsub.f32 %v4992, %v5365
        %v5399 = vsub.f32 %v4993, %v5365
        %v5400 = vsub.f32 %v4994, %v5365
        %v5401 = vsub.f32 %v4995, %v5366
        %v5402 = vsub.f32 %v4996, %v5366
        %v5403 = vsub.f32 %v4997, %v5366
        %v5404 = vsub.f32 %v4998, %v5366
        %v5405 = vsub.f32 %v4999, %v5367
        %v5406 = vsub.f32 %v5000, %v5367
        %v5407 = vsub.f32 %v5001, %v5367
        %v5408 = vsub.f32 %v5002, %v5367
        %v5409 = vsub.f32 %v5003, %v5368
        %v5410 = vsub.f32 %v5004, %v5368
        %v5411 = vsub.f32 %v5005, %v5368
        %v5412 = vsub.f32 %v5006, %v5368
        %v5413 = vsub.f32 %v5007, %v5369
        %v5414 = vsub.f32 %v5008, %v5369
        %v5415 = vsub.f32 %v5009, %v5369
        %v5416 = vsub.f32 %v5010, %v5369
        %v5417 = vsub.f32 %v5011, %v5370
        %v5418 = vsub.f32 %v5012, %v5370
        %v5419 = vsub.f32 %v5013, %v5370
        %v5420 = vsub.f32 %v5014, %v5370
        %v5421 = vsub.f32 %v5015, %v5371
        %v5422 = vsub.f32 %v5016, %v5371
        %v5423 = vsub.f32 %v5017, %v5371
        %v5424 = vsub.f32 %v5018, %v5371
        %v5425 = vsub.f32 %v5019, %v5372
        %v5426 = vsub.f32 %v5020, %v5372
        %v5427 = vsub.f32 %v5021, %v5372
        %v5428 = vsub.f32 %v5022, %v5372
        %v5429 = vsub.f32 %v5023, %v5373
        %v5430 = vsub.f32 %v5024, %v5373
        %v5431 = vsub.f32 %v5025, %v5373
        %v5432 = vsub.f32 %v5026, %v5373
        %v5433 = vsub.f32 %v5027, %v5374
        %v5434 = vsub.f32 %v5028, %v5374
        %v5435 = vsub.f32 %v5029, %v5374
        %v5436 = vsub.f32 %v5030, %v5374
        %v5437 = vsub.f32 %v5031, %v5375
        %v5438 = vsub.f32 %v5032, %v5375
        %v5439 = vsub.f32 %v5033, %v5375
        %v5440 = vsub.f32 %v5034, %v5375
        %v5441 = vsub.f32 %v5035, %v5376
        %v5442 = vsub.f32 %v5036, %v5376
        %v5443 = vsub.f32 %v5037, %v5376
        %v5444 = vsub.f32 %v5038, %v5376
        %v5445 = vsub.f32 %v5039, %v5377
        %v5446 = vsub.f32 %v5040, %v5377
        %v5447 = vsub.f32 %v5041, %v5377
        %v5448 = vsub.f32 %v5042, %v5377
        %v5449 = vsub.f32 %v5043, %v5378
        %v5450 = vsub.f32 %v5044, %v5378
        %v5451 = vsub.f32 %v5045, %v5378
        %v5452 = vsub.f32 %v5046, %v5378
        %v5453 = vsub.f32 %v5047, %v5379
        %v5454 = vsub.f32 %v5048, %v5379
        %v5455 = vsub.f32 %v5049, %v5379
        %v5456 = vsub.f32 %v5050, %v5379
        %v5457 = vsub.f32 %v5051, %v5380
        %v5458 = vsub.f32 %v5052, %v5380
        %v5459 = vsub.f32 %v5053, %v5380
        %v5460 = vsub.f32 %v5054, %v5380
        %v5461 = vmul.f32 %v5397, %v5397
        %v5462 = vmul.f32 %v5398, %v5398
        %v5463 = vmul.f32 %v5399, %v5399
        %v5464 = vmul.f32 %v5400, %v5400
        %v5465 = vmul.f32 %v5401, %v5401
        %v5466 = vmul.f32 %v5402, %v5402
        %v5467 = vmul.f32 %v5403, %v5403
        %v5468 = vmul.f32 %v5404, %v5404
        %v5469 = vmul.f32 %v5405, %v5405
        %v5470 = vmul.f32 %v5406, %v5406
        %v5471 = vmul.f32 %v5407, %v5407
        %v5472 = vmul.f32 %v5408, %v5408
        %v5473 = vmul.f32 %v5409, %v5409
        %v5474 = vmul.f32 %v5410, %v5410
        %v5475 = vmul.f32 %v5411, %v5411
        %v5476 = vmul.f32 %v5412, %v5412
        %v5477 = vmul.f32 %v5413, %v5413
        %v5478 = vmul.f32 %v5414, %v5414
        %v5479 = vmul.f32 %v5415, %v5415
        %v5480 = vmul.f32 %v5416, %v5416
        %v5481 = vmul.f32 %v5417, %v5417
        %v5482 = vmul.f32 %v5418, %v5418
        %v5483 = vmul.f32 %v5419, %v5419
        %v5484 = vmul.f32 %v5420, %v5420
        %v5485 = vmul.f32 %v5421, %v5421
        %v5486 = vmul.f32 %v5422, %v5422
        %v5487 = vmul.f32 %v5423, %v5423
        %v5488 = vmul.f32 %v5424, %v5424
        %v5489 = vmul.f32 %v5425, %v5425
        %v5490 = vmul.f32 %v5426, %v5426
        %v5491 = vmul.f32 %v5427, %v5427
        %v5492 = vmul.f32 %v5428, %v5428
        %v5493 = vmul.f32 %v5429, %v5429
        %v5494 = vmul.f32 %v5430, %v5430
        %v5495 = vmul.f32 %v5431, %v5431
        %v5496 = vmul.f32 %v5432, %v5432
        %v5497 = vmul.f32 %v5433, %v5433
        %v5498 = vmul.f32 %v5434, %v5434
        %v5499 = vmul.f32 %v5435, %v5435
        %v5500 = vmul.f32 %v5436, %v5436
        %v5501 = vmul.f32 %v5437, %v5437
        %v5502 = vmul.f32 %v5438, %v5438
        %v5503 = vmul.f32 %v5439, %v5439
        %v5504 = vmul.f32 %v5440, %v5440
        %v5505 = vmul.f32 %v5441, %v5441
        %v5506 = vmul.f32 %v5442, %v5442
        %v5507 = vmul.f32 %v5443, %v5443
        %v5508 = vmul.f32 %v5444, %v5444
        %v5509 = vmul.f32 %v5445, %v5445
        %v5510 = vmul.f32 %v5446, %v5446
        %v5511 = vmul.f32 %v5447, %v5447
        %v5512 = vmul.f32 %v5448, %v5448
        %v5513 = vmul.f32 %v5449, %v5449
        %v5514 = vmul.f32 %v5450, %v5450
        %v5515 = vmul.f32 %v5451, %v5451
        %v5516 = vmul.f32 %v5452, %v5452
        %v5517 = vmul.f32 %v5453, %v5453
        %v5518 = vmul.f32 %v5454, %v5454
        %v5519 = vmul.f32 %v5455, %v5455
        %v5520 = vmul.f32 %v5456, %v5456
        %v5521 = vmul.f32 %v5457, %v5457
        %v5522 = vmul.f32 %v5458, %v5458
        %v5523 = vmul.f32 %v5459, %v5459
        %v5524 = vmul.f32 %v5460, %v5460
        %v5525 = vadd.f32 %v5461, %v5462
        %v5526 = vadd.f32 %v5525, %v5463
        %v5527 = vadd.f32 %v5526, %v5464
        %v5528 = vrot.slane %v5527, 4
        %v5529 = vadd.f32 %v5527, %v5528
        %v5530 = vrot.slane %v5529, 2
        %v5531 = vadd.f32 %v5529, %v5530
        %v5532 = vrot.slane %v5531, 1
        %v5533 = vadd.f32 %v5531, %v5532
        %v5534 = vadd.f32 %v5465, %v5466
        %v5535 = vadd.f32 %v5534, %v5467
        %v5536 = vadd.f32 %v5535, %v5468
        %v5537 = vrot.slane %v5536, 4
        %v5538 = vadd.f32 %v5536, %v5537
        %v5539 = vrot.slane %v5538, 2
        %v5540 = vadd.f32 %v5538, %v5539
        %v5541 = vrot.slane %v5540, 1
        %v5542 = vadd.f32 %v5540, %v5541
        %v5543 = vadd.f32 %v5469, %v5470
        %v5544 = vadd.f32 %v5543, %v5471
        %v5545 = vadd.f32 %v5544, %v5472
        %v5546 = vrot.slane %v5545, 4
        %v5547 = vadd.f32 %v5545, %v5546
        %v5548 = vrot.slane %v5547, 2
        %v5549 = vadd.f32 %v5547, %v5548
        %v5550 = vrot.slane %v5549, 1
        %v5551 = vadd.f32 %v5549, %v5550
        %v5552 = vadd.f32 %v5473, %v5474
        %v5553 = vadd.f32 %v5552, %v5475
        %v5554 = vadd.f32 %v5553, %v5476
        %v5555 = vrot.slane %v5554, 4
        %v5556 = vadd.f32 %v5554, %v5555
        %v5557 = vrot.slane %v5556, 2
        %v5558 = vadd.f32 %v5556, %v5557
        %v5559 = vrot.slane %v5558, 1
        %v5560 = vadd.f32 %v5558, %v5559
        %v5561 = vadd.f32 %v5477, %v5478
        %v5562 = vadd.f32 %v5561, %v5479
        %v5563 = vadd.f32 %v5562, %v5480
        %v5564 = vrot.slane %v5563, 4
        %v5565 = vadd.f32 %v5563, %v5564
        %v5566 = vrot.slane %v5565, 2
        %v5567 = vadd.f32 %v5565, %v5566
        %v5568 = vrot.slane %v5567, 1
        %v5569 = vadd.f32 %v5567, %v5568
        %v5570 = vadd.f32 %v5481, %v5482
        %v5571 = vadd.f32 %v5570, %v5483
        %v5572 = vadd.f32 %v5571, %v5484
        %v5573 = vrot.slane %v5572, 4
        %v5574 = vadd.f32 %v5572, %v5573
        %v5575 = vrot.slane %v5574, 2
        %v5576 = vadd.f32 %v5574, %v5575
        %v5577 = vrot.slane %v5576, 1
        %v5578 = vadd.f32 %v5576, %v5577
        %v5579 = vadd.f32 %v5485, %v5486
        %v5580 = vadd.f32 %v5579, %v5487
        %v5581 = vadd.f32 %v5580, %v5488
        %v5582 = vrot.slane %v5581, 4
        %v5583 = vadd.f32 %v5581, %v5582
        %v5584 = vrot.slane %v5583, 2
        %v5585 = vadd.f32 %v5583, %v5584
        %v5586 = vrot.slane %v5585, 1
        %v5587 = vadd.f32 %v5585, %v5586
        %v5588 = vadd.f32 %v5489, %v5490
        %v5589 = vadd.f32 %v5588, %v5491
        %v5590 = vadd.f32 %v5589, %v5492
        %v5591 = vrot.slane %v5590, 4
        %v5592 = vadd.f32 %v5590, %v5591
        %v5593 = vrot.slane %v5592, 2
        %v5594 = vadd.f32 %v5592, %v5593
        %v5595 = vrot.slane %v5594, 1
        %v5596 = vadd.f32 %v5594, %v5595
        %v5597 = vadd.f32 %v5493, %v5494
        %v5598 = vadd.f32 %v5597, %v5495
        %v5599 = vadd.f32 %v5598, %v5496
        %v5600 = vrot.slane %v5599, 4
        %v5601 = vadd.f32 %v5599, %v5600
        %v5602 = vrot.slane %v5601, 2
        %v5603 = vadd.f32 %v5601, %v5602
        %v5604 = vrot.slane %v5603, 1
        %v5605 = vadd.f32 %v5603, %v5604
        %v5606 = vadd.f32 %v5497, %v5498
        %v5607 = vadd.f32 %v5606, %v5499
        %v5608 = vadd.f32 %v5607, %v5500
        %v5609 = vrot.slane %v5608, 4
        %v5610 = vadd.f32 %v5608, %v5609
        %v5611 = vrot.slane %v5610, 2
        %v5612 = vadd.f32 %v5610, %v5611
        %v5613 = vrot.slane %v5612, 1
        %v5614 = vadd.f32 %v5612, %v5613
        %v5615 = vadd.f32 %v5501, %v5502
        %v5616 = vadd.f32 %v5615, %v5503
        %v5617 = vadd.f32 %v5616, %v5504
        %v5618 = vrot.slane %v5617, 4
        %v5619 = vadd.f32 %v5617, %v5618
        %v5620 = vrot.slane %v5619, 2
        %v5621 = vadd.f32 %v5619, %v5620
        %v5622 = vrot.slane %v5621, 1
        %v5623 = vadd.f32 %v5621, %v5622
        %v5624 = vadd.f32 %v5505, %v5506
        %v5625 = vadd.f32 %v5624, %v5507
        %v5626 = vadd.f32 %v5625, %v5508
        %v5627 = vrot.slane %v5626, 4
        %v5628 = vadd.f32 %v5626, %v5627
        %v5629 = vrot.slane %v5628, 2
        %v5630 = vadd.f32 %v5628, %v5629
        %v5631 = vrot.slane %v5630, 1
        %v5632 = vadd.f32 %v5630, %v5631
        %v5633 = vadd.f32 %v5509, %v5510
        %v5634 = vadd.f32 %v5633, %v5511
        %v5635 = vadd.f32 %v5634, %v5512
        %v5636 = vrot.slane %v5635, 4
        %v5637 = vadd.f32 %v5635, %v5636
        %v5638 = vrot.slane %v5637, 2
        %v5639 = vadd.f32 %v5637, %v5638
        %v5640 = vrot.slane %v5639, 1
        %v5641 = vadd.f32 %v5639, %v5640
        %v5642 = vadd.f32 %v5513, %v5514
        %v5643 = vadd.f32 %v5642, %v5515
        %v5644 = vadd.f32 %v5643, %v5516
        %v5645 = vrot.slane %v5644, 4
        %v5646 = vadd.f32 %v5644, %v5645
        %v5647 = vrot.slane %v5646, 2
        %v5648 = vadd.f32 %v5646, %v5647
        %v5649 = vrot.slane %v5648, 1
        %v5650 = vadd.f32 %v5648, %v5649
        %v5651 = vadd.f32 %v5517, %v5518
        %v5652 = vadd.f32 %v5651, %v5519
        %v5653 = vadd.f32 %v5652, %v5520
        %v5654 = vrot.slane %v5653, 4
        %v5655 = vadd.f32 %v5653, %v5654
        %v5656 = vrot.slane %v5655, 2
        %v5657 = vadd.f32 %v5655, %v5656
        %v5658 = vrot.slane %v5657, 1
        %v5659 = vadd.f32 %v5657, %v5658
        %v5660 = vadd.f32 %v5521, %v5522
        %v5661 = vadd.f32 %v5660, %v5523
        %v5662 = vadd.f32 %v5661, %v5524
        %v5663 = vrot.slane %v5662, 4
        %v5664 = vadd.f32 %v5662, %v5663
        %v5665 = vrot.slane %v5664, 2
        %v5666 = vadd.f32 %v5664, %v5665
        %v5667 = vrot.slane %v5666, 1
        %v5668 = vadd.f32 %v5666, %v5667
        %5685 = vrot.lane.b32.xlu0 %v5533, 64
        %v5686 = vpop.permute.xlu0 %5685
        %5687 = vrot.lane.b32.xlu0 %v5542, 64
        %v5688 = vpop.permute.xlu0 %5687
        %5689 = vrot.lane.b32.xlu0 %v5551, 64
        %v5690 = vpop.permute.xlu0 %5689
        %5691 = vrot.lane.b32.xlu0 %v5560, 64
        %v5692 = vpop.permute.xlu0 %5691
        %5693 = vrot.lane.b32.xlu0 %v5569, 64
        %v5694 = vpop.permute.xlu0 %5693
        %5695 = vrot.lane.b32.xlu0 %v5578, 64
        %v5696 = vpop.permute.xlu0 %5695
        %5697 = vrot.lane.b32.xlu0 %v5587, 64
        %v5698 = vpop.permute.xlu0 %5697
        %5699 = vrot.lane.b32.xlu0 %v5596, 64
        %v5700 = vpop.permute.xlu0 %5699
        %5701 = vrot.lane.b32.xlu0 %v5605, 64
        %v5702 = vpop.permute.xlu0 %5701
        %5703 = vrot.lane.b32.xlu0 %v5614, 64
        %v5704 = vpop.permute.xlu0 %5703
        %5705 = vrot.lane.b32.xlu0 %v5623, 64
        %v5706 = vpop.permute.xlu0 %5705
        %5707 = vrot.lane.b32.xlu0 %v5632, 64
        %v5708 = vpop.permute.xlu0 %5707
        %5709 = vrot.lane.b32.xlu0 %v5641, 64
        %v5710 = vpop.permute.xlu0 %5709
        %5711 = vrot.lane.b32.xlu0 %v5650, 64
        %v5712 = vpop.permute.xlu0 %5711
        %5713 = vrot.lane.b32.xlu0 %v5659, 64
        %v5714 = vpop.permute.xlu0 %5713
        %5715 = vrot.lane.b32.xlu0 %v5668, 64
        %v5716 = vpop.permute.xlu0 %5715
        %v5733 = vadd.f32 %v5533, %v5686
        %v5734 = vadd.f32 %v5542, %v5688
        %v5735 = vadd.f32 %v5551, %v5690
        %v5736 = vadd.f32 %v5560, %v5692
        %v5737 = vadd.f32 %v5569, %v5694
        %v5738 = vadd.f32 %v5578, %v5696
        %v5739 = vadd.f32 %v5587, %v5698
        %v5740 = vadd.f32 %v5596, %v5700
        %v5741 = vadd.f32 %v5605, %v5702
        %v5742 = vadd.f32 %v5614, %v5704
        %v5743 = vadd.f32 %v5623, %v5706
        %v5744 = vadd.f32 %v5632, %v5708
        %v5745 = vadd.f32 %v5641, %v5710
        %v5746 = vadd.f32 %v5650, %v5712
        %v5747 = vadd.f32 %v5659, %v5714
        %v5748 = vadd.f32 %v5668, %v5716
        %v5749 = vmul.f32 %v5733, 0.015625
        %v5750 = vmul.f32 %v5734, 0.015625
        %v5751 = vmul.f32 %v5735, 0.015625
        %v5752 = vmul.f32 %v5736, 0.015625
        %v5753 = vmul.f32 %v5737, 0.015625
        %v5754 = vmul.f32 %v5738, 0.015625
        %v5755 = vmul.f32 %v5739, 0.015625
        %v5756 = vmul.f32 %v5740, 0.015625
        %v5757 = vmul.f32 %v5741, 0.015625
        %v5758 = vmul.f32 %v5742, 0.015625
        %v5759 = vmul.f32 %v5743, 0.015625
        %v5760 = vmul.f32 %v5744, 0.015625
        %v5761 = vmul.f32 %v5745, 0.015625
        %v5762 = vmul.f32 %v5746, 0.015625
        %v5763 = vmul.f32 %v5747, 0.015625
        %v5764 = vmul.f32 %v5748, 0.015625
        %v5765 = vadd.f32 %v5749, 1e-05
        %v5766 = vadd.f32 %v5750, 1e-05
        %v5767 = vadd.f32 %v5751, 1e-05
        %v5768 = vadd.f32 %v5752, 1e-05
        %v5769 = vadd.f32 %v5753, 1e-05
        %v5770 = vadd.f32 %v5754, 1e-05
        %v5771 = vadd.f32 %v5755, 1e-05
        %v5772 = vadd.f32 %v5756, 1e-05
        %v5773 = vadd.f32 %v5757, 1e-05
        %v5774 = vadd.f32 %v5758, 1e-05
        %v5775 = vadd.f32 %v5759, 1e-05
        %v5776 = vadd.f32 %v5760, 1e-05
        %v5777 = vadd.f32 %v5761, 1e-05
        %v5778 = vadd.f32 %v5762, 1e-05
        %v5779 = vadd.f32 %v5763, 1e-05
        %v5780 = vadd.f32 %v5764, 1e-05
        %v5781 = vrsqrt.pop %v5765
        %v5782 = vmul.f32 %v5781, %v5765
        %v5783 = vmul.f32 %v5782, %v5781
        %v5784 = vmul.f32 0.5, %v5783
        %v5785 = vsub.f32 1.5, %v5784
        %v5786 = vmul.f32 %v5781, %v5785
        %vm5787 = vweird.f32 %v5765
        %vm5788 = vweird.f32 %v5781
        %vm5789 = vmor %vm5787, %vm5788
        %v5790 = vsel %vm5789, %v5781, %v5786
        %v5791 = vrsqrt.pop %v5766
        %v5792 = vmul.f32 %v5791, %v5766
        %v5793 = vmul.f32 %v5792, %v5791
        %v5794 = vmul.f32 0.5, %v5793
        %v5795 = vsub.f32 1.5, %v5794
        %v5796 = vmul.f32 %v5791, %v5795
        %vm5797 = vweird.f32 %v5766
        %vm5798 = vweird.f32 %v5791
        %vm5799 = vmor %vm5797, %vm5798
        %v5800 = vsel %vm5799, %v5791, %v5796
        %v5801 = vrsqrt.pop %v5767
        %v5802 = vmul.f32 %v5801, %v5767
        %v5803 = vmul.f32 %v5802, %v5801
        %v5804 = vmul.f32 0.5, %v5803
        %v5805 = vsub.f32 1.5, %v5804
        %v5806 = vmul.f32 %v5801, %v5805
        %vm5807 = vweird.f32 %v5767
        %vm5808 = vweird.f32 %v5801
        %vm5809 = vmor %vm5807, %vm5808
        %v5810 = vsel %vm5809, %v5801, %v5806
        %v5811 = vrsqrt.pop %v5768
        %v5812 = vmul.f32 %v5811, %v5768
        %v5813 = vmul.f32 %v5812, %v5811
        %v5814 = vmul.f32 0.5, %v5813
        %v5815 = vsub.f32 1.5, %v5814
        %v5816 = vmul.f32 %v5811, %v5815
        %vm5817 = vweird.f32 %v5768
        %vm5818 = vweird.f32 %v5811
        %vm5819 = vmor %vm5817, %vm5818
        %v5820 = vsel %vm5819, %v5811, %v5816
        %v5821 = vrsqrt.pop %v5769
        %v5822 = vmul.f32 %v5821, %v5769
        %v5823 = vmul.f32 %v5822, %v5821
        %v5824 = vmul.f32 0.5, %v5823
        %v5825 = vsub.f32 1.5, %v5824
        %v5826 = vmul.f32 %v5821, %v5825
        %vm5827 = vweird.f32 %v5769
        %vm5828 = vweird.f32 %v5821
        %vm5829 = vmor %vm5827, %vm5828
        %v5830 = vsel %vm5829, %v5821, %v5826
        %v5831 = vrsqrt.pop %v5770
        %v5832 = vmul.f32 %v5831, %v5770
        %v5833 = vmul.f32 %v5832, %v5831
        %v5834 = vmul.f32 0.5, %v5833
        %v5835 = vsub.f32 1.5, %v5834
        %v5836 = vmul.f32 %v5831, %v5835
        %vm5837 = vweird.f32 %v5770
        %vm5838 = vweird.f32 %v5831
        %vm5839 = vmor %vm5837, %vm5838
        %v5840 = vsel %vm5839, %v5831, %v5836
        %v5841 = vrsqrt.pop %v5771
        %v5842 = vmul.f32 %v5841, %v5771
        %v5843 = vmul.f32 %v5842, %v5841
        %v5844 = vmul.f32 0.5, %v5843
        %v5845 = vsub.f32 1.5, %v5844
        %v5846 = vmul.f32 %v5841, %v5845
        %vm5847 = vweird.f32 %v5771
        %vm5848 = vweird.f32 %v5841
        %vm5849 = vmor %vm5847, %vm5848
        %v5850 = vsel %vm5849, %v5841, %v5846
        %v5851 = vrsqrt.pop %v5772
        %v5852 = vmul.f32 %v5851, %v5772
        %v5853 = vmul.f32 %v5852, %v5851
        %v5854 = vmul.f32 0.5, %v5853
        %v5855 = vsub.f32 1.5, %v5854
        %v5856 = vmul.f32 %v5851, %v5855
        %vm5857 = vweird.f32 %v5772
        %vm5858 = vweird.f32 %v5851
        %vm5859 = vmor %vm5857, %vm5858
        %v5860 = vsel %vm5859, %v5851, %v5856
        %v5861 = vrsqrt.pop %v5773
        %v5862 = vmul.f32 %v5861, %v5773
        %v5863 = vmul.f32 %v5862, %v5861
        %v5864 = vmul.f32 0.5, %v5863
        %v5865 = vsub.f32 1.5, %v5864
        %v5866 = vmul.f32 %v5861, %v5865
        %vm5867 = vweird.f32 %v5773
        %vm5868 = vweird.f32 %v5861
        %vm5869 = vmor %vm5867, %vm5868
        %v5870 = vsel %vm5869, %v5861, %v5866
        %v5871 = vrsqrt.pop %v5774
        %v5872 = vmul.f32 %v5871, %v5774
        %v5873 = vmul.f32 %v5872, %v5871
        %v5874 = vmul.f32 0.5, %v5873
        %v5875 = vsub.f32 1.5, %v5874
        %v5876 = vmul.f32 %v5871, %v5875
        %vm5877 = vweird.f32 %v5774
        %vm5878 = vweird.f32 %v5871
        %vm5879 = vmor %vm5877, %vm5878
        %v5880 = vsel %vm5879, %v5871, %v5876
        %v5881 = vrsqrt.pop %v5775
        %v5882 = vmul.f32 %v5881, %v5775
        %v5883 = vmul.f32 %v5882, %v5881
        %v5884 = vmul.f32 0.5, %v5883
        %v5885 = vsub.f32 1.5, %v5884
        %v5886 = vmul.f32 %v5881, %v5885
        %vm5887 = vweird.f32 %v5775
        %vm5888 = vweird.f32 %v5881
        %vm5889 = vmor %vm5887, %vm5888
        %v5890 = vsel %vm5889, %v5881, %v5886
        %v5891 = vrsqrt.pop %v5776
        %v5892 = vmul.f32 %v5891, %v5776
        %v5893 = vmul.f32 %v5892, %v5891
        %v5894 = vmul.f32 0.5, %v5893
        %v5895 = vsub.f32 1.5, %v5894
        %v5896 = vmul.f32 %v5891, %v5895
        %vm5897 = vweird.f32 %v5776
        %vm5898 = vweird.f32 %v5891
        %vm5899 = vmor %vm5897, %vm5898
        %v5900 = vsel %vm5899, %v5891, %v5896
        %v5901 = vrsqrt.pop %v5777
        %v5902 = vmul.f32 %v5901, %v5777
        %v5903 = vmul.f32 %v5902, %v5901
        %v5904 = vmul.f32 0.5, %v5903
        %v5905 = vsub.f32 1.5, %v5904
        %v5906 = vmul.f32 %v5901, %v5905
        %vm5907 = vweird.f32 %v5777
        %vm5908 = vweird.f32 %v5901
        %vm5909 = vmor %vm5907, %vm5908
        %v5910 = vsel %vm5909, %v5901, %v5906
        %v5911 = vrsqrt.pop %v5778
        %v5912 = vmul.f32 %v5911, %v5778
        %v5913 = vmul.f32 %v5912, %v5911
        %v5914 = vmul.f32 0.5, %v5913
        %v5915 = vsub.f32 1.5, %v5914
        %v5916 = vmul.f32 %v5911, %v5915
        %vm5917 = vweird.f32 %v5778
        %vm5918 = vweird.f32 %v5911
        %vm5919 = vmor %vm5917, %vm5918
        %v5920 = vsel %vm5919, %v5911, %v5916
        %v5921 = vrsqrt.pop %v5779
        %v5922 = vmul.f32 %v5921, %v5779
        %v5923 = vmul.f32 %v5922, %v5921
        %v5924 = vmul.f32 0.5, %v5923
        %v5925 = vsub.f32 1.5, %v5924
        %v5926 = vmul.f32 %v5921, %v5925
        %vm5927 = vweird.f32 %v5779
        %vm5928 = vweird.f32 %v5921
        %vm5929 = vmor %vm5927, %vm5928
        %v5930 = vsel %vm5929, %v5921, %v5926
        %v5931 = vrsqrt.pop %v5780
        %v5932 = vmul.f32 %v5931, %v5780
        %v5933 = vmul.f32 %v5932, %v5931
        %v5934 = vmul.f32 0.5, %v5933
        %v5935 = vsub.f32 1.5, %v5934
        %v5936 = vmul.f32 %v5931, %v5935
        %vm5937 = vweird.f32 %v5780
        %vm5938 = vweird.f32 %v5931
        %vm5939 = vmor %vm5937, %vm5938
        %v5940 = vsel %vm5939, %v5931, %v5936
        %v5957 = vrot.slane %v5800, 7
        %v5958 = vsel %vm2240, %v5957, %v5790
        %v5959 = vrot.slane %v5810, 6
        %v5960 = vsel %vm2243, %v5959, %v5958
        %v5961 = vrot.slane %v5820, 5
        %v5962 = vsel %vm2246, %v5961, %v5960
        %v5963 = vrot.slane %v5830, 4
        %v5964 = vsel %vm2249, %v5963, %v5962
        %v5965 = vrot.slane %v5840, 3
        %v5966 = vsel %vm2252, %v5965, %v5964
        %v5967 = vrot.slane %v5850, 2
        %v5968 = vsel %vm2255, %v5967, %v5966
        %v5969 = vrot.slane %v5860, 1
        %v5970 = vsel %vm2258, %v5969, %v5968
        %v5971 = vrot.slane %v5880, 7
        %v5972 = vsel %vm2240, %v5971, %v5870
        %v5973 = vrot.slane %v5890, 6
        %v5974 = vsel %vm2243, %v5973, %v5972
        %v5975 = vrot.slane %v5900, 5
        %v5976 = vsel %vm2246, %v5975, %v5974
        %v5977 = vrot.slane %v5910, 4
        %v5978 = vsel %vm2249, %v5977, %v5976
        %v5979 = vrot.slane %v5920, 3
        %v5980 = vsel %vm2252, %v5979, %v5978
        %v5981 = vrot.slane %v5930, 2
        %v5982 = vsel %vm2255, %v5981, %v5980
        %v5983 = vrot.slane %v5940, 1
        %v5984 = vsel %vm2258, %v5983, %v5982
        %5987 = vrot.lane.b32.xlu0 %v5970, 64
        %v5988 = vpop.permute.xlu0 %5987
        %5989 = vrot.lane.b32.xlu0 %v5984, 64
        %v5990 = vpop.permute.xlu0 %5989
        %v5993 = vsel %vm2282, %v5970, %v5988
        %v5994 = vsel %vm2282, %v5984, %v5990
        %v5997 = vrot.slane %v5993, 1
        %v5998 = vrot.slane %v5993, 2
        %v5999 = vrot.slane %v5993, 3
        %v6000 = vrot.slane %v5993, 4
        %v6001 = vrot.slane %v5993, 5
        %v6002 = vrot.slane %v5993, 6
        %v6003 = vrot.slane %v5993, 7
        %v6004 = vrot.slane %v5994, 1
        %v6005 = vrot.slane %v5994, 2
        %v6006 = vrot.slane %v5994, 3
        %v6007 = vrot.slane %v5994, 4
        %v6008 = vrot.slane %v5994, 5
        %v6009 = vrot.slane %v5994, 6
        %v6010 = vrot.slane %v5994, 7
        %v6011 = vperm.slane %v5993, 0
        %v6012 = vperm.slane %v5997, 0
        %v6013 = vperm.slane %v5998, 0
        %v6014 = vperm.slane %v5999, 0
        %v6015 = vperm.slane %v6000, 0
        %v6016 = vperm.slane %v6001, 0
        %v6017 = vperm.slane %v6002, 0
        %v6018 = vperm.slane %v6003, 0
        %v6019 = vperm.slane %v5994, 0
        %v6020 = vperm.slane %v6004, 0
        %v6021 = vperm.slane %v6005, 0
        %v6022 = vperm.slane %v6006, 0
        %v6023 = vperm.slane %v6007, 0
        %v6024 = vperm.slane %v6008, 0
        %v6025 = vperm.slane %v6009, 0
        %v6026 = vperm.slane %v6010, 0
        %v6043 = vmul.f32 %v5397, %v6011
        %v6044 = vmul.f32 %v5398, %v6011
        %v6045 = vmul.f32 %v5399, %v6011
        %v6046 = vmul.f32 %v5400, %v6011
        %v6047 = vmul.f32 %v5401, %v6012
        %v6048 = vmul.f32 %v5402, %v6012
        %v6049 = vmul.f32 %v5403, %v6012
        %v6050 = vmul.f32 %v5404, %v6012
        %v6051 = vmul.f32 %v5405, %v6013
        %v6052 = vmul.f32 %v5406, %v6013
        %v6053 = vmul.f32 %v5407, %v6013
        %v6054 = vmul.f32 %v5408, %v6013
        %v6055 = vmul.f32 %v5409, %v6014
        %v6056 = vmul.f32 %v5410, %v6014
        %v6057 = vmul.f32 %v5411, %v6014
        %v6058 = vmul.f32 %v5412, %v6014
        %v6059 = vmul.f32 %v5413, %v6015
        %v6060 = vmul.f32 %v5414, %v6015
        %v6061 = vmul.f32 %v5415, %v6015
        %v6062 = vmul.f32 %v5416, %v6015
        %v6063 = vmul.f32 %v5417, %v6016
        %v6064 = vmul.f32 %v5418, %v6016
        %v6065 = vmul.f32 %v5419, %v6016
        %v6066 = vmul.f32 %v5420, %v6016
        %v6067 = vmul.f32 %v5421, %v6017
        %v6068 = vmul.f32 %v5422, %v6017
        %v6069 = vmul.f32 %v5423, %v6017
        %v6070 = vmul.f32 %v5424, %v6017
        %v6071 = vmul.f32 %v5425, %v6018
        %v6072 = vmul.f32 %v5426, %v6018
        %v6073 = vmul.f32 %v5427, %v6018
        %v6074 = vmul.f32 %v5428, %v6018
        %v6075 = vmul.f32 %v5429, %v6019
        %v6076 = vmul.f32 %v5430, %v6019
        %v6077 = vmul.f32 %v5431, %v6019
        %v6078 = vmul.f32 %v5432, %v6019
        %v6079 = vmul.f32 %v5433, %v6020
        %v6080 = vmul.f32 %v5434, %v6020
        %v6081 = vmul.f32 %v5435, %v6020
        %v6082 = vmul.f32 %v5436, %v6020
        %v6083 = vmul.f32 %v5437, %v6021
        %v6084 = vmul.f32 %v5438, %v6021
        %v6085 = vmul.f32 %v5439, %v6021
        %v6086 = vmul.f32 %v5440, %v6021
        %v6087 = vmul.f32 %v5441, %v6022
        %v6088 = vmul.f32 %v5442, %v6022
        %v6089 = vmul.f32 %v5443, %v6022
        %v6090 = vmul.f32 %v5444, %v6022
        %v6091 = vmul.f32 %v5445, %v6023
        %v6092 = vmul.f32 %v5446, %v6023
        %v6093 = vmul.f32 %v5447, %v6023
        %v6094 = vmul.f32 %v5448, %v6023
        %v6095 = vmul.f32 %v5449, %v6024
        %v6096 = vmul.f32 %v5450, %v6024
        %v6097 = vmul.f32 %v5451, %v6024
        %v6098 = vmul.f32 %v5452, %v6024
        %v6099 = vmul.f32 %v5453, %v6025
        %v6100 = vmul.f32 %v5454, %v6025
        %v6101 = vmul.f32 %v5455, %v6025
        %v6102 = vmul.f32 %v5456, %v6025
        %v6103 = vmul.f32 %v5457, %v6026
        %v6104 = vmul.f32 %v5458, %v6026
        %v6105 = vmul.f32 %v5459, %v6026
        %v6106 = vmul.f32 %v5460, %v6026
        %v6107 = vmul.f32 %v6043, %v1979
        %v6108 = vmul.f32 %v6044, %v1980
        %v6109 = vmul.f32 %v6045, %v1981
        %v6110 = vmul.f32 %v6046, %v1982
        %v6111 = vmul.f32 %v6047, %v1979
        %v6112 = vmul.f32 %v6048, %v1980
        %v6113 = vmul.f32 %v6049, %v1981
        %v6114 = vmul.f32 %v6050, %v1982
        %v6115 = vmul.f32 %v6051, %v1979
        %v6116 = vmul.f32 %v6052, %v1980
        %v6117 = vmul.f32 %v6053, %v1981
        %v6118 = vmul.f32 %v6054, %v1982
        %v6119 = vmul.f32 %v6055, %v1979
        %v6120 = vmul.f32 %v6056, %v1980
        %v6121 = vmul.f32 %v6057, %v1981
        %v6122 = vmul.f32 %v6058, %v1982
        %v6123 = vmul.f32 %v6059, %v1979
        %v6124 = vmul.f32 %v6060, %v1980
        %v6125 = vmul.f32 %v6061, %v1981
        %v6126 = vmul.f32 %v6062, %v1982
        %v6127 = vmul.f32 %v6063, %v1979
        %v6128 = vmul.f32 %v6064, %v1980
        %v6129 = vmul.f32 %v6065, %v1981
        %v6130 = vmul.f32 %v6066, %v1982
        %v6131 = vmul.f32 %v6067, %v1979
        %v6132 = vmul.f32 %v6068, %v1980
        %v6133 = vmul.f32 %v6069, %v1981
        %v6134 = vmul.f32 %v6070, %v1982
        %v6135 = vmul.f32 %v6071, %v1979
        %v6136 = vmul.f32 %v6072, %v1980
        %v6137 = vmul.f32 %v6073, %v1981
        %v6138 = vmul.f32 %v6074, %v1982
        %v6139 = vmul.f32 %v6075, %v1979
        %v6140 = vmul.f32 %v6076, %v1980
        %v6141 = vmul.f32 %v6077, %v1981
        %v6142 = vmul.f32 %v6078, %v1982
        %v6143 = vmul.f32 %v6079, %v1979
        %v6144 = vmul.f32 %v6080, %v1980
        %v6145 = vmul.f32 %v6081, %v1981
        %v6146 = vmul.f32 %v6082, %v1982
        %v6147 = vmul.f32 %v6083, %v1979
        %v6148 = vmul.f32 %v6084, %v1980
        %v6149 = vmul.f32 %v6085, %v1981
        %v6150 = vmul.f32 %v6086, %v1982
        %v6151 = vmul.f32 %v6087, %v1979
        %v6152 = vmul.f32 %v6088, %v1980
        %v6153 = vmul.f32 %v6089, %v1981
        %v6154 = vmul.f32 %v6090, %v1982
        %v6155 = vmul.f32 %v6091, %v1979
        %v6156 = vmul.f32 %v6092, %v1980
        %v6157 = vmul.f32 %v6093, %v1981
        %v6158 = vmul.f32 %v6094, %v1982
        %v6159 = vmul.f32 %v6095, %v1979
        %v6160 = vmul.f32 %v6096, %v1980
        %v6161 = vmul.f32 %v6097, %v1981
        %v6162 = vmul.f32 %v6098, %v1982
        %v6163 = vmul.f32 %v6099, %v1979
        %v6164 = vmul.f32 %v6100, %v1980
        %v6165 = vmul.f32 %v6101, %v1981
        %v6166 = vmul.f32 %v6102, %v1982
        %v6167 = vmul.f32 %v6103, %v1979
        %v6168 = vmul.f32 %v6104, %v1980
        %v6169 = vmul.f32 %v6105, %v1981
        %v6170 = vmul.f32 %v6106, %v1982
        %v6171 = vadd.f32 %v4927, %v6107
        %v6172 = vadd.f32 %v4928, %v6108
        %v6173 = vadd.f32 %v4929, %v6109
        %v6174 = vadd.f32 %v4930, %v6110
        %v6175 = vadd.f32 %v4931, %v6111
        %v6176 = vadd.f32 %v4932, %v6112
        %v6177 = vadd.f32 %v4933, %v6113
        %v6178 = vadd.f32 %v4934, %v6114
        %v6179 = vadd.f32 %v4935, %v6115
        %v6180 = vadd.f32 %v4936, %v6116
        %v6181 = vadd.f32 %v4937, %v6117
        %v6182 = vadd.f32 %v4938, %v6118
        %v6183 = vadd.f32 %v4939, %v6119
        %v6184 = vadd.f32 %v4940, %v6120
        %v6185 = vadd.f32 %v4941, %v6121
        %v6186 = vadd.f32 %v4942, %v6122
        %v6187 = vadd.f32 %v4943, %v6123
        %v6188 = vadd.f32 %v4944, %v6124
        %v6189 = vadd.f32 %v4945, %v6125
        %v6190 = vadd.f32 %v4946, %v6126
        %v6191 = vadd.f32 %v4947, %v6127
        %v6192 = vadd.f32 %v4948, %v6128
        %v6193 = vadd.f32 %v4949, %v6129
        %v6194 = vadd.f32 %v4950, %v6130
        %v6195 = vadd.f32 %v4951, %v6131
        %v6196 = vadd.f32 %v4952, %v6132
        %v6197 = vadd.f32 %v4953, %v6133
        %v6198 = vadd.f32 %v4954, %v6134
        %v6199 = vadd.f32 %v4955, %v6135
        %v6200 = vadd.f32 %v4956, %v6136
        %v6201 = vadd.f32 %v4957, %v6137
        %v6202 = vadd.f32 %v4958, %v6138
        %v6203 = vadd.f32 %v4959, %v6139
        %v6204 = vadd.f32 %v4960, %v6140
        %v6205 = vadd.f32 %v4961, %v6141
        %v6206 = vadd.f32 %v4962, %v6142
        %v6207 = vadd.f32 %v4963, %v6143
        %v6208 = vadd.f32 %v4964, %v6144
        %v6209 = vadd.f32 %v4965, %v6145
        %v6210 = vadd.f32 %v4966, %v6146
        %v6211 = vadd.f32 %v4967, %v6147
        %v6212 = vadd.f32 %v4968, %v6148
        %v6213 = vadd.f32 %v4969, %v6149
        %v6214 = vadd.f32 %v4970, %v6150
        %v6215 = vadd.f32 %v4971, %v6151
        %v6216 = vadd.f32 %v4972, %v6152
        %v6217 = vadd.f32 %v4973, %v6153
        %v6218 = vadd.f32 %v4974, %v6154
        %v6219 = vadd.f32 %v4975, %v6155
        %v6220 = vadd.f32 %v4976, %v6156
        %v6221 = vadd.f32 %v4977, %v6157
        %v6222 = vadd.f32 %v4978, %v6158
        %v6223 = vadd.f32 %v4979, %v6159
        %v6224 = vadd.f32 %v4980, %v6160
        %v6225 = vadd.f32 %v4981, %v6161
        %v6226 = vadd.f32 %v4982, %v6162
        %v6227 = vadd.f32 %v4983, %v6163
        %v6228 = vadd.f32 %v4984, %v6164
        %v6229 = vadd.f32 %v4985, %v6165
        %v6230 = vadd.f32 %v4986, %v6166
        %v6231 = vadd.f32 %v4987, %v6167
        %v6232 = vadd.f32 %v4988, %v6168
        %v6233 = vadd.f32 %v4989, %v6169
        %v6234 = vadd.f32 %v4990, %v6170
        %6299 = vrot.lane.b32.xlu0 %v6107, 64
        %v6300 = vpop.permute.xlu0 %6299
        %6301 = vrot.lane.b32.xlu0 %v6108, 64
        %v6302 = vpop.permute.xlu0 %6301
        %6303 = vrot.lane.b32.xlu0 %v6109, 64
        %v6304 = vpop.permute.xlu0 %6303
        %6305 = vrot.lane.b32.xlu0 %v6110, 64
        %v6306 = vpop.permute.xlu0 %6305
        %6307 = vrot.lane.b32.xlu0 %v6111, 64
        %v6308 = vpop.permute.xlu0 %6307
        %6309 = vrot.lane.b32.xlu0 %v6112, 64
        %v6310 = vpop.permute.xlu0 %6309
        %6311 = vrot.lane.b32.xlu0 %v6113, 64
        %v6312 = vpop.permute.xlu0 %6311
        %6313 = vrot.lane.b32.xlu0 %v6114, 64
        %v6314 = vpop.permute.xlu0 %6313
        %6315 = vrot.lane.b32.xlu0 %v6115, 64
        %v6316 = vpop.permute.xlu0 %6315
        %6317 = vrot.lane.b32.xlu0 %v6116, 64
        %v6318 = vpop.permute.xlu0 %6317
        %6319 = vrot.lane.b32.xlu0 %v6117, 64
        %v6320 = vpop.permute.xlu0 %6319
        %6321 = vrot.lane.b32.xlu0 %v6118, 64
        %v6322 = vpop.permute.xlu0 %6321
        %6323 = vrot.lane.b32.xlu0 %v6119, 64
        %v6324 = vpop.permute.xlu0 %6323
        %6325 = vrot.lane.b32.xlu0 %v6120, 64
        %v6326 = vpop.permute.xlu0 %6325
        %6327 = vrot.lane.b32.xlu0 %v6121, 64
        %v6328 = vpop.permute.xlu0 %6327
        %6329 = vrot.lane.b32.xlu0 %v6122, 64
        %v6330 = vpop.permute.xlu0 %6329
        %6331 = vrot.lane.b32.xlu0 %v6123, 64
        %v6332 = vpop.permute.xlu0 %6331
        %6333 = vrot.lane.b32.xlu0 %v6124, 64
        %v6334 = vpop.permute.xlu0 %6333
        %6335 = vrot.lane.b32.xlu0 %v6125, 64
        %v6336 = vpop.permute.xlu0 %6335
        %6337 = vrot.lane.b32.xlu0 %v6126, 64
        %v6338 = vpop.permute.xlu0 %6337
        %6339 = vrot.lane.b32.xlu0 %v6127, 64
        %v6340 = vpop.permute.xlu0 %6339
        %6341 = vrot.lane.b32.xlu0 %v6128, 64
        %v6342 = vpop.permute.xlu0 %6341
        %6343 = vrot.lane.b32.xlu0 %v6129, 64
        %v6344 = vpop.permute.xlu0 %6343
        %6345 = vrot.lane.b32.xlu0 %v6130, 64
        %v6346 = vpop.permute.xlu0 %6345
        %6347 = vrot.lane.b32.xlu0 %v6131, 64
        %v6348 = vpop.permute.xlu0 %6347
        %6349 = vrot.lane.b32.xlu0 %v6132, 64
        %v6350 = vpop.permute.xlu0 %6349
        %6351 = vrot.lane.b32.xlu0 %v6133, 64
        %v6352 = vpop.permute.xlu0 %6351
        %6353 = vrot.lane.b32.xlu0 %v6134, 64
        %v6354 = vpop.permute.xlu0 %6353
        %6355 = vrot.lane.b32.xlu0 %v6135, 64
        %v6356 = vpop.permute.xlu0 %6355
        %6357 = vrot.lane.b32.xlu0 %v6136, 64
        %v6358 = vpop.permute.xlu0 %6357
        %6359 = vrot.lane.b32.xlu0 %v6137, 64
        %v6360 = vpop.permute.xlu0 %6359
        %6361 = vrot.lane.b32.xlu0 %v6138, 64
        %v6362 = vpop.permute.xlu0 %6361
        %6363 = vrot.lane.b32.xlu0 %v6139, 64
        %v6364 = vpop.permute.xlu0 %6363
        %6365 = vrot.lane.b32.xlu0 %v6140, 64
        %v6366 = vpop.permute.xlu0 %6365
        %6367 = vrot.lane.b32.xlu0 %v6141, 64
        %v6368 = vpop.permute.xlu0 %6367
        %6369 = vrot.lane.b32.xlu0 %v6142, 64
        %v6370 = vpop.permute.xlu0 %6369
        %6371 = vrot.lane.b32.xlu0 %v6143, 64
        %v6372 = vpop.permute.xlu0 %6371
        %6373 = vrot.lane.b32.xlu0 %v6144, 64
        %v6374 = vpop.permute.xlu0 %6373
        %6375 = vrot.lane.b32.xlu0 %v6145, 64
        %v6376 = vpop.permute.xlu0 %6375
        %6377 = vrot.lane.b32.xlu0 %v6146, 64
        %v6378 = vpop.permute.xlu0 %6377
        %6379 = vrot.lane.b32.xlu0 %v6147, 64
        %v6380 = vpop.permute.xlu0 %6379
        %6381 = vrot.lane.b32.xlu0 %v6148, 64
        %v6382 = vpop.permute.xlu0 %6381
        %6383 = vrot.lane.b32.xlu0 %v6149, 64
        %v6384 = vpop.permute.xlu0 %6383
        %6385 = vrot.lane.b32.xlu0 %v6150, 64
        %v6386 = vpop.permute.xlu0 %6385
        %6387 = vrot.lane.b32.xlu0 %v6151, 64
        %v6388 = vpop.permute.xlu0 %6387
        %6389 = vrot.lane.b32.xlu0 %v6152, 64
        %v6390 = vpop.permute.xlu0 %6389
        %6391 = vrot.lane.b32.xlu0 %v6153, 64
        %v6392 = vpop.permute.xlu0 %6391
        %6393 = vrot.lane.b32.xlu0 %v6154, 64
        %v6394 = vpop.permute.xlu0 %6393
        %6395 = vrot.lane.b32.xlu0 %v6155, 64
        %v6396 = vpop.permute.xlu0 %6395
        %6397 = vrot.lane.b32.xlu0 %v6156, 64
        %v6398 = vpop.permute.xlu0 %6397
        %6399 = vrot.lane.b32.xlu0 %v6157, 64
        %v6400 = vpop.permute.xlu0 %6399
        %6401 = vrot.lane.b32.xlu0 %v6158, 64
        %v6402 = vpop.permute.xlu0 %6401
        %6403 = vrot.lane.b32.xlu0 %v6159, 64
        %v6404 = vpop.permute.xlu0 %6403
        %6405 = vrot.lane.b32.xlu0 %v6160, 64
        %v6406 = vpop.permute.xlu0 %6405
        %6407 = vrot.lane.b32.xlu0 %v6161, 64
        %v6408 = vpop.permute.xlu0 %6407
        %6409 = vrot.lane.b32.xlu0 %v6162, 64
        %v6410 = vpop.permute.xlu0 %6409
        %6411 = vrot.lane.b32.xlu0 %v6163, 64
        %v6412 = vpop.permute.xlu0 %6411
        %6413 = vrot.lane.b32.xlu0 %v6164, 64
        %v6414 = vpop.permute.xlu0 %6413
        %6415 = vrot.lane.b32.xlu0 %v6165, 64
        %v6416 = vpop.permute.xlu0 %6415
        %6417 = vrot.lane.b32.xlu0 %v6166, 64
        %v6418 = vpop.permute.xlu0 %6417
        %6419 = vrot.lane.b32.xlu0 %v6167, 64
        %v6420 = vpop.permute.xlu0 %6419
        %6421 = vrot.lane.b32.xlu0 %v6168, 64
        %v6422 = vpop.permute.xlu0 %6421
        %6423 = vrot.lane.b32.xlu0 %v6169, 64
        %v6424 = vpop.permute.xlu0 %6423
        %6425 = vrot.lane.b32.xlu0 %v6170, 64
        %v6426 = vpop.permute.xlu0 %6425
        %v6491 = vadd.f32 %v6171, %v6300
        %v6492 = vadd.f32 %v6172, %v6302
        %v6493 = vadd.f32 %v6173, %v6304
        %v6494 = vadd.f32 %v6174, %v6306
        %v6495 = vadd.f32 %v6175, %v6308
        %v6496 = vadd.f32 %v6176, %v6310
        %v6497 = vadd.f32 %v6177, %v6312
        %v6498 = vadd.f32 %v6178, %v6314
        %v6499 = vadd.f32 %v6179, %v6316
        %v6500 = vadd.f32 %v6180, %v6318
        %v6501 = vadd.f32 %v6181, %v6320
        %v6502 = vadd.f32 %v6182, %v6322
        %v6503 = vadd.f32 %v6183, %v6324
        %v6504 = vadd.f32 %v6184, %v6326
        %v6505 = vadd.f32 %v6185, %v6328
        %v6506 = vadd.f32 %v6186, %v6330
        %v6507 = vadd.f32 %v6187, %v6332
        %v6508 = vadd.f32 %v6188, %v6334
        %v6509 = vadd.f32 %v6189, %v6336
        %v6510 = vadd.f32 %v6190, %v6338
        %v6511 = vadd.f32 %v6191, %v6340
        %v6512 = vadd.f32 %v6192, %v6342
        %v6513 = vadd.f32 %v6193, %v6344
        %v6514 = vadd.f32 %v6194, %v6346
        %v6515 = vadd.f32 %v6195, %v6348
        %v6516 = vadd.f32 %v6196, %v6350
        %v6517 = vadd.f32 %v6197, %v6352
        %v6518 = vadd.f32 %v6198, %v6354
        %v6519 = vadd.f32 %v6199, %v6356
        %v6520 = vadd.f32 %v6200, %v6358
        %v6521 = vadd.f32 %v6201, %v6360
        %v6522 = vadd.f32 %v6202, %v6362
        %v6523 = vadd.f32 %v6203, %v6364
        %v6524 = vadd.f32 %v6204, %v6366
        %v6525 = vadd.f32 %v6205, %v6368
        %v6526 = vadd.f32 %v6206, %v6370
        %v6527 = vadd.f32 %v6207, %v6372
        %v6528 = vadd.f32 %v6208, %v6374
        %v6529 = vadd.f32 %v6209, %v6376
        %v6530 = vadd.f32 %v6210, %v6378
        %v6531 = vadd.f32 %v6211, %v6380
        %v6532 = vadd.f32 %v6212, %v6382
        %v6533 = vadd.f32 %v6213, %v6384
        %v6534 = vadd.f32 %v6214, %v6386
        %v6535 = vadd.f32 %v6215, %v6388
        %v6536 = vadd.f32 %v6216, %v6390
        %v6537 = vadd.f32 %v6217, %v6392
        %v6538 = vadd.f32 %v6218, %v6394
        %v6539 = vadd.f32 %v6219, %v6396
        %v6540 = vadd.f32 %v6220, %v6398
        %v6541 = vadd.f32 %v6221, %v6400
        %v6542 = vadd.f32 %v6222, %v6402
        %v6543 = vadd.f32 %v6223, %v6404
        %v6544 = vadd.f32 %v6224, %v6406
        %v6545 = vadd.f32 %v6225, %v6408
        %v6546 = vadd.f32 %v6226, %v6410
        %v6547 = vadd.f32 %v6227, %v6412
        %v6548 = vadd.f32 %v6228, %v6414
        %v6549 = vadd.f32 %v6229, %v6416
        %v6550 = vadd.f32 %v6230, %v6418
        %v6551 = vadd.f32 %v6231, %v6420
        %v6552 = vadd.f32 %v6232, %v6422
        %v6553 = vadd.f32 %v6233, %v6424
        %v6554 = vadd.f32 %v6234, %v6426
        %v6555 = vadd.f32 %v1386, %v1820
        %v6556 = vadd.f32 %v1388, %v1822
        %v6557 = vadd.f32 %v1391, %v1825
        %v6558 = vadd.f32 %v1393, %v1827
        %v6559 = vadd.f32 %v1396, %v1830
        %v6560 = vadd.f32 %v1398, %v1832
        %v6561 = vadd.f32 %v1401, %v1835
        %v6562 = vadd.f32 %v1403, %v1837
        %v6563 = vadd.f32 %v1406, %v1840
        %v6564 = vadd.f32 %v1408, %v1842
        %v6565 = vadd.f32 %v1411, %v1845
        %v6566 = vadd.f32 %v1413, %v1847
        %v6567 = vadd.f32 %v1416, %v1850
        %v6568 = vadd.f32 %v1418, %v1852
        %v6569 = vadd.f32 %v1421, %v1855
        %v6570 = vadd.f32 %v1423, %v1857
        %v6571 = vadd.f32 %v1426, %v1860
        %v6572 = vadd.f32 %v1428, %v1862
        %v6573 = vadd.f32 %v1431, %v1865
        %v6574 = vadd.f32 %v1433, %v1867
        %v6575 = vadd.f32 %v1436, %v1870
        %v6576 = vadd.f32 %v1438, %v1872
        %v6577 = vadd.f32 %v1441, %v1875
        %v6578 = vadd.f32 %v1443, %v1877
        %v6579 = vadd.f32 %v1446, %v1880
        %v6580 = vadd.f32 %v1448, %v1882
        %v6581 = vadd.f32 %v1451, %v1885
        %v6582 = vadd.f32 %v1453, %v1887
        %v6583 = vadd.f32 %v1456, %v1890
        %v6584 = vadd.f32 %v1458, %v1892
        %v6585 = vadd.f32 %v1461, %v1895
        %v6586 = vadd.f32 %v1463, %v1897
        %v6587 = vadd.f32 %v1466, %v1900
        %v6588 = vadd.f32 %v1468, %v1902
        %v6589 = vadd.f32 %v1471, %v1905
        %v6590 = vadd.f32 %v1473, %v1907
        %v6591 = vadd.f32 %v1476, %v1910
        %v6592 = vadd.f32 %v1478, %v1912
        %v6593 = vadd.f32 %v1481, %v1915
        %v6594 = vadd.f32 %v1483, %v1917
        %v6595 = vadd.f32 %v1486, %v1920
        %v6596 = vadd.f32 %v1488, %v1922
        %v6597 = vadd.f32 %v1491, %v1925
        %v6598 = vadd.f32 %v1493, %v1927
        %v6599 = vadd.f32 %v1496, %v1930
        %v6600 = vadd.f32 %v1498, %v1932
        %v6601 = vadd.f32 %v1501, %v1935
        %v6602 = vadd.f32 %v1503, %v1937
        %v6603 = vadd.f32 %v1506, %v1940
        %v6604 = vadd.f32 %v1508, %v1942
        %v6605 = vadd.f32 %v1511, %v1945
        %v6606 = vadd.f32 %v1513, %v1947
        %v6607 = vadd.f32 %v1516, %v1950
        %v6608 = vadd.f32 %v1518, %v1952
        %v6609 = vadd.f32 %v1521, %v1955
        %v6610 = vadd.f32 %v1523, %v1957
        %v6611 = vadd.f32 %v1526, %v1960
        %v6612 = vadd.f32 %v1528, %v1962
        %v6613 = vadd.f32 %v1531, %v1965
        %v6614 = vadd.f32 %v1533, %v1967
        %v6615 = vadd.f32 %v1536, %v1970
        %v6616 = vadd.f32 %v1538, %v1972
        %v6617 = vadd.f32 %v1541, %v1975
        %v6618 = vadd.f32 %v1543, %v1977
        %v6619 = vadd.f32 %v6555, %v6556
        %v6620 = vadd.f32 %v6619, %v6557
        %v6621 = vadd.f32 %v6620, %v6558
        %v6622 = vrot.slane %v6621, 4
        %v6623 = vadd.f32 %v6621, %v6622
        %v6624 = vrot.slane %v6623, 2
        %v6625 = vadd.f32 %v6623, %v6624
        %v6626 = vrot.slane %v6625, 1
        %v6627 = vadd.f32 %v6625, %v6626
        %v6628 = vadd.f32 %v6559, %v6560
        %v6629 = vadd.f32 %v6628, %v6561
        %v6630 = vadd.f32 %v6629, %v6562
        %v6631 = vrot.slane %v6630, 4
        %v6632 = vadd.f32 %v6630, %v6631
        %v6633 = vrot.slane %v6632, 2
        %v6634 = vadd.f32 %v6632, %v6633
        %v6635 = vrot.slane %v6634, 1
        %v6636 = vadd.f32 %v6634, %v6635
        %v6637 = vadd.f32 %v6563, %v6564
        %v6638 = vadd.f32 %v6637, %v6565
        %v6639 = vadd.f32 %v6638, %v6566
        %v6640 = vrot.slane %v6639, 4
        %v6641 = vadd.f32 %v6639, %v6640
        %v6642 = vrot.slane %v6641, 2
        %v6643 = vadd.f32 %v6641, %v6642
        %v6644 = vrot.slane %v6643, 1
        %v6645 = vadd.f32 %v6643, %v6644
        %v6646 = vadd.f32 %v6567, %v6568
        %v6647 = vadd.f32 %v6646, %v6569
        %v6648 = vadd.f32 %v6647, %v6570
        %v6649 = vrot.slane %v6648, 4
        %v6650 = vadd.f32 %v6648, %v6649
        %v6651 = vrot.slane %v6650, 2
        %v6652 = vadd.f32 %v6650, %v6651
        %v6653 = vrot.slane %v6652, 1
        %v6654 = vadd.f32 %v6652, %v6653
        %v6655 = vadd.f32 %v6571, %v6572
        %v6656 = vadd.f32 %v6655, %v6573
        %v6657 = vadd.f32 %v6656, %v6574
        %v6658 = vrot.slane %v6657, 4
        %v6659 = vadd.f32 %v6657, %v6658
        %v6660 = vrot.slane %v6659, 2
        %v6661 = vadd.f32 %v6659, %v6660
        %v6662 = vrot.slane %v6661, 1
        %v6663 = vadd.f32 %v6661, %v6662
        %v6664 = vadd.f32 %v6575, %v6576
        %v6665 = vadd.f32 %v6664, %v6577
        %v6666 = vadd.f32 %v6665, %v6578
        %v6667 = vrot.slane %v6666, 4
        %v6668 = vadd.f32 %v6666, %v6667
        %v6669 = vrot.slane %v6668, 2
        %v6670 = vadd.f32 %v6668, %v6669
        %v6671 = vrot.slane %v6670, 1
        %v6672 = vadd.f32 %v6670, %v6671
        %v6673 = vadd.f32 %v6579, %v6580
        %v6674 = vadd.f32 %v6673, %v6581
        %v6675 = vadd.f32 %v6674, %v6582
        %v6676 = vrot.slane %v6675, 4
        %v6677 = vadd.f32 %v6675, %v6676
        %v6678 = vrot.slane %v6677, 2
        %v6679 = vadd.f32 %v6677, %v6678
        %v6680 = vrot.slane %v6679, 1
        %v6681 = vadd.f32 %v6679, %v6680
        %v6682 = vadd.f32 %v6583, %v6584
        %v6683 = vadd.f32 %v6682, %v6585
        %v6684 = vadd.f32 %v6683, %v6586
        %v6685 = vrot.slane %v6684, 4
        %v6686 = vadd.f32 %v6684, %v6685
        %v6687 = vrot.slane %v6686, 2
        %v6688 = vadd.f32 %v6686, %v6687
        %v6689 = vrot.slane %v6688, 1
        %v6690 = vadd.f32 %v6688, %v6689
        %v6691 = vadd.f32 %v6587, %v6588
        %v6692 = vadd.f32 %v6691, %v6589
        %v6693 = vadd.f32 %v6692, %v6590
        %v6694 = vrot.slane %v6693, 4
        %v6695 = vadd.f32 %v6693, %v6694
        %v6696 = vrot.slane %v6695, 2
        %v6697 = vadd.f32 %v6695, %v6696
        %v6698 = vrot.slane %v6697, 1
        %v6699 = vadd.f32 %v6697, %v6698
        %v6700 = vadd.f32 %v6591, %v6592
        %v6701 = vadd.f32 %v6700, %v6593
        %v6702 = vadd.f32 %v6701, %v6594
        %v6703 = vrot.slane %v6702, 4
        %v6704 = vadd.f32 %v6702, %v6703
        %v6705 = vrot.slane %v6704, 2
        %v6706 = vadd.f32 %v6704, %v6705
        %v6707 = vrot.slane %v6706, 1
        %v6708 = vadd.f32 %v6706, %v6707
        %v6709 = vadd.f32 %v6595, %v6596
        %v6710 = vadd.f32 %v6709, %v6597
        %v6711 = vadd.f32 %v6710, %v6598
        %v6712 = vrot.slane %v6711, 4
        %v6713 = vadd.f32 %v6711, %v6712
        %v6714 = vrot.slane %v6713, 2
        %v6715 = vadd.f32 %v6713, %v6714
        %v6716 = vrot.slane %v6715, 1
        %v6717 = vadd.f32 %v6715, %v6716
        %v6718 = vadd.f32 %v6599, %v6600
        %v6719 = vadd.f32 %v6718, %v6601
        %v6720 = vadd.f32 %v6719, %v6602
        %v6721 = vrot.slane %v6720, 4
        %v6722 = vadd.f32 %v6720, %v6721
        %v6723 = vrot.slane %v6722, 2
        %v6724 = vadd.f32 %v6722, %v6723
        %v6725 = vrot.slane %v6724, 1
        %v6726 = vadd.f32 %v6724, %v6725
        %v6727 = vadd.f32 %v6603, %v6604
        %v6728 = vadd.f32 %v6727, %v6605
        %v6729 = vadd.f32 %v6728, %v6606
        %v6730 = vrot.slane %v6729, 4
        %v6731 = vadd.f32 %v6729, %v6730
        %v6732 = vrot.slane %v6731, 2
        %v6733 = vadd.f32 %v6731, %v6732
        %v6734 = vrot.slane %v6733, 1
        %v6735 = vadd.f32 %v6733, %v6734
        %v6736 = vadd.f32 %v6607, %v6608
        %v6737 = vadd.f32 %v6736, %v6609
        %v6738 = vadd.f32 %v6737, %v6610
        %v6739 = vrot.slane %v6738, 4
        %v6740 = vadd.f32 %v6738, %v6739
        %v6741 = vrot.slane %v6740, 2
        %v6742 = vadd.f32 %v6740, %v6741
        %v6743 = vrot.slane %v6742, 1
        %v6744 = vadd.f32 %v6742, %v6743
        %v6745 = vadd.f32 %v6611, %v6612
        %v6746 = vadd.f32 %v6745, %v6613
        %v6747 = vadd.f32 %v6746, %v6614
        %v6748 = vrot.slane %v6747, 4
        %v6749 = vadd.f32 %v6747, %v6748
        %v6750 = vrot.slane %v6749, 2
        %v6751 = vadd.f32 %v6749, %v6750
        %v6752 = vrot.slane %v6751, 1
        %v6753 = vadd.f32 %v6751, %v6752
        %v6754 = vadd.f32 %v6615, %v6616
        %v6755 = vadd.f32 %v6754, %v6617
        %v6756 = vadd.f32 %v6755, %v6618
        %v6757 = vrot.slane %v6756, 4
        %v6758 = vadd.f32 %v6756, %v6757
        %v6759 = vrot.slane %v6758, 2
        %v6760 = vadd.f32 %v6758, %v6759
        %v6761 = vrot.slane %v6760, 1
        %v6762 = vadd.f32 %v6760, %v6761
        %6779 = vrot.lane.b32.xlu0 %v6627, 64
        %v6780 = vpop.permute.xlu0 %6779
        %6781 = vrot.lane.b32.xlu0 %v6636, 64
        %v6782 = vpop.permute.xlu0 %6781
        %6783 = vrot.lane.b32.xlu0 %v6645, 64
        %v6784 = vpop.permute.xlu0 %6783
        %6785 = vrot.lane.b32.xlu0 %v6654, 64
        %v6786 = vpop.permute.xlu0 %6785
        %6787 = vrot.lane.b32.xlu0 %v6663, 64
        %v6788 = vpop.permute.xlu0 %6787
        %6789 = vrot.lane.b32.xlu0 %v6672, 64
        %v6790 = vpop.permute.xlu0 %6789
        %6791 = vrot.lane.b32.xlu0 %v6681, 64
        %v6792 = vpop.permute.xlu0 %6791
        %6793 = vrot.lane.b32.xlu0 %v6690, 64
        %v6794 = vpop.permute.xlu0 %6793
        %6795 = vrot.lane.b32.xlu0 %v6699, 64
        %v6796 = vpop.permute.xlu0 %6795
        %6797 = vrot.lane.b32.xlu0 %v6708, 64
        %v6798 = vpop.permute.xlu0 %6797
        %6799 = vrot.lane.b32.xlu0 %v6717, 64
        %v6800 = vpop.permute.xlu0 %6799
        %6801 = vrot.lane.b32.xlu0 %v6726, 64
        %v6802 = vpop.permute.xlu0 %6801
        %6803 = vrot.lane.b32.xlu0 %v6735, 64
        %v6804 = vpop.permute.xlu0 %6803
        %6805 = vrot.lane.b32.xlu0 %v6744, 64
        %v6806 = vpop.permute.xlu0 %6805
        %6807 = vrot.lane.b32.xlu0 %v6753, 64
        %v6808 = vpop.permute.xlu0 %6807
        %6809 = vrot.lane.b32.xlu0 %v6762, 64
        %v6810 = vpop.permute.xlu0 %6809
        %v6827 = vadd.f32 %v6627, %v6780
        %v6828 = vadd.f32 %v6636, %v6782
        %v6829 = vadd.f32 %v6645, %v6784
        %v6830 = vadd.f32 %v6654, %v6786
        %v6831 = vadd.f32 %v6663, %v6788
        %v6832 = vadd.f32 %v6672, %v6790
        %v6833 = vadd.f32 %v6681, %v6792
        %v6834 = vadd.f32 %v6690, %v6794
        %v6835 = vadd.f32 %v6699, %v6796
        %v6836 = vadd.f32 %v6708, %v6798
        %v6837 = vadd.f32 %v6717, %v6800
        %v6838 = vadd.f32 %v6726, %v6802
        %v6839 = vadd.f32 %v6735, %v6804
        %v6840 = vadd.f32 %v6744, %v6806
        %v6841 = vadd.f32 %v6753, %v6808
        %v6842 = vadd.f32 %v6762, %v6810
        %v6843 = vmul.f32 %v6827, 0.015625
        %v6844 = vmul.f32 %v6828, 0.015625
        %v6845 = vmul.f32 %v6829, 0.015625
        %v6846 = vmul.f32 %v6830, 0.015625
        %v6847 = vmul.f32 %v6831, 0.015625
        %v6848 = vmul.f32 %v6832, 0.015625
        %v6849 = vmul.f32 %v6833, 0.015625
        %v6850 = vmul.f32 %v6834, 0.015625
        %v6851 = vmul.f32 %v6835, 0.015625
        %v6852 = vmul.f32 %v6836, 0.015625
        %v6853 = vmul.f32 %v6837, 0.015625
        %v6854 = vmul.f32 %v6838, 0.015625
        %v6855 = vmul.f32 %v6839, 0.015625
        %v6856 = vmul.f32 %v6840, 0.015625
        %v6857 = vmul.f32 %v6841, 0.015625
        %v6858 = vmul.f32 %v6842, 0.015625
        %v6875 = vrot.slane %v6844, 7
        %v6876 = vsel %vm2240, %v6875, %v6843
        %v6877 = vrot.slane %v6845, 6
        %v6878 = vsel %vm2243, %v6877, %v6876
        %v6879 = vrot.slane %v6846, 5
        %v6880 = vsel %vm2246, %v6879, %v6878
        %v6881 = vrot.slane %v6847, 4
        %v6882 = vsel %vm2249, %v6881, %v6880
        %v6883 = vrot.slane %v6848, 3
        %v6884 = vsel %vm2252, %v6883, %v6882
        %v6885 = vrot.slane %v6849, 2
        %v6886 = vsel %vm2255, %v6885, %v6884
        %v6887 = vrot.slane %v6850, 1
        %v6888 = vsel %vm2258, %v6887, %v6886
        %v6889 = vrot.slane %v6852, 7
        %v6890 = vsel %vm2240, %v6889, %v6851
        %v6891 = vrot.slane %v6853, 6
        %v6892 = vsel %vm2243, %v6891, %v6890
        %v6893 = vrot.slane %v6854, 5
        %v6894 = vsel %vm2246, %v6893, %v6892
        %v6895 = vrot.slane %v6855, 4
        %v6896 = vsel %vm2249, %v6895, %v6894
        %v6897 = vrot.slane %v6856, 3
        %v6898 = vsel %vm2252, %v6897, %v6896
        %v6899 = vrot.slane %v6857, 2
        %v6900 = vsel %vm2255, %v6899, %v6898
        %v6901 = vrot.slane %v6858, 1
        %v6902 = vsel %vm2258, %v6901, %v6900
        %6905 = vrot.lane.b32.xlu0 %v6888, 64
        %v6906 = vpop.permute.xlu0 %6905
        %6907 = vrot.lane.b32.xlu0 %v6902, 64
        %v6908 = vpop.permute.xlu0 %6907
        %v6911 = vsel %vm2282, %v6888, %v6906
        %v6912 = vsel %vm2282, %v6902, %v6908
        %v6915 = vrot.slane %v6911, 1
        %v6916 = vrot.slane %v6911, 2
        %v6917 = vrot.slane %v6911, 3
        %v6918 = vrot.slane %v6911, 4
        %v6919 = vrot.slane %v6911, 5
        %v6920 = vrot.slane %v6911, 6
        %v6921 = vrot.slane %v6911, 7
        %v6922 = vrot.slane %v6912, 1
        %v6923 = vrot.slane %v6912, 2
        %v6924 = vrot.slane %v6912, 3
        %v6925 = vrot.slane %v6912, 4
        %v6926 = vrot.slane %v6912, 5
        %v6927 = vrot.slane %v6912, 6
        %v6928 = vrot.slane %v6912, 7
        %v6929 = vperm.slane %v6911, 0
        %v6930 = vperm.slane %v6915, 0
        %v6931 = vperm.slane %v6916, 0
        %v6932 = vperm.slane %v6917, 0
        %v6933 = vperm.slane %v6918, 0
        %v6934 = vperm.slane %v6919, 0
        %v6935 = vperm.slane %v6920, 0
        %v6936 = vperm.slane %v6921, 0
        %v6937 = vperm.slane %v6912, 0
        %v6938 = vperm.slane %v6922, 0
        %v6939 = vperm.slane %v6923, 0
        %v6940 = vperm.slane %v6924, 0
        %v6941 = vperm.slane %v6925, 0
        %v6942 = vperm.slane %v6926, 0
        %v6943 = vperm.slane %v6927, 0
        %v6944 = vperm.slane %v6928, 0
        %v6961 = vsub.f32 %v6555, %v6929
        %v6962 = vsub.f32 %v6556, %v6929
        %v6963 = vsub.f32 %v6557, %v6929
        %v6964 = vsub.f32 %v6558, %v6929
        %v6965 = vsub.f32 %v6559, %v6930
        %v6966 = vsub.f32 %v6560, %v6930
        %v6967 = vsub.f32 %v6561, %v6930
        %v6968 = vsub.f32 %v6562, %v6930
        %v6969 = vsub.f32 %v6563, %v6931
        %v6970 = vsub.f32 %v6564, %v6931
        %v6971 = vsub.f32 %v6565, %v6931
        %v6972 = vsub.f32 %v6566, %v6931
        %v6973 = vsub.f32 %v6567, %v6932
        %v6974 = vsub.f32 %v6568, %v6932
        %v6975 = vsub.f32 %v6569, %v6932
        %v6976 = vsub.f32 %v6570, %v6932
        %v6977 = vsub.f32 %v6571, %v6933
        %v6978 = vsub.f32 %v6572, %v6933
        %v6979 = vsub.f32 %v6573, %v6933
        %v6980 = vsub.f32 %v6574, %v6933
        %v6981 = vsub.f32 %v6575, %v6934
        %v6982 = vsub.f32 %v6576, %v6934
        %v6983 = vsub.f32 %v6577, %v6934
        %v6984 = vsub.f32 %v6578, %v6934
        %v6985 = vsub.f32 %v6579, %v6935
        %v6986 = vsub.f32 %v6580, %v6935
        %v6987 = vsub.f32 %v6581, %v6935
        %v6988 = vsub.f32 %v6582, %v6935
        %v6989 = vsub.f32 %v6583, %v6936
        %v6990 = vsub.f32 %v6584, %v6936
        %v6991 = vsub.f32 %v6585, %v6936
        %v6992 = vsub.f32 %v6586, %v6936
        %v6993 = vsub.f32 %v6587, %v6937
        %v6994 = vsub.f32 %v6588, %v6937
        %v6995 = vsub.f32 %v6589, %v6937
        %v6996 = vsub.f32 %v6590, %v6937
        %v6997 = vsub.f32 %v6591, %v6938
        %v6998 = vsub.f32 %v6592, %v6938
        %v6999 = vsub.f32 %v6593, %v6938
        %v7000 = vsub.f32 %v6594, %v6938
        %v7001 = vsub.f32 %v6595, %v6939
        %v7002 = vsub.f32 %v6596, %v6939
        %v7003 = vsub.f32 %v6597, %v6939
        %v7004 = vsub.f32 %v6598, %v6939
        %v7005 = vsub.f32 %v6599, %v6940
        %v7006 = vsub.f32 %v6600, %v6940
        %v7007 = vsub.f32 %v6601, %v6940
        %v7008 = vsub.f32 %v6602, %v6940
        %v7009 = vsub.f32 %v6603, %v6941
        %v7010 = vsub.f32 %v6604, %v6941
        %v7011 = vsub.f32 %v6605, %v6941
        %v7012 = vsub.f32 %v6606, %v6941
        %v7013 = vsub.f32 %v6607, %v6942
        %v7014 = vsub.f32 %v6608, %v6942
        %v7015 = vsub.f32 %v6609, %v6942
        %v7016 = vsub.f32 %v6610, %v6942
        %v7017 = vsub.f32 %v6611, %v6943
        %v7018 = vsub.f32 %v6612, %v6943
        %v7019 = vsub.f32 %v6613, %v6943
        %v7020 = vsub.f32 %v6614, %v6943
        %v7021 = vsub.f32 %v6615, %v6944
        %v7022 = vsub.f32 %v6616, %v6944
        %v7023 = vsub.f32 %v6617, %v6944
        %v7024 = vsub.f32 %v6618, %v6944
        %v7025 = vmul.f32 %v6961, %v6961
        %v7026 = vmul.f32 %v6962, %v6962
        %v7027 = vmul.f32 %v6963, %v6963
        %v7028 = vmul.f32 %v6964, %v6964
        %v7029 = vmul.f32 %v6965, %v6965
        %v7030 = vmul.f32 %v6966, %v6966
        %v7031 = vmul.f32 %v6967, %v6967
        %v7032 = vmul.f32 %v6968, %v6968
        %v7033 = vmul.f32 %v6969, %v6969
        %v7034 = vmul.f32 %v6970, %v6970
        %v7035 = vmul.f32 %v6971, %v6971
        %v7036 = vmul.f32 %v6972, %v6972
        %v7037 = vmul.f32 %v6973, %v6973
        %v7038 = vmul.f32 %v6974, %v6974
        %v7039 = vmul.f32 %v6975, %v6975
        %v7040 = vmul.f32 %v6976, %v6976
        %v7041 = vmul.f32 %v6977, %v6977
        %v7042 = vmul.f32 %v6978, %v6978
        %v7043 = vmul.f32 %v6979, %v6979
        %v7044 = vmul.f32 %v6980, %v6980
        %v7045 = vmul.f32 %v6981, %v6981
        %v7046 = vmul.f32 %v6982, %v6982
        %v7047 = vmul.f32 %v6983, %v6983
        %v7048 = vmul.f32 %v6984, %v6984
        %v7049 = vmul.f32 %v6985, %v6985
        %v7050 = vmul.f32 %v6986, %v6986
        %v7051 = vmul.f32 %v6987, %v6987
        %v7052 = vmul.f32 %v6988, %v6988
        %v7053 = vmul.f32 %v6989, %v6989
        %v7054 = vmul.f32 %v6990, %v6990
        %v7055 = vmul.f32 %v6991, %v6991
        %v7056 = vmul.f32 %v6992, %v6992
        %v7057 = vmul.f32 %v6993, %v6993
        %v7058 = vmul.f32 %v6994, %v6994
        %v7059 = vmul.f32 %v6995, %v6995
        %v7060 = vmul.f32 %v6996, %v6996
        %v7061 = vmul.f32 %v6997, %v6997
        %v7062 = vmul.f32 %v6998, %v6998
        %v7063 = vmul.f32 %v6999, %v6999
        %v7064 = vmul.f32 %v7000, %v7000
        %v7065 = vmul.f32 %v7001, %v7001
        %v7066 = vmul.f32 %v7002, %v7002
        %v7067 = vmul.f32 %v7003, %v7003
        %v7068 = vmul.f32 %v7004, %v7004
        %v7069 = vmul.f32 %v7005, %v7005
        %v7070 = vmul.f32 %v7006, %v7006
        %v7071 = vmul.f32 %v7007, %v7007
        %v7072 = vmul.f32 %v7008, %v7008
        %v7073 = vmul.f32 %v7009, %v7009
        %v7074 = vmul.f32 %v7010, %v7010
        %v7075 = vmul.f32 %v7011, %v7011
        %v7076 = vmul.f32 %v7012, %v7012
        %v7077 = vmul.f32 %v7013, %v7013
        %v7078 = vmul.f32 %v7014, %v7014
        %v7079 = vmul.f32 %v7015, %v7015
        %v7080 = vmul.f32 %v7016, %v7016
        %v7081 = vmul.f32 %v7017, %v7017
        %v7082 = vmul.f32 %v7018, %v7018
        %v7083 = vmul.f32 %v7019, %v7019
        %v7084 = vmul.f32 %v7020, %v7020
        %v7085 = vmul.f32 %v7021, %v7021
        %v7086 = vmul.f32 %v7022, %v7022
        %v7087 = vmul.f32 %v7023, %v7023
        %v7088 = vmul.f32 %v7024, %v7024
        %v7089 = vadd.f32 %v7025, %v7026
        %v7090 = vadd.f32 %v7089, %v7027
        %v7091 = vadd.f32 %v7090, %v7028
        %v7092 = vrot.slane %v7091, 4
        %v7093 = vadd.f32 %v7091, %v7092
        %v7094 = vrot.slane %v7093, 2
        %v7095 = vadd.f32 %v7093, %v7094
        %v7096 = vrot.slane %v7095, 1
        %v7097 = vadd.f32 %v7095, %v7096
        %v7098 = vadd.f32 %v7029, %v7030
        %v7099 = vadd.f32 %v7098, %v7031
        %v7100 = vadd.f32 %v7099, %v7032
        %v7101 = vrot.slane %v7100, 4
        %v7102 = vadd.f32 %v7100, %v7101
        %v7103 = vrot.slane %v7102, 2
        %v7104 = vadd.f32 %v7102, %v7103
        %v7105 = vrot.slane %v7104, 1
        %v7106 = vadd.f32 %v7104, %v7105
        %v7107 = vadd.f32 %v7033, %v7034
        %v7108 = vadd.f32 %v7107, %v7035
        %v7109 = vadd.f32 %v7108, %v7036
        %v7110 = vrot.slane %v7109, 4
        %v7111 = vadd.f32 %v7109, %v7110
        %v7112 = vrot.slane %v7111, 2
        %v7113 = vadd.f32 %v7111, %v7112
        %v7114 = vrot.slane %v7113, 1
        %v7115 = vadd.f32 %v7113, %v7114
        %v7116 = vadd.f32 %v7037, %v7038
        %v7117 = vadd.f32 %v7116, %v7039
        %v7118 = vadd.f32 %v7117, %v7040
        %v7119 = vrot.slane %v7118, 4
        %v7120 = vadd.f32 %v7118, %v7119
        %v7121 = vrot.slane %v7120, 2
        %v7122 = vadd.f32 %v7120, %v7121
        %v7123 = vrot.slane %v7122, 1
        %v7124 = vadd.f32 %v7122, %v7123
        %v7125 = vadd.f32 %v7041, %v7042
        %v7126 = vadd.f32 %v7125, %v7043
        %v7127 = vadd.f32 %v7126, %v7044
        %v7128 = vrot.slane %v7127, 4
        %v7129 = vadd.f32 %v7127, %v7128
        %v7130 = vrot.slane %v7129, 2
        %v7131 = vadd.f32 %v7129, %v7130
        %v7132 = vrot.slane %v7131, 1
        %v7133 = vadd.f32 %v7131, %v7132
        %v7134 = vadd.f32 %v7045, %v7046
        %v7135 = vadd.f32 %v7134, %v7047
        %v7136 = vadd.f32 %v7135, %v7048
        %v7137 = vrot.slane %v7136, 4
        %v7138 = vadd.f32 %v7136, %v7137
        %v7139 = vrot.slane %v7138, 2
        %v7140 = vadd.f32 %v7138, %v7139
        %v7141 = vrot.slane %v7140, 1
        %v7142 = vadd.f32 %v7140, %v7141
        %v7143 = vadd.f32 %v7049, %v7050
        %v7144 = vadd.f32 %v7143, %v7051
        %v7145 = vadd.f32 %v7144, %v7052
        %v7146 = vrot.slane %v7145, 4
        %v7147 = vadd.f32 %v7145, %v7146
        %v7148 = vrot.slane %v7147, 2
        %v7149 = vadd.f32 %v7147, %v7148
        %v7150 = vrot.slane %v7149, 1
        %v7151 = vadd.f32 %v7149, %v7150
        %v7152 = vadd.f32 %v7053, %v7054
        %v7153 = vadd.f32 %v7152, %v7055
        %v7154 = vadd.f32 %v7153, %v7056
        %v7155 = vrot.slane %v7154, 4
        %v7156 = vadd.f32 %v7154, %v7155
        %v7157 = vrot.slane %v7156, 2
        %v7158 = vadd.f32 %v7156, %v7157
        %v7159 = vrot.slane %v7158, 1
        %v7160 = vadd.f32 %v7158, %v7159
        %v7161 = vadd.f32 %v7057, %v7058
        %v7162 = vadd.f32 %v7161, %v7059
        %v7163 = vadd.f32 %v7162, %v7060
        %v7164 = vrot.slane %v7163, 4
        %v7165 = vadd.f32 %v7163, %v7164
        %v7166 = vrot.slane %v7165, 2
        %v7167 = vadd.f32 %v7165, %v7166
        %v7168 = vrot.slane %v7167, 1
        %v7169 = vadd.f32 %v7167, %v7168
        %v7170 = vadd.f32 %v7061, %v7062
        %v7171 = vadd.f32 %v7170, %v7063
        %v7172 = vadd.f32 %v7171, %v7064
        %v7173 = vrot.slane %v7172, 4
        %v7174 = vadd.f32 %v7172, %v7173
        %v7175 = vrot.slane %v7174, 2
        %v7176 = vadd.f32 %v7174, %v7175
        %v7177 = vrot.slane %v7176, 1
        %v7178 = vadd.f32 %v7176, %v7177
        %v7179 = vadd.f32 %v7065, %v7066
        %v7180 = vadd.f32 %v7179, %v7067
        %v7181 = vadd.f32 %v7180, %v7068
        %v7182 = vrot.slane %v7181, 4
        %v7183 = vadd.f32 %v7181, %v7182
        %v7184 = vrot.slane %v7183, 2
        %v7185 = vadd.f32 %v7183, %v7184
        %v7186 = vrot.slane %v7185, 1
        %v7187 = vadd.f32 %v7185, %v7186
        %v7188 = vadd.f32 %v7069, %v7070
        %v7189 = vadd.f32 %v7188, %v7071
        %v7190 = vadd.f32 %v7189, %v7072
        %v7191 = vrot.slane %v7190, 4
        %v7192 = vadd.f32 %v7190, %v7191
        %v7193 = vrot.slane %v7192, 2
        %v7194 = vadd.f32 %v7192, %v7193
        %v7195 = vrot.slane %v7194, 1
        %v7196 = vadd.f32 %v7194, %v7195
        %v7197 = vadd.f32 %v7073, %v7074
        %v7198 = vadd.f32 %v7197, %v7075
        %v7199 = vadd.f32 %v7198, %v7076
        %v7200 = vrot.slane %v7199, 4
        %v7201 = vadd.f32 %v7199, %v7200
        %v7202 = vrot.slane %v7201, 2
        %v7203 = vadd.f32 %v7201, %v7202
        %v7204 = vrot.slane %v7203, 1
        %v7205 = vadd.f32 %v7203, %v7204
        %v7206 = vadd.f32 %v7077, %v7078
        %v7207 = vadd.f32 %v7206, %v7079
        %v7208 = vadd.f32 %v7207, %v7080
        %v7209 = vrot.slane %v7208, 4
        %v7210 = vadd.f32 %v7208, %v7209
        %v7211 = vrot.slane %v7210, 2
        %v7212 = vadd.f32 %v7210, %v7211
        %v7213 = vrot.slane %v7212, 1
        %v7214 = vadd.f32 %v7212, %v7213
        %v7215 = vadd.f32 %v7081, %v7082
        %v7216 = vadd.f32 %v7215, %v7083
        %v7217 = vadd.f32 %v7216, %v7084
        %v7218 = vrot.slane %v7217, 4
        %v7219 = vadd.f32 %v7217, %v7218
        %v7220 = vrot.slane %v7219, 2
        %v7221 = vadd.f32 %v7219, %v7220
        %v7222 = vrot.slane %v7221, 1
        %v7223 = vadd.f32 %v7221, %v7222
        %v7224 = vadd.f32 %v7085, %v7086
        %v7225 = vadd.f32 %v7224, %v7087
        %v7226 = vadd.f32 %v7225, %v7088
        %v7227 = vrot.slane %v7226, 4
        %v7228 = vadd.f32 %v7226, %v7227
        %v7229 = vrot.slane %v7228, 2
        %v7230 = vadd.f32 %v7228, %v7229
        %v7231 = vrot.slane %v7230, 1
        %v7232 = vadd.f32 %v7230, %v7231
        %7249 = vrot.lane.b32.xlu0 %v7097, 64
        %v7250 = vpop.permute.xlu0 %7249
        %7251 = vrot.lane.b32.xlu0 %v7106, 64
        %v7252 = vpop.permute.xlu0 %7251
        %7253 = vrot.lane.b32.xlu0 %v7115, 64
        %v7254 = vpop.permute.xlu0 %7253
        %7255 = vrot.lane.b32.xlu0 %v7124, 64
        %v7256 = vpop.permute.xlu0 %7255
        %7257 = vrot.lane.b32.xlu0 %v7133, 64
        %v7258 = vpop.permute.xlu0 %7257
        %7259 = vrot.lane.b32.xlu0 %v7142, 64
        %v7260 = vpop.permute.xlu0 %7259
        %7261 = vrot.lane.b32.xlu0 %v7151, 64
        %v7262 = vpop.permute.xlu0 %7261
        %7263 = vrot.lane.b32.xlu0 %v7160, 64
        %v7264 = vpop.permute.xlu0 %7263
        %7265 = vrot.lane.b32.xlu0 %v7169, 64
        %v7266 = vpop.permute.xlu0 %7265
        %7267 = vrot.lane.b32.xlu0 %v7178, 64
        %v7268 = vpop.permute.xlu0 %7267
        %7269 = vrot.lane.b32.xlu0 %v7187, 64
        %v7270 = vpop.permute.xlu0 %7269
        %7271 = vrot.lane.b32.xlu0 %v7196, 64
        %v7272 = vpop.permute.xlu0 %7271
        %7273 = vrot.lane.b32.xlu0 %v7205, 64
        %v7274 = vpop.permute.xlu0 %7273
        %7275 = vrot.lane.b32.xlu0 %v7214, 64
        %v7276 = vpop.permute.xlu0 %7275
        %7277 = vrot.lane.b32.xlu0 %v7223, 64
        %v7278 = vpop.permute.xlu0 %7277
        %7279 = vrot.lane.b32.xlu0 %v7232, 64
        %v7280 = vpop.permute.xlu0 %7279
        %v7297 = vadd.f32 %v7097, %v7250
        %v7298 = vadd.f32 %v7106, %v7252
        %v7299 = vadd.f32 %v7115, %v7254
        %v7300 = vadd.f32 %v7124, %v7256
        %v7301 = vadd.f32 %v7133, %v7258
        %v7302 = vadd.f32 %v7142, %v7260
        %v7303 = vadd.f32 %v7151, %v7262
        %v7304 = vadd.f32 %v7160, %v7264
        %v7305 = vadd.f32 %v7169, %v7266
        %v7306 = vadd.f32 %v7178, %v7268
        %v7307 = vadd.f32 %v7187, %v7270
        %v7308 = vadd.f32 %v7196, %v7272
        %v7309 = vadd.f32 %v7205, %v7274
        %v7310 = vadd.f32 %v7214, %v7276
        %v7311 = vadd.f32 %v7223, %v7278
        %v7312 = vadd.f32 %v7232, %v7280
        %v7313 = vmul.f32 %v7297, 0.015625
        %v7314 = vmul.f32 %v7298, 0.015625
        %v7315 = vmul.f32 %v7299, 0.015625
        %v7316 = vmul.f32 %v7300, 0.015625
        %v7317 = vmul.f32 %v7301, 0.015625
        %v7318 = vmul.f32 %v7302, 0.015625
        %v7319 = vmul.f32 %v7303, 0.015625
        %v7320 = vmul.f32 %v7304, 0.015625
        %v7321 = vmul.f32 %v7305, 0.015625
        %v7322 = vmul.f32 %v7306, 0.015625
        %v7323 = vmul.f32 %v7307, 0.015625
        %v7324 = vmul.f32 %v7308, 0.015625
        %v7325 = vmul.f32 %v7309, 0.015625
        %v7326 = vmul.f32 %v7310, 0.015625
        %v7327 = vmul.f32 %v7311, 0.015625
        %v7328 = vmul.f32 %v7312, 0.015625
        %v7329 = vadd.f32 %v7313, 1e-05
        %v7330 = vadd.f32 %v7314, 1e-05
        %v7331 = vadd.f32 %v7315, 1e-05
        %v7332 = vadd.f32 %v7316, 1e-05
        %v7333 = vadd.f32 %v7317, 1e-05
        %v7334 = vadd.f32 %v7318, 1e-05
        %v7335 = vadd.f32 %v7319, 1e-05
        %v7336 = vadd.f32 %v7320, 1e-05
        %v7337 = vadd.f32 %v7321, 1e-05
        %v7338 = vadd.f32 %v7322, 1e-05
        %v7339 = vadd.f32 %v7323, 1e-05
        %v7340 = vadd.f32 %v7324, 1e-05
        %v7341 = vadd.f32 %v7325, 1e-05
        %v7342 = vadd.f32 %v7326, 1e-05
        %v7343 = vadd.f32 %v7327, 1e-05
        %v7344 = vadd.f32 %v7328, 1e-05
        %v7345 = vrsqrt.pop %v7329
        %v7346 = vmul.f32 %v7345, %v7329
        %v7347 = vmul.f32 %v7346, %v7345
        %v7348 = vmul.f32 0.5, %v7347
        %v7349 = vsub.f32 1.5, %v7348
        %v7350 = vmul.f32 %v7345, %v7349
        %vm7351 = vweird.f32 %v7329
        %vm7352 = vweird.f32 %v7345
        %vm7353 = vmor %vm7351, %vm7352
        %v7354 = vsel %vm7353, %v7345, %v7350
        %v7355 = vrsqrt.pop %v7330
        %v7356 = vmul.f32 %v7355, %v7330
        %v7357 = vmul.f32 %v7356, %v7355
        %v7358 = vmul.f32 0.5, %v7357
        %v7359 = vsub.f32 1.5, %v7358
        %v7360 = vmul.f32 %v7355, %v7359
        %vm7361 = vweird.f32 %v7330
        %vm7362 = vweird.f32 %v7355
        %vm7363 = vmor %vm7361, %vm7362
        %v7364 = vsel %vm7363, %v7355, %v7360
        %v7365 = vrsqrt.pop %v7331
        %v7366 = vmul.f32 %v7365, %v7331
        %v7367 = vmul.f32 %v7366, %v7365
        %v7368 = vmul.f32 0.5, %v7367
        %v7369 = vsub.f32 1.5, %v7368
        %v7370 = vmul.f32 %v7365, %v7369
        %vm7371 = vweird.f32 %v7331
        %vm7372 = vweird.f32 %v7365
        %vm7373 = vmor %vm7371, %vm7372
        %v7374 = vsel %vm7373, %v7365, %v7370
        %v7375 = vrsqrt.pop %v7332
        %v7376 = vmul.f32 %v7375, %v7332
        %v7377 = vmul.f32 %v7376, %v7375
        %v7378 = vmul.f32 0.5, %v7377
        %v7379 = vsub.f32 1.5, %v7378
        %v7380 = vmul.f32 %v7375, %v7379
        %vm7381 = vweird.f32 %v7332
        %vm7382 = vweird.f32 %v7375
        %vm7383 = vmor %vm7381, %vm7382
        %v7384 = vsel %vm7383, %v7375, %v7380
        %v7385 = vrsqrt.pop %v7333
        %v7386 = vmul.f32 %v7385, %v7333
        %v7387 = vmul.f32 %v7386, %v7385
        %v7388 = vmul.f32 0.5, %v7387
        %v7389 = vsub.f32 1.5, %v7388
        %v7390 = vmul.f32 %v7385, %v7389
        %vm7391 = vweird.f32 %v7333
        %vm7392 = vweird.f32 %v7385
        %vm7393 = vmor %vm7391, %vm7392
        %v7394 = vsel %vm7393, %v7385, %v7390
        %v7395 = vrsqrt.pop %v7334
        %v7396 = vmul.f32 %v7395, %v7334
        %v7397 = vmul.f32 %v7396, %v7395
        %v7398 = vmul.f32 0.5, %v7397
        %v7399 = vsub.f32 1.5, %v7398
        %v7400 = vmul.f32 %v7395, %v7399
        %vm7401 = vweird.f32 %v7334
        %vm7402 = vweird.f32 %v7395
        %vm7403 = vmor %vm7401, %vm7402
        %v7404 = vsel %vm7403, %v7395, %v7400
        %v7405 = vrsqrt.pop %v7335
        %v7406 = vmul.f32 %v7405, %v7335
        %v7407 = vmul.f32 %v7406, %v7405
        %v7408 = vmul.f32 0.5, %v7407
        %v7409 = vsub.f32 1.5, %v7408
        %v7410 = vmul.f32 %v7405, %v7409
        %vm7411 = vweird.f32 %v7335
        %vm7412 = vweird.f32 %v7405
        %vm7413 = vmor %vm7411, %vm7412
        %v7414 = vsel %vm7413, %v7405, %v7410
        %v7415 = vrsqrt.pop %v7336
        %v7416 = vmul.f32 %v7415, %v7336
        %v7417 = vmul.f32 %v7416, %v7415
        %v7418 = vmul.f32 0.5, %v7417
        %v7419 = vsub.f32 1.5, %v7418
        %v7420 = vmul.f32 %v7415, %v7419
        %vm7421 = vweird.f32 %v7336
        %vm7422 = vweird.f32 %v7415
        %vm7423 = vmor %vm7421, %vm7422
        %v7424 = vsel %vm7423, %v7415, %v7420
        %v7425 = vrsqrt.pop %v7337
        %v7426 = vmul.f32 %v7425, %v7337
        %v7427 = vmul.f32 %v7426, %v7425
        %v7428 = vmul.f32 0.5, %v7427
        %v7429 = vsub.f32 1.5, %v7428
        %v7430 = vmul.f32 %v7425, %v7429
        %vm7431 = vweird.f32 %v7337
        %vm7432 = vweird.f32 %v7425
        %vm7433 = vmor %vm7431, %vm7432
        %v7434 = vsel %vm7433, %v7425, %v7430
        %v7435 = vrsqrt.pop %v7338
        %v7436 = vmul.f32 %v7435, %v7338
        %v7437 = vmul.f32 %v7436, %v7435
        %v7438 = vmul.f32 0.5, %v7437
        %v7439 = vsub.f32 1.5, %v7438
        %v7440 = vmul.f32 %v7435, %v7439
        %vm7441 = vweird.f32 %v7338
        %vm7442 = vweird.f32 %v7435
        %vm7443 = vmor %vm7441, %vm7442
        %v7444 = vsel %vm7443, %v7435, %v7440
        %v7445 = vrsqrt.pop %v7339
        %v7446 = vmul.f32 %v7445, %v7339
        %v7447 = vmul.f32 %v7446, %v7445
        %v7448 = vmul.f32 0.5, %v7447
        %v7449 = vsub.f32 1.5, %v7448
        %v7450 = vmul.f32 %v7445, %v7449
        %vm7451 = vweird.f32 %v7339
        %vm7452 = vweird.f32 %v7445
        %vm7453 = vmor %vm7451, %vm7452
        %v7454 = vsel %vm7453, %v7445, %v7450
        %v7455 = vrsqrt.pop %v7340
        %v7456 = vmul.f32 %v7455, %v7340
        %v7457 = vmul.f32 %v7456, %v7455
        %v7458 = vmul.f32 0.5, %v7457
        %v7459 = vsub.f32 1.5, %v7458
        %v7460 = vmul.f32 %v7455, %v7459
        %vm7461 = vweird.f32 %v7340
        %vm7462 = vweird.f32 %v7455
        %vm7463 = vmor %vm7461, %vm7462
        %v7464 = vsel %vm7463, %v7455, %v7460
        %v7465 = vrsqrt.pop %v7341
        %v7466 = vmul.f32 %v7465, %v7341
        %v7467 = vmul.f32 %v7466, %v7465
        %v7468 = vmul.f32 0.5, %v7467
        %v7469 = vsub.f32 1.5, %v7468
        %v7470 = vmul.f32 %v7465, %v7469
        %vm7471 = vweird.f32 %v7341
        %vm7472 = vweird.f32 %v7465
        %vm7473 = vmor %vm7471, %vm7472
        %v7474 = vsel %vm7473, %v7465, %v7470
        %v7475 = vrsqrt.pop %v7342
        %v7476 = vmul.f32 %v7475, %v7342
        %v7477 = vmul.f32 %v7476, %v7475
        %v7478 = vmul.f32 0.5, %v7477
        %v7479 = vsub.f32 1.5, %v7478
        %v7480 = vmul.f32 %v7475, %v7479
        %vm7481 = vweird.f32 %v7342
        %vm7482 = vweird.f32 %v7475
        %vm7483 = vmor %vm7481, %vm7482
        %v7484 = vsel %vm7483, %v7475, %v7480
        %v7485 = vrsqrt.pop %v7343
        %v7486 = vmul.f32 %v7485, %v7343
        %v7487 = vmul.f32 %v7486, %v7485
        %v7488 = vmul.f32 0.5, %v7487
        %v7489 = vsub.f32 1.5, %v7488
        %v7490 = vmul.f32 %v7485, %v7489
        %vm7491 = vweird.f32 %v7343
        %vm7492 = vweird.f32 %v7485
        %vm7493 = vmor %vm7491, %vm7492
        %v7494 = vsel %vm7493, %v7485, %v7490
        %v7495 = vrsqrt.pop %v7344
        %v7496 = vmul.f32 %v7495, %v7344
        %v7497 = vmul.f32 %v7496, %v7495
        %v7498 = vmul.f32 0.5, %v7497
        %v7499 = vsub.f32 1.5, %v7498
        %v7500 = vmul.f32 %v7495, %v7499
        %vm7501 = vweird.f32 %v7344
        %vm7502 = vweird.f32 %v7495
        %vm7503 = vmor %vm7501, %vm7502
        %v7504 = vsel %vm7503, %v7495, %v7500
        %v7521 = vrot.slane %v7364, 7
        %v7522 = vsel %vm2240, %v7521, %v7354
        %v7523 = vrot.slane %v7374, 6
        %v7524 = vsel %vm2243, %v7523, %v7522
        %v7525 = vrot.slane %v7384, 5
        %v7526 = vsel %vm2246, %v7525, %v7524
        %v7527 = vrot.slane %v7394, 4
        %v7528 = vsel %vm2249, %v7527, %v7526
        %v7529 = vrot.slane %v7404, 3
        %v7530 = vsel %vm2252, %v7529, %v7528
        %v7531 = vrot.slane %v7414, 2
        %v7532 = vsel %vm2255, %v7531, %v7530
        %v7533 = vrot.slane %v7424, 1
        %v7534 = vsel %vm2258, %v7533, %v7532
        %v7535 = vrot.slane %v7444, 7
        %v7536 = vsel %vm2240, %v7535, %v7434
        %v7537 = vrot.slane %v7454, 6
        %v7538 = vsel %vm2243, %v7537, %v7536
        %v7539 = vrot.slane %v7464, 5
        %v7540 = vsel %vm2246, %v7539, %v7538
        %v7541 = vrot.slane %v7474, 4
        %v7542 = vsel %vm2249, %v7541, %v7540
        %v7543 = vrot.slane %v7484, 3
        %v7544 = vsel %vm2252, %v7543, %v7542
        %v7545 = vrot.slane %v7494, 2
        %v7546 = vsel %vm2255, %v7545, %v7544
        %v7547 = vrot.slane %v7504, 1
        %v7548 = vsel %vm2258, %v7547, %v7546
        %7551 = vrot.lane.b32.xlu0 %v7534, 64
        %v7552 = vpop.permute.xlu0 %7551
        %7553 = vrot.lane.b32.xlu0 %v7548, 64
        %v7554 = vpop.permute.xlu0 %7553
        %v7557 = vsel %vm2282, %v7534, %v7552
        %v7558 = vsel %vm2282, %v7548, %v7554
        %v7561 = vrot.slane %v7557, 1
        %v7562 = vrot.slane %v7557, 2
        %v7563 = vrot.slane %v7557, 3
        %v7564 = vrot.slane %v7557, 4
        %v7565 = vrot.slane %v7557, 5
        %v7566 = vrot.slane %v7557, 6
        %v7567 = vrot.slane %v7557, 7
        %v7568 = vrot.slane %v7558, 1
        %v7569 = vrot.slane %v7558, 2
        %v7570 = vrot.slane %v7558, 3
        %v7571 = vrot.slane %v7558, 4
        %v7572 = vrot.slane %v7558, 5
        %v7573 = vrot.slane %v7558, 6
        %v7574 = vrot.slane %v7558, 7
        %v7575 = vperm.slane %v7557, 0
        %v7576 = vperm.slane %v7561, 0
        %v7577 = vperm.slane %v7562, 0
        %v7578 = vperm.slane %v7563, 0
        %v7579 = vperm.slane %v7564, 0
        %v7580 = vperm.slane %v7565, 0
        %v7581 = vperm.slane %v7566, 0
        %v7582 = vperm.slane %v7567, 0
        %v7583 = vperm.slane %v7558, 0
        %v7584 = vperm.slane %v7568, 0
        %v7585 = vperm.slane %v7569, 0
        %v7586 = vperm.slane %v7570, 0
        %v7587 = vperm.slane %v7571, 0
        %v7588 = vperm.slane %v7572, 0
        %v7589 = vperm.slane %v7573, 0
        %v7590 = vperm.slane %v7574, 0
        %v7607 = vmul.f32 %v6961, %v7575
        %v7608 = vmul.f32 %v6962, %v7575
        %v7609 = vmul.f32 %v6963, %v7575
        %v7610 = vmul.f32 %v6964, %v7575
        %v7611 = vmul.f32 %v6965, %v7576
        %v7612 = vmul.f32 %v6966, %v7576
        %v7613 = vmul.f32 %v6967, %v7576
        %v7614 = vmul.f32 %v6968, %v7576
        %v7615 = vmul.f32 %v6969, %v7577
        %v7616 = vmul.f32 %v6970, %v7577
        %v7617 = vmul.f32 %v6971, %v7577
        %v7618 = vmul.f32 %v6972, %v7577
        %v7619 = vmul.f32 %v6973, %v7578
        %v7620 = vmul.f32 %v6974, %v7578
        %v7621 = vmul.f32 %v6975, %v7578
        %v7622 = vmul.f32 %v6976, %v7578
        %v7623 = vmul.f32 %v6977, %v7579
        %v7624 = vmul.f32 %v6978, %v7579
        %v7625 = vmul.f32 %v6979, %v7579
        %v7626 = vmul.f32 %v6980, %v7579
        %v7627 = vmul.f32 %v6981, %v7580
        %v7628 = vmul.f32 %v6982, %v7580
        %v7629 = vmul.f32 %v6983, %v7580
        %v7630 = vmul.f32 %v6984, %v7580
        %v7631 = vmul.f32 %v6985, %v7581
        %v7632 = vmul.f32 %v6986, %v7581
        %v7633 = vmul.f32 %v6987, %v7581
        %v7634 = vmul.f32 %v6988, %v7581
        %v7635 = vmul.f32 %v6989, %v7582
        %v7636 = vmul.f32 %v6990, %v7582
        %v7637 = vmul.f32 %v6991, %v7582
        %v7638 = vmul.f32 %v6992, %v7582
        %v7639 = vmul.f32 %v6993, %v7583
        %v7640 = vmul.f32 %v6994, %v7583
        %v7641 = vmul.f32 %v6995, %v7583
        %v7642 = vmul.f32 %v6996, %v7583
        %v7643 = vmul.f32 %v6997, %v7584
        %v7644 = vmul.f32 %v6998, %v7584
        %v7645 = vmul.f32 %v6999, %v7584
        %v7646 = vmul.f32 %v7000, %v7584
        %v7647 = vmul.f32 %v7001, %v7585
        %v7648 = vmul.f32 %v7002, %v7585
        %v7649 = vmul.f32 %v7003, %v7585
        %v7650 = vmul.f32 %v7004, %v7585
        %v7651 = vmul.f32 %v7005, %v7586
        %v7652 = vmul.f32 %v7006, %v7586
        %v7653 = vmul.f32 %v7007, %v7586
        %v7654 = vmul.f32 %v7008, %v7586
        %v7655 = vmul.f32 %v7009, %v7587
        %v7656 = vmul.f32 %v7010, %v7587
        %v7657 = vmul.f32 %v7011, %v7587
        %v7658 = vmul.f32 %v7012, %v7587
        %v7659 = vmul.f32 %v7013, %v7588
        %v7660 = vmul.f32 %v7014, %v7588
        %v7661 = vmul.f32 %v7015, %v7588
        %v7662 = vmul.f32 %v7016, %v7588
        %v7663 = vmul.f32 %v7017, %v7589
        %v7664 = vmul.f32 %v7018, %v7589
        %v7665 = vmul.f32 %v7019, %v7589
        %v7666 = vmul.f32 %v7020, %v7589
        %v7667 = vmul.f32 %v7021, %v7590
        %v7668 = vmul.f32 %v7022, %v7590
        %v7669 = vmul.f32 %v7023, %v7590
        %v7670 = vmul.f32 %v7024, %v7590
        %v7671 = vmul.f32 %v7607, %v1979
        %v7672 = vmul.f32 %v7608, %v1980
        %v7673 = vmul.f32 %v7609, %v1981
        %v7674 = vmul.f32 %v7610, %v1982
        %v7675 = vmul.f32 %v7611, %v1979
        %v7676 = vmul.f32 %v7612, %v1980
        %v7677 = vmul.f32 %v7613, %v1981
        %v7678 = vmul.f32 %v7614, %v1982
        %v7679 = vmul.f32 %v7615, %v1979
        %v7680 = vmul.f32 %v7616, %v1980
        %v7681 = vmul.f32 %v7617, %v1981
        %v7682 = vmul.f32 %v7618, %v1982
        %v7683 = vmul.f32 %v7619, %v1979
        %v7684 = vmul.f32 %v7620, %v1980
        %v7685 = vmul.f32 %v7621, %v1981
        %v7686 = vmul.f32 %v7622, %v1982
        %v7687 = vmul.f32 %v7623, %v1979
        %v7688 = vmul.f32 %v7624, %v1980
        %v7689 = vmul.f32 %v7625, %v1981
        %v7690 = vmul.f32 %v7626, %v1982
        %v7691 = vmul.f32 %v7627, %v1979
        %v7692 = vmul.f32 %v7628, %v1980
        %v7693 = vmul.f32 %v7629, %v1981
        %v7694 = vmul.f32 %v7630, %v1982
        %v7695 = vmul.f32 %v7631, %v1979
        %v7696 = vmul.f32 %v7632, %v1980
        %v7697 = vmul.f32 %v7633, %v1981
        %v7698 = vmul.f32 %v7634, %v1982
        %v7699 = vmul.f32 %v7635, %v1979
        %v7700 = vmul.f32 %v7636, %v1980
        %v7701 = vmul.f32 %v7637, %v1981
        %v7702 = vmul.f32 %v7638, %v1982
        %v7703 = vmul.f32 %v7639, %v1979
        %v7704 = vmul.f32 %v7640, %v1980
        %v7705 = vmul.f32 %v7641, %v1981
        %v7706 = vmul.f32 %v7642, %v1982
        %v7707 = vmul.f32 %v7643, %v1979
        %v7708 = vmul.f32 %v7644, %v1980
        %v7709 = vmul.f32 %v7645, %v1981
        %v7710 = vmul.f32 %v7646, %v1982
        %v7711 = vmul.f32 %v7647, %v1979
        %v7712 = vmul.f32 %v7648, %v1980
        %v7713 = vmul.f32 %v7649, %v1981
        %v7714 = vmul.f32 %v7650, %v1982
        %v7715 = vmul.f32 %v7651, %v1979
        %v7716 = vmul.f32 %v7652, %v1980
        %v7717 = vmul.f32 %v7653, %v1981
        %v7718 = vmul.f32 %v7654, %v1982
        %v7719 = vmul.f32 %v7655, %v1979
        %v7720 = vmul.f32 %v7656, %v1980
        %v7721 = vmul.f32 %v7657, %v1981
        %v7722 = vmul.f32 %v7658, %v1982
        %v7723 = vmul.f32 %v7659, %v1979
        %v7724 = vmul.f32 %v7660, %v1980
        %v7725 = vmul.f32 %v7661, %v1981
        %v7726 = vmul.f32 %v7662, %v1982
        %v7727 = vmul.f32 %v7663, %v1979
        %v7728 = vmul.f32 %v7664, %v1980
        %v7729 = vmul.f32 %v7665, %v1981
        %v7730 = vmul.f32 %v7666, %v1982
        %v7731 = vmul.f32 %v7667, %v1979
        %v7732 = vmul.f32 %v7668, %v1980
        %v7733 = vmul.f32 %v7669, %v1981
        %v7734 = vmul.f32 %v7670, %v1982
        %v7735 = vadd.f32 %v6491, %v7671
        %v7736 = vadd.f32 %v6492, %v7672
        %v7737 = vadd.f32 %v6493, %v7673
        %v7738 = vadd.f32 %v6494, %v7674
        %v7739 = vadd.f32 %v6495, %v7675
        %v7740 = vadd.f32 %v6496, %v7676
        %v7741 = vadd.f32 %v6497, %v7677
        %v7742 = vadd.f32 %v6498, %v7678
        %v7743 = vadd.f32 %v6499, %v7679
        %v7744 = vadd.f32 %v6500, %v7680
        %v7745 = vadd.f32 %v6501, %v7681
        %v7746 = vadd.f32 %v6502, %v7682
        %v7747 = vadd.f32 %v6503, %v7683
        %v7748 = vadd.f32 %v6504, %v7684
        %v7749 = vadd.f32 %v6505, %v7685
        %v7750 = vadd.f32 %v6506, %v7686
        %v7751 = vadd.f32 %v6507, %v7687
        %v7752 = vadd.f32 %v6508, %v7688
        %v7753 = vadd.f32 %v6509, %v7689
        %v7754 = vadd.f32 %v6510, %v7690
        %v7755 = vadd.f32 %v6511, %v7691
        %v7756 = vadd.f32 %v6512, %v7692
        %v7757 = vadd.f32 %v6513, %v7693
        %v7758 = vadd.f32 %v6514, %v7694
        %v7759 = vadd.f32 %v6515, %v7695
        %v7760 = vadd.f32 %v6516, %v7696
        %v7761 = vadd.f32 %v6517, %v7697
        %v7762 = vadd.f32 %v6518, %v7698
        %v7763 = vadd.f32 %v6519, %v7699
        %v7764 = vadd.f32 %v6520, %v7700
        %v7765 = vadd.f32 %v6521, %v7701
        %v7766 = vadd.f32 %v6522, %v7702
        %v7767 = vadd.f32 %v6523, %v7703
        %v7768 = vadd.f32 %v6524, %v7704
        %v7769 = vadd.f32 %v6525, %v7705
        %v7770 = vadd.f32 %v6526, %v7706
        %v7771 = vadd.f32 %v6527, %v7707
        %v7772 = vadd.f32 %v6528, %v7708
        %v7773 = vadd.f32 %v6529, %v7709
        %v7774 = vadd.f32 %v6530, %v7710
        %v7775 = vadd.f32 %v6531, %v7711
        %v7776 = vadd.f32 %v6532, %v7712
        %v7777 = vadd.f32 %v6533, %v7713
        %v7778 = vadd.f32 %v6534, %v7714
        %v7779 = vadd.f32 %v6535, %v7715
        %v7780 = vadd.f32 %v6536, %v7716
        %v7781 = vadd.f32 %v6537, %v7717
        %v7782 = vadd.f32 %v6538, %v7718
        %v7783 = vadd.f32 %v6539, %v7719
        %v7784 = vadd.f32 %v6540, %v7720
        %v7785 = vadd.f32 %v6541, %v7721
        %v7786 = vadd.f32 %v6542, %v7722
        %v7787 = vadd.f32 %v6543, %v7723
        %v7788 = vadd.f32 %v6544, %v7724
        %v7789 = vadd.f32 %v6545, %v7725
        %v7790 = vadd.f32 %v6546, %v7726
        %v7791 = vadd.f32 %v6547, %v7727
        %v7792 = vadd.f32 %v6548, %v7728
        %v7793 = vadd.f32 %v6549, %v7729
        %v7794 = vadd.f32 %v6550, %v7730
        %v7795 = vadd.f32 %v6551, %v7731
        %v7796 = vadd.f32 %v6552, %v7732
        %v7797 = vadd.f32 %v6553, %v7733
        %v7798 = vadd.f32 %v6554, %v7734
        %7863 = vrot.lane.b32.xlu0 %v7671, 64
        %v7864 = vpop.permute.xlu0 %7863
        %7865 = vrot.lane.b32.xlu0 %v7672, 64
        %v7866 = vpop.permute.xlu0 %7865
        %7867 = vrot.lane.b32.xlu0 %v7673, 64
        %v7868 = vpop.permute.xlu0 %7867
        %7869 = vrot.lane.b32.xlu0 %v7674, 64
        %v7870 = vpop.permute.xlu0 %7869
        %7871 = vrot.lane.b32.xlu0 %v7675, 64
        %v7872 = vpop.permute.xlu0 %7871
        %7873 = vrot.lane.b32.xlu0 %v7676, 64
        %v7874 = vpop.permute.xlu0 %7873
        %7875 = vrot.lane.b32.xlu0 %v7677, 64
        %v7876 = vpop.permute.xlu0 %7875
        %7877 = vrot.lane.b32.xlu0 %v7678, 64
        %v7878 = vpop.permute.xlu0 %7877
        %7879 = vrot.lane.b32.xlu0 %v7679, 64
        %v7880 = vpop.permute.xlu0 %7879
        %7881 = vrot.lane.b32.xlu0 %v7680, 64
        %v7882 = vpop.permute.xlu0 %7881
        %7883 = vrot.lane.b32.xlu0 %v7681, 64
        %v7884 = vpop.permute.xlu0 %7883
        %7885 = vrot.lane.b32.xlu0 %v7682, 64
        %v7886 = vpop.permute.xlu0 %7885
        %7887 = vrot.lane.b32.xlu0 %v7683, 64
        %v7888 = vpop.permute.xlu0 %7887
        %7889 = vrot.lane.b32.xlu0 %v7684, 64
        %v7890 = vpop.permute.xlu0 %7889
        %7891 = vrot.lane.b32.xlu0 %v7685, 64
        %v7892 = vpop.permute.xlu0 %7891
        %7893 = vrot.lane.b32.xlu0 %v7686, 64
        %v7894 = vpop.permute.xlu0 %7893
        %7895 = vrot.lane.b32.xlu0 %v7687, 64
        %v7896 = vpop.permute.xlu0 %7895
        %7897 = vrot.lane.b32.xlu0 %v7688, 64
        %v7898 = vpop.permute.xlu0 %7897
        %7899 = vrot.lane.b32.xlu0 %v7689, 64
        %v7900 = vpop.permute.xlu0 %7899
        %7901 = vrot.lane.b32.xlu0 %v7690, 64
        %v7902 = vpop.permute.xlu0 %7901
        %7903 = vrot.lane.b32.xlu0 %v7691, 64
        %v7904 = vpop.permute.xlu0 %7903
        %7905 = vrot.lane.b32.xlu0 %v7692, 64
        %v7906 = vpop.permute.xlu0 %7905
        %7907 = vrot.lane.b32.xlu0 %v7693, 64
        %v7908 = vpop.permute.xlu0 %7907
        %7909 = vrot.lane.b32.xlu0 %v7694, 64
        %v7910 = vpop.permute.xlu0 %7909
        %7911 = vrot.lane.b32.xlu0 %v7695, 64
        %v7912 = vpop.permute.xlu0 %7911
        %7913 = vrot.lane.b32.xlu0 %v7696, 64
        %v7914 = vpop.permute.xlu0 %7913
        %7915 = vrot.lane.b32.xlu0 %v7697, 64
        %v7916 = vpop.permute.xlu0 %7915
        %7917 = vrot.lane.b32.xlu0 %v7698, 64
        %v7918 = vpop.permute.xlu0 %7917
        %7919 = vrot.lane.b32.xlu0 %v7699, 64
        %v7920 = vpop.permute.xlu0 %7919
        %7921 = vrot.lane.b32.xlu0 %v7700, 64
        %v7922 = vpop.permute.xlu0 %7921
        %7923 = vrot.lane.b32.xlu0 %v7701, 64
        %v7924 = vpop.permute.xlu0 %7923
        %7925 = vrot.lane.b32.xlu0 %v7702, 64
        %v7926 = vpop.permute.xlu0 %7925
        %7927 = vrot.lane.b32.xlu0 %v7703, 64
        %v7928 = vpop.permute.xlu0 %7927
        %7929 = vrot.lane.b32.xlu0 %v7704, 64
        %v7930 = vpop.permute.xlu0 %7929
        %7931 = vrot.lane.b32.xlu0 %v7705, 64
        %v7932 = vpop.permute.xlu0 %7931
        %7933 = vrot.lane.b32.xlu0 %v7706, 64
        %v7934 = vpop.permute.xlu0 %7933
        %7935 = vrot.lane.b32.xlu0 %v7707, 64
        %v7936 = vpop.permute.xlu0 %7935
        %7937 = vrot.lane.b32.xlu0 %v7708, 64
        %v7938 = vpop.permute.xlu0 %7937
        %7939 = vrot.lane.b32.xlu0 %v7709, 64
        %v7940 = vpop.permute.xlu0 %7939
        %7941 = vrot.lane.b32.xlu0 %v7710, 64
        %v7942 = vpop.permute.xlu0 %7941
        %7943 = vrot.lane.b32.xlu0 %v7711, 64
        %v7944 = vpop.permute.xlu0 %7943
        %7945 = vrot.lane.b32.xlu0 %v7712, 64
        %v7946 = vpop.permute.xlu0 %7945
        %7947 = vrot.lane.b32.xlu0 %v7713, 64
        %v7948 = vpop.permute.xlu0 %7947
        %7949 = vrot.lane.b32.xlu0 %v7714, 64
        %v7950 = vpop.permute.xlu0 %7949
        %7951 = vrot.lane.b32.xlu0 %v7715, 64
        %v7952 = vpop.permute.xlu0 %7951
        %7953 = vrot.lane.b32.xlu0 %v7716, 64
        %v7954 = vpop.permute.xlu0 %7953
        %7955 = vrot.lane.b32.xlu0 %v7717, 64
        %v7956 = vpop.permute.xlu0 %7955
        %7957 = vrot.lane.b32.xlu0 %v7718, 64
        %v7958 = vpop.permute.xlu0 %7957
        %7959 = vrot.lane.b32.xlu0 %v7719, 64
        %v7960 = vpop.permute.xlu0 %7959
        %7961 = vrot.lane.b32.xlu0 %v7720, 64
        %v7962 = vpop.permute.xlu0 %7961
        %7963 = vrot.lane.b32.xlu0 %v7721, 64
        %v7964 = vpop.permute.xlu0 %7963
        %7965 = vrot.lane.b32.xlu0 %v7722, 64
        %v7966 = vpop.permute.xlu0 %7965
        %7967 = vrot.lane.b32.xlu0 %v7723, 64
        %v7968 = vpop.permute.xlu0 %7967
        %7969 = vrot.lane.b32.xlu0 %v7724, 64
        %v7970 = vpop.permute.xlu0 %7969
        %7971 = vrot.lane.b32.xlu0 %v7725, 64
        %v7972 = vpop.permute.xlu0 %7971
        %7973 = vrot.lane.b32.xlu0 %v7726, 64
        %v7974 = vpop.permute.xlu0 %7973
        %7975 = vrot.lane.b32.xlu0 %v7727, 64
        %v7976 = vpop.permute.xlu0 %7975
        %7977 = vrot.lane.b32.xlu0 %v7728, 64
        %v7978 = vpop.permute.xlu0 %7977
        %7979 = vrot.lane.b32.xlu0 %v7729, 64
        %v7980 = vpop.permute.xlu0 %7979
        %7981 = vrot.lane.b32.xlu0 %v7730, 64
        %v7982 = vpop.permute.xlu0 %7981
        %7983 = vrot.lane.b32.xlu0 %v7731, 64
        %v7984 = vpop.permute.xlu0 %7983
        %7985 = vrot.lane.b32.xlu0 %v7732, 64
        %v7986 = vpop.permute.xlu0 %7985
        %7987 = vrot.lane.b32.xlu0 %v7733, 64
        %v7988 = vpop.permute.xlu0 %7987
        %7989 = vrot.lane.b32.xlu0 %v7734, 64
        %v7990 = vpop.permute.xlu0 %7989
        %v8055 = vadd.f32 %v7735, %v7864
        %v8056 = vadd.f32 %v7736, %v7866
        %v8057 = vadd.f32 %v7737, %v7868
        %v8058 = vadd.f32 %v7738, %v7870
        %v8059 = vadd.f32 %v7739, %v7872
        %v8060 = vadd.f32 %v7740, %v7874
        %v8061 = vadd.f32 %v7741, %v7876
        %v8062 = vadd.f32 %v7742, %v7878
        %v8063 = vadd.f32 %v7743, %v7880
        %v8064 = vadd.f32 %v7744, %v7882
        %v8065 = vadd.f32 %v7745, %v7884
        %v8066 = vadd.f32 %v7746, %v7886
        %v8067 = vadd.f32 %v7747, %v7888
        %v8068 = vadd.f32 %v7748, %v7890
        %v8069 = vadd.f32 %v7749, %v7892
        %v8070 = vadd.f32 %v7750, %v7894
        %v8071 = vadd.f32 %v7751, %v7896
        %v8072 = vadd.f32 %v7752, %v7898
        %v8073 = vadd.f32 %v7753, %v7900
        %v8074 = vadd.f32 %v7754, %v7902
        %v8075 = vadd.f32 %v7755, %v7904
        %v8076 = vadd.f32 %v7756, %v7906
        %v8077 = vadd.f32 %v7757, %v7908
        %v8078 = vadd.f32 %v7758, %v7910
        %v8079 = vadd.f32 %v7759, %v7912
        %v8080 = vadd.f32 %v7760, %v7914
        %v8081 = vadd.f32 %v7761, %v7916
        %v8082 = vadd.f32 %v7762, %v7918
        %v8083 = vadd.f32 %v7763, %v7920
        %v8084 = vadd.f32 %v7764, %v7922
        %v8085 = vadd.f32 %v7765, %v7924
        %v8086 = vadd.f32 %v7766, %v7926
        %v8087 = vadd.f32 %v7767, %v7928
        %v8088 = vadd.f32 %v7768, %v7930
        %v8089 = vadd.f32 %v7769, %v7932
        %v8090 = vadd.f32 %v7770, %v7934
        %v8091 = vadd.f32 %v7771, %v7936
        %v8092 = vadd.f32 %v7772, %v7938
        %v8093 = vadd.f32 %v7773, %v7940
        %v8094 = vadd.f32 %v7774, %v7942
        %v8095 = vadd.f32 %v7775, %v7944
        %v8096 = vadd.f32 %v7776, %v7946
        %v8097 = vadd.f32 %v7777, %v7948
        %v8098 = vadd.f32 %v7778, %v7950
        %v8099 = vadd.f32 %v7779, %v7952
        %v8100 = vadd.f32 %v7780, %v7954
        %v8101 = vadd.f32 %v7781, %v7956
        %v8102 = vadd.f32 %v7782, %v7958
        %v8103 = vadd.f32 %v7783, %v7960
        %v8104 = vadd.f32 %v7784, %v7962
        %v8105 = vadd.f32 %v7785, %v7964
        %v8106 = vadd.f32 %v7786, %v7966
        %v8107 = vadd.f32 %v7787, %v7968
        %v8108 = vadd.f32 %v7788, %v7970
        %v8109 = vadd.f32 %v7789, %v7972
        %v8110 = vadd.f32 %v7790, %v7974
        %v8111 = vadd.f32 %v7791, %v7976
        %v8112 = vadd.f32 %v7792, %v7978
        %v8113 = vadd.f32 %v7793, %v7980
        %v8114 = vadd.f32 %v7794, %v7982
        %v8115 = vadd.f32 %v7795, %v7984
        %v8116 = vadd.f32 %v7796, %v7986
        %v8117 = vadd.f32 %v7797, %v7988
        %v8118 = vadd.f32 %v7798, %v7990
        %v8119 = vld [vmem:[%s5] sm:$0xff]
        %v8120 = vld [vmem:[%s5 + $0x8] sm:$0xff]
        %v8121 = vld [vmem:[%s5 + $0x10] sm:$0xff]
        %v8122 = vld [vmem:[%s5 + $0x18] sm:$0xff]
        %v8123 = vadd.f32 %v8055, %v8119
        %v8124 = vadd.f32 %v8056, %v8120
        %v8125 = vadd.f32 %v8057, %v8121
        %v8126 = vadd.f32 %v8058, %v8122
        %v8127 = vadd.f32 %v8059, %v8119
        %v8128 = vadd.f32 %v8060, %v8120
        %v8129 = vadd.f32 %v8061, %v8121
        %v8130 = vadd.f32 %v8062, %v8122
        %v8131 = vadd.f32 %v8063, %v8119
        %v8132 = vadd.f32 %v8064, %v8120
        %v8133 = vadd.f32 %v8065, %v8121
        %v8134 = vadd.f32 %v8066, %v8122
        %v8135 = vadd.f32 %v8067, %v8119
        %v8136 = vadd.f32 %v8068, %v8120
        %v8137 = vadd.f32 %v8069, %v8121
        %v8138 = vadd.f32 %v8070, %v8122
        %v8139 = vadd.f32 %v8071, %v8119
        %v8140 = vadd.f32 %v8072, %v8120
        %v8141 = vadd.f32 %v8073, %v8121
        %v8142 = vadd.f32 %v8074, %v8122
        %v8143 = vadd.f32 %v8075, %v8119
        %v8144 = vadd.f32 %v8076, %v8120
        %v8145 = vadd.f32 %v8077, %v8121
        %v8146 = vadd.f32 %v8078, %v8122
        %v8147 = vadd.f32 %v8079, %v8119
        %v8148 = vadd.f32 %v8080, %v8120
        %v8149 = vadd.f32 %v8081, %v8121
        %v8150 = vadd.f32 %v8082, %v8122
        %v8151 = vadd.f32 %v8083, %v8119
        %v8152 = vadd.f32 %v8084, %v8120
        %v8153 = vadd.f32 %v8085, %v8121
        %v8154 = vadd.f32 %v8086, %v8122
        %v8155 = vadd.f32 %v8087, %v8119
        %v8156 = vadd.f32 %v8088, %v8120
        %v8157 = vadd.f32 %v8089, %v8121
        %v8158 = vadd.f32 %v8090, %v8122
        %v8159 = vadd.f32 %v8091, %v8119
        %v8160 = vadd.f32 %v8092, %v8120
        %v8161 = vadd.f32 %v8093, %v8121
        %v8162 = vadd.f32 %v8094, %v8122
        %v8163 = vadd.f32 %v8095, %v8119
        %v8164 = vadd.f32 %v8096, %v8120
        %v8165 = vadd.f32 %v8097, %v8121
        %v8166 = vadd.f32 %v8098, %v8122
        %v8167 = vadd.f32 %v8099, %v8119
        %v8168 = vadd.f32 %v8100, %v8120
        %v8169 = vadd.f32 %v8101, %v8121
        %v8170 = vadd.f32 %v8102, %v8122
        %v8171 = vadd.f32 %v8103, %v8119
        %v8172 = vadd.f32 %v8104, %v8120
        %v8173 = vadd.f32 %v8105, %v8121
        %v8174 = vadd.f32 %v8106, %v8122
        %v8175 = vadd.f32 %v8107, %v8119
        %v8176 = vadd.f32 %v8108, %v8120
        %v8177 = vadd.f32 %v8109, %v8121
        %v8178 = vadd.f32 %v8110, %v8122
        %v8179 = vadd.f32 %v8111, %v8119
        %v8180 = vadd.f32 %v8112, %v8120
        %v8181 = vadd.f32 %v8113, %v8121
        %v8182 = vadd.f32 %v8114, %v8122
        %v8183 = vadd.f32 %v8115, %v8119
        %v8184 = vadd.f32 %v8116, %v8120
        %v8185 = vadd.f32 %v8117, %v8121
        %v8186 = vadd.f32 %v8118, %v8122
        %v8187 = vmul.f32 %v8123, 0.5
        %v8188 = vmul.f32 %v8124, 0.5
        %v8189 = vmul.f32 %v8125, 0.5
        %v8190 = vmul.f32 %v8126, 0.5
        %v8191 = vmul.f32 %v8127, 0.5
        %v8192 = vmul.f32 %v8128, 0.5
        %v8193 = vmul.f32 %v8129, 0.5
        %v8194 = vmul.f32 %v8130, 0.5
        %v8195 = vmul.f32 %v8131, 0.5
        %v8196 = vmul.f32 %v8132, 0.5
        %v8197 = vmul.f32 %v8133, 0.5
        %v8198 = vmul.f32 %v8134, 0.5
        %v8199 = vmul.f32 %v8135, 0.5
        %v8200 = vmul.f32 %v8136, 0.5
        %v8201 = vmul.f32 %v8137, 0.5
        %v8202 = vmul.f32 %v8138, 0.5
        %v8203 = vmul.f32 %v8139, 0.5
        %v8204 = vmul.f32 %v8140, 0.5
        %v8205 = vmul.f32 %v8141, 0.5
        %v8206 = vmul.f32 %v8142, 0.5
        %v8207 = vmul.f32 %v8143, 0.5
        %v8208 = vmul.f32 %v8144, 0.5
        %v8209 = vmul.f32 %v8145, 0.5
        %v8210 = vmul.f32 %v8146, 0.5
        %v8211 = vmul.f32 %v8147, 0.5
        %v8212 = vmul.f32 %v8148, 0.5
        %v8213 = vmul.f32 %v8149, 0.5
        %v8214 = vmul.f32 %v8150, 0.5
        %v8215 = vmul.f32 %v8151, 0.5
        %v8216 = vmul.f32 %v8152, 0.5
        %v8217 = vmul.f32 %v8153, 0.5
        %v8218 = vmul.f32 %v8154, 0.5
        %v8219 = vmul.f32 %v8155, 0.5
        %v8220 = vmul.f32 %v8156, 0.5
        %v8221 = vmul.f32 %v8157, 0.5
        %v8222 = vmul.f32 %v8158, 0.5
        %v8223 = vmul.f32 %v8159, 0.5
        %v8224 = vmul.f32 %v8160, 0.5
        %v8225 = vmul.f32 %v8161, 0.5
        %v8226 = vmul.f32 %v8162, 0.5
        %v8227 = vmul.f32 %v8163, 0.5
        %v8228 = vmul.f32 %v8164, 0.5
        %v8229 = vmul.f32 %v8165, 0.5
        %v8230 = vmul.f32 %v8166, 0.5
        %v8231 = vmul.f32 %v8167, 0.5
        %v8232 = vmul.f32 %v8168, 0.5
        %v8233 = vmul.f32 %v8169, 0.5
        %v8234 = vmul.f32 %v8170, 0.5
        %v8235 = vmul.f32 %v8171, 0.5
        %v8236 = vmul.f32 %v8172, 0.5
        %v8237 = vmul.f32 %v8173, 0.5
        %v8238 = vmul.f32 %v8174, 0.5
        %v8239 = vmul.f32 %v8175, 0.5
        %v8240 = vmul.f32 %v8176, 0.5
        %v8241 = vmul.f32 %v8177, 0.5
        %v8242 = vmul.f32 %v8178, 0.5
        %v8243 = vmul.f32 %v8179, 0.5
        %v8244 = vmul.f32 %v8180, 0.5
        %v8245 = vmul.f32 %v8181, 0.5
        %v8246 = vmul.f32 %v8182, 0.5
        %v8247 = vmul.f32 %v8183, 0.5
        %v8248 = vmul.f32 %v8184, 0.5
        %v8249 = vmul.f32 %v8185, 0.5
        %v8250 = vmul.f32 %v8186, 0.5
        %v8251 = vmul.f32 %v8123, 0.70710677
        %v8252 = vmul.f32 %v8124, 0.70710677
        %v8253 = vmul.f32 %v8125, 0.70710677
        %v8254 = vmul.f32 %v8126, 0.70710677
        %v8255 = vmul.f32 %v8127, 0.70710677
        %v8256 = vmul.f32 %v8128, 0.70710677
        %v8257 = vmul.f32 %v8129, 0.70710677
        %v8258 = vmul.f32 %v8130, 0.70710677
        %v8259 = vmul.f32 %v8131, 0.70710677
        %v8260 = vmul.f32 %v8132, 0.70710677
        %v8261 = vmul.f32 %v8133, 0.70710677
        %v8262 = vmul.f32 %v8134, 0.70710677
        %v8263 = vmul.f32 %v8135, 0.70710677
        %v8264 = vmul.f32 %v8136, 0.70710677
        %v8265 = vmul.f32 %v8137, 0.70710677
        %v8266 = vmul.f32 %v8138, 0.70710677
        %v8267 = vmul.f32 %v8139, 0.70710677
        %v8268 = vmul.f32 %v8140, 0.70710677
        %v8269 = vmul.f32 %v8141, 0.70710677
        %v8270 = vmul.f32 %v8142, 0.70710677
        %v8271 = vmul.f32 %v8143, 0.70710677
        %v8272 = vmul.f32 %v8144, 0.70710677
        %v8273 = vmul.f32 %v8145, 0.70710677
        %v8274 = vmul.f32 %v8146, 0.70710677
        %v8275 = vmul.f32 %v8147, 0.70710677
        %v8276 = vmul.f32 %v8148, 0.70710677
        %v8277 = vmul.f32 %v8149, 0.70710677
        %v8278 = vmul.f32 %v8150, 0.70710677
        %v8279 = vmul.f32 %v8151, 0.70710677
        %v8280 = vmul.f32 %v8152, 0.70710677
        %v8281 = vmul.f32 %v8153, 0.70710677
        %v8282 = vmul.f32 %v8154, 0.70710677
        %v8283 = vmul.f32 %v8155, 0.70710677
        %v8284 = vmul.f32 %v8156, 0.70710677
        %v8285 = vmul.f32 %v8157, 0.70710677
        %v8286 = vmul.f32 %v8158, 0.70710677
        %v8287 = vmul.f32 %v8159, 0.70710677
        %v8288 = vmul.f32 %v8160, 0.70710677
        %v8289 = vmul.f32 %v8161, 0.70710677
        %v8290 = vmul.f32 %v8162, 0.70710677
        %v8291 = vmul.f32 %v8163, 0.70710677
        %v8292 = vmul.f32 %v8164, 0.70710677
        %v8293 = vmul.f32 %v8165, 0.70710677
        %v8294 = vmul.f32 %v8166, 0.70710677
        %v8295 = vmul.f32 %v8167, 0.70710677
        %v8296 = vmul.f32 %v8168, 0.70710677
        %v8297 = vmul.f32 %v8169, 0.70710677
        %v8298 = vmul.f32 %v8170, 0.70710677
        %v8299 = vmul.f32 %v8171, 0.70710677
        %v8300 = vmul.f32 %v8172, 0.70710677
        %v8301 = vmul.f32 %v8173, 0.70710677
        %v8302 = vmul.f32 %v8174, 0.70710677
        %v8303 = vmul.f32 %v8175, 0.70710677
        %v8304 = vmul.f32 %v8176, 0.70710677
        %v8305 = vmul.f32 %v8177, 0.70710677
        %v8306 = vmul.f32 %v8178, 0.70710677
        %v8307 = vmul.f32 %v8179, 0.70710677
        %v8308 = vmul.f32 %v8180, 0.70710677
        %v8309 = vmul.f32 %v8181, 0.70710677
        %v8310 = vmul.f32 %v8182, 0.70710677
        %v8311 = vmul.f32 %v8183, 0.70710677
        %v8312 = vmul.f32 %v8184, 0.70710677
        %v8313 = vmul.f32 %v8185, 0.70710677
        %v8314 = vmul.f32 %v8186, 0.70710677
        %vm8315 = vcmp.lt.f32.partialorder %v8251, 0.0
        %vm8316 = vcmp.lt.f32.partialorder %v8252, 0.0
        %vm8317 = vcmp.lt.f32.partialorder %v8253, 0.0
        %vm8318 = vcmp.lt.f32.partialorder %v8254, 0.0
        %vm8319 = vcmp.lt.f32.partialorder %v8255, 0.0
        %vm8320 = vcmp.lt.f32.partialorder %v8256, 0.0
        %vm8321 = vcmp.lt.f32.partialorder %v8257, 0.0
        %vm8322 = vcmp.lt.f32.partialorder %v8258, 0.0
        %vm8323 = vcmp.lt.f32.partialorder %v8259, 0.0
        %vm8324 = vcmp.lt.f32.partialorder %v8260, 0.0
        %vm8325 = vcmp.lt.f32.partialorder %v8261, 0.0
        %vm8326 = vcmp.lt.f32.partialorder %v8262, 0.0
        %vm8327 = vcmp.lt.f32.partialorder %v8263, 0.0
        %vm8328 = vcmp.lt.f32.partialorder %v8264, 0.0
        %vm8329 = vcmp.lt.f32.partialorder %v8265, 0.0
        %vm8330 = vcmp.lt.f32.partialorder %v8266, 0.0
        %vm8331 = vcmp.lt.f32.partialorder %v8267, 0.0
        %vm8332 = vcmp.lt.f32.partialorder %v8268, 0.0
        %vm8333 = vcmp.lt.f32.partialorder %v8269, 0.0
        %vm8334 = vcmp.lt.f32.partialorder %v8270, 0.0
        %vm8335 = vcmp.lt.f32.partialorder %v8271, 0.0
        %vm8336 = vcmp.lt.f32.partialorder %v8272, 0.0
        %vm8337 = vcmp.lt.f32.partialorder %v8273, 0.0
        %vm8338 = vcmp.lt.f32.partialorder %v8274, 0.0
        %vm8339 = vcmp.lt.f32.partialorder %v8275, 0.0
        %vm8340 = vcmp.lt.f32.partialorder %v8276, 0.0
        %vm8341 = vcmp.lt.f32.partialorder %v8277, 0.0
        %vm8342 = vcmp.lt.f32.partialorder %v8278, 0.0
        %vm8343 = vcmp.lt.f32.partialorder %v8279, 0.0
        %vm8344 = vcmp.lt.f32.partialorder %v8280, 0.0
        %vm8345 = vcmp.lt.f32.partialorder %v8281, 0.0
        %vm8346 = vcmp.lt.f32.partialorder %v8282, 0.0
        %vm8347 = vcmp.lt.f32.partialorder %v8283, 0.0
        %vm8348 = vcmp.lt.f32.partialorder %v8284, 0.0
        %vm8349 = vcmp.lt.f32.partialorder %v8285, 0.0
        %vm8350 = vcmp.lt.f32.partialorder %v8286, 0.0
        %vm8351 = vcmp.lt.f32.partialorder %v8287, 0.0
        %vm8352 = vcmp.lt.f32.partialorder %v8288, 0.0
        %vm8353 = vcmp.lt.f32.partialorder %v8289, 0.0
        %vm8354 = vcmp.lt.f32.partialorder %v8290, 0.0
        %vm8355 = vcmp.lt.f32.partialorder %v8291, 0.0
        %vm8356 = vcmp.lt.f32.partialorder %v8292, 0.0
        %vm8357 = vcmp.lt.f32.partialorder %v8293, 0.0
        %vm8358 = vcmp.lt.f32.partialorder %v8294, 0.0
        %vm8359 = vcmp.lt.f32.partialorder %v8295, 0.0
        %vm8360 = vcmp.lt.f32.partialorder %v8296, 0.0
        %vm8361 = vcmp.lt.f32.partialorder %v8297, 0.0
        %vm8362 = vcmp.lt.f32.partialorder %v8298, 0.0
        %vm8363 = vcmp.lt.f32.partialorder %v8299, 0.0
        %vm8364 = vcmp.lt.f32.partialorder %v8300, 0.0
        %vm8365 = vcmp.lt.f32.partialorder %v8301, 0.0
        %vm8366 = vcmp.lt.f32.partialorder %v8302, 0.0
        %vm8367 = vcmp.lt.f32.partialorder %v8303, 0.0
        %vm8368 = vcmp.lt.f32.partialorder %v8304, 0.0
        %vm8369 = vcmp.lt.f32.partialorder %v8305, 0.0
        %vm8370 = vcmp.lt.f32.partialorder %v8306, 0.0
        %vm8371 = vcmp.lt.f32.partialorder %v8307, 0.0
        %vm8372 = vcmp.lt.f32.partialorder %v8308, 0.0
        %vm8373 = vcmp.lt.f32.partialorder %v8309, 0.0
        %vm8374 = vcmp.lt.f32.partialorder %v8310, 0.0
        %vm8375 = vcmp.lt.f32.partialorder %v8311, 0.0
        %vm8376 = vcmp.lt.f32.partialorder %v8312, 0.0
        %vm8377 = vcmp.lt.f32.partialorder %v8313, 0.0
        %vm8378 = vcmp.lt.f32.partialorder %v8314, 0.0
        %v8379 = vsel %vm8315, -1.0, 1.0
        %v8380 = vsel %vm8316, -1.0, 1.0
        %v8381 = vsel %vm8317, -1.0, 1.0
        %v8382 = vsel %vm8318, -1.0, 1.0
        %v8383 = vsel %vm8319, -1.0, 1.0
        %v8384 = vsel %vm8320, -1.0, 1.0
        %v8385 = vsel %vm8321, -1.0, 1.0
        %v8386 = vsel %vm8322, -1.0, 1.0
        %v8387 = vsel %vm8323, -1.0, 1.0
        %v8388 = vsel %vm8324, -1.0, 1.0
        %v8389 = vsel %vm8325, -1.0, 1.0
        %v8390 = vsel %vm8326, -1.0, 1.0
        %v8391 = vsel %vm8327, -1.0, 1.0
        %v8392 = vsel %vm8328, -1.0, 1.0
        %v8393 = vsel %vm8329, -1.0, 1.0
        %v8394 = vsel %vm8330, -1.0, 1.0
        %v8395 = vsel %vm8331, -1.0, 1.0
        %v8396 = vsel %vm8332, -1.0, 1.0
        %v8397 = vsel %vm8333, -1.0, 1.0
        %v8398 = vsel %vm8334, -1.0, 1.0
        %v8399 = vsel %vm8335, -1.0, 1.0
        %v8400 = vsel %vm8336, -1.0, 1.0
        %v8401 = vsel %vm8337, -1.0, 1.0
        %v8402 = vsel %vm8338, -1.0, 1.0
        %v8403 = vsel %vm8339, -1.0, 1.0
        %v8404 = vsel %vm8340, -1.0, 1.0
        %v8405 = vsel %vm8341, -1.0, 1.0
        %v8406 = vsel %vm8342, -1.0, 1.0
        %v8407 = vsel %vm8343, -1.0, 1.0
        %v8408 = vsel %vm8344, -1.0, 1.0
        %v8409 = vsel %vm8345, -1.0, 1.0
        %v8410 = vsel %vm8346, -1.0, 1.0
        %v8411 = vsel %vm8347, -1.0, 1.0
        %v8412 = vsel %vm8348, -1.0, 1.0
        %v8413 = vsel %vm8349, -1.0, 1.0
        %v8414 = vsel %vm8350, -1.0, 1.0
        %v8415 = vsel %vm8351, -1.0, 1.0
        %v8416 = vsel %vm8352, -1.0, 1.0
        %v8417 = vsel %vm8353, -1.0, 1.0
        %v8418 = vsel %vm8354, -1.0, 1.0
        %v8419 = vsel %vm8355, -1.0, 1.0
        %v8420 = vsel %vm8356, -1.0, 1.0
        %v8421 = vsel %vm8357, -1.0, 1.0
        %v8422 = vsel %vm8358, -1.0, 1.0
        %v8423 = vsel %vm8359, -1.0, 1.0
        %v8424 = vsel %vm8360, -1.0, 1.0
        %v8425 = vsel %vm8361, -1.0, 1.0
        %v8426 = vsel %vm8362, -1.0, 1.0
        %v8427 = vsel %vm8363, -1.0, 1.0
        %v8428 = vsel %vm8364, -1.0, 1.0
        %v8429 = vsel %vm8365, -1.0, 1.0
        %v8430 = vsel %vm8366, -1.0, 1.0
        %v8431 = vsel %vm8367, -1.0, 1.0
        %v8432 = vsel %vm8368, -1.0, 1.0
        %v8433 = vsel %vm8369, -1.0, 1.0
        %v8434 = vsel %vm8370, -1.0, 1.0
        %v8435 = vsel %vm8371, -1.0, 1.0
        %v8436 = vsel %vm8372, -1.0, 1.0
        %v8437 = vsel %vm8373, -1.0, 1.0
        %v8438 = vsel %vm8374, -1.0, 1.0
        %v8439 = vsel %vm8375, -1.0, 1.0
        %v8440 = vsel %vm8376, -1.0, 1.0
        %v8441 = vsel %vm8377, -1.0, 1.0
        %v8442 = vsel %vm8378, -1.0, 1.0
        %v8443 = vand.u32 2147483647, %v8251
        %v8444 = vand.u32 2147483647, %v8252
        %v8445 = vand.u32 2147483647, %v8253
        %v8446 = vand.u32 2147483647, %v8254
        %v8447 = vand.u32 2147483647, %v8255
        %v8448 = vand.u32 2147483647, %v8256
        %v8449 = vand.u32 2147483647, %v8257
        %v8450 = vand.u32 2147483647, %v8258
        %v8451 = vand.u32 2147483647, %v8259
        %v8452 = vand.u32 2147483647, %v8260
        %v8453 = vand.u32 2147483647, %v8261
        %v8454 = vand.u32 2147483647, %v8262
        %v8455 = vand.u32 2147483647, %v8263
        %v8456 = vand.u32 2147483647, %v8264
        %v8457 = vand.u32 2147483647, %v8265
        %v8458 = vand.u32 2147483647, %v8266
        %v8459 = vand.u32 2147483647, %v8267
        %v8460 = vand.u32 2147483647, %v8268
        %v8461 = vand.u32 2147483647, %v8269
        %v8462 = vand.u32 2147483647, %v8270
        %v8463 = vand.u32 2147483647, %v8271
        %v8464 = vand.u32 2147483647, %v8272
        %v8465 = vand.u32 2147483647, %v8273
        %v8466 = vand.u32 2147483647, %v8274
        %v8467 = vand.u32 2147483647, %v8275
        %v8468 = vand.u32 2147483647, %v8276
        %v8469 = vand.u32 2147483647, %v8277
        %v8470 = vand.u32 2147483647, %v8278
        %v8471 = vand.u32 2147483647, %v8279
        %v8472 = vand.u32 2147483647, %v8280
        %v8473 = vand.u32 2147483647, %v8281
        %v8474 = vand.u32 2147483647, %v8282
        %v8475 = vand.u32 2147483647, %v8283
        %v8476 = vand.u32 2147483647, %v8284
        %v8477 = vand.u32 2147483647, %v8285
        %v8478 = vand.u32 2147483647, %v8286
        %v8479 = vand.u32 2147483647, %v8287
        %v8480 = vand.u32 2147483647, %v8288
        %v8481 = vand.u32 2147483647, %v8289
        %v8482 = vand.u32 2147483647, %v8290
        %v8483 = vand.u32 2147483647, %v8291
        %v8484 = vand.u32 2147483647, %v8292
        %v8485 = vand.u32 2147483647, %v8293
        %v8486 = vand.u32 2147483647, %v8294
        %v8487 = vand.u32 2147483647, %v8295
        %v8488 = vand.u32 2147483647, %v8296
        %v8489 = vand.u32 2147483647, %v8297
        %v8490 = vand.u32 2147483647, %v8298
        %v8491 = vand.u32 2147483647, %v8299
        %v8492 = vand.u32 2147483647, %v8300
        %v8493 = vand.u32 2147483647, %v8301
        %v8494 = vand.u32 2147483647, %v8302
        %v8495 = vand.u32 2147483647, %v8303
        %v8496 = vand.u32 2147483647, %v8304
        %v8497 = vand.u32 2147483647, %v8305
        %v8498 = vand.u32 2147483647, %v8306
        %v8499 = vand.u32 2147483647, %v8307
        %v8500 = vand.u32 2147483647, %v8308
        %v8501 = vand.u32 2147483647, %v8309
        %v8502 = vand.u32 2147483647, %v8310
        %v8503 = vand.u32 2147483647, %v8311
        %v8504 = vand.u32 2147483647, %v8312
        %v8505 = vand.u32 2147483647, %v8313
        %v8506 = vand.u32 2147483647, %v8314
        %v8507 = vmul.f32 %v8443, 0.3275911
        %v8508 = vmul.f32 %v8444, 0.3275911
        %v8509 = vmul.f32 %v8445, 0.3275911
        %v8510 = vmul.f32 %v8446, 0.3275911
        %v8511 = vmul.f32 %v8447, 0.3275911
        %v8512 = vmul.f32 %v8448, 0.3275911
        %v8513 = vmul.f32 %v8449, 0.3275911
        %v8514 = vmul.f32 %v8450, 0.3275911
        %v8515 = vmul.f32 %v8451, 0.3275911
        %v8516 = vmul.f32 %v8452, 0.3275911
        %v8517 = vmul.f32 %v8453, 0.3275911
        %v8518 = vmul.f32 %v8454, 0.3275911
        %v8519 = vmul.f32 %v8455, 0.3275911
        %v8520 = vmul.f32 %v8456, 0.3275911
        %v8521 = vmul.f32 %v8457, 0.3275911
        %v8522 = vmul.f32 %v8458, 0.3275911
        %v8523 = vmul.f32 %v8459, 0.3275911
        %v8524 = vmul.f32 %v8460, 0.3275911
        %v8525 = vmul.f32 %v8461, 0.3275911
        %v8526 = vmul.f32 %v8462, 0.3275911
        %v8527 = vmul.f32 %v8463, 0.3275911
        %v8528 = vmul.f32 %v8464, 0.3275911
        %v8529 = vmul.f32 %v8465, 0.3275911
        %v8530 = vmul.f32 %v8466, 0.3275911
        %v8531 = vmul.f32 %v8467, 0.3275911
        %v8532 = vmul.f32 %v8468, 0.3275911
        %v8533 = vmul.f32 %v8469, 0.3275911
        %v8534 = vmul.f32 %v8470, 0.3275911
        %v8535 = vmul.f32 %v8471, 0.3275911
        %v8536 = vmul.f32 %v8472, 0.3275911
        %v8537 = vmul.f32 %v8473, 0.3275911
        %v8538 = vmul.f32 %v8474, 0.3275911
        %v8539 = vmul.f32 %v8475, 0.3275911
        %v8540 = vmul.f32 %v8476, 0.3275911
        %v8541 = vmul.f32 %v8477, 0.3275911
        %v8542 = vmul.f32 %v8478, 0.3275911
        %v8543 = vmul.f32 %v8479, 0.3275911
        %v8544 = vmul.f32 %v8480, 0.3275911
        %v8545 = vmul.f32 %v8481, 0.3275911
        %v8546 = vmul.f32 %v8482, 0.3275911
        %v8547 = vmul.f32 %v8483, 0.3275911
        %v8548 = vmul.f32 %v8484, 0.3275911
        %v8549 = vmul.f32 %v8485, 0.3275911
        %v8550 = vmul.f32 %v8486, 0.3275911
        %v8551 = vmul.f32 %v8487, 0.3275911
        %v8552 = vmul.f32 %v8488, 0.3275911
        %v8553 = vmul.f32 %v8489, 0.3275911
        %v8554 = vmul.f32 %v8490, 0.3275911
        %v8555 = vmul.f32 %v8491, 0.3275911
        %v8556 = vmul.f32 %v8492, 0.3275911
        %v8557 = vmul.f32 %v8493, 0.3275911
        %v8558 = vmul.f32 %v8494, 0.3275911
        %v8559 = vmul.f32 %v8495, 0.3275911
        %v8560 = vmul.f32 %v8496, 0.3275911
        %v8561 = vmul.f32 %v8497, 0.3275911
        %v8562 = vmul.f32 %v8498, 0.3275911
        %v8563 = vmul.f32 %v8499, 0.3275911
        %v8564 = vmul.f32 %v8500, 0.3275911
        %v8565 = vmul.f32 %v8501, 0.3275911
        %v8566 = vmul.f32 %v8502, 0.3275911
        %v8567 = vmul.f32 %v8503, 0.3275911
        %v8568 = vmul.f32 %v8504, 0.3275911
        %v8569 = vmul.f32 %v8505, 0.3275911
        %v8570 = vmul.f32 %v8506, 0.3275911
        %v8571 = vadd.f32 %v8507, 1.0
        %v8572 = vadd.f32 %v8508, 1.0
        %v8573 = vadd.f32 %v8509, 1.0
        %v8574 = vadd.f32 %v8510, 1.0
        %v8575 = vadd.f32 %v8511, 1.0
        %v8576 = vadd.f32 %v8512, 1.0
        %v8577 = vadd.f32 %v8513, 1.0
        %v8578 = vadd.f32 %v8514, 1.0
        %v8579 = vadd.f32 %v8515, 1.0
        %v8580 = vadd.f32 %v8516, 1.0
        %v8581 = vadd.f32 %v8517, 1.0
        %v8582 = vadd.f32 %v8518, 1.0
        %v8583 = vadd.f32 %v8519, 1.0
        %v8584 = vadd.f32 %v8520, 1.0
        %v8585 = vadd.f32 %v8521, 1.0
        %v8586 = vadd.f32 %v8522, 1.0
        %v8587 = vadd.f32 %v8523, 1.0
        %v8588 = vadd.f32 %v8524, 1.0
        %v8589 = vadd.f32 %v8525, 1.0
        %v8590 = vadd.f32 %v8526, 1.0
        %v8591 = vadd.f32 %v8527, 1.0
        %v8592 = vadd.f32 %v8528, 1.0
        %v8593 = vadd.f32 %v8529, 1.0
        %v8594 = vadd.f32 %v8530, 1.0
        %v8595 = vadd.f32 %v8531, 1.0
        %v8596 = vadd.f32 %v8532, 1.0
        %v8597 = vadd.f32 %v8533, 1.0
        %v8598 = vadd.f32 %v8534, 1.0
        %v8599 = vadd.f32 %v8535, 1.0
        %v8600 = vadd.f32 %v8536, 1.0
        %v8601 = vadd.f32 %v8537, 1.0
        %v8602 = vadd.f32 %v8538, 1.0
        %v8603 = vadd.f32 %v8539, 1.0
        %v8604 = vadd.f32 %v8540, 1.0
        %v8605 = vadd.f32 %v8541, 1.0
        %v8606 = vadd.f32 %v8542, 1.0
        %v8607 = vadd.f32 %v8543, 1.0
        %v8608 = vadd.f32 %v8544, 1.0
        %v8609 = vadd.f32 %v8545, 1.0
        %v8610 = vadd.f32 %v8546, 1.0
        %v8611 = vadd.f32 %v8547, 1.0
        %v8612 = vadd.f32 %v8548, 1.0
        %v8613 = vadd.f32 %v8549, 1.0
        %v8614 = vadd.f32 %v8550, 1.0
        %v8615 = vadd.f32 %v8551, 1.0
        %v8616 = vadd.f32 %v8552, 1.0
        %v8617 = vadd.f32 %v8553, 1.0
        %v8618 = vadd.f32 %v8554, 1.0
        %v8619 = vadd.f32 %v8555, 1.0
        %v8620 = vadd.f32 %v8556, 1.0
        %v8621 = vadd.f32 %v8557, 1.0
        %v8622 = vadd.f32 %v8558, 1.0
        %v8623 = vadd.f32 %v8559, 1.0
        %v8624 = vadd.f32 %v8560, 1.0
        %v8625 = vadd.f32 %v8561, 1.0
        %v8626 = vadd.f32 %v8562, 1.0
        %v8627 = vadd.f32 %v8563, 1.0
        %v8628 = vadd.f32 %v8564, 1.0
        %v8629 = vadd.f32 %v8565, 1.0
        %v8630 = vadd.f32 %v8566, 1.0
        %v8631 = vadd.f32 %v8567, 1.0
        %v8632 = vadd.f32 %v8568, 1.0
        %v8633 = vadd.f32 %v8569, 1.0
        %v8634 = vadd.f32 %v8570, 1.0
        %v8635 = vrcp.pop %v8571
        %v8636 = vmul.f32 %v8571, %v8635
        %v8637 = vsub.f32 1.0, %v8636
        %v8638 = vmul.f32 %v8635, %v8637
        %v8639 = vadd.f32 %v8635, %v8638
        %vm8640 = vweird.f32 %v8571
        %vm8641 = vweird.f32 %v8635
        %vm8642 = vmor %vm8640, %vm8641
        %v8643 = vsel %vm8642, %v8635, %v8639
        %v8644 = vand.u32 2147483647, %v8571
        %vm8645 = vcmp.eq.f32.partialorder %v8644, 8.507059e+37
        %v8646 = vand.u32 %v8571, 2147483648
        %v8647 = vor.u32 1.1754944e-38, %v8646
        %v8648 = vsel %vm8645, %v8647, %v8643
        %v8649 = vmul.f32 1.0, %v8648
        %v8650 = vrcp.pop %v8572
        %v8651 = vmul.f32 %v8572, %v8650
        %v8652 = vsub.f32 1.0, %v8651
        %v8653 = vmul.f32 %v8650, %v8652
        %v8654 = vadd.f32 %v8650, %v8653
        %vm8655 = vweird.f32 %v8572
        %vm8656 = vweird.f32 %v8650
        %vm8657 = vmor %vm8655, %vm8656
        %v8658 = vsel %vm8657, %v8650, %v8654
        %v8659 = vand.u32 2147483647, %v8572
        %vm8660 = vcmp.eq.f32.partialorder %v8659, 8.507059e+37
        %v8661 = vand.u32 %v8572, 2147483648
        %v8662 = vor.u32 1.1754944e-38, %v8661
        %v8663 = vsel %vm8660, %v8662, %v8658
        %v8664 = vmul.f32 1.0, %v8663
        %v8665 = vrcp.pop %v8573
        %v8666 = vmul.f32 %v8573, %v8665
        %v8667 = vsub.f32 1.0, %v8666
        %v8668 = vmul.f32 %v8665, %v8667
        %v8669 = vadd.f32 %v8665, %v8668
        %vm8670 = vweird.f32 %v8573
        %vm8671 = vweird.f32 %v8665
        %vm8672 = vmor %vm8670, %vm8671
        %v8673 = vsel %vm8672, %v8665, %v8669
        %v8674 = vand.u32 2147483647, %v8573
        %vm8675 = vcmp.eq.f32.partialorder %v8674, 8.507059e+37
        %v8676 = vand.u32 %v8573, 2147483648
        %v8677 = vor.u32 1.1754944e-38, %v8676
        %v8678 = vsel %vm8675, %v8677, %v8673
        %v8679 = vmul.f32 1.0, %v8678
        %v8680 = vrcp.pop %v8574
        %v8681 = vmul.f32 %v8574, %v8680
        %v8682 = vsub.f32 1.0, %v8681
        %v8683 = vmul.f32 %v8680, %v8682
        %v8684 = vadd.f32 %v8680, %v8683
        %vm8685 = vweird.f32 %v8574
        %vm8686 = vweird.f32 %v8680
        %vm8687 = vmor %vm8685, %vm8686
        %v8688 = vsel %vm8687, %v8680, %v8684
        %v8689 = vand.u32 2147483647, %v8574
        %vm8690 = vcmp.eq.f32.partialorder %v8689, 8.507059e+37
        %v8691 = vand.u32 %v8574, 2147483648
        %v8692 = vor.u32 1.1754944e-38, %v8691
        %v8693 = vsel %vm8690, %v8692, %v8688
        %v8694 = vmul.f32 1.0, %v8693
        %v8695 = vrcp.pop %v8575
        %v8696 = vmul.f32 %v8575, %v8695
        %v8697 = vsub.f32 1.0, %v8696
        %v8698 = vmul.f32 %v8695, %v8697
        %v8699 = vadd.f32 %v8695, %v8698
        %vm8700 = vweird.f32 %v8575
        %vm8701 = vweird.f32 %v8695
        %vm8702 = vmor %vm8700, %vm8701
        %v8703 = vsel %vm8702, %v8695, %v8699
        %v8704 = vand.u32 2147483647, %v8575
        %vm8705 = vcmp.eq.f32.partialorder %v8704, 8.507059e+37
        %v8706 = vand.u32 %v8575, 2147483648
        %v8707 = vor.u32 1.1754944e-38, %v8706
        %v8708 = vsel %vm8705, %v8707, %v8703
        %v8709 = vmul.f32 1.0, %v8708
        %v8710 = vrcp.pop %v8576
        %v8711 = vmul.f32 %v8576, %v8710
        %v8712 = vsub.f32 1.0, %v8711
        %v8713 = vmul.f32 %v8710, %v8712
        %v8714 = vadd.f32 %v8710, %v8713
        %vm8715 = vweird.f32 %v8576
        %vm8716 = vweird.f32 %v8710
        %vm8717 = vmor %vm8715, %vm8716
        %v8718 = vsel %vm8717, %v8710, %v8714
        %v8719 = vand.u32 2147483647, %v8576
        %vm8720 = vcmp.eq.f32.partialorder %v8719, 8.507059e+37
        %v8721 = vand.u32 %v8576, 2147483648
        %v8722 = vor.u32 1.1754944e-38, %v8721
        %v8723 = vsel %vm8720, %v8722, %v8718
        %v8724 = vmul.f32 1.0, %v8723
        %v8725 = vrcp.pop %v8577
        %v8726 = vmul.f32 %v8577, %v8725
        %v8727 = vsub.f32 1.0, %v8726
        %v8728 = vmul.f32 %v8725, %v8727
        %v8729 = vadd.f32 %v8725, %v8728
        %vm8730 = vweird.f32 %v8577
        %vm8731 = vweird.f32 %v8725
        %vm8732 = vmor %vm8730, %vm8731
        %v8733 = vsel %vm8732, %v8725, %v8729
        %v8734 = vand.u32 2147483647, %v8577
        %vm8735 = vcmp.eq.f32.partialorder %v8734, 8.507059e+37
        %v8736 = vand.u32 %v8577, 2147483648
        %v8737 = vor.u32 1.1754944e-38, %v8736
        %v8738 = vsel %vm8735, %v8737, %v8733
        %v8739 = vmul.f32 1.0, %v8738
        %v8740 = vrcp.pop %v8578
        %v8741 = vmul.f32 %v8578, %v8740
        %v8742 = vsub.f32 1.0, %v8741
        %v8743 = vmul.f32 %v8740, %v8742
        %v8744 = vadd.f32 %v8740, %v8743
        %vm8745 = vweird.f32 %v8578
        %vm8746 = vweird.f32 %v8740
        %vm8747 = vmor %vm8745, %vm8746
        %v8748 = vsel %vm8747, %v8740, %v8744
        %v8749 = vand.u32 2147483647, %v8578
        %vm8750 = vcmp.eq.f32.partialorder %v8749, 8.507059e+37
        %v8751 = vand.u32 %v8578, 2147483648
        %v8752 = vor.u32 1.1754944e-38, %v8751
        %v8753 = vsel %vm8750, %v8752, %v8748
        %v8754 = vmul.f32 1.0, %v8753
        %v8755 = vrcp.pop %v8579
        %v8756 = vmul.f32 %v8579, %v8755
        %v8757 = vsub.f32 1.0, %v8756
        %v8758 = vmul.f32 %v8755, %v8757
        %v8759 = vadd.f32 %v8755, %v8758
        %vm8760 = vweird.f32 %v8579
        %vm8761 = vweird.f32 %v8755
        %vm8762 = vmor %vm8760, %vm8761
        %v8763 = vsel %vm8762, %v8755, %v8759
        %v8764 = vand.u32 2147483647, %v8579
        %vm8765 = vcmp.eq.f32.partialorder %v8764, 8.507059e+37
        %v8766 = vand.u32 %v8579, 2147483648
        %v8767 = vor.u32 1.1754944e-38, %v8766
        %v8768 = vsel %vm8765, %v8767, %v8763
        %v8769 = vmul.f32 1.0, %v8768
        %v8770 = vrcp.pop %v8580
        %v8771 = vmul.f32 %v8580, %v8770
        %v8772 = vsub.f32 1.0, %v8771
        %v8773 = vmul.f32 %v8770, %v8772
        %v8774 = vadd.f32 %v8770, %v8773
        %vm8775 = vweird.f32 %v8580
        %vm8776 = vweird.f32 %v8770
        %vm8777 = vmor %vm8775, %vm8776
        %v8778 = vsel %vm8777, %v8770, %v8774
        %v8779 = vand.u32 2147483647, %v8580
        %vm8780 = vcmp.eq.f32.partialorder %v8779, 8.507059e+37
        %v8781 = vand.u32 %v8580, 2147483648
        %v8782 = vor.u32 1.1754944e-38, %v8781
        %v8783 = vsel %vm8780, %v8782, %v8778
        %v8784 = vmul.f32 1.0, %v8783
        %v8785 = vrcp.pop %v8581
        %v8786 = vmul.f32 %v8581, %v8785
        %v8787 = vsub.f32 1.0, %v8786
        %v8788 = vmul.f32 %v8785, %v8787
        %v8789 = vadd.f32 %v8785, %v8788
        %vm8790 = vweird.f32 %v8581
        %vm8791 = vweird.f32 %v8785
        %vm8792 = vmor %vm8790, %vm8791
        %v8793 = vsel %vm8792, %v8785, %v8789
        %v8794 = vand.u32 2147483647, %v8581
        %vm8795 = vcmp.eq.f32.partialorder %v8794, 8.507059e+37
        %v8796 = vand.u32 %v8581, 2147483648
        %v8797 = vor.u32 1.1754944e-38, %v8796
        %v8798 = vsel %vm8795, %v8797, %v8793
        %v8799 = vmul.f32 1.0, %v8798
        %v8800 = vrcp.pop %v8582
        %v8801 = vmul.f32 %v8582, %v8800
        %v8802 = vsub.f32 1.0, %v8801
        %v8803 = vmul.f32 %v8800, %v8802
        %v8804 = vadd.f32 %v8800, %v8803
        %vm8805 = vweird.f32 %v8582
        %vm8806 = vweird.f32 %v8800
        %vm8807 = vmor %vm8805, %vm8806
        %v8808 = vsel %vm8807, %v8800, %v8804
        %v8809 = vand.u32 2147483647, %v8582
        %vm8810 = vcmp.eq.f32.partialorder %v8809, 8.507059e+37
        %v8811 = vand.u32 %v8582, 2147483648
        %v8812 = vor.u32 1.1754944e-38, %v8811
        %v8813 = vsel %vm8810, %v8812, %v8808
        %v8814 = vmul.f32 1.0, %v8813
        %v8815 = vrcp.pop %v8583
        %v8816 = vmul.f32 %v8583, %v8815
        %v8817 = vsub.f32 1.0, %v8816
        %v8818 = vmul.f32 %v8815, %v8817
        %v8819 = vadd.f32 %v8815, %v8818
        %vm8820 = vweird.f32 %v8583
        %vm8821 = vweird.f32 %v8815
        %vm8822 = vmor %vm8820, %vm8821
        %v8823 = vsel %vm8822, %v8815, %v8819
        %v8824 = vand.u32 2147483647, %v8583
        %vm8825 = vcmp.eq.f32.partialorder %v8824, 8.507059e+37
        %v8826 = vand.u32 %v8583, 2147483648
        %v8827 = vor.u32 1.1754944e-38, %v8826
        %v8828 = vsel %vm8825, %v8827, %v8823
        %v8829 = vmul.f32 1.0, %v8828
        %v8830 = vrcp.pop %v8584
        %v8831 = vmul.f32 %v8584, %v8830
        %v8832 = vsub.f32 1.0, %v8831
        %v8833 = vmul.f32 %v8830, %v8832
        %v8834 = vadd.f32 %v8830, %v8833
        %vm8835 = vweird.f32 %v8584
        %vm8836 = vweird.f32 %v8830
        %vm8837 = vmor %vm8835, %vm8836
        %v8838 = vsel %vm8837, %v8830, %v8834
        %v8839 = vand.u32 2147483647, %v8584
        %vm8840 = vcmp.eq.f32.partialorder %v8839, 8.507059e+37
        %v8841 = vand.u32 %v8584, 2147483648
        %v8842 = vor.u32 1.1754944e-38, %v8841
        %v8843 = vsel %vm8840, %v8842, %v8838
        %v8844 = vmul.f32 1.0, %v8843
        %v8845 = vrcp.pop %v8585
        %v8846 = vmul.f32 %v8585, %v8845
        %v8847 = vsub.f32 1.0, %v8846
        %v8848 = vmul.f32 %v8845, %v8847
        %v8849 = vadd.f32 %v8845, %v8848
        %vm8850 = vweird.f32 %v8585
        %vm8851 = vweird.f32 %v8845
        %vm8852 = vmor %vm8850, %vm8851
        %v8853 = vsel %vm8852, %v8845, %v8849
        %v8854 = vand.u32 2147483647, %v8585
        %vm8855 = vcmp.eq.f32.partialorder %v8854, 8.507059e+37
        %v8856 = vand.u32 %v8585, 2147483648
        %v8857 = vor.u32 1.1754944e-38, %v8856
        %v8858 = vsel %vm8855, %v8857, %v8853
        %v8859 = vmul.f32 1.0, %v8858
        %v8860 = vrcp.pop %v8586
        %v8861 = vmul.f32 %v8586, %v8860
        %v8862 = vsub.f32 1.0, %v8861
        %v8863 = vmul.f32 %v8860, %v8862
        %v8864 = vadd.f32 %v8860, %v8863
        %vm8865 = vweird.f32 %v8586
        %vm8866 = vweird.f32 %v8860
        %vm8867 = vmor %vm8865, %vm8866
        %v8868 = vsel %vm8867, %v8860, %v8864
        %v8869 = vand.u32 2147483647, %v8586
        %vm8870 = vcmp.eq.f32.partialorder %v8869, 8.507059e+37
        %v8871 = vand.u32 %v8586, 2147483648
        %v8872 = vor.u32 1.1754944e-38, %v8871
        %v8873 = vsel %vm8870, %v8872, %v8868
        %v8874 = vmul.f32 1.0, %v8873
        %v8875 = vrcp.pop %v8587
        %v8876 = vmul.f32 %v8587, %v8875
        %v8877 = vsub.f32 1.0, %v8876
        %v8878 = vmul.f32 %v8875, %v8877
        %v8879 = vadd.f32 %v8875, %v8878
        %vm8880 = vweird.f32 %v8587
        %vm8881 = vweird.f32 %v8875
        %vm8882 = vmor %vm8880, %vm8881
        %v8883 = vsel %vm8882, %v8875, %v8879
        %v8884 = vand.u32 2147483647, %v8587
        %vm8885 = vcmp.eq.f32.partialorder %v8884, 8.507059e+37
        %v8886 = vand.u32 %v8587, 2147483648
        %v8887 = vor.u32 1.1754944e-38, %v8886
        %v8888 = vsel %vm8885, %v8887, %v8883
        %v8889 = vmul.f32 1.0, %v8888
        %v8890 = vrcp.pop %v8588
        %v8891 = vmul.f32 %v8588, %v8890
        %v8892 = vsub.f32 1.0, %v8891
        %v8893 = vmul.f32 %v8890, %v8892
        %v8894 = vadd.f32 %v8890, %v8893
        %vm8895 = vweird.f32 %v8588
        %vm8896 = vweird.f32 %v8890
        %vm8897 = vmor %vm8895, %vm8896
        %v8898 = vsel %vm8897, %v8890, %v8894
        %v8899 = vand.u32 2147483647, %v8588
        %vm8900 = vcmp.eq.f32.partialorder %v8899, 8.507059e+37
        %v8901 = vand.u32 %v8588, 2147483648
        %v8902 = vor.u32 1.1754944e-38, %v8901
        %v8903 = vsel %vm8900, %v8902, %v8898
        %v8904 = vmul.f32 1.0, %v8903
        %v8905 = vrcp.pop %v8589
        %v8906 = vmul.f32 %v8589, %v8905
        %v8907 = vsub.f32 1.0, %v8906
        %v8908 = vmul.f32 %v8905, %v8907
        %v8909 = vadd.f32 %v8905, %v8908
        %vm8910 = vweird.f32 %v8589
        %vm8911 = vweird.f32 %v8905
        %vm8912 = vmor %vm8910, %vm8911
        %v8913 = vsel %vm8912, %v8905, %v8909
        %v8914 = vand.u32 2147483647, %v8589
        %vm8915 = vcmp.eq.f32.partialorder %v8914, 8.507059e+37
        %v8916 = vand.u32 %v8589, 2147483648
        %v8917 = vor.u32 1.1754944e-38, %v8916
        %v8918 = vsel %vm8915, %v8917, %v8913
        %v8919 = vmul.f32 1.0, %v8918
        %v8920 = vrcp.pop %v8590
        %v8921 = vmul.f32 %v8590, %v8920
        %v8922 = vsub.f32 1.0, %v8921
        %v8923 = vmul.f32 %v8920, %v8922
        %v8924 = vadd.f32 %v8920, %v8923
        %vm8925 = vweird.f32 %v8590
        %vm8926 = vweird.f32 %v8920
        %vm8927 = vmor %vm8925, %vm8926
        %v8928 = vsel %vm8927, %v8920, %v8924
        %v8929 = vand.u32 2147483647, %v8590
        %vm8930 = vcmp.eq.f32.partialorder %v8929, 8.507059e+37
        %v8931 = vand.u32 %v8590, 2147483648
        %v8932 = vor.u32 1.1754944e-38, %v8931
        %v8933 = vsel %vm8930, %v8932, %v8928
        %v8934 = vmul.f32 1.0, %v8933
        %v8935 = vrcp.pop %v8591
        %v8936 = vmul.f32 %v8591, %v8935
        %v8937 = vsub.f32 1.0, %v8936
        %v8938 = vmul.f32 %v8935, %v8937
        %v8939 = vadd.f32 %v8935, %v8938
        %vm8940 = vweird.f32 %v8591
        %vm8941 = vweird.f32 %v8935
        %vm8942 = vmor %vm8940, %vm8941
        %v8943 = vsel %vm8942, %v8935, %v8939
        %v8944 = vand.u32 2147483647, %v8591
        %vm8945 = vcmp.eq.f32.partialorder %v8944, 8.507059e+37
        %v8946 = vand.u32 %v8591, 2147483648
        %v8947 = vor.u32 1.1754944e-38, %v8946
        %v8948 = vsel %vm8945, %v8947, %v8943
        %v8949 = vmul.f32 1.0, %v8948
        %v8950 = vrcp.pop %v8592
        %v8951 = vmul.f32 %v8592, %v8950
        %v8952 = vsub.f32 1.0, %v8951
        %v8953 = vmul.f32 %v8950, %v8952
        %v8954 = vadd.f32 %v8950, %v8953
        %vm8955 = vweird.f32 %v8592
        %vm8956 = vweird.f32 %v8950
        %vm8957 = vmor %vm8955, %vm8956
        %v8958 = vsel %vm8957, %v8950, %v8954
        %v8959 = vand.u32 2147483647, %v8592
        %vm8960 = vcmp.eq.f32.partialorder %v8959, 8.507059e+37
        %v8961 = vand.u32 %v8592, 2147483648
        %v8962 = vor.u32 1.1754944e-38, %v8961
        %v8963 = vsel %vm8960, %v8962, %v8958
        %v8964 = vmul.f32 1.0, %v8963
        %v8965 = vrcp.pop %v8593
        %v8966 = vmul.f32 %v8593, %v8965
        %v8967 = vsub.f32 1.0, %v8966
        %v8968 = vmul.f32 %v8965, %v8967
        %v8969 = vadd.f32 %v8965, %v8968
        %vm8970 = vweird.f32 %v8593
        %vm8971 = vweird.f32 %v8965
        %vm8972 = vmor %vm8970, %vm8971
        %v8973 = vsel %vm8972, %v8965, %v8969
        %v8974 = vand.u32 2147483647, %v8593
        %vm8975 = vcmp.eq.f32.partialorder %v8974, 8.507059e+37
        %v8976 = vand.u32 %v8593, 2147483648
        %v8977 = vor.u32 1.1754944e-38, %v8976
        %v8978 = vsel %vm8975, %v8977, %v8973
        %v8979 = vmul.f32 1.0, %v8978
        %v8980 = vrcp.pop %v8594
        %v8981 = vmul.f32 %v8594, %v8980
        %v8982 = vsub.f32 1.0, %v8981
        %v8983 = vmul.f32 %v8980, %v8982
        %v8984 = vadd.f32 %v8980, %v8983
        %vm8985 = vweird.f32 %v8594
        %vm8986 = vweird.f32 %v8980
        %vm8987 = vmor %vm8985, %vm8986
        %v8988 = vsel %vm8987, %v8980, %v8984
        %v8989 = vand.u32 2147483647, %v8594
        %vm8990 = vcmp.eq.f32.partialorder %v8989, 8.507059e+37
        %v8991 = vand.u32 %v8594, 2147483648
        %v8992 = vor.u32 1.1754944e-38, %v8991
        %v8993 = vsel %vm8990, %v8992, %v8988
        %v8994 = vmul.f32 1.0, %v8993
        %v8995 = vrcp.pop %v8595
        %v8996 = vmul.f32 %v8595, %v8995
        %v8997 = vsub.f32 1.0, %v8996
        %v8998 = vmul.f32 %v8995, %v8997
        %v8999 = vadd.f32 %v8995, %v8998
        %vm9000 = vweird.f32 %v8595
        %vm9001 = vweird.f32 %v8995
        %vm9002 = vmor %vm9000, %vm9001
        %v9003 = vsel %vm9002, %v8995, %v8999
        %v9004 = vand.u32 2147483647, %v8595
        %vm9005 = vcmp.eq.f32.partialorder %v9004, 8.507059e+37
        %v9006 = vand.u32 %v8595, 2147483648
        %v9007 = vor.u32 1.1754944e-38, %v9006
        %v9008 = vsel %vm9005, %v9007, %v9003
        %v9009 = vmul.f32 1.0, %v9008
        %v9010 = vrcp.pop %v8596
        %v9011 = vmul.f32 %v8596, %v9010
        %v9012 = vsub.f32 1.0, %v9011
        %v9013 = vmul.f32 %v9010, %v9012
        %v9014 = vadd.f32 %v9010, %v9013
        %vm9015 = vweird.f32 %v8596
        %vm9016 = vweird.f32 %v9010
        %vm9017 = vmor %vm9015, %vm9016
        %v9018 = vsel %vm9017, %v9010, %v9014
        %v9019 = vand.u32 2147483647, %v8596
        %vm9020 = vcmp.eq.f32.partialorder %v9019, 8.507059e+37
        %v9021 = vand.u32 %v8596, 2147483648
        %v9022 = vor.u32 1.1754944e-38, %v9021
        %v9023 = vsel %vm9020, %v9022, %v9018
        %v9024 = vmul.f32 1.0, %v9023
        %v9025 = vrcp.pop %v8597
        %v9026 = vmul.f32 %v8597, %v9025
        %v9027 = vsub.f32 1.0, %v9026
        %v9028 = vmul.f32 %v9025, %v9027
        %v9029 = vadd.f32 %v9025, %v9028
        %vm9030 = vweird.f32 %v8597
        %vm9031 = vweird.f32 %v9025
        %vm9032 = vmor %vm9030, %vm9031
        %v9033 = vsel %vm9032, %v9025, %v9029
        %v9034 = vand.u32 2147483647, %v8597
        %vm9035 = vcmp.eq.f32.partialorder %v9034, 8.507059e+37
        %v9036 = vand.u32 %v8597, 2147483648
        %v9037 = vor.u32 1.1754944e-38, %v9036
        %v9038 = vsel %vm9035, %v9037, %v9033
        %v9039 = vmul.f32 1.0, %v9038
        %v9040 = vrcp.pop %v8598
        %v9041 = vmul.f32 %v8598, %v9040
        %v9042 = vsub.f32 1.0, %v9041
        %v9043 = vmul.f32 %v9040, %v9042
        %v9044 = vadd.f32 %v9040, %v9043
        %vm9045 = vweird.f32 %v8598
        %vm9046 = vweird.f32 %v9040
        %vm9047 = vmor %vm9045, %vm9046
        %v9048 = vsel %vm9047, %v9040, %v9044
        %v9049 = vand.u32 2147483647, %v8598
        %vm9050 = vcmp.eq.f32.partialorder %v9049, 8.507059e+37
        %v9051 = vand.u32 %v8598, 2147483648
        %v9052 = vor.u32 1.1754944e-38, %v9051
        %v9053 = vsel %vm9050, %v9052, %v9048
        %v9054 = vmul.f32 1.0, %v9053
        %v9055 = vrcp.pop %v8599
        %v9056 = vmul.f32 %v8599, %v9055
        %v9057 = vsub.f32 1.0, %v9056
        %v9058 = vmul.f32 %v9055, %v9057
        %v9059 = vadd.f32 %v9055, %v9058
        %vm9060 = vweird.f32 %v8599
        %vm9061 = vweird.f32 %v9055
        %vm9062 = vmor %vm9060, %vm9061
        %v9063 = vsel %vm9062, %v9055, %v9059
        %v9064 = vand.u32 2147483647, %v8599
        %vm9065 = vcmp.eq.f32.partialorder %v9064, 8.507059e+37
        %v9066 = vand.u32 %v8599, 2147483648
        %v9067 = vor.u32 1.1754944e-38, %v9066
        %v9068 = vsel %vm9065, %v9067, %v9063
        %v9069 = vmul.f32 1.0, %v9068
        %v9070 = vrcp.pop %v8600
        %v9071 = vmul.f32 %v8600, %v9070
        %v9072 = vsub.f32 1.0, %v9071
        %v9073 = vmul.f32 %v9070, %v9072
        %v9074 = vadd.f32 %v9070, %v9073
        %vm9075 = vweird.f32 %v8600
        %vm9076 = vweird.f32 %v9070
        %vm9077 = vmor %vm9075, %vm9076
        %v9078 = vsel %vm9077, %v9070, %v9074
        %v9079 = vand.u32 2147483647, %v8600
        %vm9080 = vcmp.eq.f32.partialorder %v9079, 8.507059e+37
        %v9081 = vand.u32 %v8600, 2147483648
        %v9082 = vor.u32 1.1754944e-38, %v9081
        %v9083 = vsel %vm9080, %v9082, %v9078
        %v9084 = vmul.f32 1.0, %v9083
        %v9085 = vrcp.pop %v8601
        %v9086 = vmul.f32 %v8601, %v9085
        %v9087 = vsub.f32 1.0, %v9086
        %v9088 = vmul.f32 %v9085, %v9087
        %v9089 = vadd.f32 %v9085, %v9088
        %vm9090 = vweird.f32 %v8601
        %vm9091 = vweird.f32 %v9085
        %vm9092 = vmor %vm9090, %vm9091
        %v9093 = vsel %vm9092, %v9085, %v9089
        %v9094 = vand.u32 2147483647, %v8601
        %vm9095 = vcmp.eq.f32.partialorder %v9094, 8.507059e+37
        %v9096 = vand.u32 %v8601, 2147483648
        %v9097 = vor.u32 1.1754944e-38, %v9096
        %v9098 = vsel %vm9095, %v9097, %v9093
        %v9099 = vmul.f32 1.0, %v9098
        %v9100 = vrcp.pop %v8602
        %v9101 = vmul.f32 %v8602, %v9100
        %v9102 = vsub.f32 1.0, %v9101
        %v9103 = vmul.f32 %v9100, %v9102
        %v9104 = vadd.f32 %v9100, %v9103
        %vm9105 = vweird.f32 %v8602
        %vm9106 = vweird.f32 %v9100
        %vm9107 = vmor %vm9105, %vm9106
        %v9108 = vsel %vm9107, %v9100, %v9104
        %v9109 = vand.u32 2147483647, %v8602
        %vm9110 = vcmp.eq.f32.partialorder %v9109, 8.507059e+37
        %v9111 = vand.u32 %v8602, 2147483648
        %v9112 = vor.u32 1.1754944e-38, %v9111
        %v9113 = vsel %vm9110, %v9112, %v9108
        %v9114 = vmul.f32 1.0, %v9113
        %v9115 = vrcp.pop %v8603
        %v9116 = vmul.f32 %v8603, %v9115
        %v9117 = vsub.f32 1.0, %v9116
        %v9118 = vmul.f32 %v9115, %v9117
        %v9119 = vadd.f32 %v9115, %v9118
        %vm9120 = vweird.f32 %v8603
        %vm9121 = vweird.f32 %v9115
        %vm9122 = vmor %vm9120, %vm9121
        %v9123 = vsel %vm9122, %v9115, %v9119
        %v9124 = vand.u32 2147483647, %v8603
        %vm9125 = vcmp.eq.f32.partialorder %v9124, 8.507059e+37
        %v9126 = vand.u32 %v8603, 2147483648
        %v9127 = vor.u32 1.1754944e-38, %v9126
        %v9128 = vsel %vm9125, %v9127, %v9123
        %v9129 = vmul.f32 1.0, %v9128
        %v9130 = vrcp.pop %v8604
        %v9131 = vmul.f32 %v8604, %v9130
        %v9132 = vsub.f32 1.0, %v9131
        %v9133 = vmul.f32 %v9130, %v9132
        %v9134 = vadd.f32 %v9130, %v9133
        %vm9135 = vweird.f32 %v8604
        %vm9136 = vweird.f32 %v9130
        %vm9137 = vmor %vm9135, %vm9136
        %v9138 = vsel %vm9137, %v9130, %v9134
        %v9139 = vand.u32 2147483647, %v8604
        %vm9140 = vcmp.eq.f32.partialorder %v9139, 8.507059e+37
        %v9141 = vand.u32 %v8604, 2147483648
        %v9142 = vor.u32 1.1754944e-38, %v9141
        %v9143 = vsel %vm9140, %v9142, %v9138
        %v9144 = vmul.f32 1.0, %v9143
        %v9145 = vrcp.pop %v8605
        %v9146 = vmul.f32 %v8605, %v9145
        %v9147 = vsub.f32 1.0, %v9146
        %v9148 = vmul.f32 %v9145, %v9147
        %v9149 = vadd.f32 %v9145, %v9148
        %vm9150 = vweird.f32 %v8605
        %vm9151 = vweird.f32 %v9145
        %vm9152 = vmor %vm9150, %vm9151
        %v9153 = vsel %vm9152, %v9145, %v9149
        %v9154 = vand.u32 2147483647, %v8605
        %vm9155 = vcmp.eq.f32.partialorder %v9154, 8.507059e+37
        %v9156 = vand.u32 %v8605, 2147483648
        %v9157 = vor.u32 1.1754944e-38, %v9156
        %v9158 = vsel %vm9155, %v9157, %v9153
        %v9159 = vmul.f32 1.0, %v9158
        %v9160 = vrcp.pop %v8606
        %v9161 = vmul.f32 %v8606, %v9160
        %v9162 = vsub.f32 1.0, %v9161
        %v9163 = vmul.f32 %v9160, %v9162
        %v9164 = vadd.f32 %v9160, %v9163
        %vm9165 = vweird.f32 %v8606
        %vm9166 = vweird.f32 %v9160
        %vm9167 = vmor %vm9165, %vm9166
        %v9168 = vsel %vm9167, %v9160, %v9164
        %v9169 = vand.u32 2147483647, %v8606
        %vm9170 = vcmp.eq.f32.partialorder %v9169, 8.507059e+37
        %v9171 = vand.u32 %v8606, 2147483648
        %v9172 = vor.u32 1.1754944e-38, %v9171
        %v9173 = vsel %vm9170, %v9172, %v9168
        %v9174 = vmul.f32 1.0, %v9173
        %v9175 = vrcp.pop %v8607
        %v9176 = vmul.f32 %v8607, %v9175
        %v9177 = vsub.f32 1.0, %v9176
        %v9178 = vmul.f32 %v9175, %v9177
        %v9179 = vadd.f32 %v9175, %v9178
        %vm9180 = vweird.f32 %v8607
        %vm9181 = vweird.f32 %v9175
        %vm9182 = vmor %vm9180, %vm9181
        %v9183 = vsel %vm9182, %v9175, %v9179
        %v9184 = vand.u32 2147483647, %v8607
        %vm9185 = vcmp.eq.f32.partialorder %v9184, 8.507059e+37
        %v9186 = vand.u32 %v8607, 2147483648
        %v9187 = vor.u32 1.1754944e-38, %v9186
        %v9188 = vsel %vm9185, %v9187, %v9183
        %v9189 = vmul.f32 1.0, %v9188
        %v9190 = vrcp.pop %v8608
        %v9191 = vmul.f32 %v8608, %v9190
        %v9192 = vsub.f32 1.0, %v9191
        %v9193 = vmul.f32 %v9190, %v9192
        %v9194 = vadd.f32 %v9190, %v9193
        %vm9195 = vweird.f32 %v8608
        %vm9196 = vweird.f32 %v9190
        %vm9197 = vmor %vm9195, %vm9196
        %v9198 = vsel %vm9197, %v9190, %v9194
        %v9199 = vand.u32 2147483647, %v8608
        %vm9200 = vcmp.eq.f32.partialorder %v9199, 8.507059e+37
        %v9201 = vand.u32 %v8608, 2147483648
        %v9202 = vor.u32 1.1754944e-38, %v9201
        %v9203 = vsel %vm9200, %v9202, %v9198
        %v9204 = vmul.f32 1.0, %v9203
        %v9205 = vrcp.pop %v8609
        %v9206 = vmul.f32 %v8609, %v9205
        %v9207 = vsub.f32 1.0, %v9206
        %v9208 = vmul.f32 %v9205, %v9207
        %v9209 = vadd.f32 %v9205, %v9208
        %vm9210 = vweird.f32 %v8609
        %vm9211 = vweird.f32 %v9205
        %vm9212 = vmor %vm9210, %vm9211
        %v9213 = vsel %vm9212, %v9205, %v9209
        %v9214 = vand.u32 2147483647, %v8609
        %vm9215 = vcmp.eq.f32.partialorder %v9214, 8.507059e+37
        %v9216 = vand.u32 %v8609, 2147483648
        %v9217 = vor.u32 1.1754944e-38, %v9216
        %v9218 = vsel %vm9215, %v9217, %v9213
        %v9219 = vmul.f32 1.0, %v9218
        %v9220 = vrcp.pop %v8610
        %v9221 = vmul.f32 %v8610, %v9220
        %v9222 = vsub.f32 1.0, %v9221
        %v9223 = vmul.f32 %v9220, %v9222
        %v9224 = vadd.f32 %v9220, %v9223
        %vm9225 = vweird.f32 %v8610
        %vm9226 = vweird.f32 %v9220
        %vm9227 = vmor %vm9225, %vm9226
        %v9228 = vsel %vm9227, %v9220, %v9224
        %v9229 = vand.u32 2147483647, %v8610
        %vm9230 = vcmp.eq.f32.partialorder %v9229, 8.507059e+37
        %v9231 = vand.u32 %v8610, 2147483648
        %v9232 = vor.u32 1.1754944e-38, %v9231
        %v9233 = vsel %vm9230, %v9232, %v9228
        %v9234 = vmul.f32 1.0, %v9233
        %v9235 = vrcp.pop %v8611
        %v9236 = vmul.f32 %v8611, %v9235
        %v9237 = vsub.f32 1.0, %v9236
        %v9238 = vmul.f32 %v9235, %v9237
        %v9239 = vadd.f32 %v9235, %v9238
        %vm9240 = vweird.f32 %v8611
        %vm9241 = vweird.f32 %v9235
        %vm9242 = vmor %vm9240, %vm9241
        %v9243 = vsel %vm9242, %v9235, %v9239
        %v9244 = vand.u32 2147483647, %v8611
        %vm9245 = vcmp.eq.f32.partialorder %v9244, 8.507059e+37
        %v9246 = vand.u32 %v8611, 2147483648
        %v9247 = vor.u32 1.1754944e-38, %v9246
        %v9248 = vsel %vm9245, %v9247, %v9243
        %v9249 = vmul.f32 1.0, %v9248
        %v9250 = vrcp.pop %v8612
        %v9251 = vmul.f32 %v8612, %v9250
        %v9252 = vsub.f32 1.0, %v9251
        %v9253 = vmul.f32 %v9250, %v9252
        %v9254 = vadd.f32 %v9250, %v9253
        %vm9255 = vweird.f32 %v8612
        %vm9256 = vweird.f32 %v9250
        %vm9257 = vmor %vm9255, %vm9256
        %v9258 = vsel %vm9257, %v9250, %v9254
        %v9259 = vand.u32 2147483647, %v8612
        %vm9260 = vcmp.eq.f32.partialorder %v9259, 8.507059e+37
        %v9261 = vand.u32 %v8612, 2147483648
        %v9262 = vor.u32 1.1754944e-38, %v9261
        %v9263 = vsel %vm9260, %v9262, %v9258
        %v9264 = vmul.f32 1.0, %v9263
        %v9265 = vrcp.pop %v8613
        %v9266 = vmul.f32 %v8613, %v9265
        %v9267 = vsub.f32 1.0, %v9266
        %v9268 = vmul.f32 %v9265, %v9267
        %v9269 = vadd.f32 %v9265, %v9268
        %vm9270 = vweird.f32 %v8613
        %vm9271 = vweird.f32 %v9265
        %vm9272 = vmor %vm9270, %vm9271
        %v9273 = vsel %vm9272, %v9265, %v9269
        %v9274 = vand.u32 2147483647, %v8613
        %vm9275 = vcmp.eq.f32.partialorder %v9274, 8.507059e+37
        %v9276 = vand.u32 %v8613, 2147483648
        %v9277 = vor.u32 1.1754944e-38, %v9276
        %v9278 = vsel %vm9275, %v9277, %v9273
        %v9279 = vmul.f32 1.0, %v9278
        %v9280 = vrcp.pop %v8614
        %v9281 = vmul.f32 %v8614, %v9280
        %v9282 = vsub.f32 1.0, %v9281
        %v9283 = vmul.f32 %v9280, %v9282
        %v9284 = vadd.f32 %v9280, %v9283
        %vm9285 = vweird.f32 %v8614
        %vm9286 = vweird.f32 %v9280
        %vm9287 = vmor %vm9285, %vm9286
        %v9288 = vsel %vm9287, %v9280, %v9284
        %v9289 = vand.u32 2147483647, %v8614
        %vm9290 = vcmp.eq.f32.partialorder %v9289, 8.507059e+37
        %v9291 = vand.u32 %v8614, 2147483648
        %v9292 = vor.u32 1.1754944e-38, %v9291
        %v9293 = vsel %vm9290, %v9292, %v9288
        %v9294 = vmul.f32 1.0, %v9293
        %v9295 = vrcp.pop %v8615
        %v9296 = vmul.f32 %v8615, %v9295
        %v9297 = vsub.f32 1.0, %v9296
        %v9298 = vmul.f32 %v9295, %v9297
        %v9299 = vadd.f32 %v9295, %v9298
        %vm9300 = vweird.f32 %v8615
        %vm9301 = vweird.f32 %v9295
        %vm9302 = vmor %vm9300, %vm9301
        %v9303 = vsel %vm9302, %v9295, %v9299
        %v9304 = vand.u32 2147483647, %v8615
        %vm9305 = vcmp.eq.f32.partialorder %v9304, 8.507059e+37
        %v9306 = vand.u32 %v8615, 2147483648
        %v9307 = vor.u32 1.1754944e-38, %v9306
        %v9308 = vsel %vm9305, %v9307, %v9303
        %v9309 = vmul.f32 1.0, %v9308
        %v9310 = vrcp.pop %v8616
        %v9311 = vmul.f32 %v8616, %v9310
        %v9312 = vsub.f32 1.0, %v9311
        %v9313 = vmul.f32 %v9310, %v9312
        %v9314 = vadd.f32 %v9310, %v9313
        %vm9315 = vweird.f32 %v8616
        %vm9316 = vweird.f32 %v9310
        %vm9317 = vmor %vm9315, %vm9316
        %v9318 = vsel %vm9317, %v9310, %v9314
        %v9319 = vand.u32 2147483647, %v8616
        %vm9320 = vcmp.eq.f32.partialorder %v9319, 8.507059e+37
        %v9321 = vand.u32 %v8616, 2147483648
        %v9322 = vor.u32 1.1754944e-38, %v9321
        %v9323 = vsel %vm9320, %v9322, %v9318
        %v9324 = vmul.f32 1.0, %v9323
        %v9325 = vrcp.pop %v8617
        %v9326 = vmul.f32 %v8617, %v9325
        %v9327 = vsub.f32 1.0, %v9326
        %v9328 = vmul.f32 %v9325, %v9327
        %v9329 = vadd.f32 %v9325, %v9328
        %vm9330 = vweird.f32 %v8617
        %vm9331 = vweird.f32 %v9325
        %vm9332 = vmor %vm9330, %vm9331
        %v9333 = vsel %vm9332, %v9325, %v9329
        %v9334 = vand.u32 2147483647, %v8617
        %vm9335 = vcmp.eq.f32.partialorder %v9334, 8.507059e+37
        %v9336 = vand.u32 %v8617, 2147483648
        %v9337 = vor.u32 1.1754944e-38, %v9336
        %v9338 = vsel %vm9335, %v9337, %v9333
        %v9339 = vmul.f32 1.0, %v9338
        %v9340 = vrcp.pop %v8618
        %v9341 = vmul.f32 %v8618, %v9340
        %v9342 = vsub.f32 1.0, %v9341
        %v9343 = vmul.f32 %v9340, %v9342
        %v9344 = vadd.f32 %v9340, %v9343
        %vm9345 = vweird.f32 %v8618
        %vm9346 = vweird.f32 %v9340
        %vm9347 = vmor %vm9345, %vm9346
        %v9348 = vsel %vm9347, %v9340, %v9344
        %v9349 = vand.u32 2147483647, %v8618
        %vm9350 = vcmp.eq.f32.partialorder %v9349, 8.507059e+37
        %v9351 = vand.u32 %v8618, 2147483648
        %v9352 = vor.u32 1.1754944e-38, %v9351
        %v9353 = vsel %vm9350, %v9352, %v9348
        %v9354 = vmul.f32 1.0, %v9353
        %v9355 = vrcp.pop %v8619
        %v9356 = vmul.f32 %v8619, %v9355
        %v9357 = vsub.f32 1.0, %v9356
        %v9358 = vmul.f32 %v9355, %v9357
        %v9359 = vadd.f32 %v9355, %v9358
        %vm9360 = vweird.f32 %v8619
        %vm9361 = vweird.f32 %v9355
        %vm9362 = vmor %vm9360, %vm9361
        %v9363 = vsel %vm9362, %v9355, %v9359
        %v9364 = vand.u32 2147483647, %v8619
        %vm9365 = vcmp.eq.f32.partialorder %v9364, 8.507059e+37
        %v9366 = vand.u32 %v8619, 2147483648
        %v9367 = vor.u32 1.1754944e-38, %v9366
        %v9368 = vsel %vm9365, %v9367, %v9363
        %v9369 = vmul.f32 1.0, %v9368
        %v9370 = vrcp.pop %v8620
        %v9371 = vmul.f32 %v8620, %v9370
        %v9372 = vsub.f32 1.0, %v9371
        %v9373 = vmul.f32 %v9370, %v9372
        %v9374 = vadd.f32 %v9370, %v9373
        %vm9375 = vweird.f32 %v8620
        %vm9376 = vweird.f32 %v9370
        %vm9377 = vmor %vm9375, %vm9376
        %v9378 = vsel %vm9377, %v9370, %v9374
        %v9379 = vand.u32 2147483647, %v8620
        %vm9380 = vcmp.eq.f32.partialorder %v9379, 8.507059e+37
        %v9381 = vand.u32 %v8620, 2147483648
        %v9382 = vor.u32 1.1754944e-38, %v9381
        %v9383 = vsel %vm9380, %v9382, %v9378
        %v9384 = vmul.f32 1.0, %v9383
        %v9385 = vrcp.pop %v8621
        %v9386 = vmul.f32 %v8621, %v9385
        %v9387 = vsub.f32 1.0, %v9386
        %v9388 = vmul.f32 %v9385, %v9387
        %v9389 = vadd.f32 %v9385, %v9388
        %vm9390 = vweird.f32 %v8621
        %vm9391 = vweird.f32 %v9385
        %vm9392 = vmor %vm9390, %vm9391
        %v9393 = vsel %vm9392, %v9385, %v9389
        %v9394 = vand.u32 2147483647, %v8621
        %vm9395 = vcmp.eq.f32.partialorder %v9394, 8.507059e+37
        %v9396 = vand.u32 %v8621, 2147483648
        %v9397 = vor.u32 1.1754944e-38, %v9396
        %v9398 = vsel %vm9395, %v9397, %v9393
        %v9399 = vmul.f32 1.0, %v9398
        %v9400 = vrcp.pop %v8622
        %v9401 = vmul.f32 %v8622, %v9400
        %v9402 = vsub.f32 1.0, %v9401
        %v9403 = vmul.f32 %v9400, %v9402
        %v9404 = vadd.f32 %v9400, %v9403
        %vm9405 = vweird.f32 %v8622
        %vm9406 = vweird.f32 %v9400
        %vm9407 = vmor %vm9405, %vm9406
        %v9408 = vsel %vm9407, %v9400, %v9404
        %v9409 = vand.u32 2147483647, %v8622
        %vm9410 = vcmp.eq.f32.partialorder %v9409, 8.507059e+37
        %v9411 = vand.u32 %v8622, 2147483648
        %v9412 = vor.u32 1.1754944e-38, %v9411
        %v9413 = vsel %vm9410, %v9412, %v9408
        %v9414 = vmul.f32 1.0, %v9413
        %v9415 = vrcp.pop %v8623
        %v9416 = vmul.f32 %v8623, %v9415
        %v9417 = vsub.f32 1.0, %v9416
        %v9418 = vmul.f32 %v9415, %v9417
        %v9419 = vadd.f32 %v9415, %v9418
        %vm9420 = vweird.f32 %v8623
        %vm9421 = vweird.f32 %v9415
        %vm9422 = vmor %vm9420, %vm9421
        %v9423 = vsel %vm9422, %v9415, %v9419
        %v9424 = vand.u32 2147483647, %v8623
        %vm9425 = vcmp.eq.f32.partialorder %v9424, 8.507059e+37
        %v9426 = vand.u32 %v8623, 2147483648
        %v9427 = vor.u32 1.1754944e-38, %v9426
        %v9428 = vsel %vm9425, %v9427, %v9423
        %v9429 = vmul.f32 1.0, %v9428
        %v9430 = vrcp.pop %v8624
        %v9431 = vmul.f32 %v8624, %v9430
        %v9432 = vsub.f32 1.0, %v9431
        %v9433 = vmul.f32 %v9430, %v9432
        %v9434 = vadd.f32 %v9430, %v9433
        %vm9435 = vweird.f32 %v8624
        %vm9436 = vweird.f32 %v9430
        %vm9437 = vmor %vm9435, %vm9436
        %v9438 = vsel %vm9437, %v9430, %v9434
        %v9439 = vand.u32 2147483647, %v8624
        %vm9440 = vcmp.eq.f32.partialorder %v9439, 8.507059e+37
        %v9441 = vand.u32 %v8624, 2147483648
        %v9442 = vor.u32 1.1754944e-38, %v9441
        %v9443 = vsel %vm9440, %v9442, %v9438
        %v9444 = vmul.f32 1.0, %v9443
        %v9445 = vrcp.pop %v8625
        %v9446 = vmul.f32 %v8625, %v9445
        %v9447 = vsub.f32 1.0, %v9446
        %v9448 = vmul.f32 %v9445, %v9447
        %v9449 = vadd.f32 %v9445, %v9448
        %vm9450 = vweird.f32 %v8625
        %vm9451 = vweird.f32 %v9445
        %vm9452 = vmor %vm9450, %vm9451
        %v9453 = vsel %vm9452, %v9445, %v9449
        %v9454 = vand.u32 2147483647, %v8625
        %vm9455 = vcmp.eq.f32.partialorder %v9454, 8.507059e+37
        %v9456 = vand.u32 %v8625, 2147483648
        %v9457 = vor.u32 1.1754944e-38, %v9456
        %v9458 = vsel %vm9455, %v9457, %v9453
        %v9459 = vmul.f32 1.0, %v9458
        %v9460 = vrcp.pop %v8626
        %v9461 = vmul.f32 %v8626, %v9460
        %v9462 = vsub.f32 1.0, %v9461
        %v9463 = vmul.f32 %v9460, %v9462
        %v9464 = vadd.f32 %v9460, %v9463
        %vm9465 = vweird.f32 %v8626
        %vm9466 = vweird.f32 %v9460
        %vm9467 = vmor %vm9465, %vm9466
        %v9468 = vsel %vm9467, %v9460, %v9464
        %v9469 = vand.u32 2147483647, %v8626
        %vm9470 = vcmp.eq.f32.partialorder %v9469, 8.507059e+37
        %v9471 = vand.u32 %v8626, 2147483648
        %v9472 = vor.u32 1.1754944e-38, %v9471
        %v9473 = vsel %vm9470, %v9472, %v9468
        %v9474 = vmul.f32 1.0, %v9473
        %v9475 = vrcp.pop %v8627
        %v9476 = vmul.f32 %v8627, %v9475
        %v9477 = vsub.f32 1.0, %v9476
        %v9478 = vmul.f32 %v9475, %v9477
        %v9479 = vadd.f32 %v9475, %v9478
        %vm9480 = vweird.f32 %v8627
        %vm9481 = vweird.f32 %v9475
        %vm9482 = vmor %vm9480, %vm9481
        %v9483 = vsel %vm9482, %v9475, %v9479
        %v9484 = vand.u32 2147483647, %v8627
        %vm9485 = vcmp.eq.f32.partialorder %v9484, 8.507059e+37
        %v9486 = vand.u32 %v8627, 2147483648
        %v9487 = vor.u32 1.1754944e-38, %v9486
        %v9488 = vsel %vm9485, %v9487, %v9483
        %v9489 = vmul.f32 1.0, %v9488
        %v9490 = vrcp.pop %v8628
        %v9491 = vmul.f32 %v8628, %v9490
        %v9492 = vsub.f32 1.0, %v9491
        %v9493 = vmul.f32 %v9490, %v9492
        %v9494 = vadd.f32 %v9490, %v9493
        %vm9495 = vweird.f32 %v8628
        %vm9496 = vweird.f32 %v9490
        %vm9497 = vmor %vm9495, %vm9496
        %v9498 = vsel %vm9497, %v9490, %v9494
        %v9499 = vand.u32 2147483647, %v8628
        %vm9500 = vcmp.eq.f32.partialorder %v9499, 8.507059e+37
        %v9501 = vand.u32 %v8628, 2147483648
        %v9502 = vor.u32 1.1754944e-38, %v9501
        %v9503 = vsel %vm9500, %v9502, %v9498
        %v9504 = vmul.f32 1.0, %v9503
        %v9505 = vrcp.pop %v8629
        %v9506 = vmul.f32 %v8629, %v9505
        %v9507 = vsub.f32 1.0, %v9506
        %v9508 = vmul.f32 %v9505, %v9507
        %v9509 = vadd.f32 %v9505, %v9508
        %vm9510 = vweird.f32 %v8629
        %vm9511 = vweird.f32 %v9505
        %vm9512 = vmor %vm9510, %vm9511
        %v9513 = vsel %vm9512, %v9505, %v9509
        %v9514 = vand.u32 2147483647, %v8629
        %vm9515 = vcmp.eq.f32.partialorder %v9514, 8.507059e+37
        %v9516 = vand.u32 %v8629, 2147483648
        %v9517 = vor.u32 1.1754944e-38, %v9516
        %v9518 = vsel %vm9515, %v9517, %v9513
        %v9519 = vmul.f32 1.0, %v9518
        %v9520 = vrcp.pop %v8630
        %v9521 = vmul.f32 %v8630, %v9520
        %v9522 = vsub.f32 1.0, %v9521
        %v9523 = vmul.f32 %v9520, %v9522
        %v9524 = vadd.f32 %v9520, %v9523
        %vm9525 = vweird.f32 %v8630
        %vm9526 = vweird.f32 %v9520
        %vm9527 = vmor %vm9525, %vm9526
        %v9528 = vsel %vm9527, %v9520, %v9524
        %v9529 = vand.u32 2147483647, %v8630
        %vm9530 = vcmp.eq.f32.partialorder %v9529, 8.507059e+37
        %v9531 = vand.u32 %v8630, 2147483648
        %v9532 = vor.u32 1.1754944e-38, %v9531
        %v9533 = vsel %vm9530, %v9532, %v9528
        %v9534 = vmul.f32 1.0, %v9533
        %v9535 = vrcp.pop %v8631
        %v9536 = vmul.f32 %v8631, %v9535
        %v9537 = vsub.f32 1.0, %v9536
        %v9538 = vmul.f32 %v9535, %v9537
        %v9539 = vadd.f32 %v9535, %v9538
        %vm9540 = vweird.f32 %v8631
        %vm9541 = vweird.f32 %v9535
        %vm9542 = vmor %vm9540, %vm9541
        %v9543 = vsel %vm9542, %v9535, %v9539
        %v9544 = vand.u32 2147483647, %v8631
        %vm9545 = vcmp.eq.f32.partialorder %v9544, 8.507059e+37
        %v9546 = vand.u32 %v8631, 2147483648
        %v9547 = vor.u32 1.1754944e-38, %v9546
        %v9548 = vsel %vm9545, %v9547, %v9543
        %v9549 = vmul.f32 1.0, %v9548
        %v9550 = vrcp.pop %v8632
        %v9551 = vmul.f32 %v8632, %v9550
        %v9552 = vsub.f32 1.0, %v9551
        %v9553 = vmul.f32 %v9550, %v9552
        %v9554 = vadd.f32 %v9550, %v9553
        %vm9555 = vweird.f32 %v8632
        %vm9556 = vweird.f32 %v9550
        %vm9557 = vmor %vm9555, %vm9556
        %v9558 = vsel %vm9557, %v9550, %v9554
        %v9559 = vand.u32 2147483647, %v8632
        %vm9560 = vcmp.eq.f32.partialorder %v9559, 8.507059e+37
        %v9561 = vand.u32 %v8632, 2147483648
        %v9562 = vor.u32 1.1754944e-38, %v9561
        %v9563 = vsel %vm9560, %v9562, %v9558
        %v9564 = vmul.f32 1.0, %v9563
        %v9565 = vrcp.pop %v8633
        %v9566 = vmul.f32 %v8633, %v9565
        %v9567 = vsub.f32 1.0, %v9566
        %v9568 = vmul.f32 %v9565, %v9567
        %v9569 = vadd.f32 %v9565, %v9568
        %vm9570 = vweird.f32 %v8633
        %vm9571 = vweird.f32 %v9565
        %vm9572 = vmor %vm9570, %vm9571
        %v9573 = vsel %vm9572, %v9565, %v9569
        %v9574 = vand.u32 2147483647, %v8633
        %vm9575 = vcmp.eq.f32.partialorder %v9574, 8.507059e+37
        %v9576 = vand.u32 %v8633, 2147483648
        %v9577 = vor.u32 1.1754944e-38, %v9576
        %v9578 = vsel %vm9575, %v9577, %v9573
        %v9579 = vmul.f32 1.0, %v9578
        %v9580 = vrcp.pop %v8634
        %v9581 = vmul.f32 %v8634, %v9580
        %v9582 = vsub.f32 1.0, %v9581
        %v9583 = vmul.f32 %v9580, %v9582
        %v9584 = vadd.f32 %v9580, %v9583
        %vm9585 = vweird.f32 %v8634
        %vm9586 = vweird.f32 %v9580
        %vm9587 = vmor %vm9585, %vm9586
        %v9588 = vsel %vm9587, %v9580, %v9584
        %v9589 = vand.u32 2147483647, %v8634
        %vm9590 = vcmp.eq.f32.partialorder %v9589, 8.507059e+37
        %v9591 = vand.u32 %v8634, 2147483648
        %v9592 = vor.u32 1.1754944e-38, %v9591
        %v9593 = vsel %vm9590, %v9592, %v9588
        %v9594 = vmul.f32 1.0, %v9593
        %v9595 = vmul.f32 %v8649, 1.0614054
        %v9596 = vmul.f32 %v8664, 1.0614054
        %v9597 = vmul.f32 %v8679, 1.0614054
        %v9598 = vmul.f32 %v8694, 1.0614054
        %v9599 = vmul.f32 %v8709, 1.0614054
        %v9600 = vmul.f32 %v8724, 1.0614054
        %v9601 = vmul.f32 %v8739, 1.0614054
        %v9602 = vmul.f32 %v8754, 1.0614054
        %v9603 = vmul.f32 %v8769, 1.0614054
        %v9604 = vmul.f32 %v8784, 1.0614054
        %v9605 = vmul.f32 %v8799, 1.0614054
        %v9606 = vmul.f32 %v8814, 1.0614054
        %v9607 = vmul.f32 %v8829, 1.0614054
        %v9608 = vmul.f32 %v8844, 1.0614054
        %v9609 = vmul.f32 %v8859, 1.0614054
        %v9610 = vmul.f32 %v8874, 1.0614054
        %v9611 = vmul.f32 %v8889, 1.0614054
        %v9612 = vmul.f32 %v8904, 1.0614054
        %v9613 = vmul.f32 %v8919, 1.0614054
        %v9614 = vmul.f32 %v8934, 1.0614054
        %v9615 = vmul.f32 %v8949, 1.0614054
        %v9616 = vmul.f32 %v8964, 1.0614054
        %v9617 = vmul.f32 %v8979, 1.0614054
        %v9618 = vmul.f32 %v8994, 1.0614054
        %v9619 = vmul.f32 %v9009, 1.0614054
        %v9620 = vmul.f32 %v9024, 1.0614054
        %v9621 = vmul.f32 %v9039, 1.0614054
        %v9622 = vmul.f32 %v9054, 1.0614054
        %v9623 = vmul.f32 %v9069, 1.0614054
        %v9624 = vmul.f32 %v9084, 1.0614054
        %v9625 = vmul.f32 %v9099, 1.0614054
        %v9626 = vmul.f32 %v9114, 1.0614054
        %v9627 = vmul.f32 %v9129, 1.0614054
        %v9628 = vmul.f32 %v9144, 1.0614054
        %v9629 = vmul.f32 %v9159, 1.0614054
        %v9630 = vmul.f32 %v9174, 1.0614054
        %v9631 = vmul.f32 %v9189, 1.0614054
        %v9632 = vmul.f32 %v9204, 1.0614054
        %v9633 = vmul.f32 %v9219, 1.0614054
        %v9634 = vmul.f32 %v9234, 1.0614054
        %v9635 = vmul.f32 %v9249, 1.0614054
        %v9636 = vmul.f32 %v9264, 1.0614054
        %v9637 = vmul.f32 %v9279, 1.0614054
        %v9638 = vmul.f32 %v9294, 1.0614054
        %v9639 = vmul.f32 %v9309, 1.0614054
        %v9640 = vmul.f32 %v9324, 1.0614054
        %v9641 = vmul.f32 %v9339, 1.0614054
        %v9642 = vmul.f32 %v9354, 1.0614054
        %v9643 = vmul.f32 %v9369, 1.0614054
        %v9644 = vmul.f32 %v9384, 1.0614054
        %v9645 = vmul.f32 %v9399, 1.0614054
        %v9646 = vmul.f32 %v9414, 1.0614054
        %v9647 = vmul.f32 %v9429, 1.0614054
        %v9648 = vmul.f32 %v9444, 1.0614054
        %v9649 = vmul.f32 %v9459, 1.0614054
        %v9650 = vmul.f32 %v9474, 1.0614054
        %v9651 = vmul.f32 %v9489, 1.0614054
        %v9652 = vmul.f32 %v9504, 1.0614054
        %v9653 = vmul.f32 %v9519, 1.0614054
        %v9654 = vmul.f32 %v9534, 1.0614054
        %v9655 = vmul.f32 %v9549, 1.0614054
        %v9656 = vmul.f32 %v9564, 1.0614054
        %v9657 = vmul.f32 %v9579, 1.0614054
        %v9658 = vmul.f32 %v9594, 1.0614054
        %v9659 = vadd.f32 %v9595, -1.4531521
        %v9660 = vadd.f32 %v9596, -1.4531521
        %v9661 = vadd.f32 %v9597, -1.4531521
        %v9662 = vadd.f32 %v9598, -1.4531521
        %v9663 = vadd.f32 %v9599, -1.4531521
        %v9664 = vadd.f32 %v9600, -1.4531521
        %v9665 = vadd.f32 %v9601, -1.4531521
        %v9666 = vadd.f32 %v9602, -1.4531521
        %v9667 = vadd.f32 %v9603, -1.4531521
        %v9668 = vadd.f32 %v9604, -1.4531521
        %v9669 = vadd.f32 %v9605, -1.4531521
        %v9670 = vadd.f32 %v9606, -1.4531521
        %v9671 = vadd.f32 %v9607, -1.4531521
        %v9672 = vadd.f32 %v9608, -1.4531521
        %v9673 = vadd.f32 %v9609, -1.4531521
        %v9674 = vadd.f32 %v9610, -1.4531521
        %v9675 = vadd.f32 %v9611, -1.4531521
        %v9676 = vadd.f32 %v9612, -1.4531521
        %v9677 = vadd.f32 %v9613, -1.4531521
        %v9678 = vadd.f32 %v9614, -1.4531521
        %v9679 = vadd.f32 %v9615, -1.4531521
        %v9680 = vadd.f32 %v9616, -1.4531521
        %v9681 = vadd.f32 %v9617, -1.4531521
        %v9682 = vadd.f32 %v9618, -1.4531521
        %v9683 = vadd.f32 %v9619, -1.4531521
        %v9684 = vadd.f32 %v9620, -1.4531521
        %v9685 = vadd.f32 %v9621, -1.4531521
        %v9686 = vadd.f32 %v9622, -1.4531521
        %v9687 = vadd.f32 %v9623, -1.4531521
        %v9688 = vadd.f32 %v9624, -1.4531521
        %v9689 = vadd.f32 %v9625, -1.4531521
        %v9690 = vadd.f32 %v9626, -1.4531521
        %v9691 = vadd.f32 %v9627, -1.4531521
        %v9692 = vadd.f32 %v9628, -1.4531521
        %v9693 = vadd.f32 %v9629, -1.4531521
        %v9694 = vadd.f32 %v9630, -1.4531521
        %v9695 = vadd.f32 %v9631, -1.4531521
        %v9696 = vadd.f32 %v9632, -1.4531521
        %v9697 = vadd.f32 %v9633, -1.4531521
        %v9698 = vadd.f32 %v9634, -1.4531521
        %v9699 = vadd.f32 %v9635, -1.4531521
        %v9700 = vadd.f32 %v9636, -1.4531521
        %v9701 = vadd.f32 %v9637, -1.4531521
        %v9702 = vadd.f32 %v9638, -1.4531521
        %v9703 = vadd.f32 %v9639, -1.4531521
        %v9704 = vadd.f32 %v9640, -1.4531521
        %v9705 = vadd.f32 %v9641, -1.4531521
        %v9706 = vadd.f32 %v9642, -1.4531521
        %v9707 = vadd.f32 %v9643, -1.4531521
        %v9708 = vadd.f32 %v9644, -1.4531521
        %v9709 = vadd.f32 %v9645, -1.4531521
        %v9710 = vadd.f32 %v9646, -1.4531521
        %v9711 = vadd.f32 %v9647, -1.4531521
        %v9712 = vadd.f32 %v9648, -1.4531521
        %v9713 = vadd.f32 %v9649, -1.4531521
        %v9714 = vadd.f32 %v9650, -1.4531521
        %v9715 = vadd.f32 %v9651, -1.4531521
        %v9716 = vadd.f32 %v9652, -1.4531521
        %v9717 = vadd.f32 %v9653, -1.4531521
        %v9718 = vadd.f32 %v9654, -1.4531521
        %v9719 = vadd.f32 %v9655, -1.4531521
        %v9720 = vadd.f32 %v9656, -1.4531521
        %v9721 = vadd.f32 %v9657, -1.4531521
        %v9722 = vadd.f32 %v9658, -1.4531521
        %v9723 = vmul.f32 %v9659, %v8649
        %v9724 = vmul.f32 %v9660, %v8664
        %v9725 = vmul.f32 %v9661, %v8679
        %v9726 = vmul.f32 %v9662, %v8694
        %v9727 = vmul.f32 %v9663, %v8709
        %v9728 = vmul.f32 %v9664, %v8724
        %v9729 = vmul.f32 %v9665, %v8739
        %v9730 = vmul.f32 %v9666, %v8754
        %v9731 = vmul.f32 %v9667, %v8769
        %v9732 = vmul.f32 %v9668, %v8784
        %v9733 = vmul.f32 %v9669, %v8799
        %v9734 = vmul.f32 %v9670, %v8814
        %v9735 = vmul.f32 %v9671, %v8829
        %v9736 = vmul.f32 %v9672, %v8844
        %v9737 = vmul.f32 %v9673, %v8859
        %v9738 = vmul.f32 %v9674, %v8874
        %v9739 = vmul.f32 %v9675, %v8889
        %v9740 = vmul.f32 %v9676, %v8904
        %v9741 = vmul.f32 %v9677, %v8919
        %v9742 = vmul.f32 %v9678, %v8934
        %v9743 = vmul.f32 %v9679, %v8949
        %v9744 = vmul.f32 %v9680, %v8964
        %v9745 = vmul.f32 %v9681, %v8979
        %v9746 = vmul.f32 %v9682, %v8994
        %v9747 = vmul.f32 %v9683, %v9009
        %v9748 = vmul.f32 %v9684, %v9024
        %v9749 = vmul.f32 %v9685, %v9039
        %v9750 = vmul.f32 %v9686, %v9054
        %v9751 = vmul.f32 %v9687, %v9069
        %v9752 = vmul.f32 %v9688, %v9084
        %v9753 = vmul.f32 %v9689, %v9099
        %v9754 = vmul.f32 %v9690, %v9114
        %v9755 = vmul.f32 %v9691, %v9129
        %v9756 = vmul.f32 %v9692, %v9144
        %v9757 = vmul.f32 %v9693, %v9159
        %v9758 = vmul.f32 %v9694, %v9174
        %v9759 = vmul.f32 %v9695, %v9189
        %v9760 = vmul.f32 %v9696, %v9204
        %v9761 = vmul.f32 %v9697, %v9219
        %v9762 = vmul.f32 %v9698, %v9234
        %v9763 = vmul.f32 %v9699, %v9249
        %v9764 = vmul.f32 %v9700, %v9264
        %v9765 = vmul.f32 %v9701, %v9279
        %v9766 = vmul.f32 %v9702, %v9294
        %v9767 = vmul.f32 %v9703, %v9309
        %v9768 = vmul.f32 %v9704, %v9324
        %v9769 = vmul.f32 %v9705, %v9339
        %v9770 = vmul.f32 %v9706, %v9354
        %v9771 = vmul.f32 %v9707, %v9369
        %v9772 = vmul.f32 %v9708, %v9384
        %v9773 = vmul.f32 %v9709, %v9399
        %v9774 = vmul.f32 %v9710, %v9414
        %v9775 = vmul.f32 %v9711, %v9429
        %v9776 = vmul.f32 %v9712, %v9444
        %v9777 = vmul.f32 %v9713, %v9459
        %v9778 = vmul.f32 %v9714, %v9474
        %v9779 = vmul.f32 %v9715, %v9489
        %v9780 = vmul.f32 %v9716, %v9504
        %v9781 = vmul.f32 %v9717, %v9519
        %v9782 = vmul.f32 %v9718, %v9534
        %v9783 = vmul.f32 %v9719, %v9549
        %v9784 = vmul.f32 %v9720, %v9564
        %v9785 = vmul.f32 %v9721, %v9579
        %v9786 = vmul.f32 %v9722, %v9594
        %v9787 = vadd.f32 %v9723, 1.4214138
        %v9788 = vadd.f32 %v9724, 1.4214138
        %v9789 = vadd.f32 %v9725, 1.4214138
        %v9790 = vadd.f32 %v9726, 1.4214138
        %v9791 = vadd.f32 %v9727, 1.4214138
        %v9792 = vadd.f32 %v9728, 1.4214138
        %v9793 = vadd.f32 %v9729, 1.4214138
        %v9794 = vadd.f32 %v9730, 1.4214138
        %v9795 = vadd.f32 %v9731, 1.4214138
        %v9796 = vadd.f32 %v9732, 1.4214138
        %v9797 = vadd.f32 %v9733, 1.4214138
        %v9798 = vadd.f32 %v9734, 1.4214138
        %v9799 = vadd.f32 %v9735, 1.4214138
        %v9800 = vadd.f32 %v9736, 1.4214138
        %v9801 = vadd.f32 %v9737, 1.4214138
        %v9802 = vadd.f32 %v9738, 1.4214138
        %v9803 = vadd.f32 %v9739, 1.4214138
        %v9804 = vadd.f32 %v9740, 1.4214138
        %v9805 = vadd.f32 %v9741, 1.4214138
        %v9806 = vadd.f32 %v9742, 1.4214138
        %v9807 = vadd.f32 %v9743, 1.4214138
        %v9808 = vadd.f32 %v9744, 1.4214138
        %v9809 = vadd.f32 %v9745, 1.4214138
        %v9810 = vadd.f32 %v9746, 1.4214138
        %v9811 = vadd.f32 %v9747, 1.4214138
        %v9812 = vadd.f32 %v9748, 1.4214138
        %v9813 = vadd.f32 %v9749, 1.4214138
        %v9814 = vadd.f32 %v9750, 1.4214138
        %v9815 = vadd.f32 %v9751, 1.4214138
        %v9816 = vadd.f32 %v9752, 1.4214138
        %v9817 = vadd.f32 %v9753, 1.4214138
        %v9818 = vadd.f32 %v9754, 1.4214138
        %v9819 = vadd.f32 %v9755, 1.4214138
        %v9820 = vadd.f32 %v9756, 1.4214138
        %v9821 = vadd.f32 %v9757, 1.4214138
        %v9822 = vadd.f32 %v9758, 1.4214138
        %v9823 = vadd.f32 %v9759, 1.4214138
        %v9824 = vadd.f32 %v9760, 1.4214138
        %v9825 = vadd.f32 %v9761, 1.4214138
        %v9826 = vadd.f32 %v9762, 1.4214138
        %v9827 = vadd.f32 %v9763, 1.4214138
        %v9828 = vadd.f32 %v9764, 1.4214138
        %v9829 = vadd.f32 %v9765, 1.4214138
        %v9830 = vadd.f32 %v9766, 1.4214138
        %v9831 = vadd.f32 %v9767, 1.4214138
        %v9832 = vadd.f32 %v9768, 1.4214138
        %v9833 = vadd.f32 %v9769, 1.4214138
        %v9834 = vadd.f32 %v9770, 1.4214138
        %v9835 = vadd.f32 %v9771, 1.4214138
        %v9836 = vadd.f32 %v9772, 1.4214138
        %v9837 = vadd.f32 %v9773, 1.4214138
        %v9838 = vadd.f32 %v9774, 1.4214138
        %v9839 = vadd.f32 %v9775, 1.4214138
        %v9840 = vadd.f32 %v9776, 1.4214138
        %v9841 = vadd.f32 %v9777, 1.4214138
        %v9842 = vadd.f32 %v9778, 1.4214138
        %v9843 = vadd.f32 %v9779, 1.4214138
        %v9844 = vadd.f32 %v9780, 1.4214138
        %v9845 = vadd.f32 %v9781, 1.4214138
        %v9846 = vadd.f32 %v9782, 1.4214138
        %v9847 = vadd.f32 %v9783, 1.4214138
        %v9848 = vadd.f32 %v9784, 1.4214138
        %v9849 = vadd.f32 %v9785, 1.4214138
        %v9850 = vadd.f32 %v9786, 1.4214138
        %v9851 = vmul.f32 %v9787, %v8649
        %v9852 = vmul.f32 %v9788, %v8664
        %v9853 = vmul.f32 %v9789, %v8679
        %v9854 = vmul.f32 %v9790, %v8694
        %v9855 = vmul.f32 %v9791, %v8709
        %v9856 = vmul.f32 %v9792, %v8724
        %v9857 = vmul.f32 %v9793, %v8739
        %v9858 = vmul.f32 %v9794, %v8754
        %v9859 = vmul.f32 %v9795, %v8769
        %v9860 = vmul.f32 %v9796, %v8784
        %v9861 = vmul.f32 %v9797, %v8799
        %v9862 = vmul.f32 %v9798, %v8814
        %v9863 = vmul.f32 %v9799, %v8829
        %v9864 = vmul.f32 %v9800, %v8844
        %v9865 = vmul.f32 %v9801, %v8859
        %v9866 = vmul.f32 %v9802, %v8874
        %v9867 = vmul.f32 %v9803, %v8889
        %v9868 = vmul.f32 %v9804, %v8904
        %v9869 = vmul.f32 %v9805, %v8919
        %v9870 = vmul.f32 %v9806, %v8934
        %v9871 = vmul.f32 %v9807, %v8949
        %v9872 = vmul.f32 %v9808, %v8964
        %v9873 = vmul.f32 %v9809, %v8979
        %v9874 = vmul.f32 %v9810, %v8994
        %v9875 = vmul.f32 %v9811, %v9009
        %v9876 = vmul.f32 %v9812, %v9024
        %v9877 = vmul.f32 %v9813, %v9039
        %v9878 = vmul.f32 %v9814, %v9054
        %v9879 = vmul.f32 %v9815, %v9069
        %v9880 = vmul.f32 %v9816, %v9084
        %v9881 = vmul.f32 %v9817, %v9099
        %v9882 = vmul.f32 %v9818, %v9114
        %v9883 = vmul.f32 %v9819, %v9129
        %v9884 = vmul.f32 %v9820, %v9144
        %v9885 = vmul.f32 %v9821, %v9159
        %v9886 = vmul.f32 %v9822, %v9174
        %v9887 = vmul.f32 %v9823, %v9189
        %v9888 = vmul.f32 %v9824, %v9204
        %v9889 = vmul.f32 %v9825, %v9219
        %v9890 = vmul.f32 %v9826, %v9234
        %v9891 = vmul.f32 %v9827, %v9249
        %v9892 = vmul.f32 %v9828, %v9264
        %v9893 = vmul.f32 %v9829, %v9279
        %v9894 = vmul.f32 %v9830, %v9294
        %v9895 = vmul.f32 %v9831, %v9309
        %v9896 = vmul.f32 %v9832, %v9324
        %v9897 = vmul.f32 %v9833, %v9339
        %v9898 = vmul.f32 %v9834, %v9354
        %v9899 = vmul.f32 %v9835, %v9369
        %v9900 = vmul.f32 %v9836, %v9384
        %v9901 = vmul.f32 %v9837, %v9399
        %v9902 = vmul.f32 %v9838, %v9414
        %v9903 = vmul.f32 %v9839, %v9429
        %v9904 = vmul.f32 %v9840, %v9444
        %v9905 = vmul.f32 %v9841, %v9459
        %v9906 = vmul.f32 %v9842, %v9474
        %v9907 = vmul.f32 %v9843, %v9489
        %v9908 = vmul.f32 %v9844, %v9504
        %v9909 = vmul.f32 %v9845, %v9519
        %v9910 = vmul.f32 %v9846, %v9534
        %v9911 = vmul.f32 %v9847, %v9549
        %v9912 = vmul.f32 %v9848, %v9564
        %v9913 = vmul.f32 %v9849, %v9579
        %v9914 = vmul.f32 %v9850, %v9594
        %v9915 = vadd.f32 %v9851, -0.28449672
        %v9916 = vadd.f32 %v9852, -0.28449672
        %v9917 = vadd.f32 %v9853, -0.28449672
        %v9918 = vadd.f32 %v9854, -0.28449672
        %v9919 = vadd.f32 %v9855, -0.28449672
        %v9920 = vadd.f32 %v9856, -0.28449672
        %v9921 = vadd.f32 %v9857, -0.28449672
        %v9922 = vadd.f32 %v9858, -0.28449672
        %v9923 = vadd.f32 %v9859, -0.28449672
        %v9924 = vadd.f32 %v9860, -0.28449672
        %v9925 = vadd.f32 %v9861, -0.28449672
        %v9926 = vadd.f32 %v9862, -0.28449672
        %v9927 = vadd.f32 %v9863, -0.28449672
        %v9928 = vadd.f32 %v9864, -0.28449672
        %v9929 = vadd.f32 %v9865, -0.28449672
        %v9930 = vadd.f32 %v9866, -0.28449672
        %v9931 = vadd.f32 %v9867, -0.28449672
        %v9932 = vadd.f32 %v9868, -0.28449672
        %v9933 = vadd.f32 %v9869, -0.28449672
        %v9934 = vadd.f32 %v9870, -0.28449672
        %v9935 = vadd.f32 %v9871, -0.28449672
        %v9936 = vadd.f32 %v9872, -0.28449672
        %v9937 = vadd.f32 %v9873, -0.28449672
        %v9938 = vadd.f32 %v9874, -0.28449672
        %v9939 = vadd.f32 %v9875, -0.28449672
        %v9940 = vadd.f32 %v9876, -0.28449672
        %v9941 = vadd.f32 %v9877, -0.28449672
        %v9942 = vadd.f32 %v9878, -0.28449672
        %v9943 = vadd.f32 %v9879, -0.28449672
        %v9944 = vadd.f32 %v9880, -0.28449672
        %v9945 = vadd.f32 %v9881, -0.28449672
        %v9946 = vadd.f32 %v9882, -0.28449672
        %v9947 = vadd.f32 %v9883, -0.28449672
        %v9948 = vadd.f32 %v9884, -0.28449672
        %v9949 = vadd.f32 %v9885, -0.28449672
        %v9950 = vadd.f32 %v9886, -0.28449672
        %v9951 = vadd.f32 %v9887, -0.28449672
        %v9952 = vadd.f32 %v9888, -0.28449672
        %v9953 = vadd.f32 %v9889, -0.28449672
        %v9954 = vadd.f32 %v9890, -0.28449672
        %v9955 = vadd.f32 %v9891, -0.28449672
        %v9956 = vadd.f32 %v9892, -0.28449672
        %v9957 = vadd.f32 %v9893, -0.28449672
        %v9958 = vadd.f32 %v9894, -0.28449672
        %v9959 = vadd.f32 %v9895, -0.28449672
        %v9960 = vadd.f32 %v9896, -0.28449672
        %v9961 = vadd.f32 %v9897, -0.28449672
        %v9962 = vadd.f32 %v9898, -0.28449672
        %v9963 = vadd.f32 %v9899, -0.28449672
        %v9964 = vadd.f32 %v9900, -0.28449672
        %v9965 = vadd.f32 %v9901, -0.28449672
        %v9966 = vadd.f32 %v9902, -0.28449672
        %v9967 = vadd.f32 %v9903, -0.28449672
        %v9968 = vadd.f32 %v9904, -0.28449672
        %v9969 = vadd.f32 %v9905, -0.28449672
        %v9970 = vadd.f32 %v9906, -0.28449672
        %v9971 = vadd.f32 %v9907, -0.28449672
        %v9972 = vadd.f32 %v9908, -0.28449672
        %v9973 = vadd.f32 %v9909, -0.28449672
        %v9974 = vadd.f32 %v9910, -0.28449672
        %v9975 = vadd.f32 %v9911, -0.28449672
        %v9976 = vadd.f32 %v9912, -0.28449672
        %v9977 = vadd.f32 %v9913, -0.28449672
        %v9978 = vadd.f32 %v9914, -0.28449672
        %v9979 = vmul.f32 %v9915, %v8649
        %v9980 = vmul.f32 %v9916, %v8664
        %v9981 = vmul.f32 %v9917, %v8679
        %v9982 = vmul.f32 %v9918, %v8694
        %v9983 = vmul.f32 %v9919, %v8709
        %v9984 = vmul.f32 %v9920, %v8724
        %v9985 = vmul.f32 %v9921, %v8739
        %v9986 = vmul.f32 %v9922, %v8754
        %v9987 = vmul.f32 %v9923, %v8769
        %v9988 = vmul.f32 %v9924, %v8784
        %v9989 = vmul.f32 %v9925, %v8799
        %v9990 = vmul.f32 %v9926, %v8814
        %v9991 = vmul.f32 %v9927, %v8829
        %v9992 = vmul.f32 %v9928, %v8844
        %v9993 = vmul.f32 %v9929, %v8859
        %v9994 = vmul.f32 %v9930, %v8874
        %v9995 = vmul.f32 %v9931, %v8889
        %v9996 = vmul.f32 %v9932, %v8904
        %v9997 = vmul.f32 %v9933, %v8919
        %v9998 = vmul.f32 %v9934, %v8934
        %v9999 = vmul.f32 %v9935, %v8949
        %v10000 = vmul.f32 %v9936, %v8964
        %v10001 = vmul.f32 %v9937, %v8979
        %v10002 = vmul.f32 %v9938, %v8994
        %v10003 = vmul.f32 %v9939, %v9009
        %v10004 = vmul.f32 %v9940, %v9024
        %v10005 = vmul.f32 %v9941, %v9039
        %v10006 = vmul.f32 %v9942, %v9054
        %v10007 = vmul.f32 %v9943, %v9069
        %v10008 = vmul.f32 %v9944, %v9084
        %v10009 = vmul.f32 %v9945, %v9099
        %v10010 = vmul.f32 %v9946, %v9114
        %v10011 = vmul.f32 %v9947, %v9129
        %v10012 = vmul.f32 %v9948, %v9144
        %v10013 = vmul.f32 %v9949, %v9159
        %v10014 = vmul.f32 %v9950, %v9174
        %v10015 = vmul.f32 %v9951, %v9189
        %v10016 = vmul.f32 %v9952, %v9204
        %v10017 = vmul.f32 %v9953, %v9219
        %v10018 = vmul.f32 %v9954, %v9234
        %v10019 = vmul.f32 %v9955, %v9249
        %v10020 = vmul.f32 %v9956, %v9264
        %v10021 = vmul.f32 %v9957, %v9279
        %v10022 = vmul.f32 %v9958, %v9294
        %v10023 = vmul.f32 %v9959, %v9309
        %v10024 = vmul.f32 %v9960, %v9324
        %v10025 = vmul.f32 %v9961, %v9339
        %v10026 = vmul.f32 %v9962, %v9354
        %v10027 = vmul.f32 %v9963, %v9369
        %v10028 = vmul.f32 %v9964, %v9384
        %v10029 = vmul.f32 %v9965, %v9399
        %v10030 = vmul.f32 %v9966, %v9414
        %v10031 = vmul.f32 %v9967, %v9429
        %v10032 = vmul.f32 %v9968, %v9444
        %v10033 = vmul.f32 %v9969, %v9459
        %v10034 = vmul.f32 %v9970, %v9474
        %v10035 = vmul.f32 %v9971, %v9489
        %v10036 = vmul.f32 %v9972, %v9504
        %v10037 = vmul.f32 %v9973, %v9519
        %v10038 = vmul.f32 %v9974, %v9534
        %v10039 = vmul.f32 %v9975, %v9549
        %v10040 = vmul.f32 %v9976, %v9564
        %v10041 = vmul.f32 %v9977, %v9579
        %v10042 = vmul.f32 %v9978, %v9594
        %v10043 = vadd.f32 %v9979, 0.2548296
        %v10044 = vadd.f32 %v9980, 0.2548296
        %v10045 = vadd.f32 %v9981, 0.2548296
        %v10046 = vadd.f32 %v9982, 0.2548296
        %v10047 = vadd.f32 %v9983, 0.2548296
        %v10048 = vadd.f32 %v9984, 0.2548296
        %v10049 = vadd.f32 %v9985, 0.2548296
        %v10050 = vadd.f32 %v9986, 0.2548296
        %v10051 = vadd.f32 %v9987, 0.2548296
        %v10052 = vadd.f32 %v9988, 0.2548296
        %v10053 = vadd.f32 %v9989, 0.2548296
        %v10054 = vadd.f32 %v9990, 0.2548296
        %v10055 = vadd.f32 %v9991, 0.2548296
        %v10056 = vadd.f32 %v9992, 0.2548296
        %v10057 = vadd.f32 %v9993, 0.2548296
        %v10058 = vadd.f32 %v9994, 0.2548296
        %v10059 = vadd.f32 %v9995, 0.2548296
        %v10060 = vadd.f32 %v9996, 0.2548296
        %v10061 = vadd.f32 %v9997, 0.2548296
        %v10062 = vadd.f32 %v9998, 0.2548296
        %v10063 = vadd.f32 %v9999, 0.2548296
        %v10064 = vadd.f32 %v10000, 0.2548296
        %v10065 = vadd.f32 %v10001, 0.2548296
        %v10066 = vadd.f32 %v10002, 0.2548296
        %v10067 = vadd.f32 %v10003, 0.2548296
        %v10068 = vadd.f32 %v10004, 0.2548296
        %v10069 = vadd.f32 %v10005, 0.2548296
        %v10070 = vadd.f32 %v10006, 0.2548296
        %v10071 = vadd.f32 %v10007, 0.2548296
        %v10072 = vadd.f32 %v10008, 0.2548296
        %v10073 = vadd.f32 %v10009, 0.2548296
        %v10074 = vadd.f32 %v10010, 0.2548296
        %v10075 = vadd.f32 %v10011, 0.2548296
        %v10076 = vadd.f32 %v10012, 0.2548296
        %v10077 = vadd.f32 %v10013, 0.2548296
        %v10078 = vadd.f32 %v10014, 0.2548296
        %v10079 = vadd.f32 %v10015, 0.2548296
        %v10080 = vadd.f32 %v10016, 0.2548296
        %v10081 = vadd.f32 %v10017, 0.2548296
        %v10082 = vadd.f32 %v10018, 0.2548296
        %v10083 = vadd.f32 %v10019, 0.2548296
        %v10084 = vadd.f32 %v10020, 0.2548296
        %v10085 = vadd.f32 %v10021, 0.2548296
        %v10086 = vadd.f32 %v10022, 0.2548296
        %v10087 = vadd.f32 %v10023, 0.2548296
        %v10088 = vadd.f32 %v10024, 0.2548296
        %v10089 = vadd.f32 %v10025, 0.2548296
        %v10090 = vadd.f32 %v10026, 0.2548296
        %v10091 = vadd.f32 %v10027, 0.2548296
        %v10092 = vadd.f32 %v10028, 0.2548296
        %v10093 = vadd.f32 %v10029, 0.2548296
        %v10094 = vadd.f32 %v10030, 0.2548296
        %v10095 = vadd.f32 %v10031, 0.2548296
        %v10096 = vadd.f32 %v10032, 0.2548296
        %v10097 = vadd.f32 %v10033, 0.2548296
        %v10098 = vadd.f32 %v10034, 0.2548296
        %v10099 = vadd.f32 %v10035, 0.2548296
        %v10100 = vadd.f32 %v10036, 0.2548296
        %v10101 = vadd.f32 %v10037, 0.2548296
        %v10102 = vadd.f32 %v10038, 0.2548296
        %v10103 = vadd.f32 %v10039, 0.2548296
        %v10104 = vadd.f32 %v10040, 0.2548296
        %v10105 = vadd.f32 %v10041, 0.2548296
        %v10106 = vadd.f32 %v10042, 0.2548296
        %v10107 = vmul.f32 %v10043, %v8649
        %v10108 = vmul.f32 %v10044, %v8664
        %v10109 = vmul.f32 %v10045, %v8679
        %v10110 = vmul.f32 %v10046, %v8694
        %v10111 = vmul.f32 %v10047, %v8709
        %v10112 = vmul.f32 %v10048, %v8724
        %v10113 = vmul.f32 %v10049, %v8739
        %v10114 = vmul.f32 %v10050, %v8754
        %v10115 = vmul.f32 %v10051, %v8769
        %v10116 = vmul.f32 %v10052, %v8784
        %v10117 = vmul.f32 %v10053, %v8799
        %v10118 = vmul.f32 %v10054, %v8814
        %v10119 = vmul.f32 %v10055, %v8829
        %v10120 = vmul.f32 %v10056, %v8844
        %v10121 = vmul.f32 %v10057, %v8859
        %v10122 = vmul.f32 %v10058, %v8874
        %v10123 = vmul.f32 %v10059, %v8889
        %v10124 = vmul.f32 %v10060, %v8904
        %v10125 = vmul.f32 %v10061, %v8919
        %v10126 = vmul.f32 %v10062, %v8934
        %v10127 = vmul.f32 %v10063, %v8949
        %v10128 = vmul.f32 %v10064, %v8964
        %v10129 = vmul.f32 %v10065, %v8979
        %v10130 = vmul.f32 %v10066, %v8994
        %v10131 = vmul.f32 %v10067, %v9009
        %v10132 = vmul.f32 %v10068, %v9024
        %v10133 = vmul.f32 %v10069, %v9039
        %v10134 = vmul.f32 %v10070, %v9054
        %v10135 = vmul.f32 %v10071, %v9069
        %v10136 = vmul.f32 %v10072, %v9084
        %v10137 = vmul.f32 %v10073, %v9099
        %v10138 = vmul.f32 %v10074, %v9114
        %v10139 = vmul.f32 %v10075, %v9129
        %v10140 = vmul.f32 %v10076, %v9144
        %v10141 = vmul.f32 %v10077, %v9159
        %v10142 = vmul.f32 %v10078, %v9174
        %v10143 = vmul.f32 %v10079, %v9189
        %v10144 = vmul.f32 %v10080, %v9204
        %v10145 = vmul.f32 %v10081, %v9219
        %v10146 = vmul.f32 %v10082, %v9234
        %v10147 = vmul.f32 %v10083, %v9249
        %v10148 = vmul.f32 %v10084, %v9264
        %v10149 = vmul.f32 %v10085, %v9279
        %v10150 = vmul.f32 %v10086, %v9294
        %v10151 = vmul.f32 %v10087, %v9309
        %v10152 = vmul.f32 %v10088, %v9324
        %v10153 = vmul.f32 %v10089, %v9339
        %v10154 = vmul.f32 %v10090, %v9354
        %v10155 = vmul.f32 %v10091, %v9369
        %v10156 = vmul.f32 %v10092, %v9384
        %v10157 = vmul.f32 %v10093, %v9399
        %v10158 = vmul.f32 %v10094, %v9414
        %v10159 = vmul.f32 %v10095, %v9429
        %v10160 = vmul.f32 %v10096, %v9444
        %v10161 = vmul.f32 %v10097, %v9459
        %v10162 = vmul.f32 %v10098, %v9474
        %v10163 = vmul.f32 %v10099, %v9489
        %v10164 = vmul.f32 %v10100, %v9504
        %v10165 = vmul.f32 %v10101, %v9519
        %v10166 = vmul.f32 %v10102, %v9534
        %v10167 = vmul.f32 %v10103, %v9549
        %v10168 = vmul.f32 %v10104, %v9564
        %v10169 = vmul.f32 %v10105, %v9579
        %v10170 = vmul.f32 %v10106, %v9594
        %v10171 = vsub.f32 0.0, %v8443
        %v10172 = vsub.f32 0.0, %v8444
        %v10173 = vsub.f32 0.0, %v8445
        %v10174 = vsub.f32 0.0, %v8446
        %v10175 = vsub.f32 0.0, %v8447
        %v10176 = vsub.f32 0.0, %v8448
        %v10177 = vsub.f32 0.0, %v8449
        %v10178 = vsub.f32 0.0, %v8450
        %v10179 = vsub.f32 0.0, %v8451
        %v10180 = vsub.f32 0.0, %v8452
        %v10181 = vsub.f32 0.0, %v8453
        %v10182 = vsub.f32 0.0, %v8454
        %v10183 = vsub.f32 0.0, %v8455
        %v10184 = vsub.f32 0.0, %v8456
        %v10185 = vsub.f32 0.0, %v8457
        %v10186 = vsub.f32 0.0, %v8458
        %v10187 = vsub.f32 0.0, %v8459
        %v10188 = vsub.f32 0.0, %v8460
        %v10189 = vsub.f32 0.0, %v8461
        %v10190 = vsub.f32 0.0, %v8462
        %v10191 = vsub.f32 0.0, %v8463
        %v10192 = vsub.f32 0.0, %v8464
        %v10193 = vsub.f32 0.0, %v8465
        %v10194 = vsub.f32 0.0, %v8466
        %v10195 = vsub.f32 0.0, %v8467
        %v10196 = vsub.f32 0.0, %v8468
        %v10197 = vsub.f32 0.0, %v8469
        %v10198 = vsub.f32 0.0, %v8470
        %v10199 = vsub.f32 0.0, %v8471
        %v10200 = vsub.f32 0.0, %v8472
        %v10201 = vsub.f32 0.0, %v8473
        %v10202 = vsub.f32 0.0, %v8474
        %v10203 = vsub.f32 0.0, %v8475
        %v10204 = vsub.f32 0.0, %v8476
        %v10205 = vsub.f32 0.0, %v8477
        %v10206 = vsub.f32 0.0, %v8478
        %v10207 = vsub.f32 0.0, %v8479
        %v10208 = vsub.f32 0.0, %v8480
        %v10209 = vsub.f32 0.0, %v8481
        %v10210 = vsub.f32 0.0, %v8482
        %v10211 = vsub.f32 0.0, %v8483
        %v10212 = vsub.f32 0.0, %v8484
        %v10213 = vsub.f32 0.0, %v8485
        %v10214 = vsub.f32 0.0, %v8486
        %v10215 = vsub.f32 0.0, %v8487
        %v10216 = vsub.f32 0.0, %v8488
        %v10217 = vsub.f32 0.0, %v8489
        %v10218 = vsub.f32 0.0, %v8490
        %v10219 = vsub.f32 0.0, %v8491
        %v10220 = vsub.f32 0.0, %v8492
        %v10221 = vsub.f32 0.0, %v8493
        %v10222 = vsub.f32 0.0, %v8494
        %v10223 = vsub.f32 0.0, %v8495
        %v10224 = vsub.f32 0.0, %v8496
        %v10225 = vsub.f32 0.0, %v8497
        %v10226 = vsub.f32 0.0, %v8498
        %v10227 = vsub.f32 0.0, %v8499
        %v10228 = vsub.f32 0.0, %v8500
        %v10229 = vsub.f32 0.0, %v8501
        %v10230 = vsub.f32 0.0, %v8502
        %v10231 = vsub.f32 0.0, %v8503
        %v10232 = vsub.f32 0.0, %v8504
        %v10233 = vsub.f32 0.0, %v8505
        %v10234 = vsub.f32 0.0, %v8506
        %v10235 = vmul.f32 %v10171, %v8443
        %v10236 = vmul.f32 %v10172, %v8444
        %v10237 = vmul.f32 %v10173, %v8445
        %v10238 = vmul.f32 %v10174, %v8446
        %v10239 = vmul.f32 %v10175, %v8447
        %v10240 = vmul.f32 %v10176, %v8448
        %v10241 = vmul.f32 %v10177, %v8449
        %v10242 = vmul.f32 %v10178, %v8450
        %v10243 = vmul.f32 %v10179, %v8451
        %v10244 = vmul.f32 %v10180, %v8452
        %v10245 = vmul.f32 %v10181, %v8453
        %v10246 = vmul.f32 %v10182, %v8454
        %v10247 = vmul.f32 %v10183, %v8455
        %v10248 = vmul.f32 %v10184, %v8456
        %v10249 = vmul.f32 %v10185, %v8457
        %v10250 = vmul.f32 %v10186, %v8458
        %v10251 = vmul.f32 %v10187, %v8459
        %v10252 = vmul.f32 %v10188, %v8460
        %v10253 = vmul.f32 %v10189, %v8461
        %v10254 = vmul.f32 %v10190, %v8462
        %v10255 = vmul.f32 %v10191, %v8463
        %v10256 = vmul.f32 %v10192, %v8464
        %v10257 = vmul.f32 %v10193, %v8465
        %v10258 = vmul.f32 %v10194, %v8466
        %v10259 = vmul.f32 %v10195, %v8467
        %v10260 = vmul.f32 %v10196, %v8468
        %v10261 = vmul.f32 %v10197, %v8469
        %v10262 = vmul.f32 %v10198, %v8470
        %v10263 = vmul.f32 %v10199, %v8471
        %v10264 = vmul.f32 %v10200, %v8472
        %v10265 = vmul.f32 %v10201, %v8473
        %v10266 = vmul.f32 %v10202, %v8474
        %v10267 = vmul.f32 %v10203, %v8475
        %v10268 = vmul.f32 %v10204, %v8476
        %v10269 = vmul.f32 %v10205, %v8477
        %v10270 = vmul.f32 %v10206, %v8478
        %v10271 = vmul.f32 %v10207, %v8479
        %v10272 = vmul.f32 %v10208, %v8480
        %v10273 = vmul.f32 %v10209, %v8481
        %v10274 = vmul.f32 %v10210, %v8482
        %v10275 = vmul.f32 %v10211, %v8483
        %v10276 = vmul.f32 %v10212, %v8484
        %v10277 = vmul.f32 %v10213, %v8485
        %v10278 = vmul.f32 %v10214, %v8486
        %v10279 = vmul.f32 %v10215, %v8487
        %v10280 = vmul.f32 %v10216, %v8488
        %v10281 = vmul.f32 %v10217, %v8489
        %v10282 = vmul.f32 %v10218, %v8490
        %v10283 = vmul.f32 %v10219, %v8491
        %v10284 = vmul.f32 %v10220, %v8492
        %v10285 = vmul.f32 %v10221, %v8493
        %v10286 = vmul.f32 %v10222, %v8494
        %v10287 = vmul.f32 %v10223, %v8495
        %v10288 = vmul.f32 %v10224, %v8496
        %v10289 = vmul.f32 %v10225, %v8497
        %v10290 = vmul.f32 %v10226, %v8498
        %v10291 = vmul.f32 %v10227, %v8499
        %v10292 = vmul.f32 %v10228, %v8500
        %v10293 = vmul.f32 %v10229, %v8501
        %v10294 = vmul.f32 %v10230, %v8502
        %v10295 = vmul.f32 %v10231, %v8503
        %v10296 = vmul.f32 %v10232, %v8504
        %v10297 = vmul.f32 %v10233, %v8505
        %v10298 = vmul.f32 %v10234, %v8506
        %v10299 = vmul.f32 %v10235, 1.442695
        %v10300 = vpow.pop %v10299
        %v10301 = vmul.f32 %v10236, 1.442695
        %v10302 = vpow.pop %v10301
        %v10303 = vmul.f32 %v10237, 1.442695
        %v10304 = vpow.pop %v10303
        %v10305 = vmul.f32 %v10238, 1.442695
        %v10306 = vpow.pop %v10305
        %v10307 = vmul.f32 %v10239, 1.442695
        %v10308 = vpow.pop %v10307
        %v10309 = vmul.f32 %v10240, 1.442695
        %v10310 = vpow.pop %v10309
        %v10311 = vmul.f32 %v10241, 1.442695
        %v10312 = vpow.pop %v10311
        %v10313 = vmul.f32 %v10242, 1.442695
        %v10314 = vpow.pop %v10313
        %v10315 = vmul.f32 %v10243, 1.442695
        %v10316 = vpow.pop %v10315
        %v10317 = vmul.f32 %v10244, 1.442695
        %v10318 = vpow.pop %v10317
        %v10319 = vmul.f32 %v10245, 1.442695
        %v10320 = vpow.pop %v10319
        %v10321 = vmul.f32 %v10246, 1.442695
        %v10322 = vpow.pop %v10321
        %v10323 = vmul.f32 %v10247, 1.442695
        %v10324 = vpow.pop %v10323
        %v10325 = vmul.f32 %v10248, 1.442695
        %v10326 = vpow.pop %v10325
        %v10327 = vmul.f32 %v10249, 1.442695
        %v10328 = vpow.pop %v10327
        %v10329 = vmul.f32 %v10250, 1.442695
        %v10330 = vpow.pop %v10329
        %v10331 = vmul.f32 %v10251, 1.442695
        %v10332 = vpow.pop %v10331
        %v10333 = vmul.f32 %v10252, 1.442695
        %v10334 = vpow.pop %v10333
        %v10335 = vmul.f32 %v10253, 1.442695
        %v10336 = vpow.pop %v10335
        %v10337 = vmul.f32 %v10254, 1.442695
        %v10338 = vpow.pop %v10337
        %v10339 = vmul.f32 %v10255, 1.442695
        %v10340 = vpow.pop %v10339
        %v10341 = vmul.f32 %v10256, 1.442695
        %v10342 = vpow.pop %v10341
        %v10343 = vmul.f32 %v10257, 1.442695
        %v10344 = vpow.pop %v10343
        %v10345 = vmul.f32 %v10258, 1.442695
        %v10346 = vpow.pop %v10345
        %v10347 = vmul.f32 %v10259, 1.442695
        %v10348 = vpow.pop %v10347
        %v10349 = vmul.f32 %v10260, 1.442695
        %v10350 = vpow.pop %v10349
        %v10351 = vmul.f32 %v10261, 1.442695
        %v10352 = vpow.pop %v10351
        %v10353 = vmul.f32 %v10262, 1.442695
        %v10354 = vpow.pop %v10353
        %v10355 = vmul.f32 %v10263, 1.442695
        %v10356 = vpow.pop %v10355
        %v10357 = vmul.f32 %v10264, 1.442695
        %v10358 = vpow.pop %v10357
        %v10359 = vmul.f32 %v10265, 1.442695
        %v10360 = vpow.pop %v10359
        %v10361 = vmul.f32 %v10266, 1.442695
        %v10362 = vpow.pop %v10361
        %v10363 = vmul.f32 %v10267, 1.442695
        %v10364 = vpow.pop %v10363
        %v10365 = vmul.f32 %v10268, 1.442695
        %v10366 = vpow.pop %v10365
        %v10367 = vmul.f32 %v10269, 1.442695
        %v10368 = vpow.pop %v10367
        %v10369 = vmul.f32 %v10270, 1.442695
        %v10370 = vpow.pop %v10369
        %v10371 = vmul.f32 %v10271, 1.442695
        %v10372 = vpow.pop %v10371
        %v10373 = vmul.f32 %v10272, 1.442695
        %v10374 = vpow.pop %v10373
        %v10375 = vmul.f32 %v10273, 1.442695
        %v10376 = vpow.pop %v10375
        %v10377 = vmul.f32 %v10274, 1.442695
        %v10378 = vpow.pop %v10377
        %v10379 = vmul.f32 %v10275, 1.442695
        %v10380 = vpow.pop %v10379
        %v10381 = vmul.f32 %v10276, 1.442695
        %v10382 = vpow.pop %v10381
        %v10383 = vmul.f32 %v10277, 1.442695
        %v10384 = vpow.pop %v10383
        %v10385 = vmul.f32 %v10278, 1.442695
        %v10386 = vpow.pop %v10385
        %v10387 = vmul.f32 %v10279, 1.442695
        %v10388 = vpow.pop %v10387
        %v10389 = vmul.f32 %v10280, 1.442695
        %v10390 = vpow.pop %v10389
        %v10391 = vmul.f32 %v10281, 1.442695
        %v10392 = vpow.pop %v10391
        %v10393 = vmul.f32 %v10282, 1.442695
        %v10394 = vpow.pop %v10393
        %v10395 = vmul.f32 %v10283, 1.442695
        %v10396 = vpow.pop %v10395
        %v10397 = vmul.f32 %v10284, 1.442695
        %v10398 = vpow.pop %v10397
        %v10399 = vmul.f32 %v10285, 1.442695
        %v10400 = vpow.pop %v10399
        %v10401 = vmul.f32 %v10286, 1.442695
        %v10402 = vpow.pop %v10401
        %v10403 = vmul.f32 %v10287, 1.442695
        %v10404 = vpow.pop %v10403
        %v10405 = vmul.f32 %v10288, 1.442695
        %v10406 = vpow.pop %v10405
        %v10407 = vmul.f32 %v10289, 1.442695
        %v10408 = vpow.pop %v10407
        %v10409 = vmul.f32 %v10290, 1.442695
        %v10410 = vpow.pop %v10409
        %v10411 = vmul.f32 %v10291, 1.442695
        %v10412 = vpow.pop %v10411
        %v10413 = vmul.f32 %v10292, 1.442695
        %v10414 = vpow.pop %v10413
        %v10415 = vmul.f32 %v10293, 1.442695
        %v10416 = vpow.pop %v10415
        %v10417 = vmul.f32 %v10294, 1.442695
        %v10418 = vpow.pop %v10417
        %v10419 = vmul.f32 %v10295, 1.442695
        %v10420 = vpow.pop %v10419
        %v10421 = vmul.f32 %v10296, 1.442695
        %v10422 = vpow.pop %v10421
        %v10423 = vmul.f32 %v10297, 1.442695
        %v10424 = vpow.pop %v10423
        %v10425 = vmul.f32 %v10298, 1.442695
        %v10426 = vpow.pop %v10425
        %v10427 = vmul.f32 %v10107, %v10300
        %v10428 = vmul.f32 %v10108, %v10302
        %v10429 = vmul.f32 %v10109, %v10304
        %v10430 = vmul.f32 %v10110, %v10306
        %v10431 = vmul.f32 %v10111, %v10308
        %v10432 = vmul.f32 %v10112, %v10310
        %v10433 = vmul.f32 %v10113, %v10312
        %v10434 = vmul.f32 %v10114, %v10314
        %v10435 = vmul.f32 %v10115, %v10316
        %v10436 = vmul.f32 %v10116, %v10318
        %v10437 = vmul.f32 %v10117, %v10320
        %v10438 = vmul.f32 %v10118, %v10322
        %v10439 = vmul.f32 %v10119, %v10324
        %v10440 = vmul.f32 %v10120, %v10326
        %v10441 = vmul.f32 %v10121, %v10328
        %v10442 = vmul.f32 %v10122, %v10330
        %v10443 = vmul.f32 %v10123, %v10332
        %v10444 = vmul.f32 %v10124, %v10334
        %v10445 = vmul.f32 %v10125, %v10336
        %v10446 = vmul.f32 %v10126, %v10338
        %v10447 = vmul.f32 %v10127, %v10340
        %v10448 = vmul.f32 %v10128, %v10342
        %v10449 = vmul.f32 %v10129, %v10344
        %v10450 = vmul.f32 %v10130, %v10346
        %v10451 = vmul.f32 %v10131, %v10348
        %v10452 = vmul.f32 %v10132, %v10350
        %v10453 = vmul.f32 %v10133, %v10352
        %v10454 = vmul.f32 %v10134, %v10354
        %v10455 = vmul.f32 %v10135, %v10356
        %v10456 = vmul.f32 %v10136, %v10358
        %v10457 = vmul.f32 %v10137, %v10360
        %v10458 = vmul.f32 %v10138, %v10362
        %v10459 = vmul.f32 %v10139, %v10364
        %v10460 = vmul.f32 %v10140, %v10366
        %v10461 = vmul.f32 %v10141, %v10368
        %v10462 = vmul.f32 %v10142, %v10370
        %v10463 = vmul.f32 %v10143, %v10372
        %v10464 = vmul.f32 %v10144, %v10374
        %v10465 = vmul.f32 %v10145, %v10376
        %v10466 = vmul.f32 %v10146, %v10378
        %v10467 = vmul.f32 %v10147, %v10380
        %v10468 = vmul.f32 %v10148, %v10382
        %v10469 = vmul.f32 %v10149, %v10384
        %v10470 = vmul.f32 %v10150, %v10386
        %v10471 = vmul.f32 %v10151, %v10388
        %v10472 = vmul.f32 %v10152, %v10390
        %v10473 = vmul.f32 %v10153, %v10392
        %v10474 = vmul.f32 %v10154, %v10394
        %v10475 = vmul.f32 %v10155, %v10396
        %v10476 = vmul.f32 %v10156, %v10398
        %v10477 = vmul.f32 %v10157, %v10400
        %v10478 = vmul.f32 %v10158, %v10402
        %v10479 = vmul.f32 %v10159, %v10404
        %v10480 = vmul.f32 %v10160, %v10406
        %v10481 = vmul.f32 %v10161, %v10408
        %v10482 = vmul.f32 %v10162, %v10410
        %v10483 = vmul.f32 %v10163, %v10412
        %v10484 = vmul.f32 %v10164, %v10414
        %v10485 = vmul.f32 %v10165, %v10416
        %v10486 = vmul.f32 %v10166, %v10418
        %v10487 = vmul.f32 %v10167, %v10420
        %v10488 = vmul.f32 %v10168, %v10422
        %v10489 = vmul.f32 %v10169, %v10424
        %v10490 = vmul.f32 %v10170, %v10426
        %v10491 = vsub.f32 1.0, %v10427
        %v10492 = vsub.f32 1.0, %v10428
        %v10493 = vsub.f32 1.0, %v10429
        %v10494 = vsub.f32 1.0, %v10430
        %v10495 = vsub.f32 1.0, %v10431
        %v10496 = vsub.f32 1.0, %v10432
        %v10497 = vsub.f32 1.0, %v10433
        %v10498 = vsub.f32 1.0, %v10434
        %v10499 = vsub.f32 1.0, %v10435
        %v10500 = vsub.f32 1.0, %v10436
        %v10501 = vsub.f32 1.0, %v10437
        %v10502 = vsub.f32 1.0, %v10438
        %v10503 = vsub.f32 1.0, %v10439
        %v10504 = vsub.f32 1.0, %v10440
        %v10505 = vsub.f32 1.0, %v10441
        %v10506 = vsub.f32 1.0, %v10442
        %v10507 = vsub.f32 1.0, %v10443
        %v10508 = vsub.f32 1.0, %v10444
        %v10509 = vsub.f32 1.0, %v10445
        %v10510 = vsub.f32 1.0, %v10446
        %v10511 = vsub.f32 1.0, %v10447
        %v10512 = vsub.f32 1.0, %v10448
        %v10513 = vsub.f32 1.0, %v10449
        %v10514 = vsub.f32 1.0, %v10450
        %v10515 = vsub.f32 1.0, %v10451
        %v10516 = vsub.f32 1.0, %v10452
        %v10517 = vsub.f32 1.0, %v10453
        %v10518 = vsub.f32 1.0, %v10454
        %v10519 = vsub.f32 1.0, %v10455
        %v10520 = vsub.f32 1.0, %v10456
        %v10521 = vsub.f32 1.0, %v10457
        %v10522 = vsub.f32 1.0, %v10458
        %v10523 = vsub.f32 1.0, %v10459
        %v10524 = vsub.f32 1.0, %v10460
        %v10525 = vsub.f32 1.0, %v10461
        %v10526 = vsub.f32 1.0, %v10462
        %v10527 = vsub.f32 1.0, %v10463
        %v10528 = vsub.f32 1.0, %v10464
        %v10529 = vsub.f32 1.0, %v10465
        %v10530 = vsub.f32 1.0, %v10466
        %v10531 = vsub.f32 1.0, %v10467
        %v10532 = vsub.f32 1.0, %v10468
        %v10533 = vsub.f32 1.0, %v10469
        %v10534 = vsub.f32 1.0, %v10470
        %v10535 = vsub.f32 1.0, %v10471
        %v10536 = vsub.f32 1.0, %v10472
        %v10537 = vsub.f32 1.0, %v10473
        %v10538 = vsub.f32 1.0, %v10474
        %v10539 = vsub.f32 1.0, %v10475
        %v10540 = vsub.f32 1.0, %v10476
        %v10541 = vsub.f32 1.0, %v10477
        %v10542 = vsub.f32 1.0, %v10478
        %v10543 = vsub.f32 1.0, %v10479
        %v10544 = vsub.f32 1.0, %v10480
        %v10545 = vsub.f32 1.0, %v10481
        %v10546 = vsub.f32 1.0, %v10482
        %v10547 = vsub.f32 1.0, %v10483
        %v10548 = vsub.f32 1.0, %v10484
        %v10549 = vsub.f32 1.0, %v10485
        %v10550 = vsub.f32 1.0, %v10486
        %v10551 = vsub.f32 1.0, %v10487
        %v10552 = vsub.f32 1.0, %v10488
        %v10553 = vsub.f32 1.0, %v10489
        %v10554 = vsub.f32 1.0, %v10490
        %v10555 = vmul.f32 %v8379, %v10491
        %v10556 = vmul.f32 %v8380, %v10492
        %v10557 = vmul.f32 %v8381, %v10493
        %v10558 = vmul.f32 %v8382, %v10494
        %v10559 = vmul.f32 %v8383, %v10495
        %v10560 = vmul.f32 %v8384, %v10496
        %v10561 = vmul.f32 %v8385, %v10497
        %v10562 = vmul.f32 %v8386, %v10498
        %v10563 = vmul.f32 %v8387, %v10499
        %v10564 = vmul.f32 %v8388, %v10500
        %v10565 = vmul.f32 %v8389, %v10501
        %v10566 = vmul.f32 %v8390, %v10502
        %v10567 = vmul.f32 %v8391, %v10503
        %v10568 = vmul.f32 %v8392, %v10504
        %v10569 = vmul.f32 %v8393, %v10505
        %v10570 = vmul.f32 %v8394, %v10506
        %v10571 = vmul.f32 %v8395, %v10507
        %v10572 = vmul.f32 %v8396, %v10508
        %v10573 = vmul.f32 %v8397, %v10509
        %v10574 = vmul.f32 %v8398, %v10510
        %v10575 = vmul.f32 %v8399, %v10511
        %v10576 = vmul.f32 %v8400, %v10512
        %v10577 = vmul.f32 %v8401, %v10513
        %v10578 = vmul.f32 %v8402, %v10514
        %v10579 = vmul.f32 %v8403, %v10515
        %v10580 = vmul.f32 %v8404, %v10516
        %v10581 = vmul.f32 %v8405, %v10517
        %v10582 = vmul.f32 %v8406, %v10518
        %v10583 = vmul.f32 %v8407, %v10519
        %v10584 = vmul.f32 %v8408, %v10520
        %v10585 = vmul.f32 %v8409, %v10521
        %v10586 = vmul.f32 %v8410, %v10522
        %v10587 = vmul.f32 %v8411, %v10523
        %v10588 = vmul.f32 %v8412, %v10524
        %v10589 = vmul.f32 %v8413, %v10525
        %v10590 = vmul.f32 %v8414, %v10526
        %v10591 = vmul.f32 %v8415, %v10527
        %v10592 = vmul.f32 %v8416, %v10528
        %v10593 = vmul.f32 %v8417, %v10529
        %v10594 = vmul.f32 %v8418, %v10530
        %v10595 = vmul.f32 %v8419, %v10531
        %v10596 = vmul.f32 %v8420, %v10532
        %v10597 = vmul.f32 %v8421, %v10533
        %v10598 = vmul.f32 %v8422, %v10534
        %v10599 = vmul.f32 %v8423, %v10535
        %v10600 = vmul.f32 %v8424, %v10536
        %v10601 = vmul.f32 %v8425, %v10537
        %v10602 = vmul.f32 %v8426, %v10538
        %v10603 = vmul.f32 %v8427, %v10539
        %v10604 = vmul.f32 %v8428, %v10540
        %v10605 = vmul.f32 %v8429, %v10541
        %v10606 = vmul.f32 %v8430, %v10542
        %v10607 = vmul.f32 %v8431, %v10543
        %v10608 = vmul.f32 %v8432, %v10544
        %v10609 = vmul.f32 %v8433, %v10545
        %v10610 = vmul.f32 %v8434, %v10546
        %v10611 = vmul.f32 %v8435, %v10547
        %v10612 = vmul.f32 %v8436, %v10548
        %v10613 = vmul.f32 %v8437, %v10549
        %v10614 = vmul.f32 %v8438, %v10550
        %v10615 = vmul.f32 %v8439, %v10551
        %v10616 = vmul.f32 %v8440, %v10552
        %v10617 = vmul.f32 %v8441, %v10553
        %v10618 = vmul.f32 %v8442, %v10554
        %v10619 = vadd.f32 %v10555, 1.0
        %v10620 = vadd.f32 %v10556, 1.0
        %v10621 = vadd.f32 %v10557, 1.0
        %v10622 = vadd.f32 %v10558, 1.0
        %v10623 = vadd.f32 %v10559, 1.0
        %v10624 = vadd.f32 %v10560, 1.0
        %v10625 = vadd.f32 %v10561, 1.0
        %v10626 = vadd.f32 %v10562, 1.0
        %v10627 = vadd.f32 %v10563, 1.0
        %v10628 = vadd.f32 %v10564, 1.0
        %v10629 = vadd.f32 %v10565, 1.0
        %v10630 = vadd.f32 %v10566, 1.0
        %v10631 = vadd.f32 %v10567, 1.0
        %v10632 = vadd.f32 %v10568, 1.0
        %v10633 = vadd.f32 %v10569, 1.0
        %v10634 = vadd.f32 %v10570, 1.0
        %v10635 = vadd.f32 %v10571, 1.0
        %v10636 = vadd.f32 %v10572, 1.0
        %v10637 = vadd.f32 %v10573, 1.0
        %v10638 = vadd.f32 %v10574, 1.0
        %v10639 = vadd.f32 %v10575, 1.0
        %v10640 = vadd.f32 %v10576, 1.0
        %v10641 = vadd.f32 %v10577, 1.0
        %v10642 = vadd.f32 %v10578, 1.0
        %v10643 = vadd.f32 %v10579, 1.0
        %v10644 = vadd.f32 %v10580, 1.0
        %v10645 = vadd.f32 %v10581, 1.0
        %v10646 = vadd.f32 %v10582, 1.0
        %v10647 = vadd.f32 %v10583, 1.0
        %v10648 = vadd.f32 %v10584, 1.0
        %v10649 = vadd.f32 %v10585, 1.0
        %v10650 = vadd.f32 %v10586, 1.0
        %v10651 = vadd.f32 %v10587, 1.0
        %v10652 = vadd.f32 %v10588, 1.0
        %v10653 = vadd.f32 %v10589, 1.0
        %v10654 = vadd.f32 %v10590, 1.0
        %v10655 = vadd.f32 %v10591, 1.0
        %v10656 = vadd.f32 %v10592, 1.0
        %v10657 = vadd.f32 %v10593, 1.0
        %v10658 = vadd.f32 %v10594, 1.0
        %v10659 = vadd.f32 %v10595, 1.0
        %v10660 = vadd.f32 %v10596, 1.0
        %v10661 = vadd.f32 %v10597, 1.0
        %v10662 = vadd.f32 %v10598, 1.0
        %v10663 = vadd.f32 %v10599, 1.0
        %v10664 = vadd.f32 %v10600, 1.0
        %v10665 = vadd.f32 %v10601, 1.0
        %v10666 = vadd.f32 %v10602, 1.0
        %v10667 = vadd.f32 %v10603, 1.0
        %v10668 = vadd.f32 %v10604, 1.0
        %v10669 = vadd.f32 %v10605, 1.0
        %v10670 = vadd.f32 %v10606, 1.0
        %v10671 = vadd.f32 %v10607, 1.0
        %v10672 = vadd.f32 %v10608, 1.0
        %v10673 = vadd.f32 %v10609, 1.0
        %v10674 = vadd.f32 %v10610, 1.0
        %v10675 = vadd.f32 %v10611, 1.0
        %v10676 = vadd.f32 %v10612, 1.0
        %v10677 = vadd.f32 %v10613, 1.0
        %v10678 = vadd.f32 %v10614, 1.0
        %v10679 = vadd.f32 %v10615, 1.0
        %v10680 = vadd.f32 %v10616, 1.0
        %v10681 = vadd.f32 %v10617, 1.0
        %v10682 = vadd.f32 %v10618, 1.0
        %v10683 = vmul.f32 %v8187, %v10619
        %v10684 = vmul.f32 %v8188, %v10620
        %v10685 = vmul.f32 %v8189, %v10621
        %v10686 = vmul.f32 %v8190, %v10622
        %v10687 = vmul.f32 %v8191, %v10623
        %v10688 = vmul.f32 %v8192, %v10624
        %v10689 = vmul.f32 %v8193, %v10625
        %v10690 = vmul.f32 %v8194, %v10626
        %v10691 = vmul.f32 %v8195, %v10627
        %v10692 = vmul.f32 %v8196, %v10628
        %v10693 = vmul.f32 %v8197, %v10629
        %v10694 = vmul.f32 %v8198, %v10630
        %v10695 = vmul.f32 %v8199, %v10631
        %v10696 = vmul.f32 %v8200, %v10632
        %v10697 = vmul.f32 %v8201, %v10633
        %v10698 = vmul.f32 %v8202, %v10634
        %v10699 = vmul.f32 %v8203, %v10635
        %v10700 = vmul.f32 %v8204, %v10636
        %v10701 = vmul.f32 %v8205, %v10637
        %v10702 = vmul.f32 %v8206, %v10638
        %v10703 = vmul.f32 %v8207, %v10639
        %v10704 = vmul.f32 %v8208, %v10640
        %v10705 = vmul.f32 %v8209, %v10641
        %v10706 = vmul.f32 %v8210, %v10642
        %v10707 = vmul.f32 %v8211, %v10643
        %v10708 = vmul.f32 %v8212, %v10644
        %v10709 = vmul.f32 %v8213, %v10645
        %v10710 = vmul.f32 %v8214, %v10646
        %v10711 = vmul.f32 %v8215, %v10647
        %v10712 = vmul.f32 %v8216, %v10648
        %v10713 = vmul.f32 %v8217, %v10649
        %v10714 = vmul.f32 %v8218, %v10650
        %v10715 = vmul.f32 %v8219, %v10651
        %v10716 = vmul.f32 %v8220, %v10652
        %v10717 = vmul.f32 %v8221, %v10653
        %v10718 = vmul.f32 %v8222, %v10654
        %v10719 = vmul.f32 %v8223, %v10655
        %v10720 = vmul.f32 %v8224, %v10656
        %v10721 = vmul.f32 %v8225, %v10657
        %v10722 = vmul.f32 %v8226, %v10658
        %v10723 = vmul.f32 %v8227, %v10659
        %v10724 = vmul.f32 %v8228, %v10660
        %v10725 = vmul.f32 %v8229, %v10661
        %v10726 = vmul.f32 %v8230, %v10662
        %v10727 = vmul.f32 %v8231, %v10663
        %v10728 = vmul.f32 %v8232, %v10664
        %v10729 = vmul.f32 %v8233, %v10665
        %v10730 = vmul.f32 %v8234, %v10666
        %v10731 = vmul.f32 %v8235, %v10667
        %v10732 = vmul.f32 %v8236, %v10668
        %v10733 = vmul.f32 %v8237, %v10669
        %v10734 = vmul.f32 %v8238, %v10670
        %v10735 = vmul.f32 %v8239, %v10671
        %v10736 = vmul.f32 %v8240, %v10672
        %v10737 = vmul.f32 %v8241, %v10673
        %v10738 = vmul.f32 %v8242, %v10674
        %v10739 = vmul.f32 %v8243, %v10675
        %v10740 = vmul.f32 %v8244, %v10676
        %v10741 = vmul.f32 %v8245, %v10677
        %v10742 = vmul.f32 %v8246, %v10678
        %v10743 = vmul.f32 %v8247, %v10679
        %v10744 = vmul.f32 %v8248, %v10680
        %v10745 = vmul.f32 %v8249, %v10681
        %v10746 = vmul.f32 %v8250, %v10682
        %10747 = vst.msk [vmem:[%s321] sm:$0xff] %vm2282, %v10683
        %10748 = vst.msk [vmem:[%s321 + $0x8] sm:$0xff] %vm2282, %v10684
        %10749 = vst.msk [vmem:[%s321 + $0x10] sm:$0xff] %vm2282, %v10685
        %10750 = vst.msk [vmem:[%s321 + $0x18] sm:$0xff] %vm2282, %v10686
        %10751 = vst.msk [vmem:[%s321 + $0x20] sm:$0xff] %vm2282, %v10687
        %10752 = vst.msk [vmem:[%s321 + $0x28] sm:$0xff] %vm2282, %v10688
        %10753 = vst.msk [vmem:[%s321 + $0x30] sm:$0xff] %vm2282, %v10689
        %10754 = vst.msk [vmem:[%s321 + $0x38] sm:$0xff] %vm2282, %v10690
        %10755 = vst.msk [vmem:[%s321 + $0x40] sm:$0xff] %vm2282, %v10691
        %10756 = vst.msk [vmem:[%s321 + $0x48] sm:$0xff] %vm2282, %v10692
        %10757 = vst.msk [vmem:[%s321 + $0x50] sm:$0xff] %vm2282, %v10693
        %10758 = vst.msk [vmem:[%s321 + $0x58] sm:$0xff] %vm2282, %v10694
        %10759 = vst.msk [vmem:[%s321 + $0x60] sm:$0xff] %vm2282, %v10695
        %10760 = vst.msk [vmem:[%s321 + $0x68] sm:$0xff] %vm2282, %v10696
        %10761 = vst.msk [vmem:[%s321 + $0x70] sm:$0xff] %vm2282, %v10697
        %10762 = vst.msk [vmem:[%s321 + $0x78] sm:$0xff] %vm2282, %v10698
        %10763 = vst.msk [vmem:[%s321 + $0x80] sm:$0xff] %vm2282, %v10699
        %10764 = vst.msk [vmem:[%s321 + $0x88] sm:$0xff] %vm2282, %v10700
        %10765 = vst.msk [vmem:[%s321 + $0x90] sm:$0xff] %vm2282, %v10701
        %10766 = vst.msk [vmem:[%s321 + $0x98] sm:$0xff] %vm2282, %v10702
        %10767 = vst.msk [vmem:[%s321 + $0xa0] sm:$0xff] %vm2282, %v10703
        %10768 = vst.msk [vmem:[%s321 + $0xa8] sm:$0xff] %vm2282, %v10704
        %10769 = vst.msk [vmem:[%s321 + $0xb0] sm:$0xff] %vm2282, %v10705
        %10770 = vst.msk [vmem:[%s321 + $0xb8] sm:$0xff] %vm2282, %v10706
        %10771 = vst.msk [vmem:[%s321 + $0xc0] sm:$0xff] %vm2282, %v10707
        %10772 = vst.msk [vmem:[%s321 + $0xc8] sm:$0xff] %vm2282, %v10708
        %10773 = vst.msk [vmem:[%s321 + $0xd0] sm:$0xff] %vm2282, %v10709
        %10774 = vst.msk [vmem:[%s321 + $0xd8] sm:$0xff] %vm2282, %v10710
        %10775 = vst.msk [vmem:[%s321 + $0xe0] sm:$0xff] %vm2282, %v10711
        %10776 = vst.msk [vmem:[%s321 + $0xe8] sm:$0xff] %vm2282, %v10712
        %10777 = vst.msk [vmem:[%s321 + $0xf0] sm:$0xff] %vm2282, %v10713
        %10778 = vst.msk [vmem:[%s321 + $0xf8] sm:$0xff] %vm2282, %v10714
        %10779 = vst.msk [vmem:[%s321 + $0x100] sm:$0xff] %vm2282, %v10715
        %10780 = vst.msk [vmem:[%s321 + $0x108] sm:$0xff] %vm2282, %v10716
        %10781 = vst.msk [vmem:[%s321 + $0x110] sm:$0xff] %vm2282, %v10717
        %10782 = vst.msk [vmem:[%s321 + $0x118] sm:$0xff] %vm2282, %v10718
        %10783 = vst.msk [vmem:[%s321 + $0x120] sm:$0xff] %vm2282, %v10719
        %10784 = vst.msk [vmem:[%s321 + $0x128] sm:$0xff] %vm2282, %v10720
        %10785 = vst.msk [vmem:[%s321 + $0x130] sm:$0xff] %vm2282, %v10721
        %10786 = vst.msk [vmem:[%s321 + $0x138] sm:$0xff] %vm2282, %v10722
        %10787 = vst.msk [vmem:[%s321 + $0x140] sm:$0xff] %vm2282, %v10723
        %10788 = vst.msk [vmem:[%s321 + $0x148] sm:$0xff] %vm2282, %v10724
        %10789 = vst.msk [vmem:[%s321 + $0x150] sm:$0xff] %vm2282, %v10725
        %10790 = vst.msk [vmem:[%s321 + $0x158] sm:$0xff] %vm2282, %v10726
        %10791 = vst.msk [vmem:[%s321 + $0x160] sm:$0xff] %vm2282, %v10727
        %10792 = vst.msk [vmem:[%s321 + $0x168] sm:$0xff] %vm2282, %v10728
        %10793 = vst.msk [vmem:[%s321 + $0x170] sm:$0xff] %vm2282, %v10729
        %10794 = vst.msk [vmem:[%s321 + $0x178] sm:$0xff] %vm2282, %v10730
        %10795 = vst.msk [vmem:[%s321 + $0x180] sm:$0xff] %vm2282, %v10731
        %10796 = vst.msk [vmem:[%s321 + $0x188] sm:$0xff] %vm2282, %v10732
        %10797 = vst.msk [vmem:[%s321 + $0x190] sm:$0xff] %vm2282, %v10733
        %10798 = vst.msk [vmem:[%s321 + $0x198] sm:$0xff] %vm2282, %v10734
        %10799 = vst.msk [vmem:[%s321 + $0x1a0] sm:$0xff] %vm2282, %v10735
        %10800 = vst.msk [vmem:[%s321 + $0x1a8] sm:$0xff] %vm2282, %v10736
        %10801 = vst.msk [vmem:[%s321 + $0x1b0] sm:$0xff] %vm2282, %v10737
        %10802 = vst.msk [vmem:[%s321 + $0x1b8] sm:$0xff] %vm2282, %v10738
        %10803 = vst.msk [vmem:[%s321 + $0x1c0] sm:$0xff] %vm2282, %v10739
        %10804 = vst.msk [vmem:[%s321 + $0x1c8] sm:$0xff] %vm2282, %v10740
        %10805 = vst.msk [vmem:[%s321 + $0x1d0] sm:$0xff] %vm2282, %v10741
        %10806 = vst.msk [vmem:[%s321 + $0x1d8] sm:$0xff] %vm2282, %v10742
        %10807 = vst.msk [vmem:[%s321 + $0x1e0] sm:$0xff] %vm2282, %v10743
        %10808 = vst.msk [vmem:[%s321 + $0x1e8] sm:$0xff] %vm2282, %v10744
        %10809 = vst.msk [vmem:[%s321 + $0x1f0] sm:$0xff] %vm2282, %v10745
        %10810 = vst.msk [vmem:[%s321 + $0x1f8] sm:$0xff] %vm2282, %v10746
        %s10811 = sand.u32 %s186, 1
        %s10812 = scalar_lea.sflag [#allocation3], %s10811
        %s10813 = sand.u32 %s186, 1
        %s10814 = smul.addr %s10813, 512
        %s10815 = scalar_lea.vmem [#allocation2], %s10814
        // Predicated region
        $region45: #{model_forward.1} parent=43 // pred_check
          %p10816 = pneg %p196
        $region46: #{model_forward.1} parent=43 // pred_check_branch
          %10818 = sbr.rel (%p10816) target = $region48
        $region47: #{model_forward.1} parent=43 // pred_region
          %s10819 = smul.u32 4, %s25
          %10821 = vsyncadd %s10812, 0
          %s10822 = smul.addr %s10819, 16
          %s10823 = smul.addr %s24, 64
          %s10824 = sadd.s32 %s10822, %s10823
          %s10825 = smul.addr %s10824, 8
          %s10826 = scalar_lea.hbm %s6, %s10825
          %s10827 = sshll.u32 %s10815, 4
          %s10828 = int_to_ptr.vmem [resolvable:$true] %s10827
          %s10829 = sshll.u32 %s10826, 4
          %s10830 = int_to_ptr.hbm [resolvable:$true] %s10829
          %10835 = dma.vmem_to_hbm [thread:$0]  %s10828, 8192, %s10830, %s10812, 128, 128, 8
        $region48: #{model_forward.1} parent=43 // pred_fallthru
          _
      $region44: #{model_forward.1} parent=5 // pred_fallthru
        _
      %p10836 = scmp.le.s32.totalorder 2, %s15
      // Predicated region
      $region49: #{model_forward.1} parent=5 // pred_check
        %p10837 = pneg %p10836
      $region50: #{model_forward.1} parent=5 // pred_check_branch
        %10839 = sbr.rel (%p10837) target = $region52
      $region51: #{model_forward.1} parent=5 // pred_region
        %s10840 = ssub.s32 %s15, 2
        // Predicated region
        $region53: #{model_forward.1} parent=51 // pred_check
          %p10841 = pneg %p202
        $region54: #{model_forward.1} parent=51 // pred_check_branch
          %10843 = sbr.rel (%p10841) target = $region56
        $region55: #{model_forward.1} parent=51 // pred_region
          %s10844 = sand.u32 %s187, 1
          %s10845 = scalar_lea.sflag [#allocation3], %s10844
          %s10846 = sand.u32 %s187, 1
          %s10847 = smul.addr %s10846, 512
          %s10848 = scalar_lea.vmem [#allocation2], %s10847
          %10850 = dma.done %s10845, 8192
        $region56: #{model_forward.1} parent=51 // pred_fallthru
          _
      $region52: #{model_forward.1} parent=5 // pred_fallthru
        _
    $region6: #{model_forward.1} parent=1 // loop_footer
      %s19 = sadd.s32 1, %s15
    $region7: #{model_forward.1} parent=1 // loop_footer_branch
      %14 = sbr.rel target = $region3
    $region8: #{model_forward.1} parent=1 // loop_exit
      _
    %10851 = vsyncpa [#allocation3], 1
    %s10852 = scalar_lea.sflag [#allocation3], 1
    %10853 = vsyncpa %s10852, 1

</llo_original>
